<compile_context>
chip_gen: v5e
topology: v5e:2x2
jax: 0.10.0
libtpu: 0.0.40
codegen_flags: <defaults>
</compile_context>

<pallas_src>
import jax
import jax.numpy as jnp
from jax.experimental import pallas as pl
from jax.experimental.pallas import tpu as pltpu


# ----------------------------- Pallas kernels ------------------------------

def _matmul_kernel(x_ref, w_ref, o_ref):
    # Pure matmul (no epilogue) -- used for the conv-transpose feature matmul.
    y = jnp.dot(x_ref[...].astype(jnp.bfloat16), w_ref[...],
                preferred_element_type=jnp.float32)
    o_ref[...] = y.astype(o_ref.dtype)


def _matmul_bias_kernel(x_ref, w_ref, sh_ref, o_ref):
    y = jnp.dot(x_ref[...].astype(jnp.bfloat16), w_ref[...],
                preferred_element_type=jnp.float32)
    o_ref[...] = (y + sh_ref[...]).astype(o_ref.dtype)


def _matmul_bias_prelu_kernel(x_ref, w_ref, sh_ref, al_ref, o_ref):
    y = jnp.dot(x_ref[...].astype(jnp.bfloat16), w_ref[...],
                preferred_element_type=jnp.float32)
    y = y + sh_ref[...]
    o_ref[...] = jnp.where(y >= 0.0, y, al_ref[...] * y).astype(o_ref.dtype)


def _make_conv3x3_kernel(h, w, add_residual):
    """Direct 3x3 conv (stride 1, pad 1): 9 shifted bf16 dots, f32 accumulate,
    folded-BN bias + PReLU epilogue, optional fused residual add."""
    def kernel(*refs):
        if add_residual:
            x_ref, w_ref, sh_ref, al_ref, r_ref, o_ref = refs
        else:
            x_ref, w_ref, sh_ref, al_ref, o_ref = refs
        cin = x_ref.shape[3]
        cout = o_ref.shape[3]
        xv = x_ref[...]                                    # (1, h+2, w+2, cin)
        acc = jnp.zeros((h * w, cout), jnp.float32)
        t = 0
        for ky in range(3):
            for kx in range(3):
                patch = xv[0, ky:ky + h, kx:kx + w, :].reshape(h * w, cin)
                acc = acc + jnp.dot(patch.astype(jnp.bfloat16), w_ref[t],
                                    preferred_element_type=jnp.float32)
                t += 1
        y = acc + sh_ref[...]
        y = jnp.where(y >= 0.0, y, al_ref[...] * y)
        y = y.reshape(1, h, w, cout)
        if add_residual:
            y = y + r_ref[...]
        o_ref[...] = y.astype(o_ref.dtype)
    return kernel


def _combine_kernel(a_ref, b_ref, r_ref, bias_ref, o_ref):
    # out = upscale + first_up + res(broadcast C) + conv_transpose_bias
    o_ref[...] = a_ref[...] + b_ref[...] + r_ref[...] + bias_ref[...]


# ------------------------------ wrappers ------------------------------------

def _pick_tile(m, cap):
    """Largest power-of-two tile <= cap dividing m (keeps grid >= 2 steps for
    the sizes used here, so both v7x TensorCores get work)."""
    t = cap
    while t > 1 and (t > m or m % t != 0):
        t //= 2
    return max(t, 1)


def fused_matmul(x, w_bf16, shift=None, alpha=None, *, tm_cap=256):
    """x: (M, K) f32, w: (K, N) bf16 (BN scale pre-folded).  Optional bias /
    PReLU epilogue.  x is cast to bf16 in-kernel; accumulation is f32."""
    m, k = x.shape
    n = w_bf16.shape[1]
    tm = _pick_tile(m, tm_cap)
    cost = pl.CostEstimate(flops=2 * m * k * n, transcendentals=0,
                           bytes_accessed=m * k * 4 + k * n * 2 + m * n * 4)
    x_spec = pl.BlockSpec((tm, k), lambda i: (i, 0))
    w_spec = pl.BlockSpec((k, n), lambda i: (0, 0))
    v_spec = pl.BlockSpec((1, n), lambda i: (0, 0))
    o_spec = pl.BlockSpec((tm, n), lambda i: (i, 0))
    cp = pltpu.CompilerParams(dimension_semantics=("parallel",))
    out_shape = jax.ShapeDtypeStruct((m, n), jnp.float32)
    if shift is None:
        return pl.pallas_call(_matmul_kernel, out_shape=out_shape, grid=(m // tm,),
                              in_specs=[x_spec, w_spec], out_specs=o_spec,
                              compiler_params=cp, cost_estimate=cost)(x, w_bf16)
    if alpha is None:
        return pl.pallas_call(_matmul_bias_kernel, out_shape=out_shape, grid=(m // tm,),
                              in_specs=[x_spec, w_spec, v_spec], out_specs=o_spec,
                              compiler_params=cp, cost_estimate=cost)(
                                  x, w_bf16, shift.reshape(1, n))
    return pl.pallas_call(_matmul_bias_prelu_kernel, out_shape=out_shape,
                          grid=(m // tm,),
                          in_specs=[x_spec, w_spec, v_spec, v_spec], out_specs=o_spec,
                          compiler_params=cp, cost_estimate=cost)(
                              x, w_bf16, shift.reshape(1, n), alpha.reshape(1, n))


def conv3x3_fused(x_nhwc, w_oihw_folded, shift, alpha, residual=None):
    """3x3 conv (stride 1, pad 1) + folded-BN bias + PReLU (+ optional fused
    residual).  Grid over batch; the padded image stays resident in VMEM."""
    b, h, w, cin = x_nhwc.shape
    cout = w_oihw_folded.shape[0]
    xp = jnp.pad(x_nhwc, ((0, 0), (1, 1), (1, 1), (0, 0)))
    wt = jnp.transpose(w_oihw_folded, (2, 3, 1, 0)).reshape(9, cin, cout)
    wt = wt.astype(jnp.bfloat16)
    kern = _make_conv3x3_kernel(h, w, residual is not None)
    in_specs = [
        pl.BlockSpec((1, h + 2, w + 2, cin), lambda i: (i, 0, 0, 0)),
        pl.BlockSpec((9, cin, cout), lambda i: (0, 0, 0)),
        pl.BlockSpec((1, cout), lambda i: (0, 0)),
        pl.BlockSpec((1, cout), lambda i: (0, 0)),
    ]
    args = [xp, wt, shift.reshape(1, cout), alpha.reshape(1, cout)]
    if residual is not None:
        in_specs.append(pl.BlockSpec((1, h, w, cout), lambda i: (i, 0, 0, 0)))
        args.append(residual)
    cost = pl.CostEstimate(
        flops=2 * b * h * w * 9 * cin * cout, transcendentals=0,
        bytes_accessed=(b * (h + 2) * (w + 2) * cin * 4 + 9 * cin * cout * 2
                        + b * h * w * cout * 4))
    return pl.pallas_call(
        kern,
        out_shape=jax.ShapeDtypeStruct((b, h, w, cout), jnp.float32),
        grid=(b,),
        in_specs=in_specs,
        out_specs=pl.BlockSpec((1, h, w, cout), lambda i: (i, 0, 0, 0)),
        compiler_params=pltpu.CompilerParams(dimension_semantics=("parallel",)),
        cost_estimate=cost,
    )(*args)


def fused_combine(up_flat, first_up_flat, res_flat, bias3):
    """out = up + first_up + res (broadcast over C) + bias, all in one kernel.
    res is (M,1) and bias is (1,3); broadcasts happen in-kernel (no HBM
    broadcast_to)."""
    m, c = up_flat.shape
    tm = _pick_tile(m, 1024)
    return pl.pallas_call(
        _combine_kernel,
        out_shape=jax.ShapeDtypeStruct((m, c), jnp.float32),
        grid=(m // tm,),
        in_specs=[
            pl.BlockSpec((tm, c), lambda i: (i, 0)),
            pl.BlockSpec((tm, c), lambda i: (i, 0)),
            pl.BlockSpec((tm, 1), lambda i: (i, 0)),
            pl.BlockSpec((1, c), lambda i: (0, 0)),
        ],
        out_specs=pl.BlockSpec((tm, c), lambda i: (i, 0)),
        compiler_params=pltpu.CompilerParams(dimension_semantics=("parallel",)),
    )(up_flat, first_up_flat, res_flat, bias3.reshape(1, c))


# ------------------------------- JAX glue -----------------------------------

def _bilinear_matrix(n, scale=4):
    """Interpolation matrix A (scale*n, n) matching PyTorch bilinear,
    align_corners=False."""
    dst = jnp.arange(scale * n, dtype=jnp.float32)
    src = jnp.maximum((dst + 0.5) / scale - 0.5, 0.0)
    i0 = jnp.minimum(jnp.floor(src).astype(jnp.int32), n - 1)
    i1 = jnp.minimum(i0 + 1, n - 1)
    frac = src - i0.astype(jnp.float32)
    rows = jnp.arange(scale * n)
    a = jnp.zeros((scale * n, n), jnp.float32)
    a = a.at[rows, i0].add(1.0 - frac)
    a = a.at[rows, i1].add(frac)
    return a


def bilinear_up4(x_nhwc):
    """4x bilinear upsample as two dense interpolation matmuls (MXU-friendly,
    no gathers)."""
    _, h, w, _ = x_nhwc.shape
    ah = _bilinear_matrix(h)
    aw = _bilinear_matrix(w)
    y = jnp.einsum('ph,bhwc->bpwc', ah, x_nhwc)
    return jnp.einsum('qw,bpwc->bpqc', aw, y)


def _im2col(x_nhwc, kh, kw, pad):
    b, h, w, c = x_nhwc.shape
    xp = jnp.pad(x_nhwc, ((0, 0), (pad, pad), (pad, pad), (0, 0)))
    patches = [xp[:, dy:dy + h, dx:dx + w, :]
               for dy in range(kh) for dx in range(kw)]
    return jnp.concatenate(patches, axis=-1).reshape(b * h * w, kh * kw * c)


def _fold_bn(bias, gamma, beta, mean, var, eps=1e-5):
    s = gamma / jnp.sqrt(var + eps)
    return s, bias * s + beta - mean * s


# ------------------------------ parameters ----------------------------------

def init_params(key):
    ks = jax.random.split(key, 32)
    nk = iter(range(32))

    def rnd(shape, scl=0.05):
        return jax.random.normal(ks[next(nk)], shape, jnp.float32) * scl

    p = {}
    # extract_features: Conv2d(1,256,5,p=2) + BN(256) + PReLU(256)
    p['w1'], p['b1'] = rnd((256, 1, 5, 5)), rnd((256,), 0.01)
    p['bn1'] = (jnp.ones((256,)), jnp.zeros((256,)), jnp.zeros((256,)), jnp.ones((256,)))
    p['a1'] = jnp.full((256,), 0.25, jnp.float32)
    # shrink: Conv2d(256,32,1)
    p['w_sh'], p['b_sh'] = rnd((32, 256, 1, 1)), rnd((32,), 0.01)
    # map: 4 x [Conv2d(32,32,3,p=1) + BN(32) + PReLU(32)]
    for i in range(4):
        p[f'wm{i}'], p[f'bm{i}'] = rnd((32, 32, 3, 3)), rnd((32,), 0.01)
        p[f'bnm{i}'] = (jnp.ones((32,)), jnp.zeros((32,)), jnp.zeros((32,)), jnp.ones((32,)))
        p[f'am{i}'] = jnp.full((32,), 0.25, jnp.float32)
    # expanding: Conv2d(32,256,1)
    p['w_ex'], p['b_ex'] = rnd((256, 32, 1, 1)), rnd((256,), 0.01)
    # upscale: ConvTranspose2d(256,3,9,stride=4,pad=4,output_padding=3)
    p['w_up'], p['b_up'] = rnd((256, 3, 9, 9)), rnd((3,), 0.01)
    return p


# ------------------------------- forward ------------------------------------

def fsrcnn_forward(edges_nchw, p):
    b, _, h, w = edges_nchw.shape
    m = b * h * w
    e = jnp.transpose(edges_nchw, (0, 2, 3, 1))                # (B,H,W,1)
    res = bilinear_up4(e)                                      # (B,4H,4W,1)

    # extract_features: 5x5 conv, C_in=1.  The im2col here is only a 25x blowup
    # of a 1-channel input (tiny); K is zero-padded 25->32 for the MXU.
    scale, shift = _fold_bn(p['b1'], *p['bn1'])
    w1 = jnp.transpose(p['w1'], (2, 3, 1, 0)).reshape(25, 256) * scale[None, :]
    w1 = jnp.pad(w1, ((0, 7), (0, 0))).astype(jnp.bfloat16)    # (32, 256)
    cols = jnp.pad(_im2col(e, 5, 5, 2), ((0, 0), (0, 7)))      # (M, 32)
    f = fused_matmul(cols, w1, shift, p['a1']).reshape(b, h, w, 256)

    # shrink (1x1, no BN/PReLU -> bias-only matmul)
    w_sh = p['w_sh'][:, :, 0, 0].T.astype(jnp.bfloat16)        # (256, 32)
    s = fused_matmul(f.reshape(m, 256), w_sh, p['b_sh']).reshape(b, h, w, 32)

    # map x4 (direct conv kernels, residual fused into the last layer)
    t = s
    for i in range(4):
        scale, shift = _fold_bn(p[f'bm{i}'], *p[f'bnm{i}'])
        w_f = p[f'wm{i}'] * scale[:, None, None, None]
        t = conv3x3_fused(t, w_f, shift, p[f'am{i}'],
                          residual=s if i == 3 else None)

    # expanding (1x1)
    w_ex = p['w_ex'][:, :, 0, 0].T.astype(jnp.bfloat16)        # (32, 256)
    ex = fused_matmul(t.reshape(m, 32), w_ex, p['b_ex'])       # (M, 256)

    # upscale = ConvTranspose2d(256,3,9,4,4,op=3): lane-dense matmul into a
    # 512-wide tap buffer ordered (gy,py,gx,px,c) + phase-grouped depth-to-space.
    wt = p['w_up']                                             # (256,3,9,9)
    w12 = jnp.zeros((256, 3, 12, 12), jnp.float32).at[:, :, :9, :9].set(wt)
    w12 = w12.reshape(256, 3, 3, 4, 3, 4)                      # (ci,co,gy,py,gx,px)
    wcols = jnp.transpose(w12, (0, 2, 3, 4, 5, 1)).reshape(256, 432)
    wu = jnp.pad(wcols, ((0, 0), (0, 80))).astype(jnp.bfloat16)  # (256, 512)
    yu = fused_matmul(ex, wu)                                  # (M, 512) f32
    yc = yu[:, :432].reshape(b, h, w, 3, 4, 3, 4, 3)           # (b,iy,ix,gy,py,gx,px,c)
    yp = jnp.pad(yc, ((0, 0), (1, 1), (1, 1)) + ((0, 0),) * 5)
    up_s = None
    for gy in range(3):                                        # 9 shifted adds
        for gx in range(3):
            sl = yp[:, 2 - gy:2 - gy + h, 2 - gx:2 - gx + w, gy, :, gx, :, :]
            up_s = sl if up_s is None else up_s + sl
    # (b,by,bx,py,px,c) -> (b,4H,4W,3)
    up = jnp.transpose(up_s, (0, 1, 3, 2, 4, 5)).reshape(b, 4 * h, 4 * w, 3)
    return up, res


def stacked_edvr_forward(x, edges, params):
    """x: (B, nframes, 3, H, W); edges: (B, 1, H, W) (PyTorch NCHW)."""
    b, n, _, h, w = x.shape
    # TODO(synk): the EDVR(128, nframes, 8, 5, 40) submodule's source is not part
    # of the reference module; its branch is substituted by a bilinear 4x
    # upsample of the center frame (same output shape).
    center = jnp.transpose(x[:, n // 2], (0, 2, 3, 1))         # (B,H,W,3)
    first_up = bilinear_up4(center)                            # (B,4H,4W,3)

    up, res = fsrcnn_forward(edges, params)                    # FSRCNN branch

    m3 = b * 4 * h * 4 * w
    out = fused_combine(up.reshape(m3, 3), first_up.reshape(m3, 3),
                        res.reshape(m3, 1), params['b_up'])
    out = out.reshape(b, 4 * h, 4 * w, 3)
    return jnp.transpose(out, (0, 3, 1, 2))                    # NCHW (B,3,4H,4W)


# --------------------------------- main --------------------------------------

if __name__ == "__main__":
    key = jax.random.PRNGKey(0)
    kp, kx, ke = jax.random.split(key, 3)

    B, NFRAMES, H, W = 2, 5, 16, 16
    params = init_params(kp)
    x = jax.random.normal(kx, (B, NFRAMES, 3, H, W), jnp.float32)
    edges = jax.random.normal(ke, (B, 1, H, W), jnp.float32)

    fwd = jax.jit(stacked_edvr_forward)
    out = fwd(x, edges, params)
    out = jax.block_until_ready(out)
    assert out.shape == (B, 3, 4 * H, 4 * W), out.shape
    print("KERNEL_OK")
</pallas_src>

<mosaic_0001>
module attributes {stable_mosaic.version = 11 : i64} {
  func.func @_matmul_bias_prelu_kernel(%arg0: i32, %arg1: memref<256x32xf32, #tpu.memory_space<vmem>>, %arg2: memref<32x256xbf16, #tpu.memory_space<vmem>>, %arg3: memref<1x256xf32, #tpu.memory_space<vmem>>, %arg4: memref<1x256xf32, #tpu.memory_space<vmem>>, %arg5: memref<256x256xf32, #tpu.memory_space<vmem>>) attributes {dimension_semantics = [#tpu.dimension_semantics<parallel>], iteration_bounds = array<i64: 2>, scalar_prefetch = 0 : i64, scratch_operands = 0 : i64, tpu.core_type = #tpu.core_type<tc>, window_params = [{transform_indices = @transform_0, window_bounds = array<i64: 256, 32>}, {pipeline_mode = #tpu.pipeline_mode<synchronous>, transform_indices = @transform_1, window_bounds = array<i64: 32, 256>}, {pipeline_mode = #tpu.pipeline_mode<synchronous>, transform_indices = @transform_2, window_bounds = array<i64: 1, 256>}, {pipeline_mode = #tpu.pipeline_mode<synchronous>, transform_indices = @transform_3, window_bounds = array<i64: 1, 256>}, {transform_indices = @transform_4, window_bounds = array<i64: 256, 256>}]} {
    %c0 = arith.constant 0 : index
    %c0_0 = arith.constant 0 : index
    %0 = vector.load %arg1[%c0, %c0_0] : memref<256x32xf32, #tpu.memory_space<vmem>>, vector<256x32xf32>
    %1 = arith.truncf %0 : vector<256x32xf32> to vector<256x32xbf16>
    %c0_1 = arith.constant 0 : index
    %c0_2 = arith.constant 0 : index
    %2 = vector.load %arg2[%c0_1, %c0_2] : memref<32x256xbf16, #tpu.memory_space<vmem>>, vector<32x256xbf16>
    %cst = arith.constant dense<0.000000e+00> : vector<256x256xf32>
    %3 = tpu.matmul %1, %2, %cst {dimension_numbers = #tpu.dot_dimension_numbers<[1], [0], [0], [1], [0, 0, 1, 1], [], []>} : vector<256x32xbf16>, vector<32x256xbf16>, vector<256x256xf32> -> vector<256x256xf32>
    %c0_3 = arith.constant 0 : index
    %c0_4 = arith.constant 0 : index
    %4 = vector.load %arg3[%c0_3, %c0_4] : memref<1x256xf32, #tpu.memory_space<vmem>>, vector<1x256xf32>
    %5 = vector.broadcast %4 : vector<1x256xf32> to vector<256x256xf32>
    %6 = arith.addf %3, %5 : vector<256x256xf32>
    %cst_5 = arith.constant 0.000000e+00 : f32
    %7 = vector.broadcast %cst_5 : f32 to vector<256x256xf32>
    %8 = arith.cmpf oge, %6, %7 : vector<256x256xf32>
    %c0_6 = arith.constant 0 : index
    %c0_7 = arith.constant 0 : index
    %9 = vector.load %arg4[%c0_6, %c0_7] : memref<1x256xf32, #tpu.memory_space<vmem>>, vector<1x256xf32>
    %10 = vector.broadcast %9 : vector<1x256xf32> to vector<256x256xf32>
    %11 = arith.mulf %10, %6 : vector<256x256xf32>
    %12 = arith.select %8, %6, %11 : vector<256x256xi1>, vector<256x256xf32>
    %c0_8 = arith.constant 0 : index
    %c0_9 = arith.constant 0 : index
    %13 = vector.load %arg5[%c0_8, %c0_9] : memref<256x256xf32, #tpu.memory_space<vmem>>, vector<256x256xf32>
    tpu.vector_store %arg5[%c0_8, %c0_9], %12 {strides = array<i32>} : memref<256x256xf32, #tpu.memory_space<vmem>>, vector<256x256xf32>,
    return
  }
  func.func @transform_0(%arg0: i32) -> (i32, i32) {
    %c0_i32 = arith.constant 0 : i32
    %c0_i32_0 = arith.constant 0 : i32
    return %arg0, %c0_i32 : i32, i32
  }
  func.func @transform_1(%arg0: i32) -> (i32, i32) {
    %c0_i32 = arith.constant 0 : i32
    %c0_i32_0 = arith.constant 0 : i32
    %c0_i32_1 = arith.constant 0 : i32
    return %c0_i32, %c0_i32_0 : i32, i32
  }
  func.func @transform_2(%arg0: i32) -> (i32, i32) {
    %c0_i32 = arith.constant 0 : i32
    %c0_i32_0 = arith.constant 0 : i32
    %c0_i32_1 = arith.constant 0 : i32
    return %c0_i32, %c0_i32_0 : i32, i32
  }
  func.func @transform_3(%arg0: i32) -> (i32, i32) {
    %c0_i32 = arith.constant 0 : i32
    %c0_i32_0 = arith.constant 0 : i32
    %c0_i32_1 = arith.constant 0 : i32
    return %c0_i32, %c0_i32_0 : i32, i32
  }
  func.func @transform_4(%arg0: i32) -> (i32, i32) {
    %c0_i32 = arith.constant 0 : i32
    %c0_i32_0 = arith.constant 0 : i32
    return %arg0, %c0_i32 : i32, i32
  }
}

module attributes {stable_mosaic.version = 11 : i64} {
  func.func @_matmul_bias_kernel(%arg0: i32, %arg1: memref<256x256xf32, #tpu.memory_space<vmem>>, %arg2: memref<256x32xbf16, #tpu.memory_space<vmem>>, %arg3: memref<1x32xf32, #tpu.memory_space<vmem>>, %arg4: memref<256x32xf32, #tpu.memory_space<vmem>>) attributes {dimension_semantics = [#tpu.dimension_semantics<parallel>], iteration_bounds = array<i64: 2>, scalar_prefetch = 0 : i64, scratch_operands = 0 : i64, tpu.core_type = #tpu.core_type<tc>, window_params = [{transform_indices = @transform_0, window_bounds = array<i64: 256, 256>}, {pipeline_mode = #tpu.pipeline_mode<synchronous>, transform_indices = @transform_1, window_bounds = array<i64: 256, 32>}, {pipeline_mode = #tpu.pipeline_mode<synchronous>, transform_indices = @transform_2, window_bounds = array<i64: 1, 32>}, {transform_indices = @transform_3, window_bounds = array<i64: 256, 32>}]} {
    %c0 = arith.constant 0 : index
    %c0_0 = arith.constant 0 : index
    %0 = vector.load %arg1[%c0, %c0_0] : memref<256x256xf32, #tpu.memory_space<vmem>>, vector<256x256xf32>
    %1 = arith.truncf %0 : vector<256x256xf32> to vector<256x256xbf16>
    %c0_1 = arith.constant 0 : index
    %c0_2 = arith.constant 0 : index
    %2 = vector.load %arg2[%c0_1, %c0_2] : memref<256x32xbf16, #tpu.memory_space<vmem>>, vector<256x32xbf16>
    %cst = arith.constant dense<0.000000e+00> : vector<256x32xf32>
    %3 = tpu.matmul %1, %2, %cst {dimension_numbers = #tpu.dot_dimension_numbers<[1], [0], [0], [1], [0, 0, 1, 1], [], []>} : vector<256x256xbf16>, vector<256x32xbf16>, vector<256x32xf32> -> vector<256x32xf32>
    %c0_3 = arith.constant 0 : index
    %c0_4 = arith.constant 0 : index
    %4 = vector.load %arg3[%c0_3, %c0_4] : memref<1x32xf32, #tpu.memory_space<vmem>>, vector<1x32xf32>
    %5 = vector.broadcast %4 : vector<1x32xf32> to vector<256x32xf32>
    %6 = arith.addf %3, %5 : vector<256x32xf32>
    %c0_5 = arith.constant 0 : index
    %c0_6 = arith.constant 0 : index
    %7 = vector.load %arg4[%c0_5, %c0_6] : memref<256x32xf32, #tpu.memory_space<vmem>>, vector<256x32xf32>
    tpu.vector_store %arg4[%c0_5, %c0_6], %6 {strides = array<i32>} : memref<256x32xf32, #tpu.memory_space<vmem>>, vector<256x32xf32>,
    return
  }
  func.func @transform_0(%arg0: i32) -> (i32, i32) {
    %c0_i32 = arith.constant 0 : i32
    %c0_i32_0 = arith.constant 0 : i32
    return %arg0, %c0_i32 : i32, i32
  }
  func.func @transform_1(%arg0: i32) -> (i32, i32) {
    %c0_i32 = arith.constant 0 : i32
    %c0_i32_0 = arith.constant 0 : i32
    %c0_i32_1 = arith.constant 0 : i32
    return %c0_i32, %c0_i32_0 : i32, i32
  }
  func.func @transform_2(%arg0: i32) -> (i32, i32) {
    %c0_i32 = arith.constant 0 : i32
    %c0_i32_0 = arith.constant 0 : i32
    %c0_i32_1 = arith.constant 0 : i32
    return %c0_i32, %c0_i32_0 : i32, i32
  }
  func.func @transform_3(%arg0: i32) -> (i32, i32) {
    %c0_i32 = arith.constant 0 : i32
    %c0_i32_0 = arith.constant 0 : i32
    return %arg0, %c0_i32 : i32, i32
  }
}

module attributes {stable_mosaic.version = 11 : i64} {
  func.func @kernel(%arg0: i32, %arg1: memref<1x18x18x32xf32, #tpu.memory_space<vmem>>, %arg2: memref<9x32x32xbf16, #tpu.memory_space<vmem>>, %arg3: memref<1x32xf32, #tpu.memory_space<vmem>>, %arg4: memref<1x32xf32, #tpu.memory_space<vmem>>, %arg5: memref<1x16x16x32xf32, #tpu.memory_space<vmem>>) attributes {dimension_semantics = [#tpu.dimension_semantics<parallel>], iteration_bounds = array<i64: 2>, scalar_prefetch = 0 : i64, scratch_operands = 0 : i64, tpu.core_type = #tpu.core_type<tc>, window_params = [{transform_indices = @transform_0, window_bounds = array<i64: 1, 18, 18, 32>}, {pipeline_mode = #tpu.pipeline_mode<synchronous>, transform_indices = @transform_1, window_bounds = array<i64: 9, 32, 32>}, {pipeline_mode = #tpu.pipeline_mode<synchronous>, transform_indices = @transform_2, window_bounds = array<i64: 1, 32>}, {pipeline_mode = #tpu.pipeline_mode<synchronous>, transform_indices = @transform_3, window_bounds = array<i64: 1, 32>}, {transform_indices = @transform_4, window_bounds = array<i64: 1, 16, 16, 32>}]} {
    %c0 = arith.constant 0 : index
    %c0_0 = arith.constant 0 : index
    %c0_1 = arith.constant 0 : index
    %c0_2 = arith.constant 0 : index
    %0 = vector.load %arg1[%c0, %c0_0, %c0_1, %c0_2] : memref<1x18x18x32xf32, #tpu.memory_space<vmem>>, vector<1x18x18x32xf32>
    %cst = arith.constant 0.000000e+00 : f32
    %1 = vector.broadcast %cst : f32 to vector<256x32xf32>
    %2 = vector.extract_strided_slice %0 {offsets = [0, 0, 0, 0], sizes = [1, 16, 16, 32], strides = [1, 1, 1, 1]} : vector<1x18x18x32xf32> to vector<1x16x16x32xf32>
    %3 = vector.shape_cast %2 : vector<1x16x16x32xf32> to vector<16x16x32xf32>
    %4 = vector.shape_cast %3 : vector<16x16x32xf32> to vector<256x32xf32>
    %5 = arith.truncf %4 : vector<256x32xf32> to vector<256x32xbf16>
    %c0_3 = arith.constant 0 : index
    %c0_4 = arith.constant 0 : index
    %c0_5 = arith.constant 0 : index
    %6 = vector.load %arg2[%c0_3, %c0_4, %c0_5] : memref<9x32x32xbf16, #tpu.memory_space<vmem>>, vector<1x32x32xbf16>
    %7 = vector.shape_cast %6 : vector<1x32x32xbf16> to vector<32x32xbf16>
    %cst_6 = arith.constant dense<0.000000e+00> : vector<256x32xf32>
    %8 = tpu.matmul %5, %7, %cst_6 {dimension_numbers = #tpu.dot_dimension_numbers<[1], [0], [0], [1], [0, 0, 1, 1], [], []>} : vector<256x32xbf16>, vector<32x32xbf16>, vector<256x32xf32> -> vector<256x32xf32>
    %9 = arith.addf %1, %8 : vector<256x32xf32>
    %10 = vector.extract_strided_slice %0 {offsets = [0, 0, 1, 0], sizes = [1, 16, 16, 32], strides = [1, 1, 1, 1]} : vector<1x18x18x32xf32> to vector<1x16x16x32xf32>
    %11 = vector.shape_cast %10 : vector<1x16x16x32xf32> to vector<16x16x32xf32>
    %12 = vector.shape_cast %11 : vector<16x16x32xf32> to vector<256x32xf32>
    %13 = arith.truncf %12 : vector<256x32xf32> to vector<256x32xbf16>
    %c1 = arith.constant 1 : index
    %c0_7 = arith.constant 0 : index
    %c0_8 = arith.constant 0 : index
    %14 = vector.load %arg2[%c1, %c0_7, %c0_8] : memref<9x32x32xbf16, #tpu.memory_space<vmem>>, vector<1x32x32xbf16>
    %15 = vector.shape_cast %14 : vector<1x32x32xbf16> to vector<32x32xbf16>
    %cst_9 = arith.constant dense<0.000000e+00> : vector<256x32xf32>
    %16 = tpu.matmul %13, %15, %cst_9 {dimension_numbers = #tpu.dot_dimension_numbers<[1], [0], [0], [1], [0, 0, 1, 1], [], []>} : vector<256x32xbf16>, vector<32x32xbf16>, vector<256x32xf32> -> vector<256x32xf32>
    %17 = arith.addf %9, %16 : vector<256x32xf32>
    %18 = vector.extract_strided_slice %0 {offsets = [0, 0, 2, 0], sizes = [1, 16, 16, 32], strides = [1, 1, 1, 1]} : vector<1x18x18x32xf32> to vector<1x16x16x32xf32>
    %19 = vector.shape_cast %18 : vector<1x16x16x32xf32> to vector<16x16x32xf32>
    %20 = vector.shape_cast %19 : vector<16x16x32xf32> to vector<256x32xf32>
    %21 = arith.truncf %20 : vector<256x32xf32> to vector<256x32xbf16>
    %c2 = arith.constant 2 : index
    %c0_10 = arith.constant 0 : index
    %c0_11 = arith.constant 0 : index
    %22 = vector.load %arg2[%c2, %c0_10, %c0_11] : memref<9x32x32xbf16, #tpu.memory_space<vmem>>, vector<1x32x32xbf16>
    %23 = vector.shape_cast %22 : vector<1x32x32xbf16> to vector<32x32xbf16>
    %cst_12 = arith.constant dense<0.000000e+00> : vector<256x32xf32>
    %24 = tpu.matmul %21, %23, %cst_12 {dimension_numbers = #tpu.dot_dimension_numbers<[1], [0], [0], [1], [0, 0, 1, 1], [], []>} : vector<256x32xbf16>, vector<32x32xbf16>, vector<256x32xf32> -> vector<256x32xf32>
    %25 = arith.addf %17, %24 : vector<256x32xf32>
    %26 = vector.extract_strided_slice %0 {offsets = [0, 1, 0, 0], sizes = [1, 16, 16, 32], strides = [1, 1, 1, 1]} : vector<1x18x18x32xf32> to vector<1x16x16x32xf32>
    %27 = vector.shape_cast %26 : vector<1x16x16x32xf32> to vector<16x16x32xf32>
    %28 = vector.shape_cast %27 : vector<16x16x32xf32> to vector<256x32xf32>
    %29 = arith.truncf %28 : vector<256x32xf32> to vector<256x32xbf16>
    %c3 = arith.constant 3 : index
    %c0_13 = arith.constant 0 : index
    %c0_14 = arith.constant 0 : index
    %30 = vector.load %arg2[%c3, %c0_13, %c0_14] : memref<9x32x32xbf16, #tpu.memory_space<vmem>>, vector<1x32x32xbf16>
    %31 = vector.shape_cast %30 : vector<1x32x32xbf16> to vector<32x32xbf16>
    %cst_15 = arith.constant dense<0.000000e+00> : vector<256x32xf32>
    %32 = tpu.matmul %29, %31, %cst_15 {dimension_numbers = #tpu.dot_dimension_numbers<[1], [0], [0], [1], [0, 0, 1, 1], [], []>} : vector<256x32xbf16>, vector<32x32xbf16>, vector<256x32xf32> -> vector<256x32xf32>
    %33 = arith.addf %25, %32 : vector<256x32xf32>
    %34 = vector.extract_strided_slice %0 {offsets = [0, 1, 1, 0], sizes = [1, 16, 16, 32], strides = [1, 1, 1, 1]} : vector<1x18x18x32xf32> to vector<1x16x16x32xf32>
    %35 = vector.shape_cast %34 : vector<1x16x16x32xf32> to vector<16x16x32xf32>
    %36 = vector.shape_cast %35 : vector<16x16x32xf32> to vector<256x32xf32>
    %37 = arith.truncf %36 : vector<256x32xf32> to vector<256x32xbf16>
    %c4 = arith.constant 4 : index
    %c0_16 = arith.constant 0 : index
    %c0_17 = arith.constant 0 : index
    %38 = vector.load %arg2[%c4, %c0_16, %c0_17] : memref<9x32x32xbf16, #tpu.memory_space<vmem>>, vector<1x32x32xbf16>
    %39 = vector.shape_cast %38 : vector<1x32x32xbf16> to vector<32x32xbf16>
    %cst_18 = arith.constant dense<0.000000e+00> : vector<256x32xf32>
    %40 = tpu.matmul %37, %39, %cst_18 {dimension_numbers = #tpu.dot_dimension_numbers<[1], [0], [0], [1], [0, 0, 1, 1], [], []>} : vector<256x32xbf16>, vector<32x32xbf16>, vector<256x32xf32> -> vector<256x32xf32>
    %41 = arith.addf %33, %40 : vector<256x32xf32>
    %42 = vector.extract_strided_slice %0 {offsets = [0, 1, 2, 0], sizes = [1, 16, 16, 32], strides = [1, 1, 1, 1]} : vector<1x18x18x32xf32> to vector<1x16x16x32xf32>
    %43 = vector.shape_cast %42 : vector<1x16x16x32xf32> to vector<16x16x32xf32>
    %44 = vector.shape_cast %43 : vector<16x16x32xf32> to vector<256x32xf32>
    %45 = arith.truncf %44 : vector<256x32xf32> to vector<256x32xbf16>
    %c5 = arith.constant 5 : index
    %c0_19 = arith.constant 0 : index
    %c0_20 = arith.constant 0 : index
    %46 = vector.load %arg2[%c5, %c0_19, %c0_20] : memref<9x32x32xbf16, #tpu.memory_space<vmem>>, vector<1x32x32xbf16>
    %47 = vector.shape_cast %46 : vector<1x32x32xbf16> to vector<32x32xbf16>
    %cst_21 = arith.constant dense<0.000000e+00> : vector<256x32xf32>
    %48 = tpu.matmul %45, %47, %cst_21 {dimension_numbers = #tpu.dot_dimension_numbers<[1], [0], [0], [1], [0, 0, 1, 1], [], []>} : vector<256x32xbf16>, vector<32x32xbf16>, vector<256x32xf32> -> vector<256x32xf32>
    %49 = arith.addf %41, %48 : vector<256x32xf32>
    %50 = vector.extract_strided_slice %0 {offsets = [0, 2, 0, 0], sizes = [1, 16, 16, 32], strides = [1, 1, 1, 1]} : vector<1x18x18x32xf32> to vector<1x16x16x32xf32>
    %51 = vector.shape_cast %50 : vector<1x16x16x32xf32> to vector<16x16x32xf32>
    %52 = vector.shape_cast %51 : vector<16x16x32xf32> to vector<256x32xf32>
    %53 = arith.truncf %52 : vector<256x32xf32> to vector<256x32xbf16>
    %c6 = arith.constant 6 : index
    %c0_22 = arith.constant 0 : index
    %c0_23 = arith.constant 0 : index
    %54 = vector.load %arg2[%c6, %c0_22, %c0_23] : memref<9x32x32xbf16, #tpu.memory_space<vmem>>, vector<1x32x32xbf16>
    %55 = vector.shape_cast %54 : vector<1x32x32xbf16> to vector<32x32xbf16>
    %cst_24 = arith.constant dense<0.000000e+00> : vector<256x32xf32>
    %56 = tpu.matmul %53, %55, %cst_24 {dimension_numbers = #tpu.dot_dimension_numbers<[1], [0], [0], [1], [0, 0, 1, 1], [], []>} : vector<256x32xbf16>, vector<32x32xbf16>, vector<256x32xf32> -> vector<256x32xf32>
    %57 = arith.addf %49, %56 : vector<256x32xf32>
    %58 = vector.extract_strided_slice %0 {offsets = [0, 2, 1, 0], sizes = [1, 16, 16, 32], strides = [1, 1, 1, 1]} : vector<1x18x18x32xf32> to vector<1x16x16x32xf32>
    %59 = vector.shape_cast %58 : vector<1x16x16x32xf32> to vector<16x16x32xf32>
    %60 = vector.shape_cast %59 : vector<16x16x32xf32> to vector<256x32xf32>
    %61 = arith.truncf %60 : vector<256x32xf32> to vector<256x32xbf16>
    %c7 = arith.constant 7 : index
    %c0_25 = arith.constant 0 : index
    %c0_26 = arith.constant 0 : index
    %62 = vector.load %arg2[%c7, %c0_25, %c0_26] : memref<9x32x32xbf16, #tpu.memory_space<vmem>>, vector<1x32x32xbf16>
    %63 = vector.shape_cast %62 : vector<1x32x32xbf16> to vector<32x32xbf16>
    %cst_27 = arith.constant dense<0.000000e+00> : vector<256x32xf32>
    %64 = tpu.matmul %61, %63, %cst_27 {dimension_numbers = #tpu.dot_dimension_numbers<[1], [0], [0], [1], [0, 0, 1, 1], [], []>} : vector<256x32xbf16>, vector<32x32xbf16>, vector<256x32xf32> -> vector<256x32xf32>
    %65 = arith.addf %57, %64 : vector<256x32xf32>
    %66 = vector.extract_strided_slice %0 {offsets = [0, 2, 2, 0], sizes = [1, 16, 16, 32], strides = [1, 1, 1, 1]} : vector<1x18x18x32xf32> to vector<1x16x16x32xf32>
    %67 = vector.shape_cast %66 : vector<1x16x16x32xf32> to vector<16x16x32xf32>
    %68 = vector.shape_cast %67 : vector<16x16x32xf32> to vector<256x32xf32>
    %69 = arith.truncf %68 : vector<256x32xf32> to vector<256x32xbf16>
    %c8 = arith.constant 8 : index
    %c0_28 = arith.constant 0 : index
    %c0_29 = arith.constant 0 : index
    %70 = vector.load %arg2[%c8, %c0_28, %c0_29] : memref<9x32x32xbf16, #tpu.memory_space<vmem>>, vector<1x32x32xbf16>
    %71 = vector.shape_cast %70 : vector<1x32x32xbf16> to vector<32x32xbf16>
    %cst_30 = arith.constant dense<0.000000e+00> : vector<256x32xf32>
    %72 = tpu.matmul %69, %71, %cst_30 {dimension_numbers = #tpu.dot_dimension_numbers<[1], [0], [0], [1], [0, 0, 1, 1], [], []>} : vector<256x32xbf16>, vector<32x32xbf16>, vector<256x32xf32> -> vector<256x32xf32>
    %73 = arith.addf %65, %72 : vector<256x32xf32>
    %c0_31 = arith.constant 0 : index
    %c0_32 = arith.constant 0 : index
    %74 = vector.load %arg3[%c0_31, %c0_32] : memref<1x32xf32, #tpu.memory_space<vmem>>, vector<1x32xf32>
    %75 = vector.broadcast %74 : vector<1x32xf32> to vector<256x32xf32>
    %76 = arith.addf %73, %75 : vector<256x32xf32>
    %cst_33 = arith.constant 0.000000e+00 : f32
    %77 = vector.broadcast %cst_33 : f32 to vector<256x32xf32>
    %78 = arith.cmpf oge, %76, %77 : vector<256x32xf32>
    %c0_34 = arith.constant 0 : index
    %c0_35 = arith.constant 0 : index
    %79 = vector.load %arg4[%c0_34, %c0_35] : memref<1x32xf32, #tpu.memory_space<vmem>>, vector<1x32xf32>
    %80 = vector.broadcast %79 : vector<1x32xf32> to vector<256x32xf32>
    %81 = arith.mulf %80, %76 : vector<256x32xf32>
    %82 = arith.select %78, %76, %81 : vector<256x32xi1>, vector<256x32xf32>
    %83 = vector.shape_cast %82 : vector<256x32xf32> to vector<1x16x16x32xf32>
    %c0_36 = arith.constant 0 : index
    %c0_37 = arith.constant 0 : index
    %c0_38 = arith.constant 0 : index
    %c0_39 = arith.constant 0 : index
    %84 = vector.load %arg5[%c0_36, %c0_37, %c0_38, %c0_39] : memref<1x16x16x32xf32, #tpu.memory_space<vmem>>, vector<1x16x16x32xf32>
    tpu.vector_store %arg5[%c0_36, %c0_37, %c0_38, %c0_39], %83 {strides = array<i32>} : memref<1x16x16x32xf32, #tpu.memory_space<vmem>>, vector<1x16x16x32xf32>,
    return
  }
  func.func @transform_0(%arg0: i32) -> (i32, i32, i32, i32) {
    %c0_i32 = arith.constant 0 : i32
    %c0_i32_0 = arith.constant 0 : i32
    %c0_i32_1 = arith.constant 0 : i32
    %c0_i32_2 = arith.constant 0 : i32
    return %arg0, %c0_i32, %c0_i32_0, %c0_i32_1 : i32, i32, i32, i32
  }
  func.func @transform_1(%arg0: i32) -> (i32, i32, i32) {
    %c0_i32 = arith.constant 0 : i32
    %c0_i32_0 = arith.constant 0 : i32
    %c0_i32_1 = arith.constant 0 : i32
    %c0_i32_2 = arith.constant 0 : i32
    return %c0_i32, %c0_i32_0, %c0_i32_1 : i32, i32, i32
  }
  func.func @transform_2(%arg0: i32) -> (i32, i32) {
    %c0_i32 = arith.constant 0 : i32
    %c0_i32_0 = arith.constant 0 : i32
    %c0_i32_1 = arith.constant 0 : i32
    return %c0_i32, %c0_i32_0 : i32, i32
  }
  func.func @transform_3(%arg0: i32) -> (i32, i32) {
    %c0_i32 = arith.constant 0 : i32
    %c0_i32_0 = arith.constant 0 : i32
    %c0_i32_1 = arith.constant 0 : i32
    return %c0_i32, %c0_i32_0 : i32, i32
  }
  func.func @transform_4(%arg0: i32) -> (i32, i32, i32, i32) {
    %c0_i32 = arith.constant 0 : i32
    %c0_i32_0 = arith.constant 0 : i32
    %c0_i32_1 = arith.constant 0 : i32
    %c0_i32_2 = arith.constant 0 : i32
    return %arg0, %c0_i32, %c0_i32_0, %c0_i32_1 : i32, i32, i32, i32
  }
}

module attributes {stable_mosaic.version = 11 : i64} {
  func.func @kernel(%arg0: i32, %arg1: memref<1x18x18x32xf32, #tpu.memory_space<vmem>>, %arg2: memref<9x32x32xbf16, #tpu.memory_space<vmem>>, %arg3: memref<1x32xf32, #tpu.memory_space<vmem>>, %arg4: memref<1x32xf32, #tpu.memory_space<vmem>>, %arg5: memref<1x16x16x32xf32, #tpu.memory_space<vmem>>, %arg6: memref<1x16x16x32xf32, #tpu.memory_space<vmem>>) attributes {dimension_semantics = [#tpu.dimension_semantics<parallel>], iteration_bounds = array<i64: 2>, scalar_prefetch = 0 : i64, scratch_operands = 0 : i64, tpu.core_type = #tpu.core_type<tc>, window_params = [{transform_indices = @transform_0, window_bounds = array<i64: 1, 18, 18, 32>}, {pipeline_mode = #tpu.pipeline_mode<synchronous>, transform_indices = @transform_1, window_bounds = array<i64: 9, 32, 32>}, {pipeline_mode = #tpu.pipeline_mode<synchronous>, transform_indices = @transform_2, window_bounds = array<i64: 1, 32>}, {pipeline_mode = #tpu.pipeline_mode<synchronous>, transform_indices = @transform_3, window_bounds = array<i64: 1, 32>}, {transform_indices = @transform_4, window_bounds = array<i64: 1, 16, 16, 32>}, {transform_indices = @transform_5, window_bounds = array<i64: 1, 16, 16, 32>}]} {
    %c0 = arith.constant 0 : index
    %c0_0 = arith.constant 0 : index
    %c0_1 = arith.constant 0 : index
    %c0_2 = arith.constant 0 : index
    %0 = vector.load %arg1[%c0, %c0_0, %c0_1, %c0_2] : memref<1x18x18x32xf32, #tpu.memory_space<vmem>>, vector<1x18x18x32xf32>
    %cst = arith.constant 0.000000e+00 : f32
    %1 = vector.broadcast %cst : f32 to vector<256x32xf32>
    %2 = vector.extract_strided_slice %0 {offsets = [0, 0, 0, 0], sizes = [1, 16, 16, 32], strides = [1, 1, 1, 1]} : vector<1x18x18x32xf32> to vector<1x16x16x32xf32>
    %3 = vector.shape_cast %2 : vector<1x16x16x32xf32> to vector<16x16x32xf32>
    %4 = vector.shape_cast %3 : vector<16x16x32xf32> to vector<256x32xf32>
    %5 = arith.truncf %4 : vector<256x32xf32> to vector<256x32xbf16>
    %c0_3 = arith.constant 0 : index
    %c0_4 = arith.constant 0 : index
    %c0_5 = arith.constant 0 : index
    %6 = vector.load %arg2[%c0_3, %c0_4, %c0_5] : memref<9x32x32xbf16, #tpu.memory_space<vmem>>, vector<1x32x32xbf16>
    %7 = vector.shape_cast %6 : vector<1x32x32xbf16> to vector<32x32xbf16>
    %cst_6 = arith.constant dense<0.000000e+00> : vector<256x32xf32>
    %8 = tpu.matmul %5, %7, %cst_6 {dimension_numbers = #tpu.dot_dimension_numbers<[1], [0], [0], [1], [0, 0, 1, 1], [], []>} : vector<256x32xbf16>, vector<32x32xbf16>, vector<256x32xf32> -> vector<256x32xf32>
    %9 = arith.addf %1, %8 : vector<256x32xf32>
    %10 = vector.extract_strided_slice %0 {offsets = [0, 0, 1, 0], sizes = [1, 16, 16, 32], strides = [1, 1, 1, 1]} : vector<1x18x18x32xf32> to vector<1x16x16x32xf32>
    %11 = vector.shape_cast %10 : vector<1x16x16x32xf32> to vector<16x16x32xf32>
    %12 = vector.shape_cast %11 : vector<16x16x32xf32> to vector<256x32xf32>
    %13 = arith.truncf %12 : vector<256x32xf32> to vector<256x32xbf16>
    %c1 = arith.constant 1 : index
    %c0_7 = arith.constant 0 : index
    %c0_8 = arith.constant 0 : index
    %14 = vector.load %arg2[%c1, %c0_7, %c0_8] : memref<9x32x32xbf16, #tpu.memory_space<vmem>>, vector<1x32x32xbf16>
    %15 = vector.shape_cast %14 : vector<1x32x32xbf16> to vector<32x32xbf16>
    %cst_9 = arith.constant dense<0.000000e+00> : vector<256x32xf32>
    %16 = tpu.matmul %13, %15, %cst_9 {dimension_numbers = #tpu.dot_dimension_numbers<[1], [0], [0], [1], [0, 0, 1, 1], [], []>} : vector<256x32xbf16>, vector<32x32xbf16>, vector<256x32xf32> -> vector<256x32xf32>
    %17 = arith.addf %9, %16 : vector<256x32xf32>
    %18 = vector.extract_strided_slice %0 {offsets = [0, 0, 2, 0], sizes = [1, 16, 16, 32], strides = [1, 1, 1, 1]} : vector<1x18x18x32xf32> to vector<1x16x16x32xf32>
    %19 = vector.shape_cast %18 : vector<1x16x16x32xf32> to vector<16x16x32xf32>
    %20 = vector.shape_cast %19 : vector<16x16x32xf32> to vector<256x32xf32>
    %21 = arith.truncf %20 : vector<256x32xf32> to vector<256x32xbf16>
    %c2 = arith.constant 2 : index
    %c0_10 = arith.constant 0 : index
    %c0_11 = arith.constant 0 : index
    %22 = vector.load %arg2[%c2, %c0_10, %c0_11] : memref<9x32x32xbf16, #tpu.memory_space<vmem>>, vector<1x32x32xbf16>
    %23 = vector.shape_cast %22 : vector<1x32x32xbf16> to vector<32x32xbf16>
    %cst_12 = arith.constant dense<0.000000e+00> : vector<256x32xf32>
    %24 = tpu.matmul %21, %23, %cst_12 {dimension_numbers = #tpu.dot_dimension_numbers<[1], [0], [0], [1], [0, 0, 1, 1], [], []>} : vector<256x32xbf16>, vector<32x32xbf16>, vector<256x32xf32> -> vector<256x32xf32>
    %25 = arith.addf %17, %24 : vector<256x32xf32>
    %26 = vector.extract_strided_slice %0 {offsets = [0, 1, 0, 0], sizes = [1, 16, 16, 32], strides = [1, 1, 1, 1]} : vector<1x18x18x32xf32> to vector<1x16x16x32xf32>
    %27 = vector.shape_cast %26 : vector<1x16x16x32xf32> to vector<16x16x32xf32>
    %28 = vector.shape_cast %27 : vector<16x16x32xf32> to vector<256x32xf32>
    %29 = arith.truncf %28 : vector<256x32xf32> to vector<256x32xbf16>
    %c3 = arith.constant 3 : index
    %c0_13 = arith.constant 0 : index
    %c0_14 = arith.constant 0 : index
    %30 = vector.load %arg2[%c3, %c0_13, %c0_14] : memref<9x32x32xbf16, #tpu.memory_space<vmem>>, vector<1x32x32xbf16>
    %31 = vector.shape_cast %30 : vector<1x32x32xbf16> to vector<32x32xbf16>
    %cst_15 = arith.constant dense<0.000000e+00> : vector<256x32xf32>
    %32 = tpu.matmul %29, %31, %cst_15 {dimension_numbers = #tpu.dot_dimension_numbers<[1], [0], [0], [1], [0, 0, 1, 1], [], []>} : vector<256x32xbf16>, vector<32x32xbf16>, vector<256x32xf32> -> vector<256x32xf32>
    %33 = arith.addf %25, %32 : vector<256x32xf32>
    %34 = vector.extract_strided_slice %0 {offsets = [0, 1, 1, 0], sizes = [1, 16, 16, 32], strides = [1, 1, 1, 1]} : vector<1x18x18x32xf32> to vector<1x16x16x32xf32>
    %35 = vector.shape_cast %34 : vector<1x16x16x32xf32> to vector<16x16x32xf32>
    %36 = vector.shape_cast %35 : vector<16x16x32xf32> to vector<256x32xf32>
    %37 = arith.truncf %36 : vector<256x32xf32> to vector<256x32xbf16>
    %c4 = arith.constant 4 : index
    %c0_16 = arith.constant 0 : index
    %c0_17 = arith.constant 0 : index
    %38 = vector.load %arg2[%c4, %c0_16, %c0_17] : memref<9x32x32xbf16, #tpu.memory_space<vmem>>, vector<1x32x32xbf16>
    %39 = vector.shape_cast %38 : vector<1x32x32xbf16> to vector<32x32xbf16>
    %cst_18 = arith.constant dense<0.000000e+00> : vector<256x32xf32>
    %40 = tpu.matmul %37, %39, %cst_18 {dimension_numbers = #tpu.dot_dimension_numbers<[1], [0], [0], [1], [0, 0, 1, 1], [], []>} : vector<256x32xbf16>, vector<32x32xbf16>, vector<256x32xf32> -> vector<256x32xf32>
    %41 = arith.addf %33, %40 : vector<256x32xf32>
    %42 = vector.extract_strided_slice %0 {offsets = [0, 1, 2, 0], sizes = [1, 16, 16, 32], strides = [1, 1, 1, 1]} : vector<1x18x18x32xf32> to vector<1x16x16x32xf32>
    %43 = vector.shape_cast %42 : vector<1x16x16x32xf32> to vector<16x16x32xf32>
    %44 = vector.shape_cast %43 : vector<16x16x32xf32> to vector<256x32xf32>
    %45 = arith.truncf %44 : vector<256x32xf32> to vector<256x32xbf16>
    %c5 = arith.constant 5 : index
    %c0_19 = arith.constant 0 : index
    %c0_20 = arith.constant 0 : index
    %46 = vector.load %arg2[%c5, %c0_19, %c0_20] : memref<9x32x32xbf16, #tpu.memory_space<vmem>>, vector<1x32x32xbf16>
    %47 = vector.shape_cast %46 : vector<1x32x32xbf16> to vector<32x32xbf16>
    %cst_21 = arith.constant dense<0.000000e+00> : vector<256x32xf32>
    %48 = tpu.matmul %45, %47, %cst_21 {dimension_numbers = #tpu.dot_dimension_numbers<[1], [0], [0], [1], [0, 0, 1, 1], [], []>} : vector<256x32xbf16>, vector<32x32xbf16>, vector<256x32xf32> -> vector<256x32xf32>
    %49 = arith.addf %41, %48 : vector<256x32xf32>
    %50 = vector.extract_strided_slice %0 {offsets = [0, 2, 0, 0], sizes = [1, 16, 16, 32], strides = [1, 1, 1, 1]} : vector<1x18x18x32xf32> to vector<1x16x16x32xf32>
    %51 = vector.shape_cast %50 : vector<1x16x16x32xf32> to vector<16x16x32xf32>
    %52 = vector.shape_cast %51 : vector<16x16x32xf32> to vector<256x32xf32>
    %53 = arith.truncf %52 : vector<256x32xf32> to vector<256x32xbf16>
    %c6 = arith.constant 6 : index
    %c0_22 = arith.constant 0 : index
    %c0_23 = arith.constant 0 : index
    %54 = vector.load %arg2[%c6, %c0_22, %c0_23] : memref<9x32x32xbf16, #tpu.memory_space<vmem>>, vector<1x32x32xbf16>
    %55 = vector.shape_cast %54 : vector<1x32x32xbf16> to vector<32x32xbf16>
    %cst_24 = arith.constant dense<0.000000e+00> : vector<256x32xf32>
    %56 = tpu.matmul %53, %55, %cst_24 {dimension_numbers = #tpu.dot_dimension_numbers<[1], [0], [0], [1], [0, 0, 1, 1], [], []>} : vector<256x32xbf16>, vector<32x32xbf16>, vector<256x32xf32> -> vector<256x32xf32>
    %57 = arith.addf %49, %56 : vector<256x32xf32>
    %58 = vector.extract_strided_slice %0 {offsets = [0, 2, 1, 0], sizes = [1, 16, 16, 32], strides = [1, 1, 1, 1]} : vector<1x18x18x32xf32> to vector<1x16x16x32xf32>
    %59 = vector.shape_cast %58 : vector<1x16x16x32xf32> to vector<16x16x32xf32>
    %60 = vector.shape_cast %59 : vector<16x16x32xf32> to vector<256x32xf32>
    %61 = arith.truncf %60 : vector<256x32xf32> to vector<256x32xbf16>
    %c7 = arith.constant 7 : index
    %c0_25 = arith.constant 0 : index
    %c0_26 = arith.constant 0 : index
    %62 = vector.load %arg2[%c7, %c0_25, %c0_26] : memref<9x32x32xbf16, #tpu.memory_space<vmem>>, vector<1x32x32xbf16>
    %63 = vector.shape_cast %62 : vector<1x32x32xbf16> to vector<32x32xbf16>
    %cst_27 = arith.constant dense<0.000000e+00> : vector<256x32xf32>
    %64 = tpu.matmul %61, %63, %cst_27 {dimension_numbers = #tpu.dot_dimension_numbers<[1], [0], [0], [1], [0, 0, 1, 1], [], []>} : vector<256x32xbf16>, vector<32x32xbf16>, vector<256x32xf32> -> vector<256x32xf32>
    %65 = arith.addf %57, %64 : vector<256x32xf32>
    %66 = vector.extract_strided_slice %0 {offsets = [0, 2, 2, 0], sizes = [1, 16, 16, 32], strides = [1, 1, 1, 1]} : vector<1x18x18x32xf32> to vector<1x16x16x32xf32>
    %67 = vector.shape_cast %66 : vector<1x16x16x32xf32> to vector<16x16x32xf32>
    %68 = vector.shape_cast %67 : vector<16x16x32xf32> to vector<256x32xf32>
    %69 = arith.truncf %68 : vector<256x32xf32> to vector<256x32xbf16>
    %c8 = arith.constant 8 : index
    %c0_28 = arith.constant 0 : index
    %c0_29 = arith.constant 0 : index
    %70 = vector.load %arg2[%c8, %c0_28, %c0_29] : memref<9x32x32xbf16, #tpu.memory_space<vmem>>, vector<1x32x32xbf16>
    %71 = vector.shape_cast %70 : vector<1x32x32xbf16> to vector<32x32xbf16>
    %cst_30 = arith.constant dense<0.000000e+00> : vector<256x32xf32>
    %72 = tpu.matmul %69, %71, %cst_30 {dimension_numbers = #tpu.dot_dimension_numbers<[1], [0], [0], [1], [0, 0, 1, 1], [], []>} : vector<256x32xbf16>, vector<32x32xbf16>, vector<256x32xf32> -> vector<256x32xf32>
    %73 = arith.addf %65, %72 : vector<256x32xf32>
    %c0_31 = arith.constant 0 : index
    %c0_32 = arith.constant 0 : index
    %74 = vector.load %arg3[%c0_31, %c0_32] : memref<1x32xf32, #tpu.memory_space<vmem>>, vector<1x32xf32>
    %75 = vector.broadcast %74 : vector<1x32xf32> to vector<256x32xf32>
    %76 = arith.addf %73, %75 : vector<256x32xf32>
    %cst_33 = arith.constant 0.000000e+00 : f32
    %77 = vector.broadcast %cst_33 : f32 to vector<256x32xf32>
    %78 = arith.cmpf oge, %76, %77 : vector<256x32xf32>
    %c0_34 = arith.constant 0 : index
    %c0_35 = arith.constant 0 : index
    %79 = vector.load %arg4[%c0_34, %c0_35] : memref<1x32xf32, #tpu.memory_space<vmem>>, vector<1x32xf32>
    %80 = vector.broadcast %79 : vector<1x32xf32> to vector<256x32xf32>
    %81 = arith.mulf %80, %76 : vector<256x32xf32>
    %82 = arith.select %78, %76, %81 : vector<256x32xi1>, vector<256x32xf32>
    %83 = vector.shape_cast %82 : vector<256x32xf32> to vector<1x16x16x32xf32>
    %c0_36 = arith.constant 0 : index
    %c0_37 = arith.constant 0 : index
    %c0_38 = arith.constant 0 : index
    %c0_39 = arith.constant 0 : index
    %84 = vector.load %arg5[%c0_36, %c0_37, %c0_38, %c0_39] : memref<1x16x16x32xf32, #tpu.memory_space<vmem>>, vector<1x16x16x32xf32>
    %85 = arith.addf %83, %84 : vector<1x16x16x32xf32>
    %c0_40 = arith.constant 0 : index
    %c0_41 = arith.constant 0 : index
    %c0_42 = arith.constant 0 : index
    %c0_43 = arith.constant 0 : index
    %86 = vector.load %arg6[%c0_40, %c0_41, %c0_42, %c0_43] : memref<1x16x16x32xf32, #tpu.memory_space<vmem>>, vector<1x16x16x32xf32>
    tpu.vector_store %arg6[%c0_40, %c0_41, %c0_42, %c0_43], %85 {strides = array<i32>} : memref<1x16x16x32xf32, #tpu.memory_space<vmem>>, vector<1x16x16x32xf32>,
    return
  }
  func.func @transform_0(%arg0: i32) -> (i32, i32, i32, i32) {
    %c0_i32 = arith.constant 0 : i32
    %c0_i32_0 = arith.constant 0 : i32
    %c0_i32_1 = arith.constant 0 : i32
    %c0_i32_2 = arith.constant 0 : i32
    return %arg0, %c0_i32, %c0_i32_0, %c0_i32_1 : i32, i32, i32, i32
  }
  func.func @transform_1(%arg0: i32) -> (i32, i32, i32) {
    %c0_i32 = arith.constant 0 : i32
    %c0_i32_0 = arith.constant 0 : i32
    %c0_i32_1 = arith.constant 0 : i32
    %c0_i32_2 = arith.constant 0 : i32
    return %c0_i32, %c0_i32_0, %c0_i32_1 : i32, i32, i32
  }
  func.func @transform_2(%arg0: i32) -> (i32, i32) {
    %c0_i32 = arith.constant 0 : i32
    %c0_i32_0 = arith.constant 0 : i32
    %c0_i32_1 = arith.constant 0 : i32
    return %c0_i32, %c0_i32_0 : i32, i32
  }
  func.func @transform_3(%arg0: i32) -> (i32, i32) {
    %c0_i32 = arith.constant 0 : i32
    %c0_i32_0 = arith.constant 0 : i32
    %c0_i32_1 = arith.constant 0 : i32
    return %c0_i32, %c0_i32_0 : i32, i32
  }
  func.func @transform_4(%arg0: i32) -> (i32, i32, i32, i32) {
    %c0_i32 = arith.constant 0 : i32
    %c0_i32_0 = arith.constant 0 : i32
    %c0_i32_1 = arith.constant 0 : i32
    %c0_i32_2 = arith.constant 0 : i32
    return %arg0, %c0_i32, %c0_i32_0, %c0_i32_1 : i32, i32, i32, i32
  }
  func.func @transform_5(%arg0: i32) -> (i32, i32, i32, i32) {
    %c0_i32 = arith.constant 0 : i32
    %c0_i32_0 = arith.constant 0 : i32
    %c0_i32_1 = arith.constant 0 : i32
    %c0_i32_2 = arith.constant 0 : i32
    return %arg0, %c0_i32, %c0_i32_0, %c0_i32_1 : i32, i32, i32, i32
  }
}

module attributes {stable_mosaic.version = 11 : i64} {
  func.func @_matmul_kernel(%arg0: i32, %arg1: memref<256x256xf32, #tpu.memory_space<vmem>>, %arg2: memref<256x512xbf16, #tpu.memory_space<vmem>>, %arg3: memref<256x512xf32, #tpu.memory_space<vmem>>) attributes {dimension_semantics = [#tpu.dimension_semantics<parallel>], iteration_bounds = array<i64: 2>, scalar_prefetch = 0 : i64, scratch_operands = 0 : i64, tpu.core_type = #tpu.core_type<tc>, window_params = [{transform_indices = @transform_0, window_bounds = array<i64: 256, 256>}, {pipeline_mode = #tpu.pipeline_mode<synchronous>, transform_indices = @transform_1, window_bounds = array<i64: 256, 512>}, {transform_indices = @transform_2, window_bounds = array<i64: 256, 512>}]} {
    %c0 = arith.constant 0 : index
    %c0_0 = arith.constant 0 : index
    %0 = vector.load %arg1[%c0, %c0_0] : memref<256x256xf32, #tpu.memory_space<vmem>>, vector<256x256xf32>
    %1 = arith.truncf %0 : vector<256x256xf32> to vector<256x256xbf16>
    %c0_1 = arith.constant 0 : index
    %c0_2 = arith.constant 0 : index
    %2 = vector.load %arg2[%c0_1, %c0_2] : memref<256x512xbf16, #tpu.memory_space<vmem>>, vector<256x512xbf16>
    %cst = arith.constant dense<0.000000e+00> : vector<256x512xf32>
    %3 = tpu.matmul %1, %2, %cst {dimension_numbers = #tpu.dot_dimension_numbers<[1], [0], [0], [1], [0, 0, 1, 1], [], []>} : vector<256x256xbf16>, vector<256x512xbf16>, vector<256x512xf32> -> vector<256x512xf32>
    %c0_3 = arith.constant 0 : index
    %c0_4 = arith.constant 0 : index
    %4 = vector.load %arg3[%c0_3, %c0_4] : memref<256x512xf32, #tpu.memory_space<vmem>>, vector<256x512xf32>
    tpu.vector_store %arg3[%c0_3, %c0_4], %3 {strides = array<i32>} : memref<256x512xf32, #tpu.memory_space<vmem>>, vector<256x512xf32>,
    return
  }
  func.func @transform_0(%arg0: i32) -> (i32, i32) {
    %c0_i32 = arith.constant 0 : i32
    %c0_i32_0 = arith.constant 0 : i32
    return %arg0, %c0_i32 : i32, i32
  }
  func.func @transform_1(%arg0: i32) -> (i32, i32) {
    %c0_i32 = arith.constant 0 : i32
    %c0_i32_0 = arith.constant 0 : i32
    %c0_i32_1 = arith.constant 0 : i32
    return %c0_i32, %c0_i32_0 : i32, i32
  }
  func.func @transform_2(%arg0: i32) -> (i32, i32) {
    %c0_i32 = arith.constant 0 : i32
    %c0_i32_0 = arith.constant 0 : i32
    return %arg0, %c0_i32 : i32, i32
  }
}

module attributes {stable_mosaic.version = 11 : i64} {
  func.func @_matmul_bias_kernel(%arg0: i32, %arg1: memref<256x32xf32, #tpu.memory_space<vmem>>, %arg2: memref<32x256xbf16, #tpu.memory_space<vmem>>, %arg3: memref<1x256xf32, #tpu.memory_space<vmem>>, %arg4: memref<256x256xf32, #tpu.memory_space<vmem>>) attributes {dimension_semantics = [#tpu.dimension_semantics<parallel>], iteration_bounds = array<i64: 2>, scalar_prefetch = 0 : i64, scratch_operands = 0 : i64, tpu.core_type = #tpu.core_type<tc>, window_params = [{transform_indices = @transform_0, window_bounds = array<i64: 256, 32>}, {pipeline_mode = #tpu.pipeline_mode<synchronous>, transform_indices = @transform_1, window_bounds = array<i64: 32, 256>}, {pipeline_mode = #tpu.pipeline_mode<synchronous>, transform_indices = @transform_2, window_bounds = array<i64: 1, 256>}, {transform_indices = @transform_3, window_bounds = array<i64: 256, 256>}]} {
    %c0 = arith.constant 0 : index
    %c0_0 = arith.constant 0 : index
    %0 = vector.load %arg1[%c0, %c0_0] : memref<256x32xf32, #tpu.memory_space<vmem>>, vector<256x32xf32>
    %1 = arith.truncf %0 : vector<256x32xf32> to vector<256x32xbf16>
    %c0_1 = arith.constant 0 : index
    %c0_2 = arith.constant 0 : index
    %2 = vector.load %arg2[%c0_1, %c0_2] : memref<32x256xbf16, #tpu.memory_space<vmem>>, vector<32x256xbf16>
    %cst = arith.constant dense<0.000000e+00> : vector<256x256xf32>
    %3 = tpu.matmul %1, %2, %cst {dimension_numbers = #tpu.dot_dimension_numbers<[1], [0], [0], [1], [0, 0, 1, 1], [], []>} : vector<256x32xbf16>, vector<32x256xbf16>, vector<256x256xf32> -> vector<256x256xf32>
    %c0_3 = arith.constant 0 : index
    %c0_4 = arith.constant 0 : index
    %4 = vector.load %arg3[%c0_3, %c0_4] : memref<1x256xf32, #tpu.memory_space<vmem>>, vector<1x256xf32>
    %5 = vector.broadcast %4 : vector<1x256xf32> to vector<256x256xf32>
    %6 = arith.addf %3, %5 : vector<256x256xf32>
    %c0_5 = arith.constant 0 : index
    %c0_6 = arith.constant 0 : index
    %7 = vector.load %arg4[%c0_5, %c0_6] : memref<256x256xf32, #tpu.memory_space<vmem>>, vector<256x256xf32>
    tpu.vector_store %arg4[%c0_5, %c0_6], %6 {strides = array<i32>} : memref<256x256xf32, #tpu.memory_space<vmem>>, vector<256x256xf32>,
    return
  }
  func.func @transform_0(%arg0: i32) -> (i32, i32) {
    %c0_i32 = arith.constant 0 : i32
    %c0_i32_0 = arith.constant 0 : i32
    return %arg0, %c0_i32 : i32, i32
  }
  func.func @transform_1(%arg0: i32) -> (i32, i32) {
    %c0_i32 = arith.constant 0 : i32
    %c0_i32_0 = arith.constant 0 : i32
    %c0_i32_1 = arith.constant 0 : i32
    return %c0_i32, %c0_i32_0 : i32, i32
  }
  func.func @transform_2(%arg0: i32) -> (i32, i32) {
    %c0_i32 = arith.constant 0 : i32
    %c0_i32_0 = arith.constant 0 : i32
    %c0_i32_1 = arith.constant 0 : i32
    return %c0_i32, %c0_i32_0 : i32, i32
  }
  func.func @transform_3(%arg0: i32) -> (i32, i32) {
    %c0_i32 = arith.constant 0 : i32
    %c0_i32_0 = arith.constant 0 : i32
    return %arg0, %c0_i32 : i32, i32
  }
}

module attributes {stable_mosaic.version = 11 : i64} {
  func.func @_combine_kernel(%arg0: i32, %arg1: memref<1024x3xf32, #tpu.memory_space<vmem>>, %arg2: memref<1024x3xf32, #tpu.memory_space<vmem>>, %arg3: memref<1024x1xf32, #tpu.memory_space<vmem>>, %arg4: memref<1x3xf32, #tpu.memory_space<vmem>>, %arg5: memref<1024x3xf32, #tpu.memory_space<vmem>>) attributes {dimension_semantics = [#tpu.dimension_semantics<parallel>], iteration_bounds = array<i64: 8>, scalar_prefetch = 0 : i64, scratch_operands = 0 : i64, tpu.core_type = #tpu.core_type<tc>, window_params = [{transform_indices = @transform_0, window_bounds = array<i64: 1024, 3>}, {transform_indices = @transform_1, window_bounds = array<i64: 1024, 3>}, {transform_indices = @transform_2, window_bounds = array<i64: 1024, 1>}, {pipeline_mode = #tpu.pipeline_mode<synchronous>, transform_indices = @transform_3, window_bounds = array<i64: 1, 3>}, {transform_indices = @transform_4, window_bounds = array<i64: 1024, 3>}]} {
    %c0 = arith.constant 0 : index
    %c0_0 = arith.constant 0 : index
    %0 = vector.load %arg1[%c0, %c0_0] : memref<1024x3xf32, #tpu.memory_space<vmem>>, vector<1024x3xf32>
    %c0_1 = arith.constant 0 : index
    %c0_2 = arith.constant 0 : index
    %1 = vector.load %arg2[%c0_1, %c0_2] : memref<1024x3xf32, #tpu.memory_space<vmem>>, vector<1024x3xf32>
    %2 = arith.addf %0, %1 : vector<1024x3xf32>
    %c0_3 = arith.constant 0 : index
    %c0_4 = arith.constant 0 : index
    %3 = vector.load %arg3[%c0_3, %c0_4] : memref<1024x1xf32, #tpu.memory_space<vmem>>, vector<1024x1xf32>
    %4 = vector.broadcast %3 : vector<1024x1xf32> to vector<1024x3xf32>
    %5 = arith.addf %2, %4 : vector<1024x3xf32>
    %c0_5 = arith.constant 0 : index
    %c0_6 = arith.constant 0 : index
    %6 = vector.load %arg4[%c0_5, %c0_6] : memref<1x3xf32, #tpu.memory_space<vmem>>, vector<1x3xf32>
    %7 = vector.broadcast %6 : vector<1x3xf32> to vector<1024x3xf32>
    %8 = arith.addf %5, %7 : vector<1024x3xf32>
    %c0_7 = arith.constant 0 : index
    %c0_8 = arith.constant 0 : index
    %9 = vector.load %arg5[%c0_7, %c0_8] : memref<1024x3xf32, #tpu.memory_space<vmem>>, vector<1024x3xf32>
    tpu.vector_store %arg5[%c0_7, %c0_8], %8 {strides = array<i32>} : memref<1024x3xf32, #tpu.memory_space<vmem>>, vector<1024x3xf32>,
    return
  }
  func.func @transform_0(%arg0: i32) -> (i32, i32) {
    %c0_i32 = arith.constant 0 : i32
    %c0_i32_0 = arith.constant 0 : i32
    return %arg0, %c0_i32 : i32, i32
  }
  func.func @transform_1(%arg0: i32) -> (i32, i32) {
    %c0_i32 = arith.constant 0 : i32
    %c0_i32_0 = arith.constant 0 : i32
    return %arg0, %c0_i32 : i32, i32
  }
  func.func @transform_2(%arg0: i32) -> (i32, i32) {
    %c0_i32 = arith.constant 0 : i32
    %c0_i32_0 = arith.constant 0 : i32
    return %arg0, %c0_i32 : i32, i32
  }
  func.func @transform_3(%arg0: i32) -> (i32, i32) {
    %c0_i32 = arith.constant 0 : i32
    %c0_i32_0 = arith.constant 0 : i32
    %c0_i32_1 = arith.constant 0 : i32
    return %c0_i32, %c0_i32_0 : i32, i32
  }
  func.func @transform_4(%arg0: i32) -> (i32, i32) {
    %c0_i32 = arith.constant 0 : i32
    %c0_i32_0 = arith.constant 0 : i32
    return %arg0, %c0_i32 : i32, i32
  }
}

</mosaic_0001>

<llo_original>
// kernel: stacked_edvr_forward.10
$region0: #{stacked_edvr_forward.10}
  #allocation0 [shape = 'u32[]', space=smem, size = 0x4, offset = 0x4, fixed_abs, tag = 'smem constant byte address 0x4 - core index']
  #allocation1 [shape = 'u32[72,128]{1,0:T(1,128)}', space=vmem, size = 0x9000, scoped, tag = 'internal scratch']
  %s0 = inlined_call_operand.vmem [shape: f32[512,256], index: 0, kind: input, shape index: {}]
  %s1 = inlined_call_operand.vmem [shape: bf16[256,32], index: 1, kind: input, shape index: {}]
  %s2 = inlined_call_operand.vmem [shape: f32[1,32], index: 2, kind: input, shape index: {}]
  %s3 = inlined_call_operand.vmem [shape: f32[512,32], index: 3, kind: output, shape index: {}]
  %s4 = sld [smem:[#allocation0]]
  $region45: #{stacked_edvr_forward.10} parent=0
    _
  %s6 = ssub.s32 1, %s4
  %s7 = scalar_select 0, %s6, %s4
  loop: start=0, step=1, limit=4
  $region2: #{stacked_edvr_forward.10} parent=0 // loop_pre_header
    _
  $region3: #{stacked_edvr_forward.10} parent=0 // loop_header
    %s9 = sphi 0, %s13
    %p10 = scmp.ge.s32.totalorder %s9, 4
    %s19 = sphi 0, %s21
    %s22 = sphi 0, %s19
    %s23 = sphi 0, %s22
    %s39 = sphi 0, %s23
    %s43 = sphi 0, %s43
    %s45 = sphi 0, %s43
    %s46 = sphi 0, %s45
    %s60 = sphi 0, %s46
    %s64 = sphi 0, %s64
    %s66 = sphi 0, %s64
    %s67 = sphi 0, %s66
    %s81 = sphi 0, %s67
    %s87 = sphi 0, %s89
    %s90 = sphi 0, %s87
    %s91 = sphi 0, %s90
    %s107 = sphi 0, %s91
  $region4: #{stacked_edvr_forward.10} parent=0 // loop_header_branch
    %12 = sbr.rel (%p10) target = $region8
  $region5: #{stacked_edvr_forward.10} parent=0 // loop_body
    %s14 = ssub.s32 %s9, 1
    %s15 = ssub.s32 %s9, 2
    %s16 = sadd.s32 %s9, 1
    %s17 = ssub.s32 %s9, %s16
    %p18 = scmp.eq.s32.totalorder %s17, 0
    %s20 = sadd.s32 %s19, 1
    %s21 = scalar_select %p18, %s19, %s20
    %p24 = pneg %p18
    %p25 = scmp.eq.s32.totalorder %s9, 1
    %p26 = por %p24, %p25
    %p27 = scmp.ne.s32.totalorder %s19, %s22
    %p28 = scmp.eq.s32.totalorder %s9, 0
    %p29 = por %p27, %p28
    %p30 = scmp.ne.s32.totalorder %s19, %s22
    %p31 = scmp.eq.s32.totalorder %s14, 1
    %p32 = por %p30, %p31
    %p33 = scmp.ne.s32.totalorder %s22, %s23
    %p34 = scmp.eq.s32.totalorder %s14, 0
    %p35 = por %p33, %p34
    %p36 = scmp.ne.s32.totalorder %s22, %s23
    %p37 = scmp.eq.s32.totalorder %s15, 1
    %p38 = por %p36, %p37
    %p40 = scmp.ne.s32.totalorder %s23, %s39
    %p41 = scmp.eq.s32.totalorder %s15, 0
    %p42 = por %p40, %p41
    %s44 = sadd.s32 %s43, 1
    %p47 = scmp.eq.s32.totalorder %s9, 1
    %p48 = scmp.ne.s32.totalorder %s43, %s45
    %p49 = scmp.eq.s32.totalorder %s9, 0
    %p50 = por %p48, %p49
    %p51 = scmp.ne.s32.totalorder %s43, %s45
    %p52 = scmp.eq.s32.totalorder %s14, 1
    %p53 = por %p51, %p52
    %p54 = scmp.ne.s32.totalorder %s45, %s46
    %p55 = scmp.eq.s32.totalorder %s14, 0
    %p56 = por %p54, %p55
    %p57 = scmp.ne.s32.totalorder %s45, %s46
    %p58 = scmp.eq.s32.totalorder %s15, 1
    %p59 = por %p57, %p58
    %p61 = scmp.ne.s32.totalorder %s46, %s60
    %p62 = scmp.eq.s32.totalorder %s15, 0
    %p63 = por %p61, %p62
    %s65 = sadd.s32 %s64, 1
    %p68 = scmp.eq.s32.totalorder %s9, 1
    %p69 = scmp.ne.s32.totalorder %s64, %s66
    %p70 = scmp.eq.s32.totalorder %s9, 0
    %p71 = por %p69, %p70
    %p72 = scmp.ne.s32.totalorder %s64, %s66
    %p73 = scmp.eq.s32.totalorder %s14, 1
    %p74 = por %p72, %p73
    %p75 = scmp.ne.s32.totalorder %s66, %s67
    %p76 = scmp.eq.s32.totalorder %s14, 0
    %p77 = por %p75, %p76
    %p78 = scmp.ne.s32.totalorder %s66, %s67
    %p79 = scmp.eq.s32.totalorder %s15, 1
    %p80 = por %p78, %p79
    %p82 = scmp.ne.s32.totalorder %s67, %s81
    %p83 = scmp.eq.s32.totalorder %s15, 0
    %p84 = por %p82, %p83
    %s85 = ssub.s32 %s9, %s16
    %p86 = scmp.eq.s32.totalorder %s85, 0
    %s88 = sadd.s32 %s87, 1
    %s89 = scalar_select %p86, %s87, %s88
    %p92 = pneg %p86
    %p93 = scmp.eq.s32.totalorder %s9, 1
    %p94 = por %p92, %p93
    %p95 = scmp.ne.s32.totalorder %s87, %s90
    %p96 = scmp.eq.s32.totalorder %s9, 0
    %p97 = por %p95, %p96
    %p98 = scmp.ne.s32.totalorder %s87, %s90
    %p99 = scmp.eq.s32.totalorder %s14, 1
    %p100 = por %p98, %p99
    %p101 = scmp.ne.s32.totalorder %s90, %s91
    %p102 = scmp.eq.s32.totalorder %s14, 0
    %p103 = por %p101, %p102
    %p104 = scmp.ne.s32.totalorder %s90, %s91
    %p105 = scmp.eq.s32.totalorder %s15, 1
    %p106 = por %p104, %p105
    %p108 = scmp.ne.s32.totalorder %s91, %s107
    %p109 = scmp.eq.s32.totalorder %s15, 0
    %p110 = por %p108, %p109
    %p111 = scmp.le.s32.totalorder 1, %s9
    %p112 = scmp.lt.s32.totalorder %s9, 3
    %p113 = pnand %p111, %p112
    %p114 = pneg %p113
    // Predicated region
    $region9: #{stacked_edvr_forward.10} parent=5 // pred_check
      _
    $region10: #{stacked_edvr_forward.10} parent=5 // pred_check_branch
      %116 = sbr.rel (%p113) target = $region12
    $region11: #{stacked_edvr_forward.10} parent=5 // pred_region
      %s117 = ssub.s32 %s9, 1
      // Predicated region
      $region13: #{stacked_edvr_forward.10} parent=11 // pred_check
        %p118 = pneg %p56
      $region14: #{stacked_edvr_forward.10} parent=11 // pred_check_branch
        %120 = sbr.rel (%p118) target = $region16
      $region15: #{stacked_edvr_forward.10} parent=11 // pred_region
        _
      $region16: #{stacked_edvr_forward.10} parent=11 // pred_fallthru
        _
      // Predicated region
      $region17: #{stacked_edvr_forward.10} parent=11 // pred_check
        %p121 = pneg %p77
      $region18: #{stacked_edvr_forward.10} parent=11 // pred_check_branch
        %123 = sbr.rel (%p121) target = $region20
      $region19: #{stacked_edvr_forward.10} parent=11 // pred_region
        _
      $region20: #{stacked_edvr_forward.10} parent=11 // pred_fallthru
        _
    $region12: #{stacked_edvr_forward.10} parent=5 // pred_fallthru
      _
    %p124 = scmp.lt.s32.totalorder %s9, 2
    // Predicated region
    $region21: #{stacked_edvr_forward.10} parent=5 // pred_check
      %p125 = pneg %p124
    $region22: #{stacked_edvr_forward.10} parent=5 // pred_check_branch
      %127 = sbr.rel (%p125) target = $region24
    $region23: #{stacked_edvr_forward.10} parent=5 // pred_region
      // Predicated region
      $region25: #{stacked_edvr_forward.10} parent=23 // pred_check
        %p128 = pneg %p29
      $region26: #{stacked_edvr_forward.10} parent=23 // pred_check_branch
        %130 = sbr.rel (%p128) target = $region28
      $region27: #{stacked_edvr_forward.10} parent=23 // pred_region
        %s131 = smul.u32 32, %s9
        %p132 = scmp.lt.s32.totalorder %s131, 63
        %s133 = scalar_select %p132, %s131, 63
        %s134 = smul.addr %s133, 2
        %s135 = smul.addr %s134, 8
        %s136 = scalar_lea.vmem %s0, %s135
        %s137 = smul.u32 32, %s9
      $region28: #{stacked_edvr_forward.10} parent=23 // pred_fallthru
        _
    $region24: #{stacked_edvr_forward.10} parent=5 // pred_fallthru
      _
    %p138 = scmp.le.s32.totalorder 1, %s9
    %p139 = scmp.lt.s32.totalorder %s9, 3
    %p140 = pnand %p138, %p139
    %p141 = pneg %p140
    // Predicated region
    $region29: #{stacked_edvr_forward.10} parent=5 // pred_check
      _
    $region30: #{stacked_edvr_forward.10} parent=5 // pred_check_branch
      %143 = sbr.rel (%p140) target = $region32
    $region31: #{stacked_edvr_forward.10} parent=5 // pred_region
      %s144 = ssub.s32 %s9, 1
      %s145 = smul.u32 32, %s14
      %p146 = scmp.lt.s32.totalorder %s145, 63
      %s147 = scalar_select %p146, %s145, 63
      %s148 = smul.addr %s147, 2
      %s149 = smul.addr %s148, 8
      %s150 = scalar_lea.vmem %s0, %s149
      %p151 = pneg %p35
      %p152 = pneg %p32
      %p153 = pneg %p56
      %p154 = pneg %p53
      %p155 = pneg %p77
      %p156 = pneg %p74
      %p157 = pneg %p103
      %p158 = pneg %p100
      %s159 = smul.u32 32, %s14
      %p160 = scmp.lt.s32.totalorder %s159, 63
      %s161 = scalar_select %p160, %s159, 63
      %s162 = smul.addr %s161, 8
      %s163 = scalar_lea.vmem %s3, %s162
      %s164 = smul.u32 32, %s14
      %p165 = scmp.lt.s32.totalorder %s164, 63
      %s166 = scalar_select %p165, %s164, 63
      %s167 = smul.addr %s166, 2
      %s168 = smul.addr %s167, 8
      %s169 = scalar_lea.vmem %s0, %s168
      %s170 = smul.u32 32, %s14
      %s171 = smul.u32 32, %s14
      %p172 = scmp.lt.s32.totalorder %s171, 63
      %s173 = scalar_select %p172, %s171, 63
      %s174 = smul.addr %s173, 8
      %s175 = scalar_lea.vmem %s3, %s174
      %s176 = smul.u32 32, %s14
      %v177 = vld [vmem:[%s169] sm:$0xff]
      %v178 = vld [vmem:[%s169 + $0x8] sm:$0xff]
      %v179 = vld [vmem:[%s169 + $0x10] sm:$0xff]
      %v180 = vld [vmem:[%s169 + $0x18] sm:$0xff]
      %v181 = vld [vmem:[%s169 + $0x20] sm:$0xff]
      %v182 = vld [vmem:[%s169 + $0x28] sm:$0xff]
      %v183 = vld [vmem:[%s169 + $0x30] sm:$0xff]
      %v184 = vld [vmem:[%s169 + $0x38] sm:$0xff]
      %v185 = vld [vmem:[%s169 + $0x40] sm:$0xff]
      %v186 = vld [vmem:[%s169 + $0x48] sm:$0xff]
      %v187 = vld [vmem:[%s169 + $0x50] sm:$0xff]
      %v188 = vld [vmem:[%s169 + $0x58] sm:$0xff]
      %v189 = vld [vmem:[%s169 + $0x60] sm:$0xff]
      %v190 = vld [vmem:[%s169 + $0x68] sm:$0xff]
      %v191 = vld [vmem:[%s169 + $0x70] sm:$0xff]
      %v192 = vld [vmem:[%s169 + $0x78] sm:$0xff]
      %v193 = vld [vmem:[%s169 + $0x80] sm:$0xff]
      %v194 = vld [vmem:[%s169 + $0x88] sm:$0xff]
      %v195 = vld [vmem:[%s169 + $0x90] sm:$0xff]
      %v196 = vld [vmem:[%s169 + $0x98] sm:$0xff]
      %v197 = vld [vmem:[%s169 + $0xa0] sm:$0xff]
      %v198 = vld [vmem:[%s169 + $0xa8] sm:$0xff]
      %v199 = vld [vmem:[%s169 + $0xb0] sm:$0xff]
      %v200 = vld [vmem:[%s169 + $0xb8] sm:$0xff]
      %v201 = vld [vmem:[%s169 + $0xc0] sm:$0xff]
      %v202 = vld [vmem:[%s169 + $0xc8] sm:$0xff]
      %v203 = vld [vmem:[%s169 + $0xd0] sm:$0xff]
      %v204 = vld [vmem:[%s169 + $0xd8] sm:$0xff]
      %v205 = vld [vmem:[%s169 + $0xe0] sm:$0xff]
      %v206 = vld [vmem:[%s169 + $0xe8] sm:$0xff]
      %v207 = vld [vmem:[%s169 + $0xf0] sm:$0xff]
      %v208 = vld [vmem:[%s169 + $0xf8] sm:$0xff]
      %v209 = vld [vmem:[%s169 + $0x100] sm:$0xff]
      %v210 = vld [vmem:[%s169 + $0x108] sm:$0xff]
      %v211 = vld [vmem:[%s169 + $0x110] sm:$0xff]
      %v212 = vld [vmem:[%s169 + $0x118] sm:$0xff]
      %v213 = vld [vmem:[%s169 + $0x120] sm:$0xff]
      %v214 = vld [vmem:[%s169 + $0x128] sm:$0xff]
      %v215 = vld [vmem:[%s169 + $0x130] sm:$0xff]
      %v216 = vld [vmem:[%s169 + $0x138] sm:$0xff]
      %v217 = vld [vmem:[%s169 + $0x140] sm:$0xff]
      %v218 = vld [vmem:[%s169 + $0x148] sm:$0xff]
      %v219 = vld [vmem:[%s169 + $0x150] sm:$0xff]
      %v220 = vld [vmem:[%s169 + $0x158] sm:$0xff]
      %v221 = vld [vmem:[%s169 + $0x160] sm:$0xff]
      %v222 = vld [vmem:[%s169 + $0x168] sm:$0xff]
      %v223 = vld [vmem:[%s169 + $0x170] sm:$0xff]
      %v224 = vld [vmem:[%s169 + $0x178] sm:$0xff]
      %v225 = vld [vmem:[%s169 + $0x180] sm:$0xff]
      %v226 = vld [vmem:[%s169 + $0x188] sm:$0xff]
      %v227 = vld [vmem:[%s169 + $0x190] sm:$0xff]
      %v228 = vld [vmem:[%s169 + $0x198] sm:$0xff]
      %v229 = vld [vmem:[%s169 + $0x1a0] sm:$0xff]
      %v230 = vld [vmem:[%s169 + $0x1a8] sm:$0xff]
      %v231 = vld [vmem:[%s169 + $0x1b0] sm:$0xff]
      %v232 = vld [vmem:[%s169 + $0x1b8] sm:$0xff]
      %v233 = vld [vmem:[%s169 + $0x1c0] sm:$0xff]
      %v234 = vld [vmem:[%s169 + $0x1c8] sm:$0xff]
      %v235 = vld [vmem:[%s169 + $0x1d0] sm:$0xff]
      %v236 = vld [vmem:[%s169 + $0x1d8] sm:$0xff]
      %v237 = vld [vmem:[%s169 + $0x1e0] sm:$0xff]
      %v238 = vld [vmem:[%s169 + $0x1e8] sm:$0xff]
      %v239 = vld [vmem:[%s169 + $0x1f0] sm:$0xff]
      %v240 = vld [vmem:[%s169 + $0x1f8] sm:$0xff]
      %v241 = vpack.c.bf16 %v179, %v177
      %v242 = vpack.c.bf16 %v180, %v178
      %v243 = vpack.c.bf16 %v183, %v181
      %v244 = vpack.c.bf16 %v184, %v182
      %v245 = vpack.c.bf16 %v187, %v185
      %v246 = vpack.c.bf16 %v188, %v186
      %v247 = vpack.c.bf16 %v191, %v189
      %v248 = vpack.c.bf16 %v192, %v190
      %v249 = vpack.c.bf16 %v195, %v193
      %v250 = vpack.c.bf16 %v196, %v194
      %v251 = vpack.c.bf16 %v199, %v197
      %v252 = vpack.c.bf16 %v200, %v198
      %v253 = vpack.c.bf16 %v203, %v201
      %v254 = vpack.c.bf16 %v204, %v202
      %v255 = vpack.c.bf16 %v207, %v205
      %v256 = vpack.c.bf16 %v208, %v206
      %v257 = vpack.c.bf16 %v211, %v209
      %v258 = vpack.c.bf16 %v212, %v210
      %v259 = vpack.c.bf16 %v215, %v213
      %v260 = vpack.c.bf16 %v216, %v214
      %v261 = vpack.c.bf16 %v219, %v217
      %v262 = vpack.c.bf16 %v220, %v218
      %v263 = vpack.c.bf16 %v223, %v221
      %v264 = vpack.c.bf16 %v224, %v222
      %v265 = vpack.c.bf16 %v227, %v225
      %v266 = vpack.c.bf16 %v228, %v226
      %v267 = vpack.c.bf16 %v231, %v229
      %v268 = vpack.c.bf16 %v232, %v230
      %v269 = vpack.c.bf16 %v235, %v233
      %v270 = vpack.c.bf16 %v236, %v234
      %v271 = vpack.c.bf16 %v239, %v237
      %v272 = vpack.c.bf16 %v240, %v238
      %v273 = vld [vmem:[%s1] sm:$0xf]
      %v274 = vld [vmem:[%s1 + $0x4] sm:$0xf]
      %v275 = vld [vmem:[%s1 + $0x8] sm:$0xf]
      %v276 = vld [vmem:[%s1 + $0xc] sm:$0xf]
      %v277 = vld [vmem:[%s1 + $0x10] sm:$0xf]
      %v278 = vld [vmem:[%s1 + $0x14] sm:$0xf]
      %v279 = vld [vmem:[%s1 + $0x18] sm:$0xf]
      %v280 = vld [vmem:[%s1 + $0x1c] sm:$0xf]
      %v281 = vld [vmem:[%s1 + $0x20] sm:$0xf]
      %v282 = vld [vmem:[%s1 + $0x24] sm:$0xf]
      %v283 = vld [vmem:[%s1 + $0x28] sm:$0xf]
      %v284 = vld [vmem:[%s1 + $0x2c] sm:$0xf]
      %v285 = vld [vmem:[%s1 + $0x30] sm:$0xf]
      %v286 = vld [vmem:[%s1 + $0x34] sm:$0xf]
      %v287 = vld [vmem:[%s1 + $0x38] sm:$0xf]
      %v288 = vld [vmem:[%s1 + $0x3c] sm:$0xf]
      %v289 = vld [vmem:[%s1 + $0x40] sm:$0xf]
      %v290 = vld [vmem:[%s1 + $0x44] sm:$0xf]
      %v291 = vld [vmem:[%s1 + $0x48] sm:$0xf]
      %v292 = vld [vmem:[%s1 + $0x4c] sm:$0xf]
      %v293 = vld [vmem:[%s1 + $0x50] sm:$0xf]
      %v294 = vld [vmem:[%s1 + $0x54] sm:$0xf]
      %v295 = vld [vmem:[%s1 + $0x58] sm:$0xf]
      %v296 = vld [vmem:[%s1 + $0x5c] sm:$0xf]
      %v297 = vld [vmem:[%s1 + $0x60] sm:$0xf]
      %v298 = vld [vmem:[%s1 + $0x64] sm:$0xf]
      %v299 = vld [vmem:[%s1 + $0x68] sm:$0xf]
      %v300 = vld [vmem:[%s1 + $0x6c] sm:$0xf]
      %v301 = vld [vmem:[%s1 + $0x70] sm:$0xf]
      %v302 = vld [vmem:[%s1 + $0x74] sm:$0xf]
      %v303 = vld [vmem:[%s1 + $0x78] sm:$0xf]
      %v304 = vld [vmem:[%s1 + $0x7c] sm:$0xf]
      %v305 = vld [vmem:[%s2] sm:$0x1]
      %v307 = vperm.slane %v305, 0
      %v341 = vunpack.c.l.b16 %v273
      %v342 = vunpack.c.l.b16 %v274
      %v343 = vunpack.c.l.b16 %v275
      %v344 = vunpack.c.l.b16 %v276
      %v345 = vunpack.c.l.b16 %v277
      %v346 = vunpack.c.l.b16 %v278
      %v347 = vunpack.c.l.b16 %v279
      %v348 = vunpack.c.l.b16 %v280
      %v349 = vunpack.c.l.b16 %v281
      %v350 = vunpack.c.l.b16 %v282
      %v351 = vunpack.c.l.b16 %v283
      %v352 = vunpack.c.l.b16 %v284
      %v353 = vunpack.c.l.b16 %v285
      %v354 = vunpack.c.l.b16 %v286
      %v355 = vunpack.c.l.b16 %v287
      %v356 = vunpack.c.l.b16 %v288
      %v357 = vunpack.c.l.b16 %v289
      %v358 = vunpack.c.l.b16 %v290
      %v359 = vunpack.c.l.b16 %v291
      %v360 = vunpack.c.l.b16 %v292
      %v361 = vunpack.c.l.b16 %v293
      %v362 = vunpack.c.l.b16 %v294
      %v363 = vunpack.c.l.b16 %v295
      %v364 = vunpack.c.l.b16 %v296
      %v365 = vunpack.c.l.b16 %v297
      %v366 = vunpack.c.l.b16 %v298
      %v367 = vunpack.c.l.b16 %v299
      %v368 = vunpack.c.l.b16 %v300
      %v369 = vunpack.c.l.b16 %v301
      %v370 = vunpack.c.l.b16 %v302
      %v371 = vunpack.c.l.b16 %v303
      %v372 = vunpack.c.l.b16 %v304
      %v373 = vpack.c.b16 %v342, %v341
      %v374 = vpack.c.b16 %v344, %v343
      %v375 = vpack.c.b16 %v346, %v345
      %v376 = vpack.c.b16 %v348, %v347
      %v377 = vpack.c.b16 %v350, %v349
      %v378 = vpack.c.b16 %v352, %v351
      %v379 = vpack.c.b16 %v354, %v353
      %v380 = vpack.c.b16 %v356, %v355
      %v381 = vpack.c.b16 %v358, %v357
      %v382 = vpack.c.b16 %v360, %v359
      %v383 = vpack.c.b16 %v362, %v361
      %v384 = vpack.c.b16 %v364, %v363
      %v385 = vpack.c.b16 %v366, %v365
      %v386 = vpack.c.b16 %v368, %v367
      %v387 = vpack.c.b16 %v370, %v369
      %v388 = vpack.c.b16 %v372, %v371
      %405 = vmatpush.bf16.msra.mxu0 %v380
      %406 = vmatpush.bf16.msra.mxu0 %v379
      %407 = vmatpush.bf16.msra.mxu0 %v378
      %408 = vmatpush.bf16.msra.mxu0 %v377
      %409 = vmatpush.bf16.msra.mxu0 %v376
      %410 = vmatpush.bf16.msra.mxu0 %v375
      %411 = vmatpush.bf16.msra.mxu0 %v374
      %412 = vmatpush.bf16.msra.mxu0 %v373
      %413 = vmatmul.bf16.gmra.mxu0 %v241
      %v414 = vpop.f32.mrf.mxu0
      %v415 = vadd.f32 %v307, %v414
      %v416 = vpop.f32.mrf.mxu0
      %v417 = vadd.f32 %v307, %v416
      %418 = vmatmul.bf16.gmra.mxu0 %v243
      %v419 = vpop.f32.mrf.mxu0
      %v420 = vadd.f32 %v307, %v419
      %v421 = vpop.f32.mrf.mxu0
      %v422 = vadd.f32 %v307, %v421
      %423 = vmatmul.bf16.gmra.mxu0 %v245
      %v424 = vpop.f32.mrf.mxu0
      %v425 = vadd.f32 %v307, %v424
      %v426 = vpop.f32.mrf.mxu0
      %v427 = vadd.f32 %v307, %v426
      %428 = vmatmul.bf16.gmra.mxu0 %v247
      %v429 = vpop.f32.mrf.mxu0
      %v430 = vadd.f32 %v307, %v429
      %v431 = vpop.f32.mrf.mxu0
      %v432 = vadd.f32 %v307, %v431
      %433 = vmatmul.bf16.gmra.mxu0 %v249
      %v434 = vpop.f32.mrf.mxu0
      %v435 = vadd.f32 %v307, %v434
      %v436 = vpop.f32.mrf.mxu0
      %v437 = vadd.f32 %v307, %v436
      %438 = vmatmul.bf16.gmra.mxu0 %v251
      %v439 = vpop.f32.mrf.mxu0
      %v440 = vadd.f32 %v307, %v439
      %v441 = vpop.f32.mrf.mxu0
      %v442 = vadd.f32 %v307, %v441
      %443 = vmatmul.bf16.gmra.mxu0 %v253
      %v444 = vpop.f32.mrf.mxu0
      %v445 = vadd.f32 %v307, %v444
      %v446 = vpop.f32.mrf.mxu0
      %v447 = vadd.f32 %v307, %v446
      %448 = vmatmul.bf16.gmra.mxu0 %v255
      %v449 = vpop.f32.mrf.mxu0
      %v450 = vadd.f32 %v307, %v449
      %v451 = vpop.f32.mrf.mxu0
      %v452 = vadd.f32 %v307, %v451
      %453 = vmatmul.bf16.gmra.mxu0 %v257
      %v454 = vpop.f32.mrf.mxu0
      %v455 = vadd.f32 %v307, %v454
      %v456 = vpop.f32.mrf.mxu0
      %v457 = vadd.f32 %v307, %v456
      %458 = vmatmul.bf16.gmra.mxu0 %v259
      %v459 = vpop.f32.mrf.mxu0
      %v460 = vadd.f32 %v307, %v459
      %v461 = vpop.f32.mrf.mxu0
      %v462 = vadd.f32 %v307, %v461
      %463 = vmatmul.bf16.gmra.mxu0 %v261
      %v464 = vpop.f32.mrf.mxu0
      %v465 = vadd.f32 %v307, %v464
      %v466 = vpop.f32.mrf.mxu0
      %v467 = vadd.f32 %v307, %v466
      %468 = vmatmul.bf16.gmra.mxu0 %v263
      %v469 = vpop.f32.mrf.mxu0
      %v470 = vadd.f32 %v307, %v469
      %v471 = vpop.f32.mrf.mxu0
      %v472 = vadd.f32 %v307, %v471
      %473 = vmatmul.bf16.gmra.mxu0 %v265
      %v474 = vpop.f32.mrf.mxu0
      %v475 = vadd.f32 %v307, %v474
      %v476 = vpop.f32.mrf.mxu0
      %v477 = vadd.f32 %v307, %v476
      %478 = vmatmul.bf16.gmra.mxu0 %v267
      %v479 = vpop.f32.mrf.mxu0
      %v480 = vadd.f32 %v307, %v479
      %v481 = vpop.f32.mrf.mxu0
      %v482 = vadd.f32 %v307, %v481
      %483 = vmatmul.bf16.gmra.mxu0 %v269
      %v484 = vpop.f32.mrf.mxu0
      %v485 = vadd.f32 %v307, %v484
      %v486 = vpop.f32.mrf.mxu0
      %v487 = vadd.f32 %v307, %v486
      %488 = vmatmul.bf16.gmra.mxu0 %v271
      %v489 = vpop.f32.mrf.mxu0
      %v490 = vadd.f32 %v307, %v489
      %v491 = vpop.f32.mrf.mxu0
      %v492 = vadd.f32 %v307, %v491
      %493 = vdwg.mxu0
      %494 = vmatpush.bf16.msra.mxu0 %v388
      %495 = vmatpush.bf16.msra.mxu0 %v387
      %496 = vmatpush.bf16.msra.mxu0 %v386
      %497 = vmatpush.bf16.msra.mxu0 %v385
      %498 = vmatpush.bf16.msra.mxu0 %v384
      %499 = vmatpush.bf16.msra.mxu0 %v383
      %500 = vmatpush.bf16.msra.mxu0 %v382
      %501 = vmatpush.bf16.msra.mxu0 %v381
      %502 = vmatmul.bf16.gmra.mxu0 %v242
      %v503 = vpop.f32.mrf.mxu0
      %v504 = vadd.f32 %v415, %v503
      %v505 = vpop.f32.mrf.mxu0
      %v506 = vadd.f32 %v417, %v505
      %507 = vmatmul.bf16.gmra.mxu0 %v244
      %v508 = vpop.f32.mrf.mxu0
      %v509 = vadd.f32 %v420, %v508
      %v510 = vpop.f32.mrf.mxu0
      %v511 = vadd.f32 %v422, %v510
      %512 = vmatmul.bf16.gmra.mxu0 %v246
      %v513 = vpop.f32.mrf.mxu0
      %v514 = vadd.f32 %v425, %v513
      %v515 = vpop.f32.mrf.mxu0
      %v516 = vadd.f32 %v427, %v515
      %517 = vmatmul.bf16.gmra.mxu0 %v248
      %v518 = vpop.f32.mrf.mxu0
      %v519 = vadd.f32 %v430, %v518
      %v520 = vpop.f32.mrf.mxu0
      %v521 = vadd.f32 %v432, %v520
      %522 = vmatmul.bf16.gmra.mxu0 %v250
      %v523 = vpop.f32.mrf.mxu0
      %v524 = vadd.f32 %v435, %v523
      %v525 = vpop.f32.mrf.mxu0
      %v526 = vadd.f32 %v437, %v525
      %527 = vmatmul.bf16.gmra.mxu0 %v252
      %v528 = vpop.f32.mrf.mxu0
      %v529 = vadd.f32 %v440, %v528
      %v530 = vpop.f32.mrf.mxu0
      %v531 = vadd.f32 %v442, %v530
      %532 = vmatmul.bf16.gmra.mxu0 %v254
      %v533 = vpop.f32.mrf.mxu0
      %v534 = vadd.f32 %v445, %v533
      %v535 = vpop.f32.mrf.mxu0
      %v536 = vadd.f32 %v447, %v535
      %537 = vmatmul.bf16.gmra.mxu0 %v256
      %v538 = vpop.f32.mrf.mxu0
      %v539 = vadd.f32 %v450, %v538
      %v540 = vpop.f32.mrf.mxu0
      %v541 = vadd.f32 %v452, %v540
      %542 = vmatmul.bf16.gmra.mxu0 %v258
      %v543 = vpop.f32.mrf.mxu0
      %v544 = vadd.f32 %v455, %v543
      %v545 = vpop.f32.mrf.mxu0
      %v546 = vadd.f32 %v457, %v545
      %547 = vmatmul.bf16.gmra.mxu0 %v260
      %v548 = vpop.f32.mrf.mxu0
      %v549 = vadd.f32 %v460, %v548
      %v550 = vpop.f32.mrf.mxu0
      %v551 = vadd.f32 %v462, %v550
      %552 = vmatmul.bf16.gmra.mxu0 %v262
      %v553 = vpop.f32.mrf.mxu0
      %v554 = vadd.f32 %v465, %v553
      %v555 = vpop.f32.mrf.mxu0
      %v556 = vadd.f32 %v467, %v555
      %557 = vmatmul.bf16.gmra.mxu0 %v264
      %v558 = vpop.f32.mrf.mxu0
      %v559 = vadd.f32 %v470, %v558
      %v560 = vpop.f32.mrf.mxu0
      %v561 = vadd.f32 %v472, %v560
      %562 = vmatmul.bf16.gmra.mxu0 %v266
      %v563 = vpop.f32.mrf.mxu0
      %v564 = vadd.f32 %v475, %v563
      %v565 = vpop.f32.mrf.mxu0
      %v566 = vadd.f32 %v477, %v565
      %567 = vmatmul.bf16.gmra.mxu0 %v268
      %v568 = vpop.f32.mrf.mxu0
      %v569 = vadd.f32 %v480, %v568
      %v570 = vpop.f32.mrf.mxu0
      %v571 = vadd.f32 %v482, %v570
      %572 = vmatmul.bf16.gmra.mxu0 %v270
      %v573 = vpop.f32.mrf.mxu0
      %v574 = vadd.f32 %v485, %v573
      %v575 = vpop.f32.mrf.mxu0
      %v576 = vadd.f32 %v487, %v575
      %577 = vmatmul.bf16.gmra.mxu0 %v272
      %v578 = vpop.f32.mrf.mxu0
      %v579 = vadd.f32 %v490, %v578
      %v580 = vpop.f32.mrf.mxu0
      %v581 = vadd.f32 %v492, %v580
      %582 = vdwg.mxu0
      %vm583 = vcmask 261120
      %584 = vst.msk [vmem:[%s175] sm:$0xff] %vm583, %v504
      %585 = vst.msk [vmem:[%s175 + $0x8] sm:$0xff] %vm583, %v506
      %586 = vst.msk [vmem:[%s175 + $0x10] sm:$0xff] %vm583, %v509
      %587 = vst.msk [vmem:[%s175 + $0x18] sm:$0xff] %vm583, %v511
      %588 = vst.msk [vmem:[%s175 + $0x20] sm:$0xff] %vm583, %v514
      %589 = vst.msk [vmem:[%s175 + $0x28] sm:$0xff] %vm583, %v516
      %590 = vst.msk [vmem:[%s175 + $0x30] sm:$0xff] %vm583, %v519
      %591 = vst.msk [vmem:[%s175 + $0x38] sm:$0xff] %vm583, %v521
      %592 = vst.msk [vmem:[%s175 + $0x40] sm:$0xff] %vm583, %v524
      %593 = vst.msk [vmem:[%s175 + $0x48] sm:$0xff] %vm583, %v526
      %594 = vst.msk [vmem:[%s175 + $0x50] sm:$0xff] %vm583, %v529
      %595 = vst.msk [vmem:[%s175 + $0x58] sm:$0xff] %vm583, %v531
      %596 = vst.msk [vmem:[%s175 + $0x60] sm:$0xff] %vm583, %v534
      %597 = vst.msk [vmem:[%s175 + $0x68] sm:$0xff] %vm583, %v536
      %598 = vst.msk [vmem:[%s175 + $0x70] sm:$0xff] %vm583, %v539
      %599 = vst.msk [vmem:[%s175 + $0x78] sm:$0xff] %vm583, %v541
      %600 = vst.msk [vmem:[%s175 + $0x80] sm:$0xff] %vm583, %v544
      %601 = vst.msk [vmem:[%s175 + $0x88] sm:$0xff] %vm583, %v546
      %602 = vst.msk [vmem:[%s175 + $0x90] sm:$0xff] %vm583, %v549
      %603 = vst.msk [vmem:[%s175 + $0x98] sm:$0xff] %vm583, %v551
      %604 = vst.msk [vmem:[%s175 + $0xa0] sm:$0xff] %vm583, %v554
      %605 = vst.msk [vmem:[%s175 + $0xa8] sm:$0xff] %vm583, %v556
      %606 = vst.msk [vmem:[%s175 + $0xb0] sm:$0xff] %vm583, %v559
      %607 = vst.msk [vmem:[%s175 + $0xb8] sm:$0xff] %vm583, %v561
      %608 = vst.msk [vmem:[%s175 + $0xc0] sm:$0xff] %vm583, %v564
      %609 = vst.msk [vmem:[%s175 + $0xc8] sm:$0xff] %vm583, %v566
      %610 = vst.msk [vmem:[%s175 + $0xd0] sm:$0xff] %vm583, %v569
      %611 = vst.msk [vmem:[%s175 + $0xd8] sm:$0xff] %vm583, %v571
      %612 = vst.msk [vmem:[%s175 + $0xe0] sm:$0xff] %vm583, %v574
      %613 = vst.msk [vmem:[%s175 + $0xe8] sm:$0xff] %vm583, %v576
      %614 = vst.msk [vmem:[%s175 + $0xf0] sm:$0xff] %vm583, %v579
      %615 = vst.msk [vmem:[%s175 + $0xf8] sm:$0xff] %vm583, %v581
      %s616 = smul.u32 32, %s14
      %p617 = scmp.lt.s32.totalorder %s616, 63
      %s618 = scalar_select %p617, %s616, 63
      %s619 = smul.addr %s618, 8
      %s620 = scalar_lea.vmem %s3, %s619
      // Predicated region
      $region33: #{stacked_edvr_forward.10} parent=31 // pred_check
        %p621 = pneg %p100
      $region34: #{stacked_edvr_forward.10} parent=31 // pred_check_branch
        %623 = sbr.rel (%p621) target = $region36
      $region35: #{stacked_edvr_forward.10} parent=31 // pred_region
        %s624 = smul.u32 32, %s14
      $region36: #{stacked_edvr_forward.10} parent=31 // pred_fallthru
        _
    $region32: #{stacked_edvr_forward.10} parent=5 // pred_fallthru
      _
    %p625 = scmp.le.s32.totalorder 2, %s9
    // Predicated region
    $region37: #{stacked_edvr_forward.10} parent=5 // pred_check
      %p626 = pneg %p625
    $region38: #{stacked_edvr_forward.10} parent=5 // pred_check_branch
      %628 = sbr.rel (%p626) target = $region40
    $region39: #{stacked_edvr_forward.10} parent=5 // pred_region
      %s629 = ssub.s32 %s9, 2
      // Predicated region
      $region41: #{stacked_edvr_forward.10} parent=39 // pred_check
        %p630 = pneg %p106
      $region42: #{stacked_edvr_forward.10} parent=39 // pred_check_branch
        %632 = sbr.rel (%p630) target = $region44
      $region43: #{stacked_edvr_forward.10} parent=39 // pred_region
        %s633 = smul.u32 32, %s15
        %p634 = scmp.lt.s32.totalorder %s633, 63
        %s635 = scalar_select %p634, %s633, 63
        %s636 = smul.addr %s635, 8
        %s637 = scalar_lea.vmem %s3, %s636
      $region44: #{stacked_edvr_forward.10} parent=39 // pred_fallthru
        _
    $region40: #{stacked_edvr_forward.10} parent=5 // pred_fallthru
      _
  $region6: #{stacked_edvr_forward.10} parent=0 // loop_footer
    %s13 = sadd.s32 1, %s9
  $region7: #{stacked_edvr_forward.10} parent=0 // loop_footer_branch
    %8 = sbr.rel target = $region3
  $region8: #{stacked_edvr_forward.10} parent=0 // loop_exit
    _

// kernel: stacked_edvr_forward.9
$region0: #{stacked_edvr_forward.9}
  #allocation0 [shape = 'u32[]', space=smem, size = 0x4, offset = 0x4, fixed_abs, tag = 'smem constant byte address 0x4 - core index']
  #allocation1 [shape = 'u32[72,128]{1,0:T(1,128)}', space=vmem, size = 0x9000, scoped, tag = 'internal scratch']
  %s0 = inlined_call_operand.vmem [shape: f32[512,32], index: 0, kind: input, shape index: {}]
  %s1 = inlined_call_operand.vmem [shape: bf16[32,256], index: 1, kind: input, shape index: {}]
  %s2 = inlined_call_operand.vmem [shape: f32[1,256], index: 2, kind: input, shape index: {}]
  %s3 = inlined_call_operand.vmem [shape: f32[1,256], index: 3, kind: input, shape index: {}]
  %s4 = inlined_call_operand.vmem [shape: f32[512,256], index: 4, kind: output, shape index: {}]
  %s5 = sld [smem:[#allocation0]]
  $region49: #{stacked_edvr_forward.9} parent=0
    _
  %s7 = ssub.s32 1, %s5
  %s8 = scalar_select 0, %s7, %s5
  loop: start=0, step=1, limit=4
  $region2: #{stacked_edvr_forward.9} parent=0 // loop_pre_header
    _
  $region3: #{stacked_edvr_forward.9} parent=0 // loop_header
    %s10 = sphi 0, %s14
    %p11 = scmp.ge.s32.totalorder %s10, 4
    %s20 = sphi 0, %s22
    %s23 = sphi 0, %s20
    %s24 = sphi 0, %s23
    %s40 = sphi 0, %s24
    %s44 = sphi 0, %s44
    %s46 = sphi 0, %s44
    %s47 = sphi 0, %s46
    %s61 = sphi 0, %s47
    %s65 = sphi 0, %s65
    %s67 = sphi 0, %s65
    %s68 = sphi 0, %s67
    %s82 = sphi 0, %s68
    %s86 = sphi 0, %s86
    %s88 = sphi 0, %s86
    %s89 = sphi 0, %s88
    %s103 = sphi 0, %s89
    %s109 = sphi 0, %s111
    %s112 = sphi 0, %s109
    %s113 = sphi 0, %s112
    %s129 = sphi 0, %s113
  $region4: #{stacked_edvr_forward.9} parent=0 // loop_header_branch
    %13 = sbr.rel (%p11) target = $region8
  $region5: #{stacked_edvr_forward.9} parent=0 // loop_body
    %s15 = ssub.s32 %s10, 1
    %s16 = ssub.s32 %s10, 2
    %s17 = sadd.s32 %s10, 1
    %s18 = ssub.s32 %s10, %s17
    %p19 = scmp.eq.s32.totalorder %s18, 0
    %s21 = sadd.s32 %s20, 1
    %s22 = scalar_select %p19, %s20, %s21
    %p25 = pneg %p19
    %p26 = scmp.eq.s32.totalorder %s10, 1
    %p27 = por %p25, %p26
    %p28 = scmp.ne.s32.totalorder %s20, %s23
    %p29 = scmp.eq.s32.totalorder %s10, 0
    %p30 = por %p28, %p29
    %p31 = scmp.ne.s32.totalorder %s20, %s23
    %p32 = scmp.eq.s32.totalorder %s15, 1
    %p33 = por %p31, %p32
    %p34 = scmp.ne.s32.totalorder %s23, %s24
    %p35 = scmp.eq.s32.totalorder %s15, 0
    %p36 = por %p34, %p35
    %p37 = scmp.ne.s32.totalorder %s23, %s24
    %p38 = scmp.eq.s32.totalorder %s16, 1
    %p39 = por %p37, %p38
    %p41 = scmp.ne.s32.totalorder %s24, %s40
    %p42 = scmp.eq.s32.totalorder %s16, 0
    %p43 = por %p41, %p42
    %s45 = sadd.s32 %s44, 1
    %p48 = scmp.eq.s32.totalorder %s10, 1
    %p49 = scmp.ne.s32.totalorder %s44, %s46
    %p50 = scmp.eq.s32.totalorder %s10, 0
    %p51 = por %p49, %p50
    %p52 = scmp.ne.s32.totalorder %s44, %s46
    %p53 = scmp.eq.s32.totalorder %s15, 1
    %p54 = por %p52, %p53
    %p55 = scmp.ne.s32.totalorder %s46, %s47
    %p56 = scmp.eq.s32.totalorder %s15, 0
    %p57 = por %p55, %p56
    %p58 = scmp.ne.s32.totalorder %s46, %s47
    %p59 = scmp.eq.s32.totalorder %s16, 1
    %p60 = por %p58, %p59
    %p62 = scmp.ne.s32.totalorder %s47, %s61
    %p63 = scmp.eq.s32.totalorder %s16, 0
    %p64 = por %p62, %p63
    %s66 = sadd.s32 %s65, 1
    %p69 = scmp.eq.s32.totalorder %s10, 1
    %p70 = scmp.ne.s32.totalorder %s65, %s67
    %p71 = scmp.eq.s32.totalorder %s10, 0
    %p72 = por %p70, %p71
    %p73 = scmp.ne.s32.totalorder %s65, %s67
    %p74 = scmp.eq.s32.totalorder %s15, 1
    %p75 = por %p73, %p74
    %p76 = scmp.ne.s32.totalorder %s67, %s68
    %p77 = scmp.eq.s32.totalorder %s15, 0
    %p78 = por %p76, %p77
    %p79 = scmp.ne.s32.totalorder %s67, %s68
    %p80 = scmp.eq.s32.totalorder %s16, 1
    %p81 = por %p79, %p80
    %p83 = scmp.ne.s32.totalorder %s68, %s82
    %p84 = scmp.eq.s32.totalorder %s16, 0
    %p85 = por %p83, %p84
    %s87 = sadd.s32 %s86, 1
    %p90 = scmp.eq.s32.totalorder %s10, 1
    %p91 = scmp.ne.s32.totalorder %s86, %s88
    %p92 = scmp.eq.s32.totalorder %s10, 0
    %p93 = por %p91, %p92
    %p94 = scmp.ne.s32.totalorder %s86, %s88
    %p95 = scmp.eq.s32.totalorder %s15, 1
    %p96 = por %p94, %p95
    %p97 = scmp.ne.s32.totalorder %s88, %s89
    %p98 = scmp.eq.s32.totalorder %s15, 0
    %p99 = por %p97, %p98
    %p100 = scmp.ne.s32.totalorder %s88, %s89
    %p101 = scmp.eq.s32.totalorder %s16, 1
    %p102 = por %p100, %p101
    %p104 = scmp.ne.s32.totalorder %s89, %s103
    %p105 = scmp.eq.s32.totalorder %s16, 0
    %p106 = por %p104, %p105
    %s107 = ssub.s32 %s10, %s17
    %p108 = scmp.eq.s32.totalorder %s107, 0
    %s110 = sadd.s32 %s109, 1
    %s111 = scalar_select %p108, %s109, %s110
    %p114 = pneg %p108
    %p115 = scmp.eq.s32.totalorder %s10, 1
    %p116 = por %p114, %p115
    %p117 = scmp.ne.s32.totalorder %s109, %s112
    %p118 = scmp.eq.s32.totalorder %s10, 0
    %p119 = por %p117, %p118
    %p120 = scmp.ne.s32.totalorder %s109, %s112
    %p121 = scmp.eq.s32.totalorder %s15, 1
    %p122 = por %p120, %p121
    %p123 = scmp.ne.s32.totalorder %s112, %s113
    %p124 = scmp.eq.s32.totalorder %s15, 0
    %p125 = por %p123, %p124
    %p126 = scmp.ne.s32.totalorder %s112, %s113
    %p127 = scmp.eq.s32.totalorder %s16, 1
    %p128 = por %p126, %p127
    %p130 = scmp.ne.s32.totalorder %s113, %s129
    %p131 = scmp.eq.s32.totalorder %s16, 0
    %p132 = por %p130, %p131
    %p133 = scmp.le.s32.totalorder 1, %s10
    %p134 = scmp.lt.s32.totalorder %s10, 3
    %p135 = pnand %p133, %p134
    %p136 = pneg %p135
    // Predicated region
    $region9: #{stacked_edvr_forward.9} parent=5 // pred_check
      _
    $region10: #{stacked_edvr_forward.9} parent=5 // pred_check_branch
      %138 = sbr.rel (%p135) target = $region12
    $region11: #{stacked_edvr_forward.9} parent=5 // pred_region
      %s139 = ssub.s32 %s10, 1
      // Predicated region
      $region13: #{stacked_edvr_forward.9} parent=11 // pred_check
        %p140 = pneg %p57
      $region14: #{stacked_edvr_forward.9} parent=11 // pred_check_branch
        %142 = sbr.rel (%p140) target = $region16
      $region15: #{stacked_edvr_forward.9} parent=11 // pred_region
        _
      $region16: #{stacked_edvr_forward.9} parent=11 // pred_fallthru
        _
      // Predicated region
      $region17: #{stacked_edvr_forward.9} parent=11 // pred_check
        %p143 = pneg %p78
      $region18: #{stacked_edvr_forward.9} parent=11 // pred_check_branch
        %145 = sbr.rel (%p143) target = $region20
      $region19: #{stacked_edvr_forward.9} parent=11 // pred_region
        _
      $region20: #{stacked_edvr_forward.9} parent=11 // pred_fallthru
        _
      // Predicated region
      $region21: #{stacked_edvr_forward.9} parent=11 // pred_check
        %p146 = pneg %p99
      $region22: #{stacked_edvr_forward.9} parent=11 // pred_check_branch
        %148 = sbr.rel (%p146) target = $region24
      $region23: #{stacked_edvr_forward.9} parent=11 // pred_region
        _
      $region24: #{stacked_edvr_forward.9} parent=11 // pred_fallthru
        _
    $region12: #{stacked_edvr_forward.9} parent=5 // pred_fallthru
      _
    %p149 = scmp.lt.s32.totalorder %s10, 2
    // Predicated region
    $region25: #{stacked_edvr_forward.9} parent=5 // pred_check
      %p150 = pneg %p149
    $region26: #{stacked_edvr_forward.9} parent=5 // pred_check_branch
      %152 = sbr.rel (%p150) target = $region28
    $region27: #{stacked_edvr_forward.9} parent=5 // pred_region
      // Predicated region
      $region29: #{stacked_edvr_forward.9} parent=27 // pred_check
        %p153 = pneg %p30
      $region30: #{stacked_edvr_forward.9} parent=27 // pred_check_branch
        %155 = sbr.rel (%p153) target = $region32
      $region31: #{stacked_edvr_forward.9} parent=27 // pred_region
        %s156 = smul.u32 32, %s10
        %p157 = scmp.lt.s32.totalorder %s156, 63
        %s158 = scalar_select %p157, %s156, 63
        %s159 = smul.addr %s158, 8
        %s160 = scalar_lea.vmem %s0, %s159
        %s161 = smul.u32 32, %s10
      $region32: #{stacked_edvr_forward.9} parent=27 // pred_fallthru
        _
    $region28: #{stacked_edvr_forward.9} parent=5 // pred_fallthru
      _
    %p162 = scmp.le.s32.totalorder 1, %s10
    %p163 = scmp.lt.s32.totalorder %s10, 3
    %p164 = pnand %p162, %p163
    %p165 = pneg %p164
    // Predicated region
    $region33: #{stacked_edvr_forward.9} parent=5 // pred_check
      _
    $region34: #{stacked_edvr_forward.9} parent=5 // pred_check_branch
      %167 = sbr.rel (%p164) target = $region36
    $region35: #{stacked_edvr_forward.9} parent=5 // pred_region
      %s168 = ssub.s32 %s10, 1
      %s169 = smul.u32 32, %s15
      %p170 = scmp.lt.s32.totalorder %s169, 63
      %s171 = scalar_select %p170, %s169, 63
      %s172 = smul.addr %s171, 8
      %s173 = scalar_lea.vmem %s0, %s172
      %p174 = pneg %p36
      %p175 = pneg %p33
      %p176 = pneg %p57
      %p177 = pneg %p54
      %p178 = pneg %p78
      %p179 = pneg %p75
      %p180 = pneg %p99
      %p181 = pneg %p96
      %p182 = pneg %p125
      %p183 = pneg %p122
      %s184 = smul.u32 32, %s15
      %p185 = scmp.lt.s32.totalorder %s184, 63
      %s186 = scalar_select %p185, %s184, 63
      %s187 = smul.addr %s186, 2
      %s188 = smul.addr %s187, 8
      %s189 = scalar_lea.vmem %s4, %s188
      %s190 = smul.u32 32, %s15
      %p191 = scmp.lt.s32.totalorder %s190, 63
      %s192 = scalar_select %p191, %s190, 63
      %s193 = smul.addr %s192, 8
      %s194 = scalar_lea.vmem %s0, %s193
      %s195 = smul.u32 32, %s15
      %s196 = smul.u32 32, %s15
      %p197 = scmp.lt.s32.totalorder %s196, 63
      %s198 = scalar_select %p197, %s196, 63
      %s199 = smul.addr %s198, 2
      %s200 = smul.addr %s199, 8
      %s201 = scalar_lea.vmem %s4, %s200
      %s202 = smul.u32 32, %s15
      %v204 = vld [vmem:[%s194] sm:$0xff]
      %v205 = vld [vmem:[%s194 + $0x8] sm:$0xff]
      %v206 = vld [vmem:[%s194 + $0x10] sm:$0xff]
      %v207 = vld [vmem:[%s194 + $0x18] sm:$0xff]
      %v208 = vld [vmem:[%s194 + $0x20] sm:$0xff]
      %v209 = vld [vmem:[%s194 + $0x28] sm:$0xff]
      %v210 = vld [vmem:[%s194 + $0x30] sm:$0xff]
      %v211 = vld [vmem:[%s194 + $0x38] sm:$0xff]
      %v212 = vld [vmem:[%s194 + $0x40] sm:$0xff]
      %v213 = vld [vmem:[%s194 + $0x48] sm:$0xff]
      %v214 = vld [vmem:[%s194 + $0x50] sm:$0xff]
      %v215 = vld [vmem:[%s194 + $0x58] sm:$0xff]
      %v216 = vld [vmem:[%s194 + $0x60] sm:$0xff]
      %v217 = vld [vmem:[%s194 + $0x68] sm:$0xff]
      %v218 = vld [vmem:[%s194 + $0x70] sm:$0xff]
      %v219 = vld [vmem:[%s194 + $0x78] sm:$0xff]
      %v220 = vld [vmem:[%s194 + $0x80] sm:$0xff]
      %v221 = vld [vmem:[%s194 + $0x88] sm:$0xff]
      %v222 = vld [vmem:[%s194 + $0x90] sm:$0xff]
      %v223 = vld [vmem:[%s194 + $0x98] sm:$0xff]
      %v224 = vld [vmem:[%s194 + $0xa0] sm:$0xff]
      %v225 = vld [vmem:[%s194 + $0xa8] sm:$0xff]
      %v226 = vld [vmem:[%s194 + $0xb0] sm:$0xff]
      %v227 = vld [vmem:[%s194 + $0xb8] sm:$0xff]
      %v228 = vld [vmem:[%s194 + $0xc0] sm:$0xff]
      %v229 = vld [vmem:[%s194 + $0xc8] sm:$0xff]
      %v230 = vld [vmem:[%s194 + $0xd0] sm:$0xff]
      %v231 = vld [vmem:[%s194 + $0xd8] sm:$0xff]
      %v232 = vld [vmem:[%s194 + $0xe0] sm:$0xff]
      %v233 = vld [vmem:[%s194 + $0xe8] sm:$0xff]
      %v234 = vld [vmem:[%s194 + $0xf0] sm:$0xff]
      %v235 = vld [vmem:[%s194 + $0xf8] sm:$0xff]
      %v236 = vpack.c.bf16 %v205, %v204
      %v237 = vpack.c.bf16 %v207, %v206
      %v238 = vpack.c.bf16 %v209, %v208
      %v239 = vpack.c.bf16 %v211, %v210
      %v240 = vpack.c.bf16 %v213, %v212
      %v241 = vpack.c.bf16 %v215, %v214
      %v242 = vpack.c.bf16 %v217, %v216
      %v243 = vpack.c.bf16 %v219, %v218
      %v244 = vpack.c.bf16 %v221, %v220
      %v245 = vpack.c.bf16 %v223, %v222
      %v246 = vpack.c.bf16 %v225, %v224
      %v247 = vpack.c.bf16 %v227, %v226
      %v248 = vpack.c.bf16 %v229, %v228
      %v249 = vpack.c.bf16 %v231, %v230
      %v250 = vpack.c.bf16 %v233, %v232
      %v251 = vpack.c.bf16 %v235, %v234
      %v252 = vld [vmem:[%s1] sm:$0xff]
      %v253 = vld [vmem:[%s1 + $0x8] sm:$0xff]
      %v254 = vld [vmem:[%s1 + $0x10] sm:$0xff]
      %v255 = vld [vmem:[%s1 + $0x18] sm:$0xff]
      %v256 = vld [vmem:[%s2] sm:$0x3]
      %v258 = vperm.slane %v256, 0
      %v259 = vperm.slane %v256, 1
      %v266 = vunpack.c.l.b16 %v252
      %v267 = vunpack.c.h.b16 %v252
      %v268 = vunpack.c.l.b16 %v253
      %v269 = vunpack.c.h.b16 %v253
      %v270 = vunpack.c.l.b16 %v254
      %v271 = vunpack.c.h.b16 %v254
      %v272 = vunpack.c.l.b16 %v255
      %v273 = vunpack.c.h.b16 %v255
      %v274 = vpack.c.b16 %v268, %v266
      %v275 = vpack.c.b16 %v269, %v267
      %v276 = vpack.c.b16 %v272, %v270
      %v277 = vpack.c.b16 %v273, %v271
      %vm282 = vcmask 261120
      %v284 = vsel %vm282, %v236, 0
      %v287 = vsel %vm282, %v237, 0
      %v290 = vsel %vm282, %v238, 0
      %v293 = vsel %vm282, %v239, 0
      %v296 = vsel %vm282, %v240, 0
      %v299 = vsel %vm282, %v241, 0
      %v302 = vsel %vm282, %v242, 0
      %v305 = vsel %vm282, %v243, 0
      %v308 = vsel %vm282, %v244, 0
      %v311 = vsel %vm282, %v245, 0
      %v314 = vsel %vm282, %v246, 0
      %v317 = vsel %vm282, %v247, 0
      %v320 = vsel %vm282, %v248, 0
      %v323 = vsel %vm282, %v249, 0
      %v326 = vsel %vm282, %v250, 0
      %v329 = vsel %vm282, %v251, 0
      %331 = vmatpush.bf16.msra.mxu0 0
      %332 = vmatpush.bf16.msra.mxu0 0
      %333 = vmatpush.bf16.msra.mxu0 0
      %334 = vmatpush.bf16.msra.mxu0 0
      %335 = vmatpush.bf16.msra.mxu0 0
      %336 = vmatpush.bf16.msra.mxu0 0
      %337 = vmatpush.bf16.msra.mxu0 %v276
      %338 = vmatpush.bf16.msra.mxu0 %v274
      %339 = vmatmul.bf16.gmra.mxu0 %v284
      %v340 = vpop.f32.mrf.mxu0
      %v341 = vadd.f32 %v258, %v340
      %v342 = vpop.f32.mrf.mxu0
      %v343 = vadd.f32 %v258, %v342
      %344 = vmatmul.bf16.gmra.mxu0 %v287
      %v345 = vpop.f32.mrf.mxu0
      %v346 = vadd.f32 %v258, %v345
      %v347 = vpop.f32.mrf.mxu0
      %v348 = vadd.f32 %v258, %v347
      %349 = vmatmul.bf16.gmra.mxu0 %v290
      %v350 = vpop.f32.mrf.mxu0
      %v351 = vadd.f32 %v258, %v350
      %v352 = vpop.f32.mrf.mxu0
      %v353 = vadd.f32 %v258, %v352
      %354 = vmatmul.bf16.gmra.mxu0 %v293
      %v355 = vpop.f32.mrf.mxu0
      %v356 = vadd.f32 %v258, %v355
      %v357 = vpop.f32.mrf.mxu0
      %v358 = vadd.f32 %v258, %v357
      %359 = vmatmul.bf16.gmra.mxu0 %v296
      %v360 = vpop.f32.mrf.mxu0
      %v361 = vadd.f32 %v258, %v360
      %v362 = vpop.f32.mrf.mxu0
      %v363 = vadd.f32 %v258, %v362
      %364 = vmatmul.bf16.gmra.mxu0 %v299
      %v365 = vpop.f32.mrf.mxu0
      %v366 = vadd.f32 %v258, %v365
      %v367 = vpop.f32.mrf.mxu0
      %v368 = vadd.f32 %v258, %v367
      %369 = vmatmul.bf16.gmra.mxu0 %v302
      %v370 = vpop.f32.mrf.mxu0
      %v371 = vadd.f32 %v258, %v370
      %v372 = vpop.f32.mrf.mxu0
      %v373 = vadd.f32 %v258, %v372
      %374 = vmatmul.bf16.gmra.mxu0 %v305
      %v375 = vpop.f32.mrf.mxu0
      %v376 = vadd.f32 %v258, %v375
      %v377 = vpop.f32.mrf.mxu0
      %v378 = vadd.f32 %v258, %v377
      %379 = vmatmul.bf16.gmra.mxu0 %v308
      %v380 = vpop.f32.mrf.mxu0
      %v381 = vadd.f32 %v258, %v380
      %v382 = vpop.f32.mrf.mxu0
      %v383 = vadd.f32 %v258, %v382
      %384 = vmatmul.bf16.gmra.mxu0 %v311
      %v385 = vpop.f32.mrf.mxu0
      %v386 = vadd.f32 %v258, %v385
      %v387 = vpop.f32.mrf.mxu0
      %v388 = vadd.f32 %v258, %v387
      %389 = vmatmul.bf16.gmra.mxu0 %v314
      %v390 = vpop.f32.mrf.mxu0
      %v391 = vadd.f32 %v258, %v390
      %v392 = vpop.f32.mrf.mxu0
      %v393 = vadd.f32 %v258, %v392
      %394 = vmatmul.bf16.gmra.mxu0 %v317
      %v395 = vpop.f32.mrf.mxu0
      %v396 = vadd.f32 %v258, %v395
      %v397 = vpop.f32.mrf.mxu0
      %v398 = vadd.f32 %v258, %v397
      %399 = vmatmul.bf16.gmra.mxu0 %v320
      %v400 = vpop.f32.mrf.mxu0
      %v401 = vadd.f32 %v258, %v400
      %v402 = vpop.f32.mrf.mxu0
      %v403 = vadd.f32 %v258, %v402
      %404 = vmatmul.bf16.gmra.mxu0 %v323
      %v405 = vpop.f32.mrf.mxu0
      %v406 = vadd.f32 %v258, %v405
      %v407 = vpop.f32.mrf.mxu0
      %v408 = vadd.f32 %v258, %v407
      %409 = vmatmul.bf16.gmra.mxu0 %v326
      %v410 = vpop.f32.mrf.mxu0
      %v411 = vadd.f32 %v258, %v410
      %v412 = vpop.f32.mrf.mxu0
      %v413 = vadd.f32 %v258, %v412
      %414 = vmatmul.bf16.gmra.mxu0 %v329
      %v415 = vpop.f32.mrf.mxu0
      %v416 = vadd.f32 %v258, %v415
      %v417 = vpop.f32.mrf.mxu0
      %v418 = vadd.f32 %v258, %v417
      %419 = vdwg.mxu0
      %420 = vmatpush.bf16.msra.mxu0 0
      %421 = vmatpush.bf16.msra.mxu0 0
      %422 = vmatpush.bf16.msra.mxu0 0
      %423 = vmatpush.bf16.msra.mxu0 0
      %424 = vmatpush.bf16.msra.mxu0 0
      %425 = vmatpush.bf16.msra.mxu0 0
      %426 = vmatpush.bf16.msra.mxu0 %v277
      %427 = vmatpush.bf16.msra.mxu0 %v275
      %428 = vmatmul.bf16.gmra.mxu0 %v284
      %v429 = vpop.f32.mrf.mxu0
      %v430 = vadd.f32 %v259, %v429
      %v431 = vpop.f32.mrf.mxu0
      %v432 = vadd.f32 %v259, %v431
      %433 = vmatmul.bf16.gmra.mxu0 %v287
      %v434 = vpop.f32.mrf.mxu0
      %v435 = vadd.f32 %v259, %v434
      %v436 = vpop.f32.mrf.mxu0
      %v437 = vadd.f32 %v259, %v436
      %438 = vmatmul.bf16.gmra.mxu0 %v290
      %v439 = vpop.f32.mrf.mxu0
      %v440 = vadd.f32 %v259, %v439
      %v441 = vpop.f32.mrf.mxu0
      %v442 = vadd.f32 %v259, %v441
      %443 = vmatmul.bf16.gmra.mxu0 %v293
      %v444 = vpop.f32.mrf.mxu0
      %v445 = vadd.f32 %v259, %v444
      %v446 = vpop.f32.mrf.mxu0
      %v447 = vadd.f32 %v259, %v446
      %448 = vmatmul.bf16.gmra.mxu0 %v296
      %v449 = vpop.f32.mrf.mxu0
      %v450 = vadd.f32 %v259, %v449
      %v451 = vpop.f32.mrf.mxu0
      %v452 = vadd.f32 %v259, %v451
      %453 = vmatmul.bf16.gmra.mxu0 %v299
      %v454 = vpop.f32.mrf.mxu0
      %v455 = vadd.f32 %v259, %v454
      %v456 = vpop.f32.mrf.mxu0
      %v457 = vadd.f32 %v259, %v456
      %458 = vmatmul.bf16.gmra.mxu0 %v302
      %v459 = vpop.f32.mrf.mxu0
      %v460 = vadd.f32 %v259, %v459
      %v461 = vpop.f32.mrf.mxu0
      %v462 = vadd.f32 %v259, %v461
      %463 = vmatmul.bf16.gmra.mxu0 %v305
      %v464 = vpop.f32.mrf.mxu0
      %v465 = vadd.f32 %v259, %v464
      %v466 = vpop.f32.mrf.mxu0
      %v467 = vadd.f32 %v259, %v466
      %468 = vmatmul.bf16.gmra.mxu0 %v308
      %v469 = vpop.f32.mrf.mxu0
      %v470 = vadd.f32 %v259, %v469
      %v471 = vpop.f32.mrf.mxu0
      %v472 = vadd.f32 %v259, %v471
      %473 = vmatmul.bf16.gmra.mxu0 %v311
      %v474 = vpop.f32.mrf.mxu0
      %v475 = vadd.f32 %v259, %v474
      %v476 = vpop.f32.mrf.mxu0
      %v477 = vadd.f32 %v259, %v476
      %478 = vmatmul.bf16.gmra.mxu0 %v314
      %v479 = vpop.f32.mrf.mxu0
      %v480 = vadd.f32 %v259, %v479
      %v481 = vpop.f32.mrf.mxu0
      %v482 = vadd.f32 %v259, %v481
      %483 = vmatmul.bf16.gmra.mxu0 %v317
      %v484 = vpop.f32.mrf.mxu0
      %v485 = vadd.f32 %v259, %v484
      %v486 = vpop.f32.mrf.mxu0
      %v487 = vadd.f32 %v259, %v486
      %488 = vmatmul.bf16.gmra.mxu0 %v320
      %v489 = vpop.f32.mrf.mxu0
      %v490 = vadd.f32 %v259, %v489
      %v491 = vpop.f32.mrf.mxu0
      %v492 = vadd.f32 %v259, %v491
      %493 = vmatmul.bf16.gmra.mxu0 %v323
      %v494 = vpop.f32.mrf.mxu0
      %v495 = vadd.f32 %v259, %v494
      %v496 = vpop.f32.mrf.mxu0
      %v497 = vadd.f32 %v259, %v496
      %498 = vmatmul.bf16.gmra.mxu0 %v326
      %v499 = vpop.f32.mrf.mxu0
      %v500 = vadd.f32 %v259, %v499
      %v501 = vpop.f32.mrf.mxu0
      %v502 = vadd.f32 %v259, %v501
      %503 = vmatmul.bf16.gmra.mxu0 %v329
      %v504 = vpop.f32.mrf.mxu0
      %v505 = vadd.f32 %v259, %v504
      %v506 = vpop.f32.mrf.mxu0
      %v507 = vadd.f32 %v259, %v506
      %508 = vdwg.mxu0
      %vm509 = vcmp.ge.f32.partialorder %v341, 0.0
      %vm510 = vcmp.ge.f32.partialorder %v430, 0.0
      %vm511 = vcmp.ge.f32.partialorder %v343, 0.0
      %vm512 = vcmp.ge.f32.partialorder %v432, 0.0
      %vm513 = vcmp.ge.f32.partialorder %v346, 0.0
      %vm514 = vcmp.ge.f32.partialorder %v435, 0.0
      %vm515 = vcmp.ge.f32.partialorder %v348, 0.0
      %vm516 = vcmp.ge.f32.partialorder %v437, 0.0
      %vm517 = vcmp.ge.f32.partialorder %v351, 0.0
      %vm518 = vcmp.ge.f32.partialorder %v440, 0.0
      %vm519 = vcmp.ge.f32.partialorder %v353, 0.0
      %vm520 = vcmp.ge.f32.partialorder %v442, 0.0
      %vm521 = vcmp.ge.f32.partialorder %v356, 0.0
      %vm522 = vcmp.ge.f32.partialorder %v445, 0.0
      %vm523 = vcmp.ge.f32.partialorder %v358, 0.0
      %vm524 = vcmp.ge.f32.partialorder %v447, 0.0
      %vm525 = vcmp.ge.f32.partialorder %v361, 0.0
      %vm526 = vcmp.ge.f32.partialorder %v450, 0.0
      %vm527 = vcmp.ge.f32.partialorder %v363, 0.0
      %vm528 = vcmp.ge.f32.partialorder %v452, 0.0
      %vm529 = vcmp.ge.f32.partialorder %v366, 0.0
      %vm530 = vcmp.ge.f32.partialorder %v455, 0.0
      %vm531 = vcmp.ge.f32.partialorder %v368, 0.0
      %vm532 = vcmp.ge.f32.partialorder %v457, 0.0
      %vm533 = vcmp.ge.f32.partialorder %v371, 0.0
      %vm534 = vcmp.ge.f32.partialorder %v460, 0.0
      %vm535 = vcmp.ge.f32.partialorder %v373, 0.0
      %vm536 = vcmp.ge.f32.partialorder %v462, 0.0
      %vm537 = vcmp.ge.f32.partialorder %v376, 0.0
      %vm538 = vcmp.ge.f32.partialorder %v465, 0.0
      %vm539 = vcmp.ge.f32.partialorder %v378, 0.0
      %vm540 = vcmp.ge.f32.partialorder %v467, 0.0
      %vm541 = vcmp.ge.f32.partialorder %v381, 0.0
      %vm542 = vcmp.ge.f32.partialorder %v470, 0.0
      %vm543 = vcmp.ge.f32.partialorder %v383, 0.0
      %vm544 = vcmp.ge.f32.partialorder %v472, 0.0
      %vm545 = vcmp.ge.f32.partialorder %v386, 0.0
      %vm546 = vcmp.ge.f32.partialorder %v475, 0.0
      %vm547 = vcmp.ge.f32.partialorder %v388, 0.0
      %vm548 = vcmp.ge.f32.partialorder %v477, 0.0
      %vm549 = vcmp.ge.f32.partialorder %v391, 0.0
      %vm550 = vcmp.ge.f32.partialorder %v480, 0.0
      %vm551 = vcmp.ge.f32.partialorder %v393, 0.0
      %vm552 = vcmp.ge.f32.partialorder %v482, 0.0
      %vm553 = vcmp.ge.f32.partialorder %v396, 0.0
      %vm554 = vcmp.ge.f32.partialorder %v485, 0.0
      %vm555 = vcmp.ge.f32.partialorder %v398, 0.0
      %vm556 = vcmp.ge.f32.partialorder %v487, 0.0
      %vm557 = vcmp.ge.f32.partialorder %v401, 0.0
      %vm558 = vcmp.ge.f32.partialorder %v490, 0.0
      %vm559 = vcmp.ge.f32.partialorder %v403, 0.0
      %vm560 = vcmp.ge.f32.partialorder %v492, 0.0
      %vm561 = vcmp.ge.f32.partialorder %v406, 0.0
      %vm562 = vcmp.ge.f32.partialorder %v495, 0.0
      %vm563 = vcmp.ge.f32.partialorder %v408, 0.0
      %vm564 = vcmp.ge.f32.partialorder %v497, 0.0
      %vm565 = vcmp.ge.f32.partialorder %v411, 0.0
      %vm566 = vcmp.ge.f32.partialorder %v500, 0.0
      %vm567 = vcmp.ge.f32.partialorder %v413, 0.0
      %vm568 = vcmp.ge.f32.partialorder %v502, 0.0
      %vm569 = vcmp.ge.f32.partialorder %v416, 0.0
      %vm570 = vcmp.ge.f32.partialorder %v505, 0.0
      %vm571 = vcmp.ge.f32.partialorder %v418, 0.0
      %vm572 = vcmp.ge.f32.partialorder %v507, 0.0
      %v573 = vld [vmem:[%s3] sm:$0x3]
      %v575 = vperm.slane %v573, 0
      %v576 = vperm.slane %v573, 1
      %v579 = vmul.f32 %v575, %v341
      %v580 = vmul.f32 %v576, %v430
      %v581 = vmul.f32 %v575, %v343
      %v582 = vmul.f32 %v576, %v432
      %v583 = vmul.f32 %v575, %v346
      %v584 = vmul.f32 %v576, %v435
      %v585 = vmul.f32 %v575, %v348
      %v586 = vmul.f32 %v576, %v437
      %v587 = vmul.f32 %v575, %v351
      %v588 = vmul.f32 %v576, %v440
      %v589 = vmul.f32 %v575, %v353
      %v590 = vmul.f32 %v576, %v442
      %v591 = vmul.f32 %v575, %v356
      %v592 = vmul.f32 %v576, %v445
      %v593 = vmul.f32 %v575, %v358
      %v594 = vmul.f32 %v576, %v447
      %v595 = vmul.f32 %v575, %v361
      %v596 = vmul.f32 %v576, %v450
      %v597 = vmul.f32 %v575, %v363
      %v598 = vmul.f32 %v576, %v452
      %v599 = vmul.f32 %v575, %v366
      %v600 = vmul.f32 %v576, %v455
      %v601 = vmul.f32 %v575, %v368
      %v602 = vmul.f32 %v576, %v457
      %v603 = vmul.f32 %v575, %v371
      %v604 = vmul.f32 %v576, %v460
      %v605 = vmul.f32 %v575, %v373
      %v606 = vmul.f32 %v576, %v462
      %v607 = vmul.f32 %v575, %v376
      %v608 = vmul.f32 %v576, %v465
      %v609 = vmul.f32 %v575, %v378
      %v610 = vmul.f32 %v576, %v467
      %v611 = vmul.f32 %v575, %v381
      %v612 = vmul.f32 %v576, %v470
      %v613 = vmul.f32 %v575, %v383
      %v614 = vmul.f32 %v576, %v472
      %v615 = vmul.f32 %v575, %v386
      %v616 = vmul.f32 %v576, %v475
      %v617 = vmul.f32 %v575, %v388
      %v618 = vmul.f32 %v576, %v477
      %v619 = vmul.f32 %v575, %v391
      %v620 = vmul.f32 %v576, %v480
      %v621 = vmul.f32 %v575, %v393
      %v622 = vmul.f32 %v576, %v482
      %v623 = vmul.f32 %v575, %v396
      %v624 = vmul.f32 %v576, %v485
      %v625 = vmul.f32 %v575, %v398
      %v626 = vmul.f32 %v576, %v487
      %v627 = vmul.f32 %v575, %v401
      %v628 = vmul.f32 %v576, %v490
      %v629 = vmul.f32 %v575, %v403
      %v630 = vmul.f32 %v576, %v492
      %v631 = vmul.f32 %v575, %v406
      %v632 = vmul.f32 %v576, %v495
      %v633 = vmul.f32 %v575, %v408
      %v634 = vmul.f32 %v576, %v497
      %v635 = vmul.f32 %v575, %v411
      %v636 = vmul.f32 %v576, %v500
      %v637 = vmul.f32 %v575, %v413
      %v638 = vmul.f32 %v576, %v502
      %v639 = vmul.f32 %v575, %v416
      %v640 = vmul.f32 %v576, %v505
      %v641 = vmul.f32 %v575, %v418
      %v642 = vmul.f32 %v576, %v507
      %v643 = vsel %vm509, %v341, %v579
      %v644 = vsel %vm510, %v430, %v580
      %v645 = vsel %vm511, %v343, %v581
      %v646 = vsel %vm512, %v432, %v582
      %v647 = vsel %vm513, %v346, %v583
      %v648 = vsel %vm514, %v435, %v584
      %v649 = vsel %vm515, %v348, %v585
      %v650 = vsel %vm516, %v437, %v586
      %v651 = vsel %vm517, %v351, %v587
      %v652 = vsel %vm518, %v440, %v588
      %v653 = vsel %vm519, %v353, %v589
      %v654 = vsel %vm520, %v442, %v590
      %v655 = vsel %vm521, %v356, %v591
      %v656 = vsel %vm522, %v445, %v592
      %v657 = vsel %vm523, %v358, %v593
      %v658 = vsel %vm524, %v447, %v594
      %v659 = vsel %vm525, %v361, %v595
      %v660 = vsel %vm526, %v450, %v596
      %v661 = vsel %vm527, %v363, %v597
      %v662 = vsel %vm528, %v452, %v598
      %v663 = vsel %vm529, %v366, %v599
      %v664 = vsel %vm530, %v455, %v600
      %v665 = vsel %vm531, %v368, %v601
      %v666 = vsel %vm532, %v457, %v602
      %v667 = vsel %vm533, %v371, %v603
      %v668 = vsel %vm534, %v460, %v604
      %v669 = vsel %vm535, %v373, %v605
      %v670 = vsel %vm536, %v462, %v606
      %v671 = vsel %vm537, %v376, %v607
      %v672 = vsel %vm538, %v465, %v608
      %v673 = vsel %vm539, %v378, %v609
      %v674 = vsel %vm540, %v467, %v610
      %v675 = vsel %vm541, %v381, %v611
      %v676 = vsel %vm542, %v470, %v612
      %v677 = vsel %vm543, %v383, %v613
      %v678 = vsel %vm544, %v472, %v614
      %v679 = vsel %vm545, %v386, %v615
      %v680 = vsel %vm546, %v475, %v616
      %v681 = vsel %vm547, %v388, %v617
      %v682 = vsel %vm548, %v477, %v618
      %v683 = vsel %vm549, %v391, %v619
      %v684 = vsel %vm550, %v480, %v620
      %v685 = vsel %vm551, %v393, %v621
      %v686 = vsel %vm552, %v482, %v622
      %v687 = vsel %vm553, %v396, %v623
      %v688 = vsel %vm554, %v485, %v624
      %v689 = vsel %vm555, %v398, %v625
      %v690 = vsel %vm556, %v487, %v626
      %v691 = vsel %vm557, %v401, %v627
      %v692 = vsel %vm558, %v490, %v628
      %v693 = vsel %vm559, %v403, %v629
      %v694 = vsel %vm560, %v492, %v630
      %v695 = vsel %vm561, %v406, %v631
      %v696 = vsel %vm562, %v495, %v632
      %v697 = vsel %vm563, %v408, %v633
      %v698 = vsel %vm564, %v497, %v634
      %v699 = vsel %vm565, %v411, %v635
      %v700 = vsel %vm566, %v500, %v636
      %v701 = vsel %vm567, %v413, %v637
      %v702 = vsel %vm568, %v502, %v638
      %v703 = vsel %vm569, %v416, %v639
      %v704 = vsel %vm570, %v505, %v640
      %v705 = vsel %vm571, %v418, %v641
      %v706 = vsel %vm572, %v507, %v642
      %707 = vst [vmem:[%s201] sm:$0xff] %v643
      %708 = vst [vmem:[%s201 + $0x8] sm:$0xff] %v644
      %709 = vst [vmem:[%s201 + $0x10] sm:$0xff] %v645
      %710 = vst [vmem:[%s201 + $0x18] sm:$0xff] %v646
      %711 = vst [vmem:[%s201 + $0x20] sm:$0xff] %v647
      %712 = vst [vmem:[%s201 + $0x28] sm:$0xff] %v648
      %713 = vst [vmem:[%s201 + $0x30] sm:$0xff] %v649
      %714 = vst [vmem:[%s201 + $0x38] sm:$0xff] %v650
      %715 = vst [vmem:[%s201 + $0x40] sm:$0xff] %v651
      %716 = vst [vmem:[%s201 + $0x48] sm:$0xff] %v652
      %717 = vst [vmem:[%s201 + $0x50] sm:$0xff] %v653
      %718 = vst [vmem:[%s201 + $0x58] sm:$0xff] %v654
      %719 = vst [vmem:[%s201 + $0x60] sm:$0xff] %v655
      %720 = vst [vmem:[%s201 + $0x68] sm:$0xff] %v656
      %721 = vst [vmem:[%s201 + $0x70] sm:$0xff] %v657
      %722 = vst [vmem:[%s201 + $0x78] sm:$0xff] %v658
      %723 = vst [vmem:[%s201 + $0x80] sm:$0xff] %v659
      %724 = vst [vmem:[%s201 + $0x88] sm:$0xff] %v660
      %725 = vst [vmem:[%s201 + $0x90] sm:$0xff] %v661
      %726 = vst [vmem:[%s201 + $0x98] sm:$0xff] %v662
      %727 = vst [vmem:[%s201 + $0xa0] sm:$0xff] %v663
      %728 = vst [vmem:[%s201 + $0xa8] sm:$0xff] %v664
      %729 = vst [vmem:[%s201 + $0xb0] sm:$0xff] %v665
      %730 = vst [vmem:[%s201 + $0xb8] sm:$0xff] %v666
      %731 = vst [vmem:[%s201 + $0xc0] sm:$0xff] %v667
      %732 = vst [vmem:[%s201 + $0xc8] sm:$0xff] %v668
      %733 = vst [vmem:[%s201 + $0xd0] sm:$0xff] %v669
      %734 = vst [vmem:[%s201 + $0xd8] sm:$0xff] %v670
      %735 = vst [vmem:[%s201 + $0xe0] sm:$0xff] %v671
      %736 = vst [vmem:[%s201 + $0xe8] sm:$0xff] %v672
      %737 = vst [vmem:[%s201 + $0xf0] sm:$0xff] %v673
      %738 = vst [vmem:[%s201 + $0xf8] sm:$0xff] %v674
      %739 = vst [vmem:[%s201 + $0x100] sm:$0xff] %v675
      %740 = vst [vmem:[%s201 + $0x108] sm:$0xff] %v676
      %741 = vst [vmem:[%s201 + $0x110] sm:$0xff] %v677
      %742 = vst [vmem:[%s201 + $0x118] sm:$0xff] %v678
      %743 = vst [vmem:[%s201 + $0x120] sm:$0xff] %v679
      %744 = vst [vmem:[%s201 + $0x128] sm:$0xff] %v680
      %745 = vst [vmem:[%s201 + $0x130] sm:$0xff] %v681
      %746 = vst [vmem:[%s201 + $0x138] sm:$0xff] %v682
      %747 = vst [vmem:[%s201 + $0x140] sm:$0xff] %v683
      %748 = vst [vmem:[%s201 + $0x148] sm:$0xff] %v684
      %749 = vst [vmem:[%s201 + $0x150] sm:$0xff] %v685
      %750 = vst [vmem:[%s201 + $0x158] sm:$0xff] %v686
      %751 = vst [vmem:[%s201 + $0x160] sm:$0xff] %v687
      %752 = vst [vmem:[%s201 + $0x168] sm:$0xff] %v688
      %753 = vst [vmem:[%s201 + $0x170] sm:$0xff] %v689
      %754 = vst [vmem:[%s201 + $0x178] sm:$0xff] %v690
      %755 = vst [vmem:[%s201 + $0x180] sm:$0xff] %v691
      %756 = vst [vmem:[%s201 + $0x188] sm:$0xff] %v692
      %757 = vst [vmem:[%s201 + $0x190] sm:$0xff] %v693
      %758 = vst [vmem:[%s201 + $0x198] sm:$0xff] %v694
      %759 = vst [vmem:[%s201 + $0x1a0] sm:$0xff] %v695
      %760 = vst [vmem:[%s201 + $0x1a8] sm:$0xff] %v696
      %761 = vst [vmem:[%s201 + $0x1b0] sm:$0xff] %v697
      %762 = vst [vmem:[%s201 + $0x1b8] sm:$0xff] %v698
      %763 = vst [vmem:[%s201 + $0x1c0] sm:$0xff] %v699
      %764 = vst [vmem:[%s201 + $0x1c8] sm:$0xff] %v700
      %765 = vst [vmem:[%s201 + $0x1d0] sm:$0xff] %v701
      %766 = vst [vmem:[%s201 + $0x1d8] sm:$0xff] %v702
      %767 = vst [vmem:[%s201 + $0x1e0] sm:$0xff] %v703
      %768 = vst [vmem:[%s201 + $0x1e8] sm:$0xff] %v704
      %769 = vst [vmem:[%s201 + $0x1f0] sm:$0xff] %v705
      %770 = vst [vmem:[%s201 + $0x1f8] sm:$0xff] %v706
      %s771 = smul.u32 32, %s15
      %p772 = scmp.lt.s32.totalorder %s771, 63
      %s773 = scalar_select %p772, %s771, 63
      %s774 = smul.addr %s773, 2
      %s775 = smul.addr %s774, 8
      %s776 = scalar_lea.vmem %s4, %s775
      // Predicated region
      $region37: #{stacked_edvr_forward.9} parent=35 // pred_check
        %p777 = pneg %p122
      $region38: #{stacked_edvr_forward.9} parent=35 // pred_check_branch
        %779 = sbr.rel (%p777) target = $region40
      $region39: #{stacked_edvr_forward.9} parent=35 // pred_region
        %s780 = smul.u32 32, %s15
      $region40: #{stacked_edvr_forward.9} parent=35 // pred_fallthru
        _
    $region36: #{stacked_edvr_forward.9} parent=5 // pred_fallthru
      _
    %p781 = scmp.le.s32.totalorder 2, %s10
    // Predicated region
    $region41: #{stacked_edvr_forward.9} parent=5 // pred_check
      %p782 = pneg %p781
    $region42: #{stacked_edvr_forward.9} parent=5 // pred_check_branch
      %784 = sbr.rel (%p782) target = $region44
    $region43: #{stacked_edvr_forward.9} parent=5 // pred_region
      %s785 = ssub.s32 %s10, 2
      // Predicated region
      $region45: #{stacked_edvr_forward.9} parent=43 // pred_check
        %p786 = pneg %p128
      $region46: #{stacked_edvr_forward.9} parent=43 // pred_check_branch
        %788 = sbr.rel (%p786) target = $region48
      $region47: #{stacked_edvr_forward.9} parent=43 // pred_region
        %s789 = smul.u32 32, %s16
        %p790 = scmp.lt.s32.totalorder %s789, 63
        %s791 = scalar_select %p790, %s789, 63
        %s792 = smul.addr %s791, 2
        %s793 = smul.addr %s792, 8
        %s794 = scalar_lea.vmem %s4, %s793
      $region48: #{stacked_edvr_forward.9} parent=43 // pred_fallthru
        _
    $region44: #{stacked_edvr_forward.9} parent=5 // pred_fallthru
      _
  $region6: #{stacked_edvr_forward.9} parent=0 // loop_footer
    %s14 = sadd.s32 1, %s10
  $region7: #{stacked_edvr_forward.9} parent=0 // loop_footer_branch
    %9 = sbr.rel target = $region3
  $region8: #{stacked_edvr_forward.9} parent=0 // loop_exit
    _

// kernel: stacked_edvr_forward.11
$region0: #{stacked_edvr_forward.11}
  #allocation0 [shape = 'u32[]', space=smem, size = 0x4, offset = 0x4, fixed_abs, tag = 'smem constant byte address 0x4 - core index']
  #allocation1 [shape = 'u32[72,128]{1,0:T(1,128)}', space=vmem, size = 0x9000, scoped, tag = 'internal scratch']
  %s0 = inlined_call_operand.vmem [shape: f32[2,18,18,32], index: 0, kind: input, shape index: {}]
  %s1 = inlined_call_operand.vmem [shape: bf16[9,32,32], index: 1, kind: input, shape index: {}]
  %s2 = inlined_call_operand.vmem [shape: f32[1,32], index: 2, kind: input, shape index: {}]
  %s3 = inlined_call_operand.vmem [shape: f32[1,32], index: 3, kind: input, shape index: {}]
  %s4 = inlined_call_operand.vmem [shape: f32[2,16,16,32], index: 4, kind: output, shape index: {}]
  %s5 = sld [smem:[#allocation0]]
  $region49: #{stacked_edvr_forward.11} parent=0
    _
  %s7 = ssub.s32 1, %s5
  %s8 = scalar_select 0, %s7, %s5
  loop: start=0, step=1, limit=4
  $region2: #{stacked_edvr_forward.11} parent=0 // loop_pre_header
    _
  $region3: #{stacked_edvr_forward.11} parent=0 // loop_header
    %s10 = sphi 0, %s14
    %p11 = scmp.ge.s32.totalorder %s10, 4
    %s20 = sphi 0, %s22
    %s23 = sphi 0, %s20
    %s24 = sphi 0, %s23
    %s40 = sphi 0, %s24
    %s44 = sphi 0, %s44
    %s46 = sphi 0, %s44
    %s47 = sphi 0, %s46
    %s61 = sphi 0, %s47
    %s65 = sphi 0, %s65
    %s67 = sphi 0, %s65
    %s68 = sphi 0, %s67
    %s82 = sphi 0, %s68
    %s86 = sphi 0, %s86
    %s88 = sphi 0, %s86
    %s89 = sphi 0, %s88
    %s103 = sphi 0, %s89
    %s109 = sphi 0, %s111
    %s112 = sphi 0, %s109
    %s113 = sphi 0, %s112
    %s129 = sphi 0, %s113
  $region4: #{stacked_edvr_forward.11} parent=0 // loop_header_branch
    %13 = sbr.rel (%p11) target = $region8
  $region5: #{stacked_edvr_forward.11} parent=0 // loop_body
    %s15 = ssub.s32 %s10, 1
    %s16 = ssub.s32 %s10, 2
    %s17 = sadd.s32 %s10, 1
    %s18 = ssub.s32 %s10, %s17
    %p19 = scmp.eq.s32.totalorder %s18, 0
    %s21 = sadd.s32 %s20, 1
    %s22 = scalar_select %p19, %s20, %s21
    %p25 = pneg %p19
    %p26 = scmp.eq.s32.totalorder %s10, 1
    %p27 = por %p25, %p26
    %p28 = scmp.ne.s32.totalorder %s20, %s23
    %p29 = scmp.eq.s32.totalorder %s10, 0
    %p30 = por %p28, %p29
    %p31 = scmp.ne.s32.totalorder %s20, %s23
    %p32 = scmp.eq.s32.totalorder %s15, 1
    %p33 = por %p31, %p32
    %p34 = scmp.ne.s32.totalorder %s23, %s24
    %p35 = scmp.eq.s32.totalorder %s15, 0
    %p36 = por %p34, %p35
    %p37 = scmp.ne.s32.totalorder %s23, %s24
    %p38 = scmp.eq.s32.totalorder %s16, 1
    %p39 = por %p37, %p38
    %p41 = scmp.ne.s32.totalorder %s24, %s40
    %p42 = scmp.eq.s32.totalorder %s16, 0
    %p43 = por %p41, %p42
    %s45 = sadd.s32 %s44, 1
    %p48 = scmp.eq.s32.totalorder %s10, 1
    %p49 = scmp.ne.s32.totalorder %s44, %s46
    %p50 = scmp.eq.s32.totalorder %s10, 0
    %p51 = por %p49, %p50
    %p52 = scmp.ne.s32.totalorder %s44, %s46
    %p53 = scmp.eq.s32.totalorder %s15, 1
    %p54 = por %p52, %p53
    %p55 = scmp.ne.s32.totalorder %s46, %s47
    %p56 = scmp.eq.s32.totalorder %s15, 0
    %p57 = por %p55, %p56
    %p58 = scmp.ne.s32.totalorder %s46, %s47
    %p59 = scmp.eq.s32.totalorder %s16, 1
    %p60 = por %p58, %p59
    %p62 = scmp.ne.s32.totalorder %s47, %s61
    %p63 = scmp.eq.s32.totalorder %s16, 0
    %p64 = por %p62, %p63
    %s66 = sadd.s32 %s65, 1
    %p69 = scmp.eq.s32.totalorder %s10, 1
    %p70 = scmp.ne.s32.totalorder %s65, %s67
    %p71 = scmp.eq.s32.totalorder %s10, 0
    %p72 = por %p70, %p71
    %p73 = scmp.ne.s32.totalorder %s65, %s67
    %p74 = scmp.eq.s32.totalorder %s15, 1
    %p75 = por %p73, %p74
    %p76 = scmp.ne.s32.totalorder %s67, %s68
    %p77 = scmp.eq.s32.totalorder %s15, 0
    %p78 = por %p76, %p77
    %p79 = scmp.ne.s32.totalorder %s67, %s68
    %p80 = scmp.eq.s32.totalorder %s16, 1
    %p81 = por %p79, %p80
    %p83 = scmp.ne.s32.totalorder %s68, %s82
    %p84 = scmp.eq.s32.totalorder %s16, 0
    %p85 = por %p83, %p84
    %s87 = sadd.s32 %s86, 1
    %p90 = scmp.eq.s32.totalorder %s10, 1
    %p91 = scmp.ne.s32.totalorder %s86, %s88
    %p92 = scmp.eq.s32.totalorder %s10, 0
    %p93 = por %p91, %p92
    %p94 = scmp.ne.s32.totalorder %s86, %s88
    %p95 = scmp.eq.s32.totalorder %s15, 1
    %p96 = por %p94, %p95
    %p97 = scmp.ne.s32.totalorder %s88, %s89
    %p98 = scmp.eq.s32.totalorder %s15, 0
    %p99 = por %p97, %p98
    %p100 = scmp.ne.s32.totalorder %s88, %s89
    %p101 = scmp.eq.s32.totalorder %s16, 1
    %p102 = por %p100, %p101
    %p104 = scmp.ne.s32.totalorder %s89, %s103
    %p105 = scmp.eq.s32.totalorder %s16, 0
    %p106 = por %p104, %p105
    %s107 = ssub.s32 %s10, %s17
    %p108 = scmp.eq.s32.totalorder %s107, 0
    %s110 = sadd.s32 %s109, 1
    %s111 = scalar_select %p108, %s109, %s110
    %p114 = pneg %p108
    %p115 = scmp.eq.s32.totalorder %s10, 1
    %p116 = por %p114, %p115
    %p117 = scmp.ne.s32.totalorder %s109, %s112
    %p118 = scmp.eq.s32.totalorder %s10, 0
    %p119 = por %p117, %p118
    %p120 = scmp.ne.s32.totalorder %s109, %s112
    %p121 = scmp.eq.s32.totalorder %s15, 1
    %p122 = por %p120, %p121
    %p123 = scmp.ne.s32.totalorder %s112, %s113
    %p124 = scmp.eq.s32.totalorder %s15, 0
    %p125 = por %p123, %p124
    %p126 = scmp.ne.s32.totalorder %s112, %s113
    %p127 = scmp.eq.s32.totalorder %s16, 1
    %p128 = por %p126, %p127
    %p130 = scmp.ne.s32.totalorder %s113, %s129
    %p131 = scmp.eq.s32.totalorder %s16, 0
    %p132 = por %p130, %p131
    %p133 = scmp.le.s32.totalorder 1, %s10
    %p134 = scmp.lt.s32.totalorder %s10, 3
    %p135 = pnand %p133, %p134
    %p136 = pneg %p135
    // Predicated region
    $region9: #{stacked_edvr_forward.11} parent=5 // pred_check
      _
    $region10: #{stacked_edvr_forward.11} parent=5 // pred_check_branch
      %138 = sbr.rel (%p135) target = $region12
    $region11: #{stacked_edvr_forward.11} parent=5 // pred_region
      %s139 = ssub.s32 %s10, 1
      // Predicated region
      $region13: #{stacked_edvr_forward.11} parent=11 // pred_check
        %p140 = pneg %p57
      $region14: #{stacked_edvr_forward.11} parent=11 // pred_check_branch
        %142 = sbr.rel (%p140) target = $region16
      $region15: #{stacked_edvr_forward.11} parent=11 // pred_region
        _
      $region16: #{stacked_edvr_forward.11} parent=11 // pred_fallthru
        _
      // Predicated region
      $region17: #{stacked_edvr_forward.11} parent=11 // pred_check
        %p143 = pneg %p78
      $region18: #{stacked_edvr_forward.11} parent=11 // pred_check_branch
        %145 = sbr.rel (%p143) target = $region20
      $region19: #{stacked_edvr_forward.11} parent=11 // pred_region
        _
      $region20: #{stacked_edvr_forward.11} parent=11 // pred_fallthru
        _
      // Predicated region
      $region21: #{stacked_edvr_forward.11} parent=11 // pred_check
        %p146 = pneg %p99
      $region22: #{stacked_edvr_forward.11} parent=11 // pred_check_branch
        %148 = sbr.rel (%p146) target = $region24
      $region23: #{stacked_edvr_forward.11} parent=11 // pred_region
        _
      $region24: #{stacked_edvr_forward.11} parent=11 // pred_fallthru
        _
    $region12: #{stacked_edvr_forward.11} parent=5 // pred_fallthru
      _
    %p149 = scmp.lt.s32.totalorder %s10, 2
    // Predicated region
    $region25: #{stacked_edvr_forward.11} parent=5 // pred_check
      %p150 = pneg %p149
    $region26: #{stacked_edvr_forward.11} parent=5 // pred_check_branch
      %152 = sbr.rel (%p150) target = $region28
    $region27: #{stacked_edvr_forward.11} parent=5 // pred_region
      // Predicated region
      $region29: #{stacked_edvr_forward.11} parent=27 // pred_check
        %p153 = pneg %p30
      $region30: #{stacked_edvr_forward.11} parent=27 // pred_check_branch
        %155 = sbr.rel (%p153) target = $region32
      $region31: #{stacked_edvr_forward.11} parent=27 // pred_region
        %p156 = scmp.lt.s32.totalorder %s10, 1
        %s157 = scalar_select %p156, %s10, 1
        %s158 = smul.addr %s157, 54
        %s159 = smul.addr %s158, 8
        %s160 = scalar_lea.vmem %s0, %s159
      $region32: #{stacked_edvr_forward.11} parent=27 // pred_fallthru
        _
    $region28: #{stacked_edvr_forward.11} parent=5 // pred_fallthru
      _
    %p161 = scmp.le.s32.totalorder 1, %s10
    %p162 = scmp.lt.s32.totalorder %s10, 3
    %p163 = pnand %p161, %p162
    %p164 = pneg %p163
    // Predicated region
    $region33: #{stacked_edvr_forward.11} parent=5 // pred_check
      _
    $region34: #{stacked_edvr_forward.11} parent=5 // pred_check_branch
      %166 = sbr.rel (%p163) target = $region36
    $region35: #{stacked_edvr_forward.11} parent=5 // pred_region
      %s167 = ssub.s32 %s10, 1
      %p168 = scmp.lt.s32.totalorder %s15, 1
      %s169 = scalar_select %p168, %s15, 1
      %s170 = smul.addr %s169, 54
      %s171 = smul.addr %s170, 8
      %s172 = scalar_lea.vmem %s0, %s171
      %p173 = pneg %p36
      %p174 = pneg %p33
      %p175 = pneg %p57
      %p176 = pneg %p54
      %p177 = pneg %p78
      %p178 = pneg %p75
      %p179 = pneg %p99
      %p180 = pneg %p96
      %p181 = pneg %p125
      %p182 = pneg %p122
      %p183 = scmp.lt.s32.totalorder %s15, 1
      %s184 = scalar_select %p183, %s15, 1
      %s185 = smul.addr %s184, 32
      %s186 = smul.addr %s185, 8
      %s187 = scalar_lea.vmem %s4, %s186
      %p188 = scmp.lt.s32.totalorder %s15, 1
      %s189 = scalar_select %p188, %s15, 1
      %s190 = smul.addr %s189, 54
      %s191 = smul.addr %s190, 8
      %s192 = scalar_lea.vmem %s0, %s191
      %p193 = scmp.lt.s32.totalorder %s15, 1
      %s194 = scalar_select %p193, %s15, 1
      %s195 = smul.addr %s194, 32
      %s196 = smul.addr %s195, 8
      %s197 = scalar_lea.vmem %s4, %s196
      %v199 = vld [vmem:[%s192] sm:$0xff]
      %v200 = vld [vmem:[%s192 + $0x8] sm:$0xff]
      %v201 = vld [vmem:[%s192 + $0x10] sm:$0x3]
      %v202 = vld [vmem:[%s192 + $0x18] sm:$0xff]
      %v203 = vld [vmem:[%s192 + $0x20] sm:$0xff]
      %v204 = vld [vmem:[%s192 + $0x28] sm:$0x3]
      %v205 = vld [vmem:[%s192 + $0x30] sm:$0xff]
      %v206 = vld [vmem:[%s192 + $0x38] sm:$0xff]
      %v207 = vld [vmem:[%s192 + $0x40] sm:$0x3]
      %v208 = vld [vmem:[%s192 + $0x48] sm:$0xff]
      %v209 = vld [vmem:[%s192 + $0x50] sm:$0xff]
      %v210 = vld [vmem:[%s192 + $0x58] sm:$0x3]
      %v211 = vld [vmem:[%s192 + $0x60] sm:$0xff]
      %v212 = vld [vmem:[%s192 + $0x68] sm:$0xff]
      %v213 = vld [vmem:[%s192 + $0x70] sm:$0x3]
      %v214 = vld [vmem:[%s192 + $0x78] sm:$0xff]
      %v215 = vld [vmem:[%s192 + $0x80] sm:$0xff]
      %v216 = vld [vmem:[%s192 + $0x88] sm:$0x3]
      %v217 = vld [vmem:[%s192 + $0x90] sm:$0xff]
      %v218 = vld [vmem:[%s192 + $0x98] sm:$0xff]
      %v219 = vld [vmem:[%s192 + $0xa0] sm:$0x3]
      %v220 = vld [vmem:[%s192 + $0xa8] sm:$0xff]
      %v221 = vld [vmem:[%s192 + $0xb0] sm:$0xff]
      %v222 = vld [vmem:[%s192 + $0xb8] sm:$0x3]
      %v223 = vld [vmem:[%s192 + $0xc0] sm:$0xff]
      %v224 = vld [vmem:[%s192 + $0xc8] sm:$0xff]
      %v225 = vld [vmem:[%s192 + $0xd0] sm:$0x3]
      %v226 = vld [vmem:[%s192 + $0xd8] sm:$0xff]
      %v227 = vld [vmem:[%s192 + $0xe0] sm:$0xff]
      %v228 = vld [vmem:[%s192 + $0xe8] sm:$0x3]
      %v229 = vld [vmem:[%s192 + $0xf0] sm:$0xff]
      %v230 = vld [vmem:[%s192 + $0xf8] sm:$0xff]
      %v231 = vld [vmem:[%s192 + $0x100] sm:$0x3]
      %v232 = vld [vmem:[%s192 + $0x108] sm:$0xff]
      %v233 = vld [vmem:[%s192 + $0x110] sm:$0xff]
      %v234 = vld [vmem:[%s192 + $0x118] sm:$0x3]
      %v235 = vld [vmem:[%s192 + $0x120] sm:$0xff]
      %v236 = vld [vmem:[%s192 + $0x128] sm:$0xff]
      %v237 = vld [vmem:[%s192 + $0x130] sm:$0x3]
      %v238 = vld [vmem:[%s192 + $0x138] sm:$0xff]
      %v239 = vld [vmem:[%s192 + $0x140] sm:$0xff]
      %v240 = vld [vmem:[%s192 + $0x148] sm:$0x3]
      %v241 = vld [vmem:[%s192 + $0x150] sm:$0xff]
      %v242 = vld [vmem:[%s192 + $0x158] sm:$0xff]
      %v243 = vld [vmem:[%s192 + $0x160] sm:$0x3]
      %v244 = vld [vmem:[%s192 + $0x168] sm:$0xff]
      %v245 = vld [vmem:[%s192 + $0x170] sm:$0xff]
      %v246 = vld [vmem:[%s192 + $0x178] sm:$0x3]
      %v247 = vld [vmem:[%s192 + $0x180] sm:$0xff]
      %v248 = vld [vmem:[%s192 + $0x188] sm:$0xff]
      %v249 = vld [vmem:[%s192 + $0x190] sm:$0x3]
      %v250 = vld [vmem:[%s192 + $0x198] sm:$0xff]
      %v251 = vld [vmem:[%s192 + $0x1a0] sm:$0xff]
      %v252 = vld [vmem:[%s192 + $0x1a8] sm:$0x3]
      %v253 = vpack.c.bf16 %v200, %v199
      %v254 = vpack.c.bf16 %v203, %v202
      %v255 = vpack.c.bf16 %v206, %v205
      %v256 = vpack.c.bf16 %v209, %v208
      %v257 = vpack.c.bf16 %v212, %v211
      %v258 = vpack.c.bf16 %v215, %v214
      %v259 = vpack.c.bf16 %v218, %v217
      %v260 = vpack.c.bf16 %v221, %v220
      %v261 = vpack.c.bf16 %v224, %v223
      %v262 = vpack.c.bf16 %v227, %v226
      %v263 = vpack.c.bf16 %v230, %v229
      %v264 = vpack.c.bf16 %v233, %v232
      %v265 = vpack.c.bf16 %v236, %v235
      %v266 = vpack.c.bf16 %v239, %v238
      %v267 = vpack.c.bf16 %v242, %v241
      %v268 = vpack.c.bf16 %v245, %v244
      %v269 = vld [vmem:[%s1] sm:$0xf]
      %v270 = vld [vmem:[%s1 + $0x4] sm:$0xf]
      %v271 = vld [vmem:[%s1 + $0x8] sm:$0xf]
      %v272 = vld [vmem:[%s1 + $0xc] sm:$0xf]
      %vm321 = vcmask 1046528
      %v322 = vrot.slane %v199, 1
      %v323 = vrot.slane %v200, 1
      %v324 = vsel %vm321, %v322, %v323
      %v325 = vrot.slane %v201, 1
      %v326 = vsel %vm321, %v323, %v325
      %v327 = vrot.slane %v202, 1
      %v328 = vrot.slane %v203, 1
      %v329 = vsel %vm321, %v327, %v328
      %v330 = vrot.slane %v204, 1
      %v331 = vsel %vm321, %v328, %v330
      %v332 = vrot.slane %v205, 1
      %v333 = vrot.slane %v206, 1
      %v334 = vsel %vm321, %v332, %v333
      %v335 = vrot.slane %v207, 1
      %v336 = vsel %vm321, %v333, %v335
      %v337 = vrot.slane %v208, 1
      %v338 = vrot.slane %v209, 1
      %v339 = vsel %vm321, %v337, %v338
      %v340 = vrot.slane %v210, 1
      %v341 = vsel %vm321, %v338, %v340
      %v342 = vrot.slane %v211, 1
      %v343 = vrot.slane %v212, 1
      %v344 = vsel %vm321, %v342, %v343
      %v345 = vrot.slane %v213, 1
      %v346 = vsel %vm321, %v343, %v345
      %v347 = vrot.slane %v214, 1
      %v348 = vrot.slane %v215, 1
      %v349 = vsel %vm321, %v347, %v348
      %v350 = vrot.slane %v216, 1
      %v351 = vsel %vm321, %v348, %v350
      %v352 = vrot.slane %v217, 1
      %v353 = vrot.slane %v218, 1
      %v354 = vsel %vm321, %v352, %v353
      %v355 = vrot.slane %v219, 1
      %v356 = vsel %vm321, %v353, %v355
      %v357 = vrot.slane %v220, 1
      %v358 = vrot.slane %v221, 1
      %v359 = vsel %vm321, %v357, %v358
      %v360 = vrot.slane %v222, 1
      %v361 = vsel %vm321, %v358, %v360
      %v362 = vrot.slane %v223, 1
      %v363 = vrot.slane %v224, 1
      %v364 = vsel %vm321, %v362, %v363
      %v365 = vrot.slane %v225, 1
      %v366 = vsel %vm321, %v363, %v365
      %v367 = vrot.slane %v226, 1
      %v368 = vrot.slane %v227, 1
      %v369 = vsel %vm321, %v367, %v368
      %v370 = vrot.slane %v228, 1
      %v371 = vsel %vm321, %v368, %v370
      %v372 = vrot.slane %v229, 1
      %v373 = vrot.slane %v230, 1
      %v374 = vsel %vm321, %v372, %v373
      %v375 = vrot.slane %v231, 1
      %v376 = vsel %vm321, %v373, %v375
      %v377 = vrot.slane %v232, 1
      %v378 = vrot.slane %v233, 1
      %v379 = vsel %vm321, %v377, %v378
      %v380 = vrot.slane %v234, 1
      %v381 = vsel %vm321, %v378, %v380
      %v382 = vrot.slane %v235, 1
      %v383 = vrot.slane %v236, 1
      %v384 = vsel %vm321, %v382, %v383
      %v385 = vrot.slane %v237, 1
      %v386 = vsel %vm321, %v383, %v385
      %v387 = vrot.slane %v238, 1
      %v388 = vrot.slane %v239, 1
      %v389 = vsel %vm321, %v387, %v388
      %v390 = vrot.slane %v240, 1
      %v391 = vsel %vm321, %v388, %v390
      %v392 = vrot.slane %v241, 1
      %v393 = vrot.slane %v242, 1
      %v394 = vsel %vm321, %v392, %v393
      %v395 = vrot.slane %v243, 1
      %v396 = vsel %vm321, %v393, %v395
      %v397 = vrot.slane %v244, 1
      %v398 = vrot.slane %v245, 1
      %v399 = vsel %vm321, %v397, %v398
      %v400 = vrot.slane %v246, 1
      %v401 = vsel %vm321, %v398, %v400
      %v434 = vpack.c.bf16 %v326, %v324
      %v435 = vpack.c.bf16 %v331, %v329
      %v436 = vpack.c.bf16 %v336, %v334
      %v437 = vpack.c.bf16 %v341, %v339
      %v438 = vpack.c.bf16 %v346, %v344
      %v439 = vpack.c.bf16 %v351, %v349
      %v440 = vpack.c.bf16 %v356, %v354
      %v441 = vpack.c.bf16 %v361, %v359
      %v442 = vpack.c.bf16 %v366, %v364
      %v443 = vpack.c.bf16 %v371, %v369
      %v444 = vpack.c.bf16 %v376, %v374
      %v445 = vpack.c.bf16 %v381, %v379
      %v446 = vpack.c.bf16 %v386, %v384
      %v447 = vpack.c.bf16 %v391, %v389
      %v448 = vpack.c.bf16 %v396, %v394
      %v449 = vpack.c.bf16 %v401, %v399
      %s450 = scalar_lea.vmem %s1, 16
      %v451 = vld [vmem:[%s450] sm:$0xf]
      %v452 = vld [vmem:[%s450 + $0x4] sm:$0xf]
      %v453 = vld [vmem:[%s450 + $0x8] sm:$0xf]
      %v454 = vld [vmem:[%s450 + $0xc] sm:$0xf]
      %v459 = vunpack.c.l.b16 %v451
      %v460 = vunpack.c.l.b16 %v452
      %v461 = vunpack.c.l.b16 %v453
      %v462 = vunpack.c.l.b16 %v454
      %v463 = vpack.c.b16 %v460, %v459
      %v464 = vpack.c.b16 %v462, %v461
      %vm467 = vcmask 261120
      %v469 = vsel %vm467, %v434, 0
      %v472 = vsel %vm467, %v435, 0
      %v475 = vsel %vm467, %v436, 0
      %v478 = vsel %vm467, %v437, 0
      %v481 = vsel %vm467, %v438, 0
      %v484 = vsel %vm467, %v439, 0
      %v487 = vsel %vm467, %v440, 0
      %v490 = vsel %vm467, %v441, 0
      %v493 = vsel %vm467, %v442, 0
      %v496 = vsel %vm467, %v443, 0
      %v499 = vsel %vm467, %v444, 0
      %v502 = vsel %vm467, %v445, 0
      %v505 = vsel %vm467, %v446, 0
      %v508 = vsel %vm467, %v447, 0
      %v511 = vsel %vm467, %v448, 0
      %v514 = vsel %vm467, %v449, 0
      %516 = vmatpush.bf16.msra.mxu0 0
      %517 = vmatpush.bf16.msra.mxu0 0
      %518 = vmatpush.bf16.msra.mxu0 0
      %519 = vmatpush.bf16.msra.mxu0 0
      %520 = vmatpush.bf16.msra.mxu0 0
      %521 = vmatpush.bf16.msra.mxu0 0
      %522 = vmatpush.bf16.msra.mxu0 %v464
      %523 = vmatpush.bf16.msra.mxu0 %v463
      %524 = vmatmul.bf16.gmra.mxu0 %v469
      %v525 = vpop.f32.mrf.mxu0
      %v526 = vadd.f32 0.0, %v525
      %v527 = vpop.f32.mrf.mxu0
      %v528 = vadd.f32 0.0, %v527
      %529 = vmatmul.bf16.gmra.mxu0 %v472
      %v530 = vpop.f32.mrf.mxu0
      %v531 = vadd.f32 0.0, %v530
      %v532 = vpop.f32.mrf.mxu0
      %v533 = vadd.f32 0.0, %v532
      %534 = vmatmul.bf16.gmra.mxu0 %v475
      %v535 = vpop.f32.mrf.mxu0
      %v536 = vadd.f32 0.0, %v535
      %v537 = vpop.f32.mrf.mxu0
      %v538 = vadd.f32 0.0, %v537
      %539 = vmatmul.bf16.gmra.mxu0 %v478
      %v540 = vpop.f32.mrf.mxu0
      %v541 = vadd.f32 0.0, %v540
      %v542 = vpop.f32.mrf.mxu0
      %v543 = vadd.f32 0.0, %v542
      %544 = vmatmul.bf16.gmra.mxu0 %v481
      %v545 = vpop.f32.mrf.mxu0
      %v546 = vadd.f32 0.0, %v545
      %v547 = vpop.f32.mrf.mxu0
      %v548 = vadd.f32 0.0, %v547
      %549 = vmatmul.bf16.gmra.mxu0 %v484
      %v550 = vpop.f32.mrf.mxu0
      %v551 = vadd.f32 0.0, %v550
      %v552 = vpop.f32.mrf.mxu0
      %v553 = vadd.f32 0.0, %v552
      %554 = vmatmul.bf16.gmra.mxu0 %v487
      %v555 = vpop.f32.mrf.mxu0
      %v556 = vadd.f32 0.0, %v555
      %v557 = vpop.f32.mrf.mxu0
      %v558 = vadd.f32 0.0, %v557
      %559 = vmatmul.bf16.gmra.mxu0 %v490
      %v560 = vpop.f32.mrf.mxu0
      %v561 = vadd.f32 0.0, %v560
      %v562 = vpop.f32.mrf.mxu0
      %v563 = vadd.f32 0.0, %v562
      %564 = vmatmul.bf16.gmra.mxu0 %v493
      %v565 = vpop.f32.mrf.mxu0
      %v566 = vadd.f32 0.0, %v565
      %v567 = vpop.f32.mrf.mxu0
      %v568 = vadd.f32 0.0, %v567
      %569 = vmatmul.bf16.gmra.mxu0 %v496
      %v570 = vpop.f32.mrf.mxu0
      %v571 = vadd.f32 0.0, %v570
      %v572 = vpop.f32.mrf.mxu0
      %v573 = vadd.f32 0.0, %v572
      %574 = vmatmul.bf16.gmra.mxu0 %v499
      %v575 = vpop.f32.mrf.mxu0
      %v576 = vadd.f32 0.0, %v575
      %v577 = vpop.f32.mrf.mxu0
      %v578 = vadd.f32 0.0, %v577
      %579 = vmatmul.bf16.gmra.mxu0 %v502
      %v580 = vpop.f32.mrf.mxu0
      %v581 = vadd.f32 0.0, %v580
      %v582 = vpop.f32.mrf.mxu0
      %v583 = vadd.f32 0.0, %v582
      %584 = vmatmul.bf16.gmra.mxu0 %v505
      %v585 = vpop.f32.mrf.mxu0
      %v586 = vadd.f32 0.0, %v585
      %v587 = vpop.f32.mrf.mxu0
      %v588 = vadd.f32 0.0, %v587
      %589 = vmatmul.bf16.gmra.mxu0 %v508
      %v590 = vpop.f32.mrf.mxu0
      %v591 = vadd.f32 0.0, %v590
      %v592 = vpop.f32.mrf.mxu0
      %v593 = vadd.f32 0.0, %v592
      %594 = vmatmul.bf16.gmra.mxu0 %v511
      %v595 = vpop.f32.mrf.mxu0
      %v596 = vadd.f32 0.0, %v595
      %v597 = vpop.f32.mrf.mxu0
      %v598 = vadd.f32 0.0, %v597
      %599 = vmatmul.bf16.gmra.mxu0 %v514
      %v600 = vpop.f32.mrf.mxu0
      %v601 = vadd.f32 0.0, %v600
      %v602 = vpop.f32.mrf.mxu0
      %v603 = vadd.f32 0.0, %v602
      %604 = vdwg.mxu0
      %v609 = vunpack.c.l.b16 %v269
      %v610 = vunpack.c.l.b16 %v270
      %v611 = vunpack.c.l.b16 %v271
      %v612 = vunpack.c.l.b16 %v272
      %v613 = vpack.c.b16 %v610, %v609
      %v614 = vpack.c.b16 %v612, %v611
      %v618 = vsel %vm467, %v253, 0
      %v621 = vsel %vm467, %v254, 0
      %v624 = vsel %vm467, %v255, 0
      %v627 = vsel %vm467, %v256, 0
      %v630 = vsel %vm467, %v257, 0
      %v633 = vsel %vm467, %v258, 0
      %v636 = vsel %vm467, %v259, 0
      %v639 = vsel %vm467, %v260, 0
      %v642 = vsel %vm467, %v261, 0
      %v645 = vsel %vm467, %v262, 0
      %v648 = vsel %vm467, %v263, 0
      %v651 = vsel %vm467, %v264, 0
      %v654 = vsel %vm467, %v265, 0
      %v657 = vsel %vm467, %v266, 0
      %v660 = vsel %vm467, %v267, 0
      %v663 = vsel %vm467, %v268, 0
      %665 = vmatpush.bf16.msra.mxu0 0
      %666 = vmatpush.bf16.msra.mxu0 0
      %667 = vmatpush.bf16.msra.mxu0 0
      %668 = vmatpush.bf16.msra.mxu0 0
      %669 = vmatpush.bf16.msra.mxu0 0
      %670 = vmatpush.bf16.msra.mxu0 0
      %671 = vmatpush.bf16.msra.mxu0 %v614
      %672 = vmatpush.bf16.msra.mxu0 %v613
      %673 = vmatmul.bf16.gmra.mxu0 %v618
      %v674 = vpop.f32.mrf.mxu0
      %v675 = vadd.f32 %v526, %v674
      %v676 = vpop.f32.mrf.mxu0
      %v677 = vadd.f32 %v528, %v676
      %678 = vmatmul.bf16.gmra.mxu0 %v621
      %v679 = vpop.f32.mrf.mxu0
      %v680 = vadd.f32 %v531, %v679
      %v681 = vpop.f32.mrf.mxu0
      %v682 = vadd.f32 %v533, %v681
      %683 = vmatmul.bf16.gmra.mxu0 %v624
      %v684 = vpop.f32.mrf.mxu0
      %v685 = vadd.f32 %v536, %v684
      %v686 = vpop.f32.mrf.mxu0
      %v687 = vadd.f32 %v538, %v686
      %688 = vmatmul.bf16.gmra.mxu0 %v627
      %v689 = vpop.f32.mrf.mxu0
      %v690 = vadd.f32 %v541, %v689
      %v691 = vpop.f32.mrf.mxu0
      %v692 = vadd.f32 %v543, %v691
      %693 = vmatmul.bf16.gmra.mxu0 %v630
      %v694 = vpop.f32.mrf.mxu0
      %v695 = vadd.f32 %v546, %v694
      %v696 = vpop.f32.mrf.mxu0
      %v697 = vadd.f32 %v548, %v696
      %698 = vmatmul.bf16.gmra.mxu0 %v633
      %v699 = vpop.f32.mrf.mxu0
      %v700 = vadd.f32 %v551, %v699
      %v701 = vpop.f32.mrf.mxu0
      %v702 = vadd.f32 %v553, %v701
      %703 = vmatmul.bf16.gmra.mxu0 %v636
      %v704 = vpop.f32.mrf.mxu0
      %v705 = vadd.f32 %v556, %v704
      %v706 = vpop.f32.mrf.mxu0
      %v707 = vadd.f32 %v558, %v706
      %708 = vmatmul.bf16.gmra.mxu0 %v639
      %v709 = vpop.f32.mrf.mxu0
      %v710 = vadd.f32 %v561, %v709
      %v711 = vpop.f32.mrf.mxu0
      %v712 = vadd.f32 %v563, %v711
      %713 = vmatmul.bf16.gmra.mxu0 %v642
      %v714 = vpop.f32.mrf.mxu0
      %v715 = vadd.f32 %v566, %v714
      %v716 = vpop.f32.mrf.mxu0
      %v717 = vadd.f32 %v568, %v716
      %718 = vmatmul.bf16.gmra.mxu0 %v645
      %v719 = vpop.f32.mrf.mxu0
      %v720 = vadd.f32 %v571, %v719
      %v721 = vpop.f32.mrf.mxu0
      %v722 = vadd.f32 %v573, %v721
      %723 = vmatmul.bf16.gmra.mxu0 %v648
      %v724 = vpop.f32.mrf.mxu0
      %v725 = vadd.f32 %v576, %v724
      %v726 = vpop.f32.mrf.mxu0
      %v727 = vadd.f32 %v578, %v726
      %728 = vmatmul.bf16.gmra.mxu0 %v651
      %v729 = vpop.f32.mrf.mxu0
      %v730 = vadd.f32 %v581, %v729
      %v731 = vpop.f32.mrf.mxu0
      %v732 = vadd.f32 %v583, %v731
      %733 = vmatmul.bf16.gmra.mxu0 %v654
      %v734 = vpop.f32.mrf.mxu0
      %v735 = vadd.f32 %v586, %v734
      %v736 = vpop.f32.mrf.mxu0
      %v737 = vadd.f32 %v588, %v736
      %738 = vmatmul.bf16.gmra.mxu0 %v657
      %v739 = vpop.f32.mrf.mxu0
      %v740 = vadd.f32 %v591, %v739
      %v741 = vpop.f32.mrf.mxu0
      %v742 = vadd.f32 %v593, %v741
      %743 = vmatmul.bf16.gmra.mxu0 %v660
      %v744 = vpop.f32.mrf.mxu0
      %v745 = vadd.f32 %v596, %v744
      %v746 = vpop.f32.mrf.mxu0
      %v747 = vadd.f32 %v598, %v746
      %748 = vmatmul.bf16.gmra.mxu0 %v663
      %v749 = vpop.f32.mrf.mxu0
      %v750 = vadd.f32 %v601, %v749
      %v751 = vpop.f32.mrf.mxu0
      %v752 = vadd.f32 %v603, %v751
      %753 = vdwg.mxu0
      %vm754 = vcmask 1045504
      %v755 = vrot.slane %v199, 2
      %v756 = vrot.slane %v200, 2
      %v757 = vsel %vm754, %v755, %v756
      %v758 = vrot.slane %v201, 2
      %v759 = vsel %vm754, %v756, %v758
      %v760 = vrot.slane %v202, 2
      %v761 = vrot.slane %v203, 2
      %v762 = vsel %vm754, %v760, %v761
      %v763 = vrot.slane %v204, 2
      %v764 = vsel %vm754, %v761, %v763
      %v765 = vrot.slane %v205, 2
      %v766 = vrot.slane %v206, 2
      %v767 = vsel %vm754, %v765, %v766
      %v768 = vrot.slane %v207, 2
      %v769 = vsel %vm754, %v766, %v768
      %v770 = vrot.slane %v208, 2
      %v771 = vrot.slane %v209, 2
      %v772 = vsel %vm754, %v770, %v771
      %v773 = vrot.slane %v210, 2
      %v774 = vsel %vm754, %v771, %v773
      %v775 = vrot.slane %v211, 2
      %v776 = vrot.slane %v212, 2
      %v777 = vsel %vm754, %v775, %v776
      %v778 = vrot.slane %v213, 2
      %v779 = vsel %vm754, %v776, %v778
      %v780 = vrot.slane %v214, 2
      %v781 = vrot.slane %v215, 2
      %v782 = vsel %vm754, %v780, %v781
      %v783 = vrot.slane %v216, 2
      %v784 = vsel %vm754, %v781, %v783
      %v785 = vrot.slane %v217, 2
      %v786 = vrot.slane %v218, 2
      %v787 = vsel %vm754, %v785, %v786
      %v788 = vrot.slane %v219, 2
      %v789 = vsel %vm754, %v786, %v788
      %v790 = vrot.slane %v220, 2
      %v791 = vrot.slane %v221, 2
      %v792 = vsel %vm754, %v790, %v791
      %v793 = vrot.slane %v222, 2
      %v794 = vsel %vm754, %v791, %v793
      %v795 = vrot.slane %v223, 2
      %v796 = vrot.slane %v224, 2
      %v797 = vsel %vm754, %v795, %v796
      %v798 = vrot.slane %v225, 2
      %v799 = vsel %vm754, %v796, %v798
      %v800 = vrot.slane %v226, 2
      %v801 = vrot.slane %v227, 2
      %v802 = vsel %vm754, %v800, %v801
      %v803 = vrot.slane %v228, 2
      %v804 = vsel %vm754, %v801, %v803
      %v805 = vrot.slane %v229, 2
      %v806 = vrot.slane %v230, 2
      %v807 = vsel %vm754, %v805, %v806
      %v808 = vrot.slane %v231, 2
      %v809 = vsel %vm754, %v806, %v808
      %v810 = vrot.slane %v232, 2
      %v811 = vrot.slane %v233, 2
      %v812 = vsel %vm754, %v810, %v811
      %v813 = vrot.slane %v234, 2
      %v814 = vsel %vm754, %v811, %v813
      %v815 = vrot.slane %v235, 2
      %v816 = vrot.slane %v236, 2
      %v817 = vsel %vm754, %v815, %v816
      %v818 = vrot.slane %v237, 2
      %v819 = vsel %vm754, %v816, %v818
      %v820 = vrot.slane %v238, 2
      %v821 = vrot.slane %v239, 2
      %v822 = vsel %vm754, %v820, %v821
      %v823 = vrot.slane %v240, 2
      %v824 = vsel %vm754, %v821, %v823
      %v825 = vrot.slane %v241, 2
      %v826 = vrot.slane %v242, 2
      %v827 = vsel %vm754, %v825, %v826
      %v828 = vrot.slane %v243, 2
      %v829 = vsel %vm754, %v826, %v828
      %v830 = vrot.slane %v244, 2
      %v831 = vrot.slane %v245, 2
      %v832 = vsel %vm754, %v830, %v831
      %v833 = vrot.slane %v246, 2
      %v834 = vsel %vm754, %v831, %v833
      %v867 = vpack.c.bf16 %v759, %v757
      %v868 = vpack.c.bf16 %v764, %v762
      %v869 = vpack.c.bf16 %v769, %v767
      %v870 = vpack.c.bf16 %v774, %v772
      %v871 = vpack.c.bf16 %v779, %v777
      %v872 = vpack.c.bf16 %v784, %v782
      %v873 = vpack.c.bf16 %v789, %v787
      %v874 = vpack.c.bf16 %v794, %v792
      %v875 = vpack.c.bf16 %v799, %v797
      %v876 = vpack.c.bf16 %v804, %v802
      %v877 = vpack.c.bf16 %v809, %v807
      %v878 = vpack.c.bf16 %v814, %v812
      %v879 = vpack.c.bf16 %v819, %v817
      %v880 = vpack.c.bf16 %v824, %v822
      %v881 = vpack.c.bf16 %v829, %v827
      %v882 = vpack.c.bf16 %v834, %v832
      %s883 = scalar_lea.vmem %s1, 32
      %v884 = vld [vmem:[%s883] sm:$0xf]
      %v885 = vld [vmem:[%s883 + $0x4] sm:$0xf]
      %v886 = vld [vmem:[%s883 + $0x8] sm:$0xf]
      %v887 = vld [vmem:[%s883 + $0xc] sm:$0xf]
      %v892 = vunpack.c.l.b16 %v884
      %v893 = vunpack.c.l.b16 %v885
      %v894 = vunpack.c.l.b16 %v886
      %v895 = vunpack.c.l.b16 %v887
      %v896 = vpack.c.b16 %v893, %v892
      %v897 = vpack.c.b16 %v895, %v894
      %v901 = vsel %vm467, %v867, 0
      %v904 = vsel %vm467, %v868, 0
      %v907 = vsel %vm467, %v869, 0
      %v910 = vsel %vm467, %v870, 0
      %v913 = vsel %vm467, %v871, 0
      %v916 = vsel %vm467, %v872, 0
      %v919 = vsel %vm467, %v873, 0
      %v922 = vsel %vm467, %v874, 0
      %v925 = vsel %vm467, %v875, 0
      %v928 = vsel %vm467, %v876, 0
      %v931 = vsel %vm467, %v877, 0
      %v934 = vsel %vm467, %v878, 0
      %v937 = vsel %vm467, %v879, 0
      %v940 = vsel %vm467, %v880, 0
      %v943 = vsel %vm467, %v881, 0
      %v946 = vsel %vm467, %v882, 0
      %948 = vmatpush.bf16.msra.mxu0 0
      %949 = vmatpush.bf16.msra.mxu0 0
      %950 = vmatpush.bf16.msra.mxu0 0
      %951 = vmatpush.bf16.msra.mxu0 0
      %952 = vmatpush.bf16.msra.mxu0 0
      %953 = vmatpush.bf16.msra.mxu0 0
      %954 = vmatpush.bf16.msra.mxu0 %v897
      %955 = vmatpush.bf16.msra.mxu0 %v896
      %956 = vmatmul.bf16.gmra.mxu0 %v901
      %v957 = vpop.f32.mrf.mxu0
      %v958 = vadd.f32 0.0, %v957
      %v959 = vpop.f32.mrf.mxu0
      %v960 = vadd.f32 0.0, %v959
      %961 = vmatmul.bf16.gmra.mxu0 %v904
      %v962 = vpop.f32.mrf.mxu0
      %v963 = vadd.f32 0.0, %v962
      %v964 = vpop.f32.mrf.mxu0
      %v965 = vadd.f32 0.0, %v964
      %966 = vmatmul.bf16.gmra.mxu0 %v907
      %v967 = vpop.f32.mrf.mxu0
      %v968 = vadd.f32 0.0, %v967
      %v969 = vpop.f32.mrf.mxu0
      %v970 = vadd.f32 0.0, %v969
      %971 = vmatmul.bf16.gmra.mxu0 %v910
      %v972 = vpop.f32.mrf.mxu0
      %v973 = vadd.f32 0.0, %v972
      %v974 = vpop.f32.mrf.mxu0
      %v975 = vadd.f32 0.0, %v974
      %976 = vmatmul.bf16.gmra.mxu0 %v913
      %v977 = vpop.f32.mrf.mxu0
      %v978 = vadd.f32 0.0, %v977
      %v979 = vpop.f32.mrf.mxu0
      %v980 = vadd.f32 0.0, %v979
      %981 = vmatmul.bf16.gmra.mxu0 %v916
      %v982 = vpop.f32.mrf.mxu0
      %v983 = vadd.f32 0.0, %v982
      %v984 = vpop.f32.mrf.mxu0
      %v985 = vadd.f32 0.0, %v984
      %986 = vmatmul.bf16.gmra.mxu0 %v919
      %v987 = vpop.f32.mrf.mxu0
      %v988 = vadd.f32 0.0, %v987
      %v989 = vpop.f32.mrf.mxu0
      %v990 = vadd.f32 0.0, %v989
      %991 = vmatmul.bf16.gmra.mxu0 %v922
      %v992 = vpop.f32.mrf.mxu0
      %v993 = vadd.f32 0.0, %v992
      %v994 = vpop.f32.mrf.mxu0
      %v995 = vadd.f32 0.0, %v994
      %996 = vmatmul.bf16.gmra.mxu0 %v925
      %v997 = vpop.f32.mrf.mxu0
      %v998 = vadd.f32 0.0, %v997
      %v999 = vpop.f32.mrf.mxu0
      %v1000 = vadd.f32 0.0, %v999
      %1001 = vmatmul.bf16.gmra.mxu0 %v928
      %v1002 = vpop.f32.mrf.mxu0
      %v1003 = vadd.f32 0.0, %v1002
      %v1004 = vpop.f32.mrf.mxu0
      %v1005 = vadd.f32 0.0, %v1004
      %1006 = vmatmul.bf16.gmra.mxu0 %v931
      %v1007 = vpop.f32.mrf.mxu0
      %v1008 = vadd.f32 0.0, %v1007
      %v1009 = vpop.f32.mrf.mxu0
      %v1010 = vadd.f32 0.0, %v1009
      %1011 = vmatmul.bf16.gmra.mxu0 %v934
      %v1012 = vpop.f32.mrf.mxu0
      %v1013 = vadd.f32 0.0, %v1012
      %v1014 = vpop.f32.mrf.mxu0
      %v1015 = vadd.f32 0.0, %v1014
      %1016 = vmatmul.bf16.gmra.mxu0 %v937
      %v1017 = vpop.f32.mrf.mxu0
      %v1018 = vadd.f32 0.0, %v1017
      %v1019 = vpop.f32.mrf.mxu0
      %v1020 = vadd.f32 0.0, %v1019
      %1021 = vmatmul.bf16.gmra.mxu0 %v940
      %v1022 = vpop.f32.mrf.mxu0
      %v1023 = vadd.f32 0.0, %v1022
      %v1024 = vpop.f32.mrf.mxu0
      %v1025 = vadd.f32 0.0, %v1024
      %1026 = vmatmul.bf16.gmra.mxu0 %v943
      %v1027 = vpop.f32.mrf.mxu0
      %v1028 = vadd.f32 0.0, %v1027
      %v1029 = vpop.f32.mrf.mxu0
      %v1030 = vadd.f32 0.0, %v1029
      %1031 = vmatmul.bf16.gmra.mxu0 %v946
      %v1032 = vpop.f32.mrf.mxu0
      %v1033 = vadd.f32 0.0, %v1032
      %v1034 = vpop.f32.mrf.mxu0
      %v1035 = vadd.f32 0.0, %v1034
      %1036 = vdwg.mxu0
      %v1037 = vadd.f32 %v675, %v958
      %v1038 = vadd.f32 %v677, %v960
      %v1039 = vadd.f32 %v680, %v963
      %v1040 = vadd.f32 %v682, %v965
      %v1041 = vadd.f32 %v685, %v968
      %v1042 = vadd.f32 %v687, %v970
      %v1043 = vadd.f32 %v690, %v973
      %v1044 = vadd.f32 %v692, %v975
      %v1045 = vadd.f32 %v695, %v978
      %v1046 = vadd.f32 %v697, %v980
      %v1047 = vadd.f32 %v700, %v983
      %v1048 = vadd.f32 %v702, %v985
      %v1049 = vadd.f32 %v705, %v988
      %v1050 = vadd.f32 %v707, %v990
      %v1051 = vadd.f32 %v710, %v993
      %v1052 = vadd.f32 %v712, %v995
      %v1053 = vadd.f32 %v715, %v998
      %v1054 = vadd.f32 %v717, %v1000
      %v1055 = vadd.f32 %v720, %v1003
      %v1056 = vadd.f32 %v722, %v1005
      %v1057 = vadd.f32 %v725, %v1008
      %v1058 = vadd.f32 %v727, %v1010
      %v1059 = vadd.f32 %v730, %v1013
      %v1060 = vadd.f32 %v732, %v1015
      %v1061 = vadd.f32 %v735, %v1018
      %v1062 = vadd.f32 %v737, %v1020
      %v1063 = vadd.f32 %v740, %v1023
      %v1064 = vadd.f32 %v742, %v1025
      %v1065 = vadd.f32 %v745, %v1028
      %v1066 = vadd.f32 %v747, %v1030
      %v1067 = vadd.f32 %v750, %v1033
      %v1068 = vadd.f32 %v752, %v1035
      %v1069 = vpack.c.bf16 %v248, %v247
      %s1070 = scalar_lea.vmem %s1, 48
      %v1071 = vld [vmem:[%s1070] sm:$0xf]
      %v1072 = vld [vmem:[%s1070 + $0x4] sm:$0xf]
      %v1073 = vld [vmem:[%s1070 + $0x8] sm:$0xf]
      %v1074 = vld [vmem:[%s1070 + $0xc] sm:$0xf]
      %v1079 = vunpack.c.l.b16 %v1071
      %v1080 = vunpack.c.l.b16 %v1072
      %v1081 = vunpack.c.l.b16 %v1073
      %v1082 = vunpack.c.l.b16 %v1074
      %v1083 = vpack.c.b16 %v1080, %v1079
      %v1084 = vpack.c.b16 %v1082, %v1081
      %v1088 = vsel %vm467, %v1069, 0
      %1090 = vmatpush.bf16.msra.mxu0 0
      %1091 = vmatpush.bf16.msra.mxu0 0
      %1092 = vmatpush.bf16.msra.mxu0 0
      %1093 = vmatpush.bf16.msra.mxu0 0
      %1094 = vmatpush.bf16.msra.mxu0 0
      %1095 = vmatpush.bf16.msra.mxu0 0
      %1096 = vmatpush.bf16.msra.mxu0 %v1084
      %1097 = vmatpush.bf16.msra.mxu0 %v1083
      %1098 = vmatmul.bf16.gmra.mxu0 %v621
      %v1099 = vpop.f32.mrf.mxu0
      %v1100 = vadd.f32 0.0, %v1099
      %v1101 = vpop.f32.mrf.mxu0
      %v1102 = vadd.f32 0.0, %v1101
      %1103 = vmatmul.bf16.gmra.mxu0 %v624
      %v1104 = vpop.f32.mrf.mxu0
      %v1105 = vadd.f32 0.0, %v1104
      %v1106 = vpop.f32.mrf.mxu0
      %v1107 = vadd.f32 0.0, %v1106
      %1108 = vmatmul.bf16.gmra.mxu0 %v627
      %v1109 = vpop.f32.mrf.mxu0
      %v1110 = vadd.f32 0.0, %v1109
      %v1111 = vpop.f32.mrf.mxu0
      %v1112 = vadd.f32 0.0, %v1111
      %1113 = vmatmul.bf16.gmra.mxu0 %v630
      %v1114 = vpop.f32.mrf.mxu0
      %v1115 = vadd.f32 0.0, %v1114
      %v1116 = vpop.f32.mrf.mxu0
      %v1117 = vadd.f32 0.0, %v1116
      %1118 = vmatmul.bf16.gmra.mxu0 %v633
      %v1119 = vpop.f32.mrf.mxu0
      %v1120 = vadd.f32 0.0, %v1119
      %v1121 = vpop.f32.mrf.mxu0
      %v1122 = vadd.f32 0.0, %v1121
      %1123 = vmatmul.bf16.gmra.mxu0 %v636
      %v1124 = vpop.f32.mrf.mxu0
      %v1125 = vadd.f32 0.0, %v1124
      %v1126 = vpop.f32.mrf.mxu0
      %v1127 = vadd.f32 0.0, %v1126
      %1128 = vmatmul.bf16.gmra.mxu0 %v639
      %v1129 = vpop.f32.mrf.mxu0
      %v1130 = vadd.f32 0.0, %v1129
      %v1131 = vpop.f32.mrf.mxu0
      %v1132 = vadd.f32 0.0, %v1131
      %1133 = vmatmul.bf16.gmra.mxu0 %v642
      %v1134 = vpop.f32.mrf.mxu0
      %v1135 = vadd.f32 0.0, %v1134
      %v1136 = vpop.f32.mrf.mxu0
      %v1137 = vadd.f32 0.0, %v1136
      %1138 = vmatmul.bf16.gmra.mxu0 %v645
      %v1139 = vpop.f32.mrf.mxu0
      %v1140 = vadd.f32 0.0, %v1139
      %v1141 = vpop.f32.mrf.mxu0
      %v1142 = vadd.f32 0.0, %v1141
      %1143 = vmatmul.bf16.gmra.mxu0 %v648
      %v1144 = vpop.f32.mrf.mxu0
      %v1145 = vadd.f32 0.0, %v1144
      %v1146 = vpop.f32.mrf.mxu0
      %v1147 = vadd.f32 0.0, %v1146
      %1148 = vmatmul.bf16.gmra.mxu0 %v651
      %v1149 = vpop.f32.mrf.mxu0
      %v1150 = vadd.f32 0.0, %v1149
      %v1151 = vpop.f32.mrf.mxu0
      %v1152 = vadd.f32 0.0, %v1151
      %1153 = vmatmul.bf16.gmra.mxu0 %v654
      %v1154 = vpop.f32.mrf.mxu0
      %v1155 = vadd.f32 0.0, %v1154
      %v1156 = vpop.f32.mrf.mxu0
      %v1157 = vadd.f32 0.0, %v1156
      %1158 = vmatmul.bf16.gmra.mxu0 %v657
      %v1159 = vpop.f32.mrf.mxu0
      %v1160 = vadd.f32 0.0, %v1159
      %v1161 = vpop.f32.mrf.mxu0
      %v1162 = vadd.f32 0.0, %v1161
      %1163 = vmatmul.bf16.gmra.mxu0 %v660
      %v1164 = vpop.f32.mrf.mxu0
      %v1165 = vadd.f32 0.0, %v1164
      %v1166 = vpop.f32.mrf.mxu0
      %v1167 = vadd.f32 0.0, %v1166
      %1168 = vmatmul.bf16.gmra.mxu0 %v663
      %v1169 = vpop.f32.mrf.mxu0
      %v1170 = vadd.f32 0.0, %v1169
      %v1171 = vpop.f32.mrf.mxu0
      %v1172 = vadd.f32 0.0, %v1171
      %1173 = vmatmul.bf16.gmra.mxu0 %v1088
      %v1174 = vpop.f32.mrf.mxu0
      %v1175 = vadd.f32 0.0, %v1174
      %v1176 = vpop.f32.mrf.mxu0
      %v1177 = vadd.f32 0.0, %v1176
      %1178 = vdwg.mxu0
      %v1179 = vadd.f32 %v1037, %v1100
      %v1180 = vadd.f32 %v1038, %v1102
      %v1181 = vadd.f32 %v1039, %v1105
      %v1182 = vadd.f32 %v1040, %v1107
      %v1183 = vadd.f32 %v1041, %v1110
      %v1184 = vadd.f32 %v1042, %v1112
      %v1185 = vadd.f32 %v1043, %v1115
      %v1186 = vadd.f32 %v1044, %v1117
      %v1187 = vadd.f32 %v1045, %v1120
      %v1188 = vadd.f32 %v1046, %v1122
      %v1189 = vadd.f32 %v1047, %v1125
      %v1190 = vadd.f32 %v1048, %v1127
      %v1191 = vadd.f32 %v1049, %v1130
      %v1192 = vadd.f32 %v1050, %v1132
      %v1193 = vadd.f32 %v1051, %v1135
      %v1194 = vadd.f32 %v1052, %v1137
      %v1195 = vadd.f32 %v1053, %v1140
      %v1196 = vadd.f32 %v1054, %v1142
      %v1197 = vadd.f32 %v1055, %v1145
      %v1198 = vadd.f32 %v1056, %v1147
      %v1199 = vadd.f32 %v1057, %v1150
      %v1200 = vadd.f32 %v1058, %v1152
      %v1201 = vadd.f32 %v1059, %v1155
      %v1202 = vadd.f32 %v1060, %v1157
      %v1203 = vadd.f32 %v1061, %v1160
      %v1204 = vadd.f32 %v1062, %v1162
      %v1205 = vadd.f32 %v1063, %v1165
      %v1206 = vadd.f32 %v1064, %v1167
      %v1207 = vadd.f32 %v1065, %v1170
      %v1208 = vadd.f32 %v1066, %v1172
      %v1209 = vadd.f32 %v1067, %v1175
      %v1210 = vadd.f32 %v1068, %v1177
      %v1214 = vrot.slane %v247, 1
      %v1215 = vrot.slane %v248, 1
      %v1216 = vsel %vm321, %v1214, %v1215
      %v1217 = vrot.slane %v249, 1
      %v1218 = vsel %vm321, %v1215, %v1217
      %v1221 = vpack.c.bf16 %v1218, %v1216
      %s1222 = scalar_lea.vmem %s1, 64
      %v1223 = vld [vmem:[%s1222] sm:$0xf]
      %v1224 = vld [vmem:[%s1222 + $0x4] sm:$0xf]
      %v1225 = vld [vmem:[%s1222 + $0x8] sm:$0xf]
      %v1226 = vld [vmem:[%s1222 + $0xc] sm:$0xf]
      %v1231 = vunpack.c.l.b16 %v1223
      %v1232 = vunpack.c.l.b16 %v1224
      %v1233 = vunpack.c.l.b16 %v1225
      %v1234 = vunpack.c.l.b16 %v1226
      %v1235 = vpack.c.b16 %v1232, %v1231
      %v1236 = vpack.c.b16 %v1234, %v1233
      %v1240 = vsel %vm467, %v1221, 0
      %1242 = vmatpush.bf16.msra.mxu0 0
      %1243 = vmatpush.bf16.msra.mxu0 0
      %1244 = vmatpush.bf16.msra.mxu0 0
      %1245 = vmatpush.bf16.msra.mxu0 0
      %1246 = vmatpush.bf16.msra.mxu0 0
      %1247 = vmatpush.bf16.msra.mxu0 0
      %1248 = vmatpush.bf16.msra.mxu0 %v1236
      %1249 = vmatpush.bf16.msra.mxu0 %v1235
      %1250 = vmatmul.bf16.gmra.mxu0 %v472
      %v1251 = vpop.f32.mrf.mxu0
      %v1252 = vadd.f32 0.0, %v1251
      %v1253 = vpop.f32.mrf.mxu0
      %v1254 = vadd.f32 0.0, %v1253
      %1255 = vmatmul.bf16.gmra.mxu0 %v475
      %v1256 = vpop.f32.mrf.mxu0
      %v1257 = vadd.f32 0.0, %v1256
      %v1258 = vpop.f32.mrf.mxu0
      %v1259 = vadd.f32 0.0, %v1258
      %1260 = vmatmul.bf16.gmra.mxu0 %v478
      %v1261 = vpop.f32.mrf.mxu0
      %v1262 = vadd.f32 0.0, %v1261
      %v1263 = vpop.f32.mrf.mxu0
      %v1264 = vadd.f32 0.0, %v1263
      %1265 = vmatmul.bf16.gmra.mxu0 %v481
      %v1266 = vpop.f32.mrf.mxu0
      %v1267 = vadd.f32 0.0, %v1266
      %v1268 = vpop.f32.mrf.mxu0
      %v1269 = vadd.f32 0.0, %v1268
      %1270 = vmatmul.bf16.gmra.mxu0 %v484
      %v1271 = vpop.f32.mrf.mxu0
      %v1272 = vadd.f32 0.0, %v1271
      %v1273 = vpop.f32.mrf.mxu0
      %v1274 = vadd.f32 0.0, %v1273
      %1275 = vmatmul.bf16.gmra.mxu0 %v487
      %v1276 = vpop.f32.mrf.mxu0
      %v1277 = vadd.f32 0.0, %v1276
      %v1278 = vpop.f32.mrf.mxu0
      %v1279 = vadd.f32 0.0, %v1278
      %1280 = vmatmul.bf16.gmra.mxu0 %v490
      %v1281 = vpop.f32.mrf.mxu0
      %v1282 = vadd.f32 0.0, %v1281
      %v1283 = vpop.f32.mrf.mxu0
      %v1284 = vadd.f32 0.0, %v1283
      %1285 = vmatmul.bf16.gmra.mxu0 %v493
      %v1286 = vpop.f32.mrf.mxu0
      %v1287 = vadd.f32 0.0, %v1286
      %v1288 = vpop.f32.mrf.mxu0
      %v1289 = vadd.f32 0.0, %v1288
      %1290 = vmatmul.bf16.gmra.mxu0 %v496
      %v1291 = vpop.f32.mrf.mxu0
      %v1292 = vadd.f32 0.0, %v1291
      %v1293 = vpop.f32.mrf.mxu0
      %v1294 = vadd.f32 0.0, %v1293
      %1295 = vmatmul.bf16.gmra.mxu0 %v499
      %v1296 = vpop.f32.mrf.mxu0
      %v1297 = vadd.f32 0.0, %v1296
      %v1298 = vpop.f32.mrf.mxu0
      %v1299 = vadd.f32 0.0, %v1298
      %1300 = vmatmul.bf16.gmra.mxu0 %v502
      %v1301 = vpop.f32.mrf.mxu0
      %v1302 = vadd.f32 0.0, %v1301
      %v1303 = vpop.f32.mrf.mxu0
      %v1304 = vadd.f32 0.0, %v1303
      %1305 = vmatmul.bf16.gmra.mxu0 %v505
      %v1306 = vpop.f32.mrf.mxu0
      %v1307 = vadd.f32 0.0, %v1306
      %v1308 = vpop.f32.mrf.mxu0
      %v1309 = vadd.f32 0.0, %v1308
      %1310 = vmatmul.bf16.gmra.mxu0 %v508
      %v1311 = vpop.f32.mrf.mxu0
      %v1312 = vadd.f32 0.0, %v1311
      %v1313 = vpop.f32.mrf.mxu0
      %v1314 = vadd.f32 0.0, %v1313
      %1315 = vmatmul.bf16.gmra.mxu0 %v511
      %v1316 = vpop.f32.mrf.mxu0
      %v1317 = vadd.f32 0.0, %v1316
      %v1318 = vpop.f32.mrf.mxu0
      %v1319 = vadd.f32 0.0, %v1318
      %1320 = vmatmul.bf16.gmra.mxu0 %v514
      %v1321 = vpop.f32.mrf.mxu0
      %v1322 = vadd.f32 0.0, %v1321
      %v1323 = vpop.f32.mrf.mxu0
      %v1324 = vadd.f32 0.0, %v1323
      %1325 = vmatmul.bf16.gmra.mxu0 %v1240
      %v1326 = vpop.f32.mrf.mxu0
      %v1327 = vadd.f32 0.0, %v1326
      %v1328 = vpop.f32.mrf.mxu0
      %v1329 = vadd.f32 0.0, %v1328
      %1330 = vdwg.mxu0
      %v1331 = vadd.f32 %v1179, %v1252
      %v1332 = vadd.f32 %v1180, %v1254
      %v1333 = vadd.f32 %v1181, %v1257
      %v1334 = vadd.f32 %v1182, %v1259
      %v1335 = vadd.f32 %v1183, %v1262
      %v1336 = vadd.f32 %v1184, %v1264
      %v1337 = vadd.f32 %v1185, %v1267
      %v1338 = vadd.f32 %v1186, %v1269
      %v1339 = vadd.f32 %v1187, %v1272
      %v1340 = vadd.f32 %v1188, %v1274
      %v1341 = vadd.f32 %v1189, %v1277
      %v1342 = vadd.f32 %v1190, %v1279
      %v1343 = vadd.f32 %v1191, %v1282
      %v1344 = vadd.f32 %v1192, %v1284
      %v1345 = vadd.f32 %v1193, %v1287
      %v1346 = vadd.f32 %v1194, %v1289
      %v1347 = vadd.f32 %v1195, %v1292
      %v1348 = vadd.f32 %v1196, %v1294
      %v1349 = vadd.f32 %v1197, %v1297
      %v1350 = vadd.f32 %v1198, %v1299
      %v1351 = vadd.f32 %v1199, %v1302
      %v1352 = vadd.f32 %v1200, %v1304
      %v1353 = vadd.f32 %v1201, %v1307
      %v1354 = vadd.f32 %v1202, %v1309
      %v1355 = vadd.f32 %v1203, %v1312
      %v1356 = vadd.f32 %v1204, %v1314
      %v1357 = vadd.f32 %v1205, %v1317
      %v1358 = vadd.f32 %v1206, %v1319
      %v1359 = vadd.f32 %v1207, %v1322
      %v1360 = vadd.f32 %v1208, %v1324
      %v1361 = vadd.f32 %v1209, %v1327
      %v1362 = vadd.f32 %v1210, %v1329
      %v1363 = vrot.slane %v247, 2
      %v1364 = vrot.slane %v248, 2
      %v1365 = vsel %vm754, %v1363, %v1364
      %v1366 = vrot.slane %v249, 2
      %v1367 = vsel %vm754, %v1364, %v1366
      %v1370 = vpack.c.bf16 %v1367, %v1365
      %s1371 = scalar_lea.vmem %s1, 80
      %v1372 = vld [vmem:[%s1371] sm:$0xf]
      %v1373 = vld [vmem:[%s1371 + $0x4] sm:$0xf]
      %v1374 = vld [vmem:[%s1371 + $0x8] sm:$0xf]
      %v1375 = vld [vmem:[%s1371 + $0xc] sm:$0xf]
      %v1380 = vunpack.c.l.b16 %v1372
      %v1381 = vunpack.c.l.b16 %v1373
      %v1382 = vunpack.c.l.b16 %v1374
      %v1383 = vunpack.c.l.b16 %v1375
      %v1384 = vpack.c.b16 %v1381, %v1380
      %v1385 = vpack.c.b16 %v1383, %v1382
      %v1389 = vsel %vm467, %v1370, 0
      %1391 = vmatpush.bf16.msra.mxu0 0
      %1392 = vmatpush.bf16.msra.mxu0 0
      %1393 = vmatpush.bf16.msra.mxu0 0
      %1394 = vmatpush.bf16.msra.mxu0 0
      %1395 = vmatpush.bf16.msra.mxu0 0
      %1396 = vmatpush.bf16.msra.mxu0 0
      %1397 = vmatpush.bf16.msra.mxu0 %v1385
      %1398 = vmatpush.bf16.msra.mxu0 %v1384
      %1399 = vmatmul.bf16.gmra.mxu0 %v904
      %v1400 = vpop.f32.mrf.mxu0
      %v1401 = vadd.f32 0.0, %v1400
      %v1402 = vpop.f32.mrf.mxu0
      %v1403 = vadd.f32 0.0, %v1402
      %1404 = vmatmul.bf16.gmra.mxu0 %v907
      %v1405 = vpop.f32.mrf.mxu0
      %v1406 = vadd.f32 0.0, %v1405
      %v1407 = vpop.f32.mrf.mxu0
      %v1408 = vadd.f32 0.0, %v1407
      %1409 = vmatmul.bf16.gmra.mxu0 %v910
      %v1410 = vpop.f32.mrf.mxu0
      %v1411 = vadd.f32 0.0, %v1410
      %v1412 = vpop.f32.mrf.mxu0
      %v1413 = vadd.f32 0.0, %v1412
      %1414 = vmatmul.bf16.gmra.mxu0 %v913
      %v1415 = vpop.f32.mrf.mxu0
      %v1416 = vadd.f32 0.0, %v1415
      %v1417 = vpop.f32.mrf.mxu0
      %v1418 = vadd.f32 0.0, %v1417
      %1419 = vmatmul.bf16.gmra.mxu0 %v916
      %v1420 = vpop.f32.mrf.mxu0
      %v1421 = vadd.f32 0.0, %v1420
      %v1422 = vpop.f32.mrf.mxu0
      %v1423 = vadd.f32 0.0, %v1422
      %1424 = vmatmul.bf16.gmra.mxu0 %v919
      %v1425 = vpop.f32.mrf.mxu0
      %v1426 = vadd.f32 0.0, %v1425
      %v1427 = vpop.f32.mrf.mxu0
      %v1428 = vadd.f32 0.0, %v1427
      %1429 = vmatmul.bf16.gmra.mxu0 %v922
      %v1430 = vpop.f32.mrf.mxu0
      %v1431 = vadd.f32 0.0, %v1430
      %v1432 = vpop.f32.mrf.mxu0
      %v1433 = vadd.f32 0.0, %v1432
      %1434 = vmatmul.bf16.gmra.mxu0 %v925
      %v1435 = vpop.f32.mrf.mxu0
      %v1436 = vadd.f32 0.0, %v1435
      %v1437 = vpop.f32.mrf.mxu0
      %v1438 = vadd.f32 0.0, %v1437
      %1439 = vmatmul.bf16.gmra.mxu0 %v928
      %v1440 = vpop.f32.mrf.mxu0
      %v1441 = vadd.f32 0.0, %v1440
      %v1442 = vpop.f32.mrf.mxu0
      %v1443 = vadd.f32 0.0, %v1442
      %1444 = vmatmul.bf16.gmra.mxu0 %v931
      %v1445 = vpop.f32.mrf.mxu0
      %v1446 = vadd.f32 0.0, %v1445
      %v1447 = vpop.f32.mrf.mxu0
      %v1448 = vadd.f32 0.0, %v1447
      %1449 = vmatmul.bf16.gmra.mxu0 %v934
      %v1450 = vpop.f32.mrf.mxu0
      %v1451 = vadd.f32 0.0, %v1450
      %v1452 = vpop.f32.mrf.mxu0
      %v1453 = vadd.f32 0.0, %v1452
      %1454 = vmatmul.bf16.gmra.mxu0 %v937
      %v1455 = vpop.f32.mrf.mxu0
      %v1456 = vadd.f32 0.0, %v1455
      %v1457 = vpop.f32.mrf.mxu0
      %v1458 = vadd.f32 0.0, %v1457
      %1459 = vmatmul.bf16.gmra.mxu0 %v940
      %v1460 = vpop.f32.mrf.mxu0
      %v1461 = vadd.f32 0.0, %v1460
      %v1462 = vpop.f32.mrf.mxu0
      %v1463 = vadd.f32 0.0, %v1462
      %1464 = vmatmul.bf16.gmra.mxu0 %v943
      %v1465 = vpop.f32.mrf.mxu0
      %v1466 = vadd.f32 0.0, %v1465
      %v1467 = vpop.f32.mrf.mxu0
      %v1468 = vadd.f32 0.0, %v1467
      %1469 = vmatmul.bf16.gmra.mxu0 %v946
      %v1470 = vpop.f32.mrf.mxu0
      %v1471 = vadd.f32 0.0, %v1470
      %v1472 = vpop.f32.mrf.mxu0
      %v1473 = vadd.f32 0.0, %v1472
      %1474 = vmatmul.bf16.gmra.mxu0 %v1389
      %v1475 = vpop.f32.mrf.mxu0
      %v1476 = vadd.f32 0.0, %v1475
      %v1477 = vpop.f32.mrf.mxu0
      %v1478 = vadd.f32 0.0, %v1477
      %1479 = vdwg.mxu0
      %v1480 = vadd.f32 %v1331, %v1401
      %v1481 = vadd.f32 %v1332, %v1403
      %v1482 = vadd.f32 %v1333, %v1406
      %v1483 = vadd.f32 %v1334, %v1408
      %v1484 = vadd.f32 %v1335, %v1411
      %v1485 = vadd.f32 %v1336, %v1413
      %v1486 = vadd.f32 %v1337, %v1416
      %v1487 = vadd.f32 %v1338, %v1418
      %v1488 = vadd.f32 %v1339, %v1421
      %v1489 = vadd.f32 %v1340, %v1423
      %v1490 = vadd.f32 %v1341, %v1426
      %v1491 = vadd.f32 %v1342, %v1428
      %v1492 = vadd.f32 %v1343, %v1431
      %v1493 = vadd.f32 %v1344, %v1433
      %v1494 = vadd.f32 %v1345, %v1436
      %v1495 = vadd.f32 %v1346, %v1438
      %v1496 = vadd.f32 %v1347, %v1441
      %v1497 = vadd.f32 %v1348, %v1443
      %v1498 = vadd.f32 %v1349, %v1446
      %v1499 = vadd.f32 %v1350, %v1448
      %v1500 = vadd.f32 %v1351, %v1451
      %v1501 = vadd.f32 %v1352, %v1453
      %v1502 = vadd.f32 %v1353, %v1456
      %v1503 = vadd.f32 %v1354, %v1458
      %v1504 = vadd.f32 %v1355, %v1461
      %v1505 = vadd.f32 %v1356, %v1463
      %v1506 = vadd.f32 %v1357, %v1466
      %v1507 = vadd.f32 %v1358, %v1468
      %v1508 = vadd.f32 %v1359, %v1471
      %v1509 = vadd.f32 %v1360, %v1473
      %v1510 = vadd.f32 %v1361, %v1476
      %v1511 = vadd.f32 %v1362, %v1478
      %v1512 = vpack.c.bf16 %v251, %v250
      %s1513 = scalar_lea.vmem %s1, 96
      %v1514 = vld [vmem:[%s1513] sm:$0xf]
      %v1515 = vld [vmem:[%s1513 + $0x4] sm:$0xf]
      %v1516 = vld [vmem:[%s1513 + $0x8] sm:$0xf]
      %v1517 = vld [vmem:[%s1513 + $0xc] sm:$0xf]
      %v1522 = vunpack.c.l.b16 %v1514
      %v1523 = vunpack.c.l.b16 %v1515
      %v1524 = vunpack.c.l.b16 %v1516
      %v1525 = vunpack.c.l.b16 %v1517
      %v1526 = vpack.c.b16 %v1523, %v1522
      %v1527 = vpack.c.b16 %v1525, %v1524
      %v1531 = vsel %vm467, %v1512, 0
      %1533 = vmatpush.bf16.msra.mxu0 0
      %1534 = vmatpush.bf16.msra.mxu0 0
      %1535 = vmatpush.bf16.msra.mxu0 0
      %1536 = vmatpush.bf16.msra.mxu0 0
      %1537 = vmatpush.bf16.msra.mxu0 0
      %1538 = vmatpush.bf16.msra.mxu0 0
      %1539 = vmatpush.bf16.msra.mxu0 %v1527
      %1540 = vmatpush.bf16.msra.mxu0 %v1526
      %1541 = vmatmul.bf16.gmra.mxu0 %v624
      %v1542 = vpop.f32.mrf.mxu0
      %v1543 = vadd.f32 0.0, %v1542
      %v1544 = vpop.f32.mrf.mxu0
      %v1545 = vadd.f32 0.0, %v1544
      %1546 = vmatmul.bf16.gmra.mxu0 %v627
      %v1547 = vpop.f32.mrf.mxu0
      %v1548 = vadd.f32 0.0, %v1547
      %v1549 = vpop.f32.mrf.mxu0
      %v1550 = vadd.f32 0.0, %v1549
      %1551 = vmatmul.bf16.gmra.mxu0 %v630
      %v1552 = vpop.f32.mrf.mxu0
      %v1553 = vadd.f32 0.0, %v1552
      %v1554 = vpop.f32.mrf.mxu0
      %v1555 = vadd.f32 0.0, %v1554
      %1556 = vmatmul.bf16.gmra.mxu0 %v633
      %v1557 = vpop.f32.mrf.mxu0
      %v1558 = vadd.f32 0.0, %v1557
      %v1559 = vpop.f32.mrf.mxu0
      %v1560 = vadd.f32 0.0, %v1559
      %1561 = vmatmul.bf16.gmra.mxu0 %v636
      %v1562 = vpop.f32.mrf.mxu0
      %v1563 = vadd.f32 0.0, %v1562
      %v1564 = vpop.f32.mrf.mxu0
      %v1565 = vadd.f32 0.0, %v1564
      %1566 = vmatmul.bf16.gmra.mxu0 %v639
      %v1567 = vpop.f32.mrf.mxu0
      %v1568 = vadd.f32 0.0, %v1567
      %v1569 = vpop.f32.mrf.mxu0
      %v1570 = vadd.f32 0.0, %v1569
      %1571 = vmatmul.bf16.gmra.mxu0 %v642
      %v1572 = vpop.f32.mrf.mxu0
      %v1573 = vadd.f32 0.0, %v1572
      %v1574 = vpop.f32.mrf.mxu0
      %v1575 = vadd.f32 0.0, %v1574
      %1576 = vmatmul.bf16.gmra.mxu0 %v645
      %v1577 = vpop.f32.mrf.mxu0
      %v1578 = vadd.f32 0.0, %v1577
      %v1579 = vpop.f32.mrf.mxu0
      %v1580 = vadd.f32 0.0, %v1579
      %1581 = vmatmul.bf16.gmra.mxu0 %v648
      %v1582 = vpop.f32.mrf.mxu0
      %v1583 = vadd.f32 0.0, %v1582
      %v1584 = vpop.f32.mrf.mxu0
      %v1585 = vadd.f32 0.0, %v1584
      %1586 = vmatmul.bf16.gmra.mxu0 %v651
      %v1587 = vpop.f32.mrf.mxu0
      %v1588 = vadd.f32 0.0, %v1587
      %v1589 = vpop.f32.mrf.mxu0
      %v1590 = vadd.f32 0.0, %v1589
      %1591 = vmatmul.bf16.gmra.mxu0 %v654
      %v1592 = vpop.f32.mrf.mxu0
      %v1593 = vadd.f32 0.0, %v1592
      %v1594 = vpop.f32.mrf.mxu0
      %v1595 = vadd.f32 0.0, %v1594
      %1596 = vmatmul.bf16.gmra.mxu0 %v657
      %v1597 = vpop.f32.mrf.mxu0
      %v1598 = vadd.f32 0.0, %v1597
      %v1599 = vpop.f32.mrf.mxu0
      %v1600 = vadd.f32 0.0, %v1599
      %1601 = vmatmul.bf16.gmra.mxu0 %v660
      %v1602 = vpop.f32.mrf.mxu0
      %v1603 = vadd.f32 0.0, %v1602
      %v1604 = vpop.f32.mrf.mxu0
      %v1605 = vadd.f32 0.0, %v1604
      %1606 = vmatmul.bf16.gmra.mxu0 %v663
      %v1607 = vpop.f32.mrf.mxu0
      %v1608 = vadd.f32 0.0, %v1607
      %v1609 = vpop.f32.mrf.mxu0
      %v1610 = vadd.f32 0.0, %v1609
      %1611 = vmatmul.bf16.gmra.mxu0 %v1088
      %v1612 = vpop.f32.mrf.mxu0
      %v1613 = vadd.f32 0.0, %v1612
      %v1614 = vpop.f32.mrf.mxu0
      %v1615 = vadd.f32 0.0, %v1614
      %1616 = vmatmul.bf16.gmra.mxu0 %v1531
      %v1617 = vpop.f32.mrf.mxu0
      %v1618 = vadd.f32 0.0, %v1617
      %v1619 = vpop.f32.mrf.mxu0
      %v1620 = vadd.f32 0.0, %v1619
      %1621 = vdwg.mxu0
      %v1622 = vadd.f32 %v1480, %v1543
      %v1623 = vadd.f32 %v1481, %v1545
      %v1624 = vadd.f32 %v1482, %v1548
      %v1625 = vadd.f32 %v1483, %v1550
      %v1626 = vadd.f32 %v1484, %v1553
      %v1627 = vadd.f32 %v1485, %v1555
      %v1628 = vadd.f32 %v1486, %v1558
      %v1629 = vadd.f32 %v1487, %v1560
      %v1630 = vadd.f32 %v1488, %v1563
      %v1631 = vadd.f32 %v1489, %v1565
      %v1632 = vadd.f32 %v1490, %v1568
      %v1633 = vadd.f32 %v1491, %v1570
      %v1634 = vadd.f32 %v1492, %v1573
      %v1635 = vadd.f32 %v1493, %v1575
      %v1636 = vadd.f32 %v1494, %v1578
      %v1637 = vadd.f32 %v1495, %v1580
      %v1638 = vadd.f32 %v1496, %v1583
      %v1639 = vadd.f32 %v1497, %v1585
      %v1640 = vadd.f32 %v1498, %v1588
      %v1641 = vadd.f32 %v1499, %v1590
      %v1642 = vadd.f32 %v1500, %v1593
      %v1643 = vadd.f32 %v1501, %v1595
      %v1644 = vadd.f32 %v1502, %v1598
      %v1645 = vadd.f32 %v1503, %v1600
      %v1646 = vadd.f32 %v1504, %v1603
      %v1647 = vadd.f32 %v1505, %v1605
      %v1648 = vadd.f32 %v1506, %v1608
      %v1649 = vadd.f32 %v1507, %v1610
      %v1650 = vadd.f32 %v1508, %v1613
      %v1651 = vadd.f32 %v1509, %v1615
      %v1652 = vadd.f32 %v1510, %v1618
      %v1653 = vadd.f32 %v1511, %v1620
      %v1657 = vrot.slane %v250, 1
      %v1658 = vrot.slane %v251, 1
      %v1659 = vsel %vm321, %v1657, %v1658
      %v1660 = vrot.slane %v252, 1
      %v1661 = vsel %vm321, %v1658, %v1660
      %v1664 = vpack.c.bf16 %v1661, %v1659
      %s1665 = scalar_lea.vmem %s1, 112
      %v1666 = vld [vmem:[%s1665] sm:$0xf]
      %v1667 = vld [vmem:[%s1665 + $0x4] sm:$0xf]
      %v1668 = vld [vmem:[%s1665 + $0x8] sm:$0xf]
      %v1669 = vld [vmem:[%s1665 + $0xc] sm:$0xf]
      %v1674 = vunpack.c.l.b16 %v1666
      %v1675 = vunpack.c.l.b16 %v1667
      %v1676 = vunpack.c.l.b16 %v1668
      %v1677 = vunpack.c.l.b16 %v1669
      %v1678 = vpack.c.b16 %v1675, %v1674
      %v1679 = vpack.c.b16 %v1677, %v1676
      %v1683 = vsel %vm467, %v1664, 0
      %1685 = vmatpush.bf16.msra.mxu0 0
      %1686 = vmatpush.bf16.msra.mxu0 0
      %1687 = vmatpush.bf16.msra.mxu0 0
      %1688 = vmatpush.bf16.msra.mxu0 0
      %1689 = vmatpush.bf16.msra.mxu0 0
      %1690 = vmatpush.bf16.msra.mxu0 0
      %1691 = vmatpush.bf16.msra.mxu0 %v1679
      %1692 = vmatpush.bf16.msra.mxu0 %v1678
      %1693 = vmatmul.bf16.gmra.mxu0 %v475
      %v1694 = vpop.f32.mrf.mxu0
      %v1695 = vadd.f32 0.0, %v1694
      %v1696 = vpop.f32.mrf.mxu0
      %v1697 = vadd.f32 0.0, %v1696
      %1698 = vmatmul.bf16.gmra.mxu0 %v478
      %v1699 = vpop.f32.mrf.mxu0
      %v1700 = vadd.f32 0.0, %v1699
      %v1701 = vpop.f32.mrf.mxu0
      %v1702 = vadd.f32 0.0, %v1701
      %1703 = vmatmul.bf16.gmra.mxu0 %v481
      %v1704 = vpop.f32.mrf.mxu0
      %v1705 = vadd.f32 0.0, %v1704
      %v1706 = vpop.f32.mrf.mxu0
      %v1707 = vadd.f32 0.0, %v1706
      %1708 = vmatmul.bf16.gmra.mxu0 %v484
      %v1709 = vpop.f32.mrf.mxu0
      %v1710 = vadd.f32 0.0, %v1709
      %v1711 = vpop.f32.mrf.mxu0
      %v1712 = vadd.f32 0.0, %v1711
      %1713 = vmatmul.bf16.gmra.mxu0 %v487
      %v1714 = vpop.f32.mrf.mxu0
      %v1715 = vadd.f32 0.0, %v1714
      %v1716 = vpop.f32.mrf.mxu0
      %v1717 = vadd.f32 0.0, %v1716
      %1718 = vmatmul.bf16.gmra.mxu0 %v490
      %v1719 = vpop.f32.mrf.mxu0
      %v1720 = vadd.f32 0.0, %v1719
      %v1721 = vpop.f32.mrf.mxu0
      %v1722 = vadd.f32 0.0, %v1721
      %1723 = vmatmul.bf16.gmra.mxu0 %v493
      %v1724 = vpop.f32.mrf.mxu0
      %v1725 = vadd.f32 0.0, %v1724
      %v1726 = vpop.f32.mrf.mxu0
      %v1727 = vadd.f32 0.0, %v1726
      %1728 = vmatmul.bf16.gmra.mxu0 %v496
      %v1729 = vpop.f32.mrf.mxu0
      %v1730 = vadd.f32 0.0, %v1729
      %v1731 = vpop.f32.mrf.mxu0
      %v1732 = vadd.f32 0.0, %v1731
      %1733 = vmatmul.bf16.gmra.mxu0 %v499
      %v1734 = vpop.f32.mrf.mxu0
      %v1735 = vadd.f32 0.0, %v1734
      %v1736 = vpop.f32.mrf.mxu0
      %v1737 = vadd.f32 0.0, %v1736
      %1738 = vmatmul.bf16.gmra.mxu0 %v502
      %v1739 = vpop.f32.mrf.mxu0
      %v1740 = vadd.f32 0.0, %v1739
      %v1741 = vpop.f32.mrf.mxu0
      %v1742 = vadd.f32 0.0, %v1741
      %1743 = vmatmul.bf16.gmra.mxu0 %v505
      %v1744 = vpop.f32.mrf.mxu0
      %v1745 = vadd.f32 0.0, %v1744
      %v1746 = vpop.f32.mrf.mxu0
      %v1747 = vadd.f32 0.0, %v1746
      %1748 = vmatmul.bf16.gmra.mxu0 %v508
      %v1749 = vpop.f32.mrf.mxu0
      %v1750 = vadd.f32 0.0, %v1749
      %v1751 = vpop.f32.mrf.mxu0
      %v1752 = vadd.f32 0.0, %v1751
      %1753 = vmatmul.bf16.gmra.mxu0 %v511
      %v1754 = vpop.f32.mrf.mxu0
      %v1755 = vadd.f32 0.0, %v1754
      %v1756 = vpop.f32.mrf.mxu0
      %v1757 = vadd.f32 0.0, %v1756
      %1758 = vmatmul.bf16.gmra.mxu0 %v514
      %v1759 = vpop.f32.mrf.mxu0
      %v1760 = vadd.f32 0.0, %v1759
      %v1761 = vpop.f32.mrf.mxu0
      %v1762 = vadd.f32 0.0, %v1761
      %1763 = vmatmul.bf16.gmra.mxu0 %v1240
      %v1764 = vpop.f32.mrf.mxu0
      %v1765 = vadd.f32 0.0, %v1764
      %v1766 = vpop.f32.mrf.mxu0
      %v1767 = vadd.f32 0.0, %v1766
      %1768 = vmatmul.bf16.gmra.mxu0 %v1683
      %v1769 = vpop.f32.mrf.mxu0
      %v1770 = vadd.f32 0.0, %v1769
      %v1771 = vpop.f32.mrf.mxu0
      %v1772 = vadd.f32 0.0, %v1771
      %1773 = vdwg.mxu0
      %v1774 = vadd.f32 %v1622, %v1695
      %v1775 = vadd.f32 %v1623, %v1697
      %v1776 = vadd.f32 %v1624, %v1700
      %v1777 = vadd.f32 %v1625, %v1702
      %v1778 = vadd.f32 %v1626, %v1705
      %v1779 = vadd.f32 %v1627, %v1707
      %v1780 = vadd.f32 %v1628, %v1710
      %v1781 = vadd.f32 %v1629, %v1712
      %v1782 = vadd.f32 %v1630, %v1715
      %v1783 = vadd.f32 %v1631, %v1717
      %v1784 = vadd.f32 %v1632, %v1720
      %v1785 = vadd.f32 %v1633, %v1722
      %v1786 = vadd.f32 %v1634, %v1725
      %v1787 = vadd.f32 %v1635, %v1727
      %v1788 = vadd.f32 %v1636, %v1730
      %v1789 = vadd.f32 %v1637, %v1732
      %v1790 = vadd.f32 %v1638, %v1735
      %v1791 = vadd.f32 %v1639, %v1737
      %v1792 = vadd.f32 %v1640, %v1740
      %v1793 = vadd.f32 %v1641, %v1742
      %v1794 = vadd.f32 %v1642, %v1745
      %v1795 = vadd.f32 %v1643, %v1747
      %v1796 = vadd.f32 %v1644, %v1750
      %v1797 = vadd.f32 %v1645, %v1752
      %v1798 = vadd.f32 %v1646, %v1755
      %v1799 = vadd.f32 %v1647, %v1757
      %v1800 = vadd.f32 %v1648, %v1760
      %v1801 = vadd.f32 %v1649, %v1762
      %v1802 = vadd.f32 %v1650, %v1765
      %v1803 = vadd.f32 %v1651, %v1767
      %v1804 = vadd.f32 %v1652, %v1770
      %v1805 = vadd.f32 %v1653, %v1772
      %v1806 = vrot.slane %v250, 2
      %v1807 = vrot.slane %v251, 2
      %v1808 = vsel %vm754, %v1806, %v1807
      %v1809 = vrot.slane %v252, 2
      %v1810 = vsel %vm754, %v1807, %v1809
      %v1813 = vpack.c.bf16 %v1810, %v1808
      %s1814 = scalar_lea.vmem %s1, 128
      %v1815 = vld [vmem:[%s1814] sm:$0xf]
      %v1816 = vld [vmem:[%s1814 + $0x4] sm:$0xf]
      %v1817 = vld [vmem:[%s1814 + $0x8] sm:$0xf]
      %v1818 = vld [vmem:[%s1814 + $0xc] sm:$0xf]
      %v1823 = vunpack.c.l.b16 %v1815
      %v1824 = vunpack.c.l.b16 %v1816
      %v1825 = vunpack.c.l.b16 %v1817
      %v1826 = vunpack.c.l.b16 %v1818
      %v1827 = vpack.c.b16 %v1824, %v1823
      %v1828 = vpack.c.b16 %v1826, %v1825
      %v1832 = vsel %vm467, %v1813, 0
      %1834 = vmatpush.bf16.msra.mxu0 0
      %1835 = vmatpush.bf16.msra.mxu0 0
      %1836 = vmatpush.bf16.msra.mxu0 0
      %1837 = vmatpush.bf16.msra.mxu0 0
      %1838 = vmatpush.bf16.msra.mxu0 0
      %1839 = vmatpush.bf16.msra.mxu0 0
      %1840 = vmatpush.bf16.msra.mxu0 %v1828
      %1841 = vmatpush.bf16.msra.mxu0 %v1827
      %1842 = vmatmul.bf16.gmra.mxu0 %v907
      %v1843 = vpop.f32.mrf.mxu0
      %v1844 = vadd.f32 0.0, %v1843
      %v1845 = vpop.f32.mrf.mxu0
      %v1846 = vadd.f32 0.0, %v1845
      %1847 = vmatmul.bf16.gmra.mxu0 %v910
      %v1848 = vpop.f32.mrf.mxu0
      %v1849 = vadd.f32 0.0, %v1848
      %v1850 = vpop.f32.mrf.mxu0
      %v1851 = vadd.f32 0.0, %v1850
      %1852 = vmatmul.bf16.gmra.mxu0 %v913
      %v1853 = vpop.f32.mrf.mxu0
      %v1854 = vadd.f32 0.0, %v1853
      %v1855 = vpop.f32.mrf.mxu0
      %v1856 = vadd.f32 0.0, %v1855
      %1857 = vmatmul.bf16.gmra.mxu0 %v916
      %v1858 = vpop.f32.mrf.mxu0
      %v1859 = vadd.f32 0.0, %v1858
      %v1860 = vpop.f32.mrf.mxu0
      %v1861 = vadd.f32 0.0, %v1860
      %1862 = vmatmul.bf16.gmra.mxu0 %v919
      %v1863 = vpop.f32.mrf.mxu0
      %v1864 = vadd.f32 0.0, %v1863
      %v1865 = vpop.f32.mrf.mxu0
      %v1866 = vadd.f32 0.0, %v1865
      %1867 = vmatmul.bf16.gmra.mxu0 %v922
      %v1868 = vpop.f32.mrf.mxu0
      %v1869 = vadd.f32 0.0, %v1868
      %v1870 = vpop.f32.mrf.mxu0
      %v1871 = vadd.f32 0.0, %v1870
      %1872 = vmatmul.bf16.gmra.mxu0 %v925
      %v1873 = vpop.f32.mrf.mxu0
      %v1874 = vadd.f32 0.0, %v1873
      %v1875 = vpop.f32.mrf.mxu0
      %v1876 = vadd.f32 0.0, %v1875
      %1877 = vmatmul.bf16.gmra.mxu0 %v928
      %v1878 = vpop.f32.mrf.mxu0
      %v1879 = vadd.f32 0.0, %v1878
      %v1880 = vpop.f32.mrf.mxu0
      %v1881 = vadd.f32 0.0, %v1880
      %1882 = vmatmul.bf16.gmra.mxu0 %v931
      %v1883 = vpop.f32.mrf.mxu0
      %v1884 = vadd.f32 0.0, %v1883
      %v1885 = vpop.f32.mrf.mxu0
      %v1886 = vadd.f32 0.0, %v1885
      %1887 = vmatmul.bf16.gmra.mxu0 %v934
      %v1888 = vpop.f32.mrf.mxu0
      %v1889 = vadd.f32 0.0, %v1888
      %v1890 = vpop.f32.mrf.mxu0
      %v1891 = vadd.f32 0.0, %v1890
      %1892 = vmatmul.bf16.gmra.mxu0 %v937
      %v1893 = vpop.f32.mrf.mxu0
      %v1894 = vadd.f32 0.0, %v1893
      %v1895 = vpop.f32.mrf.mxu0
      %v1896 = vadd.f32 0.0, %v1895
      %1897 = vmatmul.bf16.gmra.mxu0 %v940
      %v1898 = vpop.f32.mrf.mxu0
      %v1899 = vadd.f32 0.0, %v1898
      %v1900 = vpop.f32.mrf.mxu0
      %v1901 = vadd.f32 0.0, %v1900
      %1902 = vmatmul.bf16.gmra.mxu0 %v943
      %v1903 = vpop.f32.mrf.mxu0
      %v1904 = vadd.f32 0.0, %v1903
      %v1905 = vpop.f32.mrf.mxu0
      %v1906 = vadd.f32 0.0, %v1905
      %1907 = vmatmul.bf16.gmra.mxu0 %v946
      %v1908 = vpop.f32.mrf.mxu0
      %v1909 = vadd.f32 0.0, %v1908
      %v1910 = vpop.f32.mrf.mxu0
      %v1911 = vadd.f32 0.0, %v1910
      %1912 = vmatmul.bf16.gmra.mxu0 %v1389
      %v1913 = vpop.f32.mrf.mxu0
      %v1914 = vadd.f32 0.0, %v1913
      %v1915 = vpop.f32.mrf.mxu0
      %v1916 = vadd.f32 0.0, %v1915
      %1917 = vmatmul.bf16.gmra.mxu0 %v1832
      %v1918 = vpop.f32.mrf.mxu0
      %v1919 = vadd.f32 0.0, %v1918
      %v1920 = vpop.f32.mrf.mxu0
      %v1921 = vadd.f32 0.0, %v1920
      %1922 = vdwg.mxu0
      %v1923 = vadd.f32 %v1774, %v1844
      %v1924 = vadd.f32 %v1775, %v1846
      %v1925 = vadd.f32 %v1776, %v1849
      %v1926 = vadd.f32 %v1777, %v1851
      %v1927 = vadd.f32 %v1778, %v1854
      %v1928 = vadd.f32 %v1779, %v1856
      %v1929 = vadd.f32 %v1780, %v1859
      %v1930 = vadd.f32 %v1781, %v1861
      %v1931 = vadd.f32 %v1782, %v1864
      %v1932 = vadd.f32 %v1783, %v1866
      %v1933 = vadd.f32 %v1784, %v1869
      %v1934 = vadd.f32 %v1785, %v1871
      %v1935 = vadd.f32 %v1786, %v1874
      %v1936 = vadd.f32 %v1787, %v1876
      %v1937 = vadd.f32 %v1788, %v1879
      %v1938 = vadd.f32 %v1789, %v1881
      %v1939 = vadd.f32 %v1790, %v1884
      %v1940 = vadd.f32 %v1791, %v1886
      %v1941 = vadd.f32 %v1792, %v1889
      %v1942 = vadd.f32 %v1793, %v1891
      %v1943 = vadd.f32 %v1794, %v1894
      %v1944 = vadd.f32 %v1795, %v1896
      %v1945 = vadd.f32 %v1796, %v1899
      %v1946 = vadd.f32 %v1797, %v1901
      %v1947 = vadd.f32 %v1798, %v1904
      %v1948 = vadd.f32 %v1799, %v1906
      %v1949 = vadd.f32 %v1800, %v1909
      %v1950 = vadd.f32 %v1801, %v1911
      %v1951 = vadd.f32 %v1802, %v1914
      %v1952 = vadd.f32 %v1803, %v1916
      %v1953 = vadd.f32 %v1804, %v1919
      %v1954 = vadd.f32 %v1805, %v1921
      %v1955 = vld [vmem:[%s2] sm:$0x1]
      %v1957 = vperm.slane %v1955, 0
      %v1959 = vadd.f32 %v1923, %v1957
      %v1960 = vadd.f32 %v1924, %v1957
      %v1961 = vadd.f32 %v1925, %v1957
      %v1962 = vadd.f32 %v1926, %v1957
      %v1963 = vadd.f32 %v1927, %v1957
      %v1964 = vadd.f32 %v1928, %v1957
      %v1965 = vadd.f32 %v1929, %v1957
      %v1966 = vadd.f32 %v1930, %v1957
      %v1967 = vadd.f32 %v1931, %v1957
      %v1968 = vadd.f32 %v1932, %v1957
      %v1969 = vadd.f32 %v1933, %v1957
      %v1970 = vadd.f32 %v1934, %v1957
      %v1971 = vadd.f32 %v1935, %v1957
      %v1972 = vadd.f32 %v1936, %v1957
      %v1973 = vadd.f32 %v1937, %v1957
      %v1974 = vadd.f32 %v1938, %v1957
      %v1975 = vadd.f32 %v1939, %v1957
      %v1976 = vadd.f32 %v1940, %v1957
      %v1977 = vadd.f32 %v1941, %v1957
      %v1978 = vadd.f32 %v1942, %v1957
      %v1979 = vadd.f32 %v1943, %v1957
      %v1980 = vadd.f32 %v1944, %v1957
      %v1981 = vadd.f32 %v1945, %v1957
      %v1982 = vadd.f32 %v1946, %v1957
      %v1983 = vadd.f32 %v1947, %v1957
      %v1984 = vadd.f32 %v1948, %v1957
      %v1985 = vadd.f32 %v1949, %v1957
      %v1986 = vadd.f32 %v1950, %v1957
      %v1987 = vadd.f32 %v1951, %v1957
      %v1988 = vadd.f32 %v1952, %v1957
      %v1989 = vadd.f32 %v1953, %v1957
      %v1990 = vadd.f32 %v1954, %v1957
      %vm1991 = vcmp.ge.f32.partialorder %v1959, 0.0
      %vm1992 = vcmp.ge.f32.partialorder %v1960, 0.0
      %vm1993 = vcmp.ge.f32.partialorder %v1961, 0.0
      %vm1994 = vcmp.ge.f32.partialorder %v1962, 0.0
      %vm1995 = vcmp.ge.f32.partialorder %v1963, 0.0
      %vm1996 = vcmp.ge.f32.partialorder %v1964, 0.0
      %vm1997 = vcmp.ge.f32.partialorder %v1965, 0.0
      %vm1998 = vcmp.ge.f32.partialorder %v1966, 0.0
      %vm1999 = vcmp.ge.f32.partialorder %v1967, 0.0
      %vm2000 = vcmp.ge.f32.partialorder %v1968, 0.0
      %vm2001 = vcmp.ge.f32.partialorder %v1969, 0.0
      %vm2002 = vcmp.ge.f32.partialorder %v1970, 0.0
      %vm2003 = vcmp.ge.f32.partialorder %v1971, 0.0
      %vm2004 = vcmp.ge.f32.partialorder %v1972, 0.0
      %vm2005 = vcmp.ge.f32.partialorder %v1973, 0.0
      %vm2006 = vcmp.ge.f32.partialorder %v1974, 0.0
      %vm2007 = vcmp.ge.f32.partialorder %v1975, 0.0
      %vm2008 = vcmp.ge.f32.partialorder %v1976, 0.0
      %vm2009 = vcmp.ge.f32.partialorder %v1977, 0.0
      %vm2010 = vcmp.ge.f32.partialorder %v1978, 0.0
      %vm2011 = vcmp.ge.f32.partialorder %v1979, 0.0
      %vm2012 = vcmp.ge.f32.partialorder %v1980, 0.0
      %vm2013 = vcmp.ge.f32.partialorder %v1981, 0.0
      %vm2014 = vcmp.ge.f32.partialorder %v1982, 0.0
      %vm2015 = vcmp.ge.f32.partialorder %v1983, 0.0
      %vm2016 = vcmp.ge.f32.partialorder %v1984, 0.0
      %vm2017 = vcmp.ge.f32.partialorder %v1985, 0.0
      %vm2018 = vcmp.ge.f32.partialorder %v1986, 0.0
      %vm2019 = vcmp.ge.f32.partialorder %v1987, 0.0
      %vm2020 = vcmp.ge.f32.partialorder %v1988, 0.0
      %vm2021 = vcmp.ge.f32.partialorder %v1989, 0.0
      %vm2022 = vcmp.ge.f32.partialorder %v1990, 0.0
      %v2023 = vld [vmem:[%s3] sm:$0x1]
      %v2025 = vperm.slane %v2023, 0
      %v2027 = vmul.f32 %v2025, %v1959
      %v2028 = vmul.f32 %v2025, %v1960
      %v2029 = vmul.f32 %v2025, %v1961
      %v2030 = vmul.f32 %v2025, %v1962
      %v2031 = vmul.f32 %v2025, %v1963
      %v2032 = vmul.f32 %v2025, %v1964
      %v2033 = vmul.f32 %v2025, %v1965
      %v2034 = vmul.f32 %v2025, %v1966
      %v2035 = vmul.f32 %v2025, %v1967
      %v2036 = vmul.f32 %v2025, %v1968
      %v2037 = vmul.f32 %v2025, %v1969
      %v2038 = vmul.f32 %v2025, %v1970
      %v2039 = vmul.f32 %v2025, %v1971
      %v2040 = vmul.f32 %v2025, %v1972
      %v2041 = vmul.f32 %v2025, %v1973
      %v2042 = vmul.f32 %v2025, %v1974
      %v2043 = vmul.f32 %v2025, %v1975
      %v2044 = vmul.f32 %v2025, %v1976
      %v2045 = vmul.f32 %v2025, %v1977
      %v2046 = vmul.f32 %v2025, %v1978
      %v2047 = vmul.f32 %v2025, %v1979
      %v2048 = vmul.f32 %v2025, %v1980
      %v2049 = vmul.f32 %v2025, %v1981
      %v2050 = vmul.f32 %v2025, %v1982
      %v2051 = vmul.f32 %v2025, %v1983
      %v2052 = vmul.f32 %v2025, %v1984
      %v2053 = vmul.f32 %v2025, %v1985
      %v2054 = vmul.f32 %v2025, %v1986
      %v2055 = vmul.f32 %v2025, %v1987
      %v2056 = vmul.f32 %v2025, %v1988
      %v2057 = vmul.f32 %v2025, %v1989
      %v2058 = vmul.f32 %v2025, %v1990
      %v2059 = vsel %vm1991, %v1959, %v2027
      %v2060 = vsel %vm1992, %v1960, %v2028
      %v2061 = vsel %vm1993, %v1961, %v2029
      %v2062 = vsel %vm1994, %v1962, %v2030
      %v2063 = vsel %vm1995, %v1963, %v2031
      %v2064 = vsel %vm1996, %v1964, %v2032
      %v2065 = vsel %vm1997, %v1965, %v2033
      %v2066 = vsel %vm1998, %v1966, %v2034
      %v2067 = vsel %vm1999, %v1967, %v2035
      %v2068 = vsel %vm2000, %v1968, %v2036
      %v2069 = vsel %vm2001, %v1969, %v2037
      %v2070 = vsel %vm2002, %v1970, %v2038
      %v2071 = vsel %vm2003, %v1971, %v2039
      %v2072 = vsel %vm2004, %v1972, %v2040
      %v2073 = vsel %vm2005, %v1973, %v2041
      %v2074 = vsel %vm2006, %v1974, %v2042
      %v2075 = vsel %vm2007, %v1975, %v2043
      %v2076 = vsel %vm2008, %v1976, %v2044
      %v2077 = vsel %vm2009, %v1977, %v2045
      %v2078 = vsel %vm2010, %v1978, %v2046
      %v2079 = vsel %vm2011, %v1979, %v2047
      %v2080 = vsel %vm2012, %v1980, %v2048
      %v2081 = vsel %vm2013, %v1981, %v2049
      %v2082 = vsel %vm2014, %v1982, %v2050
      %v2083 = vsel %vm2015, %v1983, %v2051
      %v2084 = vsel %vm2016, %v1984, %v2052
      %v2085 = vsel %vm2017, %v1985, %v2053
      %v2086 = vsel %vm2018, %v1986, %v2054
      %v2087 = vsel %vm2019, %v1987, %v2055
      %v2088 = vsel %vm2020, %v1988, %v2056
      %v2089 = vsel %vm2021, %v1989, %v2057
      %v2090 = vsel %vm2022, %v1990, %v2058
      %2091 = vst.msk [vmem:[%s197] sm:$0xff] %vm467, %v2059
      %2092 = vst.msk [vmem:[%s197 + $0x8] sm:$0xff] %vm467, %v2060
      %2093 = vst.msk [vmem:[%s197 + $0x10] sm:$0xff] %vm467, %v2061
      %2094 = vst.msk [vmem:[%s197 + $0x18] sm:$0xff] %vm467, %v2062
      %2095 = vst.msk [vmem:[%s197 + $0x20] sm:$0xff] %vm467, %v2063
      %2096 = vst.msk [vmem:[%s197 + $0x28] sm:$0xff] %vm467, %v2064
      %2097 = vst.msk [vmem:[%s197 + $0x30] sm:$0xff] %vm467, %v2065
      %2098 = vst.msk [vmem:[%s197 + $0x38] sm:$0xff] %vm467, %v2066
      %2099 = vst.msk [vmem:[%s197 + $0x40] sm:$0xff] %vm467, %v2067
      %2100 = vst.msk [vmem:[%s197 + $0x48] sm:$0xff] %vm467, %v2068
      %2101 = vst.msk [vmem:[%s197 + $0x50] sm:$0xff] %vm467, %v2069
      %2102 = vst.msk [vmem:[%s197 + $0x58] sm:$0xff] %vm467, %v2070
      %2103 = vst.msk [vmem:[%s197 + $0x60] sm:$0xff] %vm467, %v2071
      %2104 = vst.msk [vmem:[%s197 + $0x68] sm:$0xff] %vm467, %v2072
      %2105 = vst.msk [vmem:[%s197 + $0x70] sm:$0xff] %vm467, %v2073
      %2106 = vst.msk [vmem:[%s197 + $0x78] sm:$0xff] %vm467, %v2074
      %2107 = vst.msk [vmem:[%s197 + $0x80] sm:$0xff] %vm467, %v2075
      %2108 = vst.msk [vmem:[%s197 + $0x88] sm:$0xff] %vm467, %v2076
      %2109 = vst.msk [vmem:[%s197 + $0x90] sm:$0xff] %vm467, %v2077
      %2110 = vst.msk [vmem:[%s197 + $0x98] sm:$0xff] %vm467, %v2078
      %2111 = vst.msk [vmem:[%s197 + $0xa0] sm:$0xff] %vm467, %v2079
      %2112 = vst.msk [vmem:[%s197 + $0xa8] sm:$0xff] %vm467, %v2080
      %2113 = vst.msk [vmem:[%s197 + $0xb0] sm:$0xff] %vm467, %v2081
      %2114 = vst.msk [vmem:[%s197 + $0xb8] sm:$0xff] %vm467, %v2082
      %2115 = vst.msk [vmem:[%s197 + $0xc0] sm:$0xff] %vm467, %v2083
      %2116 = vst.msk [vmem:[%s197 + $0xc8] sm:$0xff] %vm467, %v2084
      %2117 = vst.msk [vmem:[%s197 + $0xd0] sm:$0xff] %vm467, %v2085
      %2118 = vst.msk [vmem:[%s197 + $0xd8] sm:$0xff] %vm467, %v2086
      %2119 = vst.msk [vmem:[%s197 + $0xe0] sm:$0xff] %vm467, %v2087
      %2120 = vst.msk [vmem:[%s197 + $0xe8] sm:$0xff] %vm467, %v2088
      %2121 = vst.msk [vmem:[%s197 + $0xf0] sm:$0xff] %vm467, %v2089
      %2122 = vst.msk [vmem:[%s197 + $0xf8] sm:$0xff] %vm467, %v2090
      %p2123 = scmp.lt.s32.totalorder %s15, 1
      %s2124 = scalar_select %p2123, %s15, 1
      %s2125 = smul.addr %s2124, 32
      %s2126 = smul.addr %s2125, 8
      %s2127 = scalar_lea.vmem %s4, %s2126
      // Predicated region
      $region37: #{stacked_edvr_forward.11} parent=35 // pred_check
        %p2128 = pneg %p122
      $region38: #{stacked_edvr_forward.11} parent=35 // pred_check_branch
        %2130 = sbr.rel (%p2128) target = $region40
      $region39: #{stacked_edvr_forward.11} parent=35 // pred_region
        _
      $region40: #{stacked_edvr_forward.11} parent=35 // pred_fallthru
        _
    $region36: #{stacked_edvr_forward.11} parent=5 // pred_fallthru
      _
    %p2131 = scmp.le.s32.totalorder 2, %s10
    // Predicated region
    $region41: #{stacked_edvr_forward.11} parent=5 // pred_check
      %p2132 = pneg %p2131
    $region42: #{stacked_edvr_forward.11} parent=5 // pred_check_branch
      %2134 = sbr.rel (%p2132) target = $region44
    $region43: #{stacked_edvr_forward.11} parent=5 // pred_region
      %s2135 = ssub.s32 %s10, 2
      // Predicated region
      $region45: #{stacked_edvr_forward.11} parent=43 // pred_check
        %p2136 = pneg %p128
      $region46: #{stacked_edvr_forward.11} parent=43 // pred_check_branch
        %2138 = sbr.rel (%p2136) target = $region48
      $region47: #{stacked_edvr_forward.11} parent=43 // pred_region
        %p2139 = scmp.lt.s32.totalorder %s16, 1
        %s2140 = scalar_select %p2139, %s16, 1
        %s2141 = smul.addr %s2140, 32
        %s2142 = smul.addr %s2141, 8
        %s2143 = scalar_lea.vmem %s4, %s2142
      $region48: #{stacked_edvr_forward.11} parent=43 // pred_fallthru
        _
    $region44: #{stacked_edvr_forward.11} parent=5 // pred_fallthru
      _
  $region6: #{stacked_edvr_forward.11} parent=0 // loop_footer
    %s14 = sadd.s32 1, %s10
  $region7: #{stacked_edvr_forward.11} parent=0 // loop_footer_branch
    %9 = sbr.rel target = $region3
  $region8: #{stacked_edvr_forward.11} parent=0 // loop_exit
    _

// kernel: stacked_edvr_forward.15
$region0: #{stacked_edvr_forward.15}
  #allocation0 [shape = 'u32[]', space=smem, size = 0x4, offset = 0x4, fixed_abs, tag = 'smem constant byte address 0x4 - core index']
  #allocation1 [shape = 'u32[72,128]{1,0:T(1,128)}', space=vmem, size = 0x9000, scoped, tag = 'internal scratch']
  %s0 = inlined_call_operand.vmem [shape: f32[512,32], index: 0, kind: input, shape index: {}]
  %s1 = inlined_call_operand.vmem [shape: bf16[32,256], index: 1, kind: input, shape index: {}]
  %s2 = inlined_call_operand.vmem [shape: f32[1,256], index: 2, kind: input, shape index: {}]
  %s3 = inlined_call_operand.vmem [shape: f32[512,256], index: 3, kind: output, shape index: {}]
  %s4 = sld [smem:[#allocation0]]
  $region45: #{stacked_edvr_forward.15} parent=0
    _
  %s6 = ssub.s32 1, %s4
  %s7 = scalar_select 0, %s6, %s4
  loop: start=0, step=1, limit=4
  $region2: #{stacked_edvr_forward.15} parent=0 // loop_pre_header
    _
  $region3: #{stacked_edvr_forward.15} parent=0 // loop_header
    %s9 = sphi 0, %s13
    %p10 = scmp.ge.s32.totalorder %s9, 4
    %s19 = sphi 0, %s21
    %s22 = sphi 0, %s19
    %s23 = sphi 0, %s22
    %s39 = sphi 0, %s23
    %s43 = sphi 0, %s43
    %s45 = sphi 0, %s43
    %s46 = sphi 0, %s45
    %s60 = sphi 0, %s46
    %s64 = sphi 0, %s64
    %s66 = sphi 0, %s64
    %s67 = sphi 0, %s66
    %s81 = sphi 0, %s67
    %s87 = sphi 0, %s89
    %s90 = sphi 0, %s87
    %s91 = sphi 0, %s90
    %s107 = sphi 0, %s91
  $region4: #{stacked_edvr_forward.15} parent=0 // loop_header_branch
    %12 = sbr.rel (%p10) target = $region8
  $region5: #{stacked_edvr_forward.15} parent=0 // loop_body
    %s14 = ssub.s32 %s9, 1
    %s15 = ssub.s32 %s9, 2
    %s16 = sadd.s32 %s9, 1
    %s17 = ssub.s32 %s9, %s16
    %p18 = scmp.eq.s32.totalorder %s17, 0
    %s20 = sadd.s32 %s19, 1
    %s21 = scalar_select %p18, %s19, %s20
    %p24 = pneg %p18
    %p25 = scmp.eq.s32.totalorder %s9, 1
    %p26 = por %p24, %p25
    %p27 = scmp.ne.s32.totalorder %s19, %s22
    %p28 = scmp.eq.s32.totalorder %s9, 0
    %p29 = por %p27, %p28
    %p30 = scmp.ne.s32.totalorder %s19, %s22
    %p31 = scmp.eq.s32.totalorder %s14, 1
    %p32 = por %p30, %p31
    %p33 = scmp.ne.s32.totalorder %s22, %s23
    %p34 = scmp.eq.s32.totalorder %s14, 0
    %p35 = por %p33, %p34
    %p36 = scmp.ne.s32.totalorder %s22, %s23
    %p37 = scmp.eq.s32.totalorder %s15, 1
    %p38 = por %p36, %p37
    %p40 = scmp.ne.s32.totalorder %s23, %s39
    %p41 = scmp.eq.s32.totalorder %s15, 0
    %p42 = por %p40, %p41
    %s44 = sadd.s32 %s43, 1
    %p47 = scmp.eq.s32.totalorder %s9, 1
    %p48 = scmp.ne.s32.totalorder %s43, %s45
    %p49 = scmp.eq.s32.totalorder %s9, 0
    %p50 = por %p48, %p49
    %p51 = scmp.ne.s32.totalorder %s43, %s45
    %p52 = scmp.eq.s32.totalorder %s14, 1
    %p53 = por %p51, %p52
    %p54 = scmp.ne.s32.totalorder %s45, %s46
    %p55 = scmp.eq.s32.totalorder %s14, 0
    %p56 = por %p54, %p55
    %p57 = scmp.ne.s32.totalorder %s45, %s46
    %p58 = scmp.eq.s32.totalorder %s15, 1
    %p59 = por %p57, %p58
    %p61 = scmp.ne.s32.totalorder %s46, %s60
    %p62 = scmp.eq.s32.totalorder %s15, 0
    %p63 = por %p61, %p62
    %s65 = sadd.s32 %s64, 1
    %p68 = scmp.eq.s32.totalorder %s9, 1
    %p69 = scmp.ne.s32.totalorder %s64, %s66
    %p70 = scmp.eq.s32.totalorder %s9, 0
    %p71 = por %p69, %p70
    %p72 = scmp.ne.s32.totalorder %s64, %s66
    %p73 = scmp.eq.s32.totalorder %s14, 1
    %p74 = por %p72, %p73
    %p75 = scmp.ne.s32.totalorder %s66, %s67
    %p76 = scmp.eq.s32.totalorder %s14, 0
    %p77 = por %p75, %p76
    %p78 = scmp.ne.s32.totalorder %s66, %s67
    %p79 = scmp.eq.s32.totalorder %s15, 1
    %p80 = por %p78, %p79
    %p82 = scmp.ne.s32.totalorder %s67, %s81
    %p83 = scmp.eq.s32.totalorder %s15, 0
    %p84 = por %p82, %p83
    %s85 = ssub.s32 %s9, %s16
    %p86 = scmp.eq.s32.totalorder %s85, 0
    %s88 = sadd.s32 %s87, 1
    %s89 = scalar_select %p86, %s87, %s88
    %p92 = pneg %p86
    %p93 = scmp.eq.s32.totalorder %s9, 1
    %p94 = por %p92, %p93
    %p95 = scmp.ne.s32.totalorder %s87, %s90
    %p96 = scmp.eq.s32.totalorder %s9, 0
    %p97 = por %p95, %p96
    %p98 = scmp.ne.s32.totalorder %s87, %s90
    %p99 = scmp.eq.s32.totalorder %s14, 1
    %p100 = por %p98, %p99
    %p101 = scmp.ne.s32.totalorder %s90, %s91
    %p102 = scmp.eq.s32.totalorder %s14, 0
    %p103 = por %p101, %p102
    %p104 = scmp.ne.s32.totalorder %s90, %s91
    %p105 = scmp.eq.s32.totalorder %s15, 1
    %p106 = por %p104, %p105
    %p108 = scmp.ne.s32.totalorder %s91, %s107
    %p109 = scmp.eq.s32.totalorder %s15, 0
    %p110 = por %p108, %p109
    %p111 = scmp.le.s32.totalorder 1, %s9
    %p112 = scmp.lt.s32.totalorder %s9, 3
    %p113 = pnand %p111, %p112
    %p114 = pneg %p113
    // Predicated region
    $region9: #{stacked_edvr_forward.15} parent=5 // pred_check
      _
    $region10: #{stacked_edvr_forward.15} parent=5 // pred_check_branch
      %116 = sbr.rel (%p113) target = $region12
    $region11: #{stacked_edvr_forward.15} parent=5 // pred_region
      %s117 = ssub.s32 %s9, 1
      // Predicated region
      $region13: #{stacked_edvr_forward.15} parent=11 // pred_check
        %p118 = pneg %p56
      $region14: #{stacked_edvr_forward.15} parent=11 // pred_check_branch
        %120 = sbr.rel (%p118) target = $region16
      $region15: #{stacked_edvr_forward.15} parent=11 // pred_region
        _
      $region16: #{stacked_edvr_forward.15} parent=11 // pred_fallthru
        _
      // Predicated region
      $region17: #{stacked_edvr_forward.15} parent=11 // pred_check
        %p121 = pneg %p77
      $region18: #{stacked_edvr_forward.15} parent=11 // pred_check_branch
        %123 = sbr.rel (%p121) target = $region20
      $region19: #{stacked_edvr_forward.15} parent=11 // pred_region
        _
      $region20: #{stacked_edvr_forward.15} parent=11 // pred_fallthru
        _
    $region12: #{stacked_edvr_forward.15} parent=5 // pred_fallthru
      _
    %p124 = scmp.lt.s32.totalorder %s9, 2
    // Predicated region
    $region21: #{stacked_edvr_forward.15} parent=5 // pred_check
      %p125 = pneg %p124
    $region22: #{stacked_edvr_forward.15} parent=5 // pred_check_branch
      %127 = sbr.rel (%p125) target = $region24
    $region23: #{stacked_edvr_forward.15} parent=5 // pred_region
      // Predicated region
      $region25: #{stacked_edvr_forward.15} parent=23 // pred_check
        %p128 = pneg %p29
      $region26: #{stacked_edvr_forward.15} parent=23 // pred_check_branch
        %130 = sbr.rel (%p128) target = $region28
      $region27: #{stacked_edvr_forward.15} parent=23 // pred_region
        %s131 = smul.u32 32, %s9
        %p132 = scmp.lt.s32.totalorder %s131, 63
        %s133 = scalar_select %p132, %s131, 63
        %s134 = smul.addr %s133, 8
        %s135 = scalar_lea.vmem %s0, %s134
        %s136 = smul.u32 32, %s9
      $region28: #{stacked_edvr_forward.15} parent=23 // pred_fallthru
        _
    $region24: #{stacked_edvr_forward.15} parent=5 // pred_fallthru
      _
    %p137 = scmp.le.s32.totalorder 1, %s9
    %p138 = scmp.lt.s32.totalorder %s9, 3
    %p139 = pnand %p137, %p138
    %p140 = pneg %p139
    // Predicated region
    $region29: #{stacked_edvr_forward.15} parent=5 // pred_check
      _
    $region30: #{stacked_edvr_forward.15} parent=5 // pred_check_branch
      %142 = sbr.rel (%p139) target = $region32
    $region31: #{stacked_edvr_forward.15} parent=5 // pred_region
      %s143 = ssub.s32 %s9, 1
      %s144 = smul.u32 32, %s14
      %p145 = scmp.lt.s32.totalorder %s144, 63
      %s146 = scalar_select %p145, %s144, 63
      %s147 = smul.addr %s146, 8
      %s148 = scalar_lea.vmem %s0, %s147
      %p149 = pneg %p35
      %p150 = pneg %p32
      %p151 = pneg %p56
      %p152 = pneg %p53
      %p153 = pneg %p77
      %p154 = pneg %p74
      %p155 = pneg %p103
      %p156 = pneg %p100
      %s157 = smul.u32 32, %s14
      %p158 = scmp.lt.s32.totalorder %s157, 63
      %s159 = scalar_select %p158, %s157, 63
      %s160 = smul.addr %s159, 2
      %s161 = smul.addr %s160, 8
      %s162 = scalar_lea.vmem %s3, %s161
      %s163 = smul.u32 32, %s14
      %p164 = scmp.lt.s32.totalorder %s163, 63
      %s165 = scalar_select %p164, %s163, 63
      %s166 = smul.addr %s165, 8
      %s167 = scalar_lea.vmem %s0, %s166
      %s168 = smul.u32 32, %s14
      %s169 = smul.u32 32, %s14
      %p170 = scmp.lt.s32.totalorder %s169, 63
      %s171 = scalar_select %p170, %s169, 63
      %s172 = smul.addr %s171, 2
      %s173 = smul.addr %s172, 8
      %s174 = scalar_lea.vmem %s3, %s173
      %s175 = smul.u32 32, %s14
      %v177 = vld [vmem:[%s167] sm:$0xff]
      %v178 = vld [vmem:[%s167 + $0x8] sm:$0xff]
      %v179 = vld [vmem:[%s167 + $0x10] sm:$0xff]
      %v180 = vld [vmem:[%s167 + $0x18] sm:$0xff]
      %v181 = vld [vmem:[%s167 + $0x20] sm:$0xff]
      %v182 = vld [vmem:[%s167 + $0x28] sm:$0xff]
      %v183 = vld [vmem:[%s167 + $0x30] sm:$0xff]
      %v184 = vld [vmem:[%s167 + $0x38] sm:$0xff]
      %v185 = vld [vmem:[%s167 + $0x40] sm:$0xff]
      %v186 = vld [vmem:[%s167 + $0x48] sm:$0xff]
      %v187 = vld [vmem:[%s167 + $0x50] sm:$0xff]
      %v188 = vld [vmem:[%s167 + $0x58] sm:$0xff]
      %v189 = vld [vmem:[%s167 + $0x60] sm:$0xff]
      %v190 = vld [vmem:[%s167 + $0x68] sm:$0xff]
      %v191 = vld [vmem:[%s167 + $0x70] sm:$0xff]
      %v192 = vld [vmem:[%s167 + $0x78] sm:$0xff]
      %v193 = vld [vmem:[%s167 + $0x80] sm:$0xff]
      %v194 = vld [vmem:[%s167 + $0x88] sm:$0xff]
      %v195 = vld [vmem:[%s167 + $0x90] sm:$0xff]
      %v196 = vld [vmem:[%s167 + $0x98] sm:$0xff]
      %v197 = vld [vmem:[%s167 + $0xa0] sm:$0xff]
      %v198 = vld [vmem:[%s167 + $0xa8] sm:$0xff]
      %v199 = vld [vmem:[%s167 + $0xb0] sm:$0xff]
      %v200 = vld [vmem:[%s167 + $0xb8] sm:$0xff]
      %v201 = vld [vmem:[%s167 + $0xc0] sm:$0xff]
      %v202 = vld [vmem:[%s167 + $0xc8] sm:$0xff]
      %v203 = vld [vmem:[%s167 + $0xd0] sm:$0xff]
      %v204 = vld [vmem:[%s167 + $0xd8] sm:$0xff]
      %v205 = vld [vmem:[%s167 + $0xe0] sm:$0xff]
      %v206 = vld [vmem:[%s167 + $0xe8] sm:$0xff]
      %v207 = vld [vmem:[%s167 + $0xf0] sm:$0xff]
      %v208 = vld [vmem:[%s167 + $0xf8] sm:$0xff]
      %v209 = vpack.c.bf16 %v178, %v177
      %v210 = vpack.c.bf16 %v180, %v179
      %v211 = vpack.c.bf16 %v182, %v181
      %v212 = vpack.c.bf16 %v184, %v183
      %v213 = vpack.c.bf16 %v186, %v185
      %v214 = vpack.c.bf16 %v188, %v187
      %v215 = vpack.c.bf16 %v190, %v189
      %v216 = vpack.c.bf16 %v192, %v191
      %v217 = vpack.c.bf16 %v194, %v193
      %v218 = vpack.c.bf16 %v196, %v195
      %v219 = vpack.c.bf16 %v198, %v197
      %v220 = vpack.c.bf16 %v200, %v199
      %v221 = vpack.c.bf16 %v202, %v201
      %v222 = vpack.c.bf16 %v204, %v203
      %v223 = vpack.c.bf16 %v206, %v205
      %v224 = vpack.c.bf16 %v208, %v207
      %v225 = vld [vmem:[%s1] sm:$0xff]
      %v226 = vld [vmem:[%s1 + $0x8] sm:$0xff]
      %v227 = vld [vmem:[%s1 + $0x10] sm:$0xff]
      %v228 = vld [vmem:[%s1 + $0x18] sm:$0xff]
      %v229 = vld [vmem:[%s2] sm:$0x3]
      %v231 = vperm.slane %v229, 0
      %v232 = vperm.slane %v229, 1
      %v239 = vunpack.c.l.b16 %v225
      %v240 = vunpack.c.h.b16 %v225
      %v241 = vunpack.c.l.b16 %v226
      %v242 = vunpack.c.h.b16 %v226
      %v243 = vunpack.c.l.b16 %v227
      %v244 = vunpack.c.h.b16 %v227
      %v245 = vunpack.c.l.b16 %v228
      %v246 = vunpack.c.h.b16 %v228
      %v247 = vpack.c.b16 %v241, %v239
      %v248 = vpack.c.b16 %v242, %v240
      %v249 = vpack.c.b16 %v245, %v243
      %v250 = vpack.c.b16 %v246, %v244
      %vm255 = vcmask 261120
      %v257 = vsel %vm255, %v209, 0
      %v260 = vsel %vm255, %v210, 0
      %v263 = vsel %vm255, %v211, 0
      %v266 = vsel %vm255, %v212, 0
      %v269 = vsel %vm255, %v213, 0
      %v272 = vsel %vm255, %v214, 0
      %v275 = vsel %vm255, %v215, 0
      %v278 = vsel %vm255, %v216, 0
      %v281 = vsel %vm255, %v217, 0
      %v284 = vsel %vm255, %v218, 0
      %v287 = vsel %vm255, %v219, 0
      %v290 = vsel %vm255, %v220, 0
      %v293 = vsel %vm255, %v221, 0
      %v296 = vsel %vm255, %v222, 0
      %v299 = vsel %vm255, %v223, 0
      %v302 = vsel %vm255, %v224, 0
      %304 = vmatpush.bf16.msra.mxu0 0
      %305 = vmatpush.bf16.msra.mxu0 0
      %306 = vmatpush.bf16.msra.mxu0 0
      %307 = vmatpush.bf16.msra.mxu0 0
      %308 = vmatpush.bf16.msra.mxu0 0
      %309 = vmatpush.bf16.msra.mxu0 0
      %310 = vmatpush.bf16.msra.mxu0 %v249
      %311 = vmatpush.bf16.msra.mxu0 %v247
      %312 = vmatmul.bf16.gmra.mxu0 %v257
      %v313 = vpop.f32.mrf.mxu0
      %v314 = vadd.f32 %v231, %v313
      %v315 = vpop.f32.mrf.mxu0
      %v316 = vadd.f32 %v231, %v315
      %317 = vmatmul.bf16.gmra.mxu0 %v260
      %v318 = vpop.f32.mrf.mxu0
      %v319 = vadd.f32 %v231, %v318
      %v320 = vpop.f32.mrf.mxu0
      %v321 = vadd.f32 %v231, %v320
      %322 = vmatmul.bf16.gmra.mxu0 %v263
      %v323 = vpop.f32.mrf.mxu0
      %v324 = vadd.f32 %v231, %v323
      %v325 = vpop.f32.mrf.mxu0
      %v326 = vadd.f32 %v231, %v325
      %327 = vmatmul.bf16.gmra.mxu0 %v266
      %v328 = vpop.f32.mrf.mxu0
      %v329 = vadd.f32 %v231, %v328
      %v330 = vpop.f32.mrf.mxu0
      %v331 = vadd.f32 %v231, %v330
      %332 = vmatmul.bf16.gmra.mxu0 %v269
      %v333 = vpop.f32.mrf.mxu0
      %v334 = vadd.f32 %v231, %v333
      %v335 = vpop.f32.mrf.mxu0
      %v336 = vadd.f32 %v231, %v335
      %337 = vmatmul.bf16.gmra.mxu0 %v272
      %v338 = vpop.f32.mrf.mxu0
      %v339 = vadd.f32 %v231, %v338
      %v340 = vpop.f32.mrf.mxu0
      %v341 = vadd.f32 %v231, %v340
      %342 = vmatmul.bf16.gmra.mxu0 %v275
      %v343 = vpop.f32.mrf.mxu0
      %v344 = vadd.f32 %v231, %v343
      %v345 = vpop.f32.mrf.mxu0
      %v346 = vadd.f32 %v231, %v345
      %347 = vmatmul.bf16.gmra.mxu0 %v278
      %v348 = vpop.f32.mrf.mxu0
      %v349 = vadd.f32 %v231, %v348
      %v350 = vpop.f32.mrf.mxu0
      %v351 = vadd.f32 %v231, %v350
      %352 = vmatmul.bf16.gmra.mxu0 %v281
      %v353 = vpop.f32.mrf.mxu0
      %v354 = vadd.f32 %v231, %v353
      %v355 = vpop.f32.mrf.mxu0
      %v356 = vadd.f32 %v231, %v355
      %357 = vmatmul.bf16.gmra.mxu0 %v284
      %v358 = vpop.f32.mrf.mxu0
      %v359 = vadd.f32 %v231, %v358
      %v360 = vpop.f32.mrf.mxu0
      %v361 = vadd.f32 %v231, %v360
      %362 = vmatmul.bf16.gmra.mxu0 %v287
      %v363 = vpop.f32.mrf.mxu0
      %v364 = vadd.f32 %v231, %v363
      %v365 = vpop.f32.mrf.mxu0
      %v366 = vadd.f32 %v231, %v365
      %367 = vmatmul.bf16.gmra.mxu0 %v290
      %v368 = vpop.f32.mrf.mxu0
      %v369 = vadd.f32 %v231, %v368
      %v370 = vpop.f32.mrf.mxu0
      %v371 = vadd.f32 %v231, %v370
      %372 = vmatmul.bf16.gmra.mxu0 %v293
      %v373 = vpop.f32.mrf.mxu0
      %v374 = vadd.f32 %v231, %v373
      %v375 = vpop.f32.mrf.mxu0
      %v376 = vadd.f32 %v231, %v375
      %377 = vmatmul.bf16.gmra.mxu0 %v296
      %v378 = vpop.f32.mrf.mxu0
      %v379 = vadd.f32 %v231, %v378
      %v380 = vpop.f32.mrf.mxu0
      %v381 = vadd.f32 %v231, %v380
      %382 = vmatmul.bf16.gmra.mxu0 %v299
      %v383 = vpop.f32.mrf.mxu0
      %v384 = vadd.f32 %v231, %v383
      %v385 = vpop.f32.mrf.mxu0
      %v386 = vadd.f32 %v231, %v385
      %387 = vmatmul.bf16.gmra.mxu0 %v302
      %v388 = vpop.f32.mrf.mxu0
      %v389 = vadd.f32 %v231, %v388
      %v390 = vpop.f32.mrf.mxu0
      %v391 = vadd.f32 %v231, %v390
      %392 = vdwg.mxu0
      %393 = vmatpush.bf16.msra.mxu0 0
      %394 = vmatpush.bf16.msra.mxu0 0
      %395 = vmatpush.bf16.msra.mxu0 0
      %396 = vmatpush.bf16.msra.mxu0 0
      %397 = vmatpush.bf16.msra.mxu0 0
      %398 = vmatpush.bf16.msra.mxu0 0
      %399 = vmatpush.bf16.msra.mxu0 %v250
      %400 = vmatpush.bf16.msra.mxu0 %v248
      %401 = vmatmul.bf16.gmra.mxu0 %v257
      %v402 = vpop.f32.mrf.mxu0
      %v403 = vadd.f32 %v232, %v402
      %v404 = vpop.f32.mrf.mxu0
      %v405 = vadd.f32 %v232, %v404
      %406 = vmatmul.bf16.gmra.mxu0 %v260
      %v407 = vpop.f32.mrf.mxu0
      %v408 = vadd.f32 %v232, %v407
      %v409 = vpop.f32.mrf.mxu0
      %v410 = vadd.f32 %v232, %v409
      %411 = vmatmul.bf16.gmra.mxu0 %v263
      %v412 = vpop.f32.mrf.mxu0
      %v413 = vadd.f32 %v232, %v412
      %v414 = vpop.f32.mrf.mxu0
      %v415 = vadd.f32 %v232, %v414
      %416 = vmatmul.bf16.gmra.mxu0 %v266
      %v417 = vpop.f32.mrf.mxu0
      %v418 = vadd.f32 %v232, %v417
      %v419 = vpop.f32.mrf.mxu0
      %v420 = vadd.f32 %v232, %v419
      %421 = vmatmul.bf16.gmra.mxu0 %v269
      %v422 = vpop.f32.mrf.mxu0
      %v423 = vadd.f32 %v232, %v422
      %v424 = vpop.f32.mrf.mxu0
      %v425 = vadd.f32 %v232, %v424
      %426 = vmatmul.bf16.gmra.mxu0 %v272
      %v427 = vpop.f32.mrf.mxu0
      %v428 = vadd.f32 %v232, %v427
      %v429 = vpop.f32.mrf.mxu0
      %v430 = vadd.f32 %v232, %v429
      %431 = vmatmul.bf16.gmra.mxu0 %v275
      %v432 = vpop.f32.mrf.mxu0
      %v433 = vadd.f32 %v232, %v432
      %v434 = vpop.f32.mrf.mxu0
      %v435 = vadd.f32 %v232, %v434
      %436 = vmatmul.bf16.gmra.mxu0 %v278
      %v437 = vpop.f32.mrf.mxu0
      %v438 = vadd.f32 %v232, %v437
      %v439 = vpop.f32.mrf.mxu0
      %v440 = vadd.f32 %v232, %v439
      %441 = vmatmul.bf16.gmra.mxu0 %v281
      %v442 = vpop.f32.mrf.mxu0
      %v443 = vadd.f32 %v232, %v442
      %v444 = vpop.f32.mrf.mxu0
      %v445 = vadd.f32 %v232, %v444
      %446 = vmatmul.bf16.gmra.mxu0 %v284
      %v447 = vpop.f32.mrf.mxu0
      %v448 = vadd.f32 %v232, %v447
      %v449 = vpop.f32.mrf.mxu0
      %v450 = vadd.f32 %v232, %v449
      %451 = vmatmul.bf16.gmra.mxu0 %v287
      %v452 = vpop.f32.mrf.mxu0
      %v453 = vadd.f32 %v232, %v452
      %v454 = vpop.f32.mrf.mxu0
      %v455 = vadd.f32 %v232, %v454
      %456 = vmatmul.bf16.gmra.mxu0 %v290
      %v457 = vpop.f32.mrf.mxu0
      %v458 = vadd.f32 %v232, %v457
      %v459 = vpop.f32.mrf.mxu0
      %v460 = vadd.f32 %v232, %v459
      %461 = vmatmul.bf16.gmra.mxu0 %v293
      %v462 = vpop.f32.mrf.mxu0
      %v463 = vadd.f32 %v232, %v462
      %v464 = vpop.f32.mrf.mxu0
      %v465 = vadd.f32 %v232, %v464
      %466 = vmatmul.bf16.gmra.mxu0 %v296
      %v467 = vpop.f32.mrf.mxu0
      %v468 = vadd.f32 %v232, %v467
      %v469 = vpop.f32.mrf.mxu0
      %v470 = vadd.f32 %v232, %v469
      %471 = vmatmul.bf16.gmra.mxu0 %v299
      %v472 = vpop.f32.mrf.mxu0
      %v473 = vadd.f32 %v232, %v472
      %v474 = vpop.f32.mrf.mxu0
      %v475 = vadd.f32 %v232, %v474
      %476 = vmatmul.bf16.gmra.mxu0 %v302
      %v477 = vpop.f32.mrf.mxu0
      %v478 = vadd.f32 %v232, %v477
      %v479 = vpop.f32.mrf.mxu0
      %v480 = vadd.f32 %v232, %v479
      %481 = vdwg.mxu0
      %482 = vst [vmem:[%s174] sm:$0xff] %v314
      %483 = vst [vmem:[%s174 + $0x8] sm:$0xff] %v403
      %484 = vst [vmem:[%s174 + $0x10] sm:$0xff] %v316
      %485 = vst [vmem:[%s174 + $0x18] sm:$0xff] %v405
      %486 = vst [vmem:[%s174 + $0x20] sm:$0xff] %v319
      %487 = vst [vmem:[%s174 + $0x28] sm:$0xff] %v408
      %488 = vst [vmem:[%s174 + $0x30] sm:$0xff] %v321
      %489 = vst [vmem:[%s174 + $0x38] sm:$0xff] %v410
      %490 = vst [vmem:[%s174 + $0x40] sm:$0xff] %v324
      %491 = vst [vmem:[%s174 + $0x48] sm:$0xff] %v413
      %492 = vst [vmem:[%s174 + $0x50] sm:$0xff] %v326
      %493 = vst [vmem:[%s174 + $0x58] sm:$0xff] %v415
      %494 = vst [vmem:[%s174 + $0x60] sm:$0xff] %v329
      %495 = vst [vmem:[%s174 + $0x68] sm:$0xff] %v418
      %496 = vst [vmem:[%s174 + $0x70] sm:$0xff] %v331
      %497 = vst [vmem:[%s174 + $0x78] sm:$0xff] %v420
      %498 = vst [vmem:[%s174 + $0x80] sm:$0xff] %v334
      %499 = vst [vmem:[%s174 + $0x88] sm:$0xff] %v423
      %500 = vst [vmem:[%s174 + $0x90] sm:$0xff] %v336
      %501 = vst [vmem:[%s174 + $0x98] sm:$0xff] %v425
      %502 = vst [vmem:[%s174 + $0xa0] sm:$0xff] %v339
      %503 = vst [vmem:[%s174 + $0xa8] sm:$0xff] %v428
      %504 = vst [vmem:[%s174 + $0xb0] sm:$0xff] %v341
      %505 = vst [vmem:[%s174 + $0xb8] sm:$0xff] %v430
      %506 = vst [vmem:[%s174 + $0xc0] sm:$0xff] %v344
      %507 = vst [vmem:[%s174 + $0xc8] sm:$0xff] %v433
      %508 = vst [vmem:[%s174 + $0xd0] sm:$0xff] %v346
      %509 = vst [vmem:[%s174 + $0xd8] sm:$0xff] %v435
      %510 = vst [vmem:[%s174 + $0xe0] sm:$0xff] %v349
      %511 = vst [vmem:[%s174 + $0xe8] sm:$0xff] %v438
      %512 = vst [vmem:[%s174 + $0xf0] sm:$0xff] %v351
      %513 = vst [vmem:[%s174 + $0xf8] sm:$0xff] %v440
      %514 = vst [vmem:[%s174 + $0x100] sm:$0xff] %v354
      %515 = vst [vmem:[%s174 + $0x108] sm:$0xff] %v443
      %516 = vst [vmem:[%s174 + $0x110] sm:$0xff] %v356
      %517 = vst [vmem:[%s174 + $0x118] sm:$0xff] %v445
      %518 = vst [vmem:[%s174 + $0x120] sm:$0xff] %v359
      %519 = vst [vmem:[%s174 + $0x128] sm:$0xff] %v448
      %520 = vst [vmem:[%s174 + $0x130] sm:$0xff] %v361
      %521 = vst [vmem:[%s174 + $0x138] sm:$0xff] %v450
      %522 = vst [vmem:[%s174 + $0x140] sm:$0xff] %v364
      %523 = vst [vmem:[%s174 + $0x148] sm:$0xff] %v453
      %524 = vst [vmem:[%s174 + $0x150] sm:$0xff] %v366
      %525 = vst [vmem:[%s174 + $0x158] sm:$0xff] %v455
      %526 = vst [vmem:[%s174 + $0x160] sm:$0xff] %v369
      %527 = vst [vmem:[%s174 + $0x168] sm:$0xff] %v458
      %528 = vst [vmem:[%s174 + $0x170] sm:$0xff] %v371
      %529 = vst [vmem:[%s174 + $0x178] sm:$0xff] %v460
      %530 = vst [vmem:[%s174 + $0x180] sm:$0xff] %v374
      %531 = vst [vmem:[%s174 + $0x188] sm:$0xff] %v463
      %532 = vst [vmem:[%s174 + $0x190] sm:$0xff] %v376
      %533 = vst [vmem:[%s174 + $0x198] sm:$0xff] %v465
      %534 = vst [vmem:[%s174 + $0x1a0] sm:$0xff] %v379
      %535 = vst [vmem:[%s174 + $0x1a8] sm:$0xff] %v468
      %536 = vst [vmem:[%s174 + $0x1b0] sm:$0xff] %v381
      %537 = vst [vmem:[%s174 + $0x1b8] sm:$0xff] %v470
      %538 = vst [vmem:[%s174 + $0x1c0] sm:$0xff] %v384
      %539 = vst [vmem:[%s174 + $0x1c8] sm:$0xff] %v473
      %540 = vst [vmem:[%s174 + $0x1d0] sm:$0xff] %v386
      %541 = vst [vmem:[%s174 + $0x1d8] sm:$0xff] %v475
      %542 = vst [vmem:[%s174 + $0x1e0] sm:$0xff] %v389
      %543 = vst [vmem:[%s174 + $0x1e8] sm:$0xff] %v478
      %544 = vst [vmem:[%s174 + $0x1f0] sm:$0xff] %v391
      %545 = vst [vmem:[%s174 + $0x1f8] sm:$0xff] %v480
      %s546 = smul.u32 32, %s14
      %p547 = scmp.lt.s32.totalorder %s546, 63
      %s548 = scalar_select %p547, %s546, 63
      %s549 = smul.addr %s548, 2
      %s550 = smul.addr %s549, 8
      %s551 = scalar_lea.vmem %s3, %s550
      // Predicated region
      $region33: #{stacked_edvr_forward.15} parent=31 // pred_check
        %p552 = pneg %p100
      $region34: #{stacked_edvr_forward.15} parent=31 // pred_check_branch
        %554 = sbr.rel (%p552) target = $region36
      $region35: #{stacked_edvr_forward.15} parent=31 // pred_region
        %s555 = smul.u32 32, %s14
      $region36: #{stacked_edvr_forward.15} parent=31 // pred_fallthru
        _
    $region32: #{stacked_edvr_forward.15} parent=5 // pred_fallthru
      _
    %p556 = scmp.le.s32.totalorder 2, %s9
    // Predicated region
    $region37: #{stacked_edvr_forward.15} parent=5 // pred_check
      %p557 = pneg %p556
    $region38: #{stacked_edvr_forward.15} parent=5 // pred_check_branch
      %559 = sbr.rel (%p557) target = $region40
    $region39: #{stacked_edvr_forward.15} parent=5 // pred_region
      %s560 = ssub.s32 %s9, 2
      // Predicated region
      $region41: #{stacked_edvr_forward.15} parent=39 // pred_check
        %p561 = pneg %p106
      $region42: #{stacked_edvr_forward.15} parent=39 // pred_check_branch
        %563 = sbr.rel (%p561) target = $region44
      $region43: #{stacked_edvr_forward.15} parent=39 // pred_region
        %s564 = smul.u32 32, %s15
        %p565 = scmp.lt.s32.totalorder %s564, 63
        %s566 = scalar_select %p565, %s564, 63
        %s567 = smul.addr %s566, 2
        %s568 = smul.addr %s567, 8
        %s569 = scalar_lea.vmem %s3, %s568
      $region44: #{stacked_edvr_forward.15} parent=39 // pred_fallthru
        _
    $region40: #{stacked_edvr_forward.15} parent=5 // pred_fallthru
      _
  $region6: #{stacked_edvr_forward.15} parent=0 // loop_footer
    %s13 = sadd.s32 1, %s9
  $region7: #{stacked_edvr_forward.15} parent=0 // loop_footer_branch
    %8 = sbr.rel target = $region3
  $region8: #{stacked_edvr_forward.15} parent=0 // loop_exit
    _

// kernel: stacked_edvr_forward.16
$region0: #{stacked_edvr_forward.16}
  #allocation0 [shape = 'u32[]', space=smem, size = 0x4, offset = 0x4, fixed_abs, tag = 'smem constant byte address 0x4 - core index']
  #allocation1 [shape = 'u32[72,128]{1,0:T(1,128)}', space=vmem, size = 0x9000, scoped, tag = 'internal scratch']
  %s0 = inlined_call_operand.vmem [shape: f32[512,256], index: 0, kind: input, shape index: {}]
  %s1 = inlined_call_operand.vmem [shape: bf16[256,512], index: 1, kind: input, shape index: {}]
  %s2 = inlined_call_operand.vmem [shape: f32[512,512], index: 2, kind: output, shape index: {}]
  %s3 = sld [smem:[#allocation0]]
  $region41: #{stacked_edvr_forward.16} parent=0
    _
  %s5 = ssub.s32 1, %s3
  %s6 = scalar_select 0, %s5, %s3
  loop: start=0, step=1, limit=4
  $region2: #{stacked_edvr_forward.16} parent=0 // loop_pre_header
    _
  $region3: #{stacked_edvr_forward.16} parent=0 // loop_header
    %s8 = sphi 0, %s12
    %p9 = scmp.ge.s32.totalorder %s8, 4
    %s18 = sphi 0, %s20
    %s21 = sphi 0, %s18
    %s22 = sphi 0, %s21
    %s38 = sphi 0, %s22
    %s42 = sphi 0, %s42
    %s44 = sphi 0, %s42
    %s45 = sphi 0, %s44
    %s59 = sphi 0, %s45
    %s65 = sphi 0, %s67
    %s68 = sphi 0, %s65
    %s69 = sphi 0, %s68
    %s85 = sphi 0, %s69
  $region4: #{stacked_edvr_forward.16} parent=0 // loop_header_branch
    %11 = sbr.rel (%p9) target = $region8
  $region5: #{stacked_edvr_forward.16} parent=0 // loop_body
    %s13 = ssub.s32 %s8, 1
    %s14 = ssub.s32 %s8, 2
    %s15 = sadd.s32 %s8, 1
    %s16 = ssub.s32 %s8, %s15
    %p17 = scmp.eq.s32.totalorder %s16, 0
    %s19 = sadd.s32 %s18, 1
    %s20 = scalar_select %p17, %s18, %s19
    %p23 = pneg %p17
    %p24 = scmp.eq.s32.totalorder %s8, 1
    %p25 = por %p23, %p24
    %p26 = scmp.ne.s32.totalorder %s18, %s21
    %p27 = scmp.eq.s32.totalorder %s8, 0
    %p28 = por %p26, %p27
    %p29 = scmp.ne.s32.totalorder %s18, %s21
    %p30 = scmp.eq.s32.totalorder %s13, 1
    %p31 = por %p29, %p30
    %p32 = scmp.ne.s32.totalorder %s21, %s22
    %p33 = scmp.eq.s32.totalorder %s13, 0
    %p34 = por %p32, %p33
    %p35 = scmp.ne.s32.totalorder %s21, %s22
    %p36 = scmp.eq.s32.totalorder %s14, 1
    %p37 = por %p35, %p36
    %p39 = scmp.ne.s32.totalorder %s22, %s38
    %p40 = scmp.eq.s32.totalorder %s14, 0
    %p41 = por %p39, %p40
    %s43 = sadd.s32 %s42, 1
    %p46 = scmp.eq.s32.totalorder %s8, 1
    %p47 = scmp.ne.s32.totalorder %s42, %s44
    %p48 = scmp.eq.s32.totalorder %s8, 0
    %p49 = por %p47, %p48
    %p50 = scmp.ne.s32.totalorder %s42, %s44
    %p51 = scmp.eq.s32.totalorder %s13, 1
    %p52 = por %p50, %p51
    %p53 = scmp.ne.s32.totalorder %s44, %s45
    %p54 = scmp.eq.s32.totalorder %s13, 0
    %p55 = por %p53, %p54
    %p56 = scmp.ne.s32.totalorder %s44, %s45
    %p57 = scmp.eq.s32.totalorder %s14, 1
    %p58 = por %p56, %p57
    %p60 = scmp.ne.s32.totalorder %s45, %s59
    %p61 = scmp.eq.s32.totalorder %s14, 0
    %p62 = por %p60, %p61
    %s63 = ssub.s32 %s8, %s15
    %p64 = scmp.eq.s32.totalorder %s63, 0
    %s66 = sadd.s32 %s65, 1
    %s67 = scalar_select %p64, %s65, %s66
    %p70 = pneg %p64
    %p71 = scmp.eq.s32.totalorder %s8, 1
    %p72 = por %p70, %p71
    %p73 = scmp.ne.s32.totalorder %s65, %s68
    %p74 = scmp.eq.s32.totalorder %s8, 0
    %p75 = por %p73, %p74
    %p76 = scmp.ne.s32.totalorder %s65, %s68
    %p77 = scmp.eq.s32.totalorder %s13, 1
    %p78 = por %p76, %p77
    %p79 = scmp.ne.s32.totalorder %s68, %s69
    %p80 = scmp.eq.s32.totalorder %s13, 0
    %p81 = por %p79, %p80
    %p82 = scmp.ne.s32.totalorder %s68, %s69
    %p83 = scmp.eq.s32.totalorder %s14, 1
    %p84 = por %p82, %p83
    %p86 = scmp.ne.s32.totalorder %s69, %s85
    %p87 = scmp.eq.s32.totalorder %s14, 0
    %p88 = por %p86, %p87
    %p89 = scmp.le.s32.totalorder 1, %s8
    %p90 = scmp.lt.s32.totalorder %s8, 3
    %p91 = pnand %p89, %p90
    %p92 = pneg %p91
    // Predicated region
    $region9: #{stacked_edvr_forward.16} parent=5 // pred_check
      _
    $region10: #{stacked_edvr_forward.16} parent=5 // pred_check_branch
      %94 = sbr.rel (%p91) target = $region12
    $region11: #{stacked_edvr_forward.16} parent=5 // pred_region
      %s95 = ssub.s32 %s8, 1
      // Predicated region
      $region13: #{stacked_edvr_forward.16} parent=11 // pred_check
        %p96 = pneg %p55
      $region14: #{stacked_edvr_forward.16} parent=11 // pred_check_branch
        %98 = sbr.rel (%p96) target = $region16
      $region15: #{stacked_edvr_forward.16} parent=11 // pred_region
        _
      $region16: #{stacked_edvr_forward.16} parent=11 // pred_fallthru
        _
    $region12: #{stacked_edvr_forward.16} parent=5 // pred_fallthru
      _
    %p99 = scmp.lt.s32.totalorder %s8, 2
    // Predicated region
    $region17: #{stacked_edvr_forward.16} parent=5 // pred_check
      %p100 = pneg %p99
    $region18: #{stacked_edvr_forward.16} parent=5 // pred_check_branch
      %102 = sbr.rel (%p100) target = $region20
    $region19: #{stacked_edvr_forward.16} parent=5 // pred_region
      // Predicated region
      $region21: #{stacked_edvr_forward.16} parent=19 // pred_check
        %p103 = pneg %p28
      $region22: #{stacked_edvr_forward.16} parent=19 // pred_check_branch
        %105 = sbr.rel (%p103) target = $region24
      $region23: #{stacked_edvr_forward.16} parent=19 // pred_region
        %s106 = smul.u32 32, %s8
        %p107 = scmp.lt.s32.totalorder %s106, 63
        %s108 = scalar_select %p107, %s106, 63
        %s109 = smul.addr %s108, 2
        %s110 = smul.addr %s109, 8
        %s111 = scalar_lea.vmem %s0, %s110
        %s112 = smul.u32 32, %s8
      $region24: #{stacked_edvr_forward.16} parent=19 // pred_fallthru
        _
    $region20: #{stacked_edvr_forward.16} parent=5 // pred_fallthru
      _
    %p113 = scmp.le.s32.totalorder 1, %s8
    %p114 = scmp.lt.s32.totalorder %s8, 3
    %p115 = pnand %p113, %p114
    %p116 = pneg %p115
    // Predicated region
    $region25: #{stacked_edvr_forward.16} parent=5 // pred_check
      _
    $region26: #{stacked_edvr_forward.16} parent=5 // pred_check_branch
      %118 = sbr.rel (%p115) target = $region28
    $region27: #{stacked_edvr_forward.16} parent=5 // pred_region
      %s119 = ssub.s32 %s8, 1
      %s120 = smul.u32 32, %s13
      %p121 = scmp.lt.s32.totalorder %s120, 63
      %s122 = scalar_select %p121, %s120, 63
      %s123 = smul.addr %s122, 2
      %s124 = smul.addr %s123, 8
      %s125 = scalar_lea.vmem %s0, %s124
      %p126 = pneg %p34
      %p127 = pneg %p31
      %p128 = pneg %p55
      %p129 = pneg %p52
      %p130 = pneg %p81
      %p131 = pneg %p78
      %s132 = smul.u32 32, %s13
      %p133 = scmp.lt.s32.totalorder %s132, 63
      %s134 = scalar_select %p133, %s132, 63
      %s135 = smul.addr %s134, 4
      %s136 = smul.addr %s135, 8
      %s137 = scalar_lea.vmem %s2, %s136
      %s138 = smul.u32 32, %s13
      %p139 = scmp.lt.s32.totalorder %s138, 63
      %s140 = scalar_select %p139, %s138, 63
      %s141 = smul.addr %s140, 2
      %s142 = smul.addr %s141, 8
      %s143 = scalar_lea.vmem %s0, %s142
      %s144 = smul.u32 32, %s13
      %s145 = smul.u32 32, %s13
      %p146 = scmp.lt.s32.totalorder %s145, 63
      %s147 = scalar_select %p146, %s145, 63
      %s148 = smul.addr %s147, 4
      %s149 = smul.addr %s148, 8
      %s150 = scalar_lea.vmem %s2, %s149
      %s151 = smul.u32 32, %s13
      %v152 = vld [vmem:[%s143] sm:$0xff]
      %v153 = vld [vmem:[%s143 + $0x8] sm:$0xff]
      %v154 = vld [vmem:[%s143 + $0x10] sm:$0xff]
      %v155 = vld [vmem:[%s143 + $0x18] sm:$0xff]
      %v156 = vld [vmem:[%s143 + $0x20] sm:$0xff]
      %v157 = vld [vmem:[%s143 + $0x28] sm:$0xff]
      %v158 = vld [vmem:[%s143 + $0x30] sm:$0xff]
      %v159 = vld [vmem:[%s143 + $0x38] sm:$0xff]
      %v160 = vld [vmem:[%s143 + $0x40] sm:$0xff]
      %v161 = vld [vmem:[%s143 + $0x48] sm:$0xff]
      %v162 = vld [vmem:[%s143 + $0x50] sm:$0xff]
      %v163 = vld [vmem:[%s143 + $0x58] sm:$0xff]
      %v164 = vld [vmem:[%s143 + $0x60] sm:$0xff]
      %v165 = vld [vmem:[%s143 + $0x68] sm:$0xff]
      %v166 = vld [vmem:[%s143 + $0x70] sm:$0xff]
      %v167 = vld [vmem:[%s143 + $0x78] sm:$0xff]
      %v168 = vld [vmem:[%s143 + $0x80] sm:$0xff]
      %v169 = vld [vmem:[%s143 + $0x88] sm:$0xff]
      %v170 = vld [vmem:[%s143 + $0x90] sm:$0xff]
      %v171 = vld [vmem:[%s143 + $0x98] sm:$0xff]
      %v172 = vld [vmem:[%s143 + $0xa0] sm:$0xff]
      %v173 = vld [vmem:[%s143 + $0xa8] sm:$0xff]
      %v174 = vld [vmem:[%s143 + $0xb0] sm:$0xff]
      %v175 = vld [vmem:[%s143 + $0xb8] sm:$0xff]
      %v176 = vld [vmem:[%s143 + $0xc0] sm:$0xff]
      %v177 = vld [vmem:[%s143 + $0xc8] sm:$0xff]
      %v178 = vld [vmem:[%s143 + $0xd0] sm:$0xff]
      %v179 = vld [vmem:[%s143 + $0xd8] sm:$0xff]
      %v180 = vld [vmem:[%s143 + $0xe0] sm:$0xff]
      %v181 = vld [vmem:[%s143 + $0xe8] sm:$0xff]
      %v182 = vld [vmem:[%s143 + $0xf0] sm:$0xff]
      %v183 = vld [vmem:[%s143 + $0xf8] sm:$0xff]
      %v184 = vld [vmem:[%s143 + $0x100] sm:$0xff]
      %v185 = vld [vmem:[%s143 + $0x108] sm:$0xff]
      %v186 = vld [vmem:[%s143 + $0x110] sm:$0xff]
      %v187 = vld [vmem:[%s143 + $0x118] sm:$0xff]
      %v188 = vld [vmem:[%s143 + $0x120] sm:$0xff]
      %v189 = vld [vmem:[%s143 + $0x128] sm:$0xff]
      %v190 = vld [vmem:[%s143 + $0x130] sm:$0xff]
      %v191 = vld [vmem:[%s143 + $0x138] sm:$0xff]
      %v192 = vld [vmem:[%s143 + $0x140] sm:$0xff]
      %v193 = vld [vmem:[%s143 + $0x148] sm:$0xff]
      %v194 = vld [vmem:[%s143 + $0x150] sm:$0xff]
      %v195 = vld [vmem:[%s143 + $0x158] sm:$0xff]
      %v196 = vld [vmem:[%s143 + $0x160] sm:$0xff]
      %v197 = vld [vmem:[%s143 + $0x168] sm:$0xff]
      %v198 = vld [vmem:[%s143 + $0x170] sm:$0xff]
      %v199 = vld [vmem:[%s143 + $0x178] sm:$0xff]
      %v200 = vld [vmem:[%s143 + $0x180] sm:$0xff]
      %v201 = vld [vmem:[%s143 + $0x188] sm:$0xff]
      %v202 = vld [vmem:[%s143 + $0x190] sm:$0xff]
      %v203 = vld [vmem:[%s143 + $0x198] sm:$0xff]
      %v204 = vld [vmem:[%s143 + $0x1a0] sm:$0xff]
      %v205 = vld [vmem:[%s143 + $0x1a8] sm:$0xff]
      %v206 = vld [vmem:[%s143 + $0x1b0] sm:$0xff]
      %v207 = vld [vmem:[%s143 + $0x1b8] sm:$0xff]
      %v208 = vld [vmem:[%s143 + $0x1c0] sm:$0xff]
      %v209 = vld [vmem:[%s143 + $0x1c8] sm:$0xff]
      %v210 = vld [vmem:[%s143 + $0x1d0] sm:$0xff]
      %v211 = vld [vmem:[%s143 + $0x1d8] sm:$0xff]
      %v212 = vld [vmem:[%s143 + $0x1e0] sm:$0xff]
      %v213 = vld [vmem:[%s143 + $0x1e8] sm:$0xff]
      %v214 = vld [vmem:[%s143 + $0x1f0] sm:$0xff]
      %v215 = vld [vmem:[%s143 + $0x1f8] sm:$0xff]
      %v216 = vpack.c.bf16 %v154, %v152
      %v217 = vpack.c.bf16 %v155, %v153
      %v218 = vpack.c.bf16 %v158, %v156
      %v219 = vpack.c.bf16 %v159, %v157
      %v220 = vpack.c.bf16 %v162, %v160
      %v221 = vpack.c.bf16 %v163, %v161
      %v222 = vpack.c.bf16 %v166, %v164
      %v223 = vpack.c.bf16 %v167, %v165
      %v224 = vpack.c.bf16 %v170, %v168
      %v225 = vpack.c.bf16 %v171, %v169
      %v226 = vpack.c.bf16 %v174, %v172
      %v227 = vpack.c.bf16 %v175, %v173
      %v228 = vpack.c.bf16 %v178, %v176
      %v229 = vpack.c.bf16 %v179, %v177
      %v230 = vpack.c.bf16 %v182, %v180
      %v231 = vpack.c.bf16 %v183, %v181
      %v232 = vpack.c.bf16 %v186, %v184
      %v233 = vpack.c.bf16 %v187, %v185
      %v234 = vpack.c.bf16 %v190, %v188
      %v235 = vpack.c.bf16 %v191, %v189
      %v236 = vpack.c.bf16 %v194, %v192
      %v237 = vpack.c.bf16 %v195, %v193
      %v238 = vpack.c.bf16 %v198, %v196
      %v239 = vpack.c.bf16 %v199, %v197
      %v240 = vpack.c.bf16 %v202, %v200
      %v241 = vpack.c.bf16 %v203, %v201
      %v242 = vpack.c.bf16 %v206, %v204
      %v243 = vpack.c.bf16 %v207, %v205
      %v244 = vpack.c.bf16 %v210, %v208
      %v245 = vpack.c.bf16 %v211, %v209
      %v246 = vpack.c.bf16 %v214, %v212
      %v247 = vpack.c.bf16 %v215, %v213
      %v248 = vld [vmem:[%s1] sm:$0xff]
      %v249 = vld [vmem:[%s1 + $0x8] sm:$0xff]
      %v250 = vld [vmem:[%s1 + $0x10] sm:$0xff]
      %v251 = vld [vmem:[%s1 + $0x18] sm:$0xff]
      %v252 = vld [vmem:[%s1 + $0x20] sm:$0xff]
      %v253 = vld [vmem:[%s1 + $0x28] sm:$0xff]
      %v254 = vld [vmem:[%s1 + $0x30] sm:$0xff]
      %v255 = vld [vmem:[%s1 + $0x38] sm:$0xff]
      %v256 = vld [vmem:[%s1 + $0x40] sm:$0xff]
      %v257 = vld [vmem:[%s1 + $0x48] sm:$0xff]
      %v258 = vld [vmem:[%s1 + $0x50] sm:$0xff]
      %v259 = vld [vmem:[%s1 + $0x58] sm:$0xff]
      %v260 = vld [vmem:[%s1 + $0x60] sm:$0xff]
      %v261 = vld [vmem:[%s1 + $0x68] sm:$0xff]
      %v262 = vld [vmem:[%s1 + $0x70] sm:$0xff]
      %v263 = vld [vmem:[%s1 + $0x78] sm:$0xff]
      %v264 = vld [vmem:[%s1 + $0x80] sm:$0xff]
      %v265 = vld [vmem:[%s1 + $0x88] sm:$0xff]
      %v266 = vld [vmem:[%s1 + $0x90] sm:$0xff]
      %v267 = vld [vmem:[%s1 + $0x98] sm:$0xff]
      %v268 = vld [vmem:[%s1 + $0xa0] sm:$0xff]
      %v269 = vld [vmem:[%s1 + $0xa8] sm:$0xff]
      %v270 = vld [vmem:[%s1 + $0xb0] sm:$0xff]
      %v271 = vld [vmem:[%s1 + $0xb8] sm:$0xff]
      %v272 = vld [vmem:[%s1 + $0xc0] sm:$0xff]
      %v273 = vld [vmem:[%s1 + $0xc8] sm:$0xff]
      %v274 = vld [vmem:[%s1 + $0xd0] sm:$0xff]
      %v275 = vld [vmem:[%s1 + $0xd8] sm:$0xff]
      %v276 = vld [vmem:[%s1 + $0xe0] sm:$0xff]
      %v277 = vld [vmem:[%s1 + $0xe8] sm:$0xff]
      %v278 = vld [vmem:[%s1 + $0xf0] sm:$0xff]
      %v279 = vld [vmem:[%s1 + $0xf8] sm:$0xff]
      %v280 = vld [vmem:[%s1 + $0x100] sm:$0xff]
      %v281 = vld [vmem:[%s1 + $0x108] sm:$0xff]
      %v282 = vld [vmem:[%s1 + $0x110] sm:$0xff]
      %v283 = vld [vmem:[%s1 + $0x118] sm:$0xff]
      %v284 = vld [vmem:[%s1 + $0x120] sm:$0xff]
      %v285 = vld [vmem:[%s1 + $0x128] sm:$0xff]
      %v286 = vld [vmem:[%s1 + $0x130] sm:$0xff]
      %v287 = vld [vmem:[%s1 + $0x138] sm:$0xff]
      %v288 = vld [vmem:[%s1 + $0x140] sm:$0xff]
      %v289 = vld [vmem:[%s1 + $0x148] sm:$0xff]
      %v290 = vld [vmem:[%s1 + $0x150] sm:$0xff]
      %v291 = vld [vmem:[%s1 + $0x158] sm:$0xff]
      %v292 = vld [vmem:[%s1 + $0x160] sm:$0xff]
      %v293 = vld [vmem:[%s1 + $0x168] sm:$0xff]
      %v294 = vld [vmem:[%s1 + $0x170] sm:$0xff]
      %v295 = vld [vmem:[%s1 + $0x178] sm:$0xff]
      %v296 = vld [vmem:[%s1 + $0x180] sm:$0xff]
      %v297 = vld [vmem:[%s1 + $0x188] sm:$0xff]
      %v298 = vld [vmem:[%s1 + $0x190] sm:$0xff]
      %v299 = vld [vmem:[%s1 + $0x198] sm:$0xff]
      %v300 = vld [vmem:[%s1 + $0x1a0] sm:$0xff]
      %v301 = vld [vmem:[%s1 + $0x1a8] sm:$0xff]
      %v302 = vld [vmem:[%s1 + $0x1b0] sm:$0xff]
      %v303 = vld [vmem:[%s1 + $0x1b8] sm:$0xff]
      %v304 = vld [vmem:[%s1 + $0x1c0] sm:$0xff]
      %v305 = vld [vmem:[%s1 + $0x1c8] sm:$0xff]
      %v306 = vld [vmem:[%s1 + $0x1d0] sm:$0xff]
      %v307 = vld [vmem:[%s1 + $0x1d8] sm:$0xff]
      %v308 = vld [vmem:[%s1 + $0x1e0] sm:$0xff]
      %v309 = vld [vmem:[%s1 + $0x1e8] sm:$0xff]
      %v310 = vld [vmem:[%s1 + $0x1f0] sm:$0xff]
      %v311 = vld [vmem:[%s1 + $0x1f8] sm:$0xff]
      %v376 = vunpack.c.l.b16 %v248
      %v377 = vunpack.c.h.b16 %v248
      %v378 = vunpack.c.l.b16 %v249
      %v379 = vunpack.c.h.b16 %v249
      %v380 = vunpack.c.l.b16 %v250
      %v381 = vunpack.c.h.b16 %v250
      %v382 = vunpack.c.l.b16 %v251
      %v383 = vunpack.c.h.b16 %v251
      %v384 = vunpack.c.l.b16 %v252
      %v385 = vunpack.c.h.b16 %v252
      %v386 = vunpack.c.l.b16 %v253
      %v387 = vunpack.c.h.b16 %v253
      %v388 = vunpack.c.l.b16 %v254
      %v389 = vunpack.c.h.b16 %v254
      %v390 = vunpack.c.l.b16 %v255
      %v391 = vunpack.c.h.b16 %v255
      %v392 = vunpack.c.l.b16 %v256
      %v393 = vunpack.c.h.b16 %v256
      %v394 = vunpack.c.l.b16 %v257
      %v395 = vunpack.c.h.b16 %v257
      %v396 = vunpack.c.l.b16 %v258
      %v397 = vunpack.c.h.b16 %v258
      %v398 = vunpack.c.l.b16 %v259
      %v399 = vunpack.c.h.b16 %v259
      %v400 = vunpack.c.l.b16 %v260
      %v401 = vunpack.c.h.b16 %v260
      %v402 = vunpack.c.l.b16 %v261
      %v403 = vunpack.c.h.b16 %v261
      %v404 = vunpack.c.l.b16 %v262
      %v405 = vunpack.c.h.b16 %v262
      %v406 = vunpack.c.l.b16 %v263
      %v407 = vunpack.c.h.b16 %v263
      %v408 = vunpack.c.l.b16 %v264
      %v409 = vunpack.c.h.b16 %v264
      %v410 = vunpack.c.l.b16 %v265
      %v411 = vunpack.c.h.b16 %v265
      %v412 = vunpack.c.l.b16 %v266
      %v413 = vunpack.c.h.b16 %v266
      %v414 = vunpack.c.l.b16 %v267
      %v415 = vunpack.c.h.b16 %v267
      %v416 = vunpack.c.l.b16 %v268
      %v417 = vunpack.c.h.b16 %v268
      %v418 = vunpack.c.l.b16 %v269
      %v419 = vunpack.c.h.b16 %v269
      %v420 = vunpack.c.l.b16 %v270
      %v421 = vunpack.c.h.b16 %v270
      %v422 = vunpack.c.l.b16 %v271
      %v423 = vunpack.c.h.b16 %v271
      %v424 = vunpack.c.l.b16 %v272
      %v425 = vunpack.c.h.b16 %v272
      %v426 = vunpack.c.l.b16 %v273
      %v427 = vunpack.c.h.b16 %v273
      %v428 = vunpack.c.l.b16 %v274
      %v429 = vunpack.c.h.b16 %v274
      %v430 = vunpack.c.l.b16 %v275
      %v431 = vunpack.c.h.b16 %v275
      %v432 = vunpack.c.l.b16 %v276
      %v433 = vunpack.c.h.b16 %v276
      %v434 = vunpack.c.l.b16 %v277
      %v435 = vunpack.c.h.b16 %v277
      %v436 = vunpack.c.l.b16 %v278
      %v437 = vunpack.c.h.b16 %v278
      %v438 = vunpack.c.l.b16 %v279
      %v439 = vunpack.c.h.b16 %v279
      %v440 = vunpack.c.l.b16 %v280
      %v441 = vunpack.c.h.b16 %v280
      %v442 = vunpack.c.l.b16 %v281
      %v443 = vunpack.c.h.b16 %v281
      %v444 = vunpack.c.l.b16 %v282
      %v445 = vunpack.c.h.b16 %v282
      %v446 = vunpack.c.l.b16 %v283
      %v447 = vunpack.c.h.b16 %v283
      %v448 = vunpack.c.l.b16 %v284
      %v449 = vunpack.c.h.b16 %v284
      %v450 = vunpack.c.l.b16 %v285
      %v451 = vunpack.c.h.b16 %v285
      %v452 = vunpack.c.l.b16 %v286
      %v453 = vunpack.c.h.b16 %v286
      %v454 = vunpack.c.l.b16 %v287
      %v455 = vunpack.c.h.b16 %v287
      %v456 = vunpack.c.l.b16 %v288
      %v457 = vunpack.c.h.b16 %v288
      %v458 = vunpack.c.l.b16 %v289
      %v459 = vunpack.c.h.b16 %v289
      %v460 = vunpack.c.l.b16 %v290
      %v461 = vunpack.c.h.b16 %v290
      %v462 = vunpack.c.l.b16 %v291
      %v463 = vunpack.c.h.b16 %v291
      %v464 = vunpack.c.l.b16 %v292
      %v465 = vunpack.c.h.b16 %v292
      %v466 = vunpack.c.l.b16 %v293
      %v467 = vunpack.c.h.b16 %v293
      %v468 = vunpack.c.l.b16 %v294
      %v469 = vunpack.c.h.b16 %v294
      %v470 = vunpack.c.l.b16 %v295
      %v471 = vunpack.c.h.b16 %v295
      %v472 = vunpack.c.l.b16 %v296
      %v473 = vunpack.c.h.b16 %v296
      %v474 = vunpack.c.l.b16 %v297
      %v475 = vunpack.c.h.b16 %v297
      %v476 = vunpack.c.l.b16 %v298
      %v477 = vunpack.c.h.b16 %v298
      %v478 = vunpack.c.l.b16 %v299
      %v479 = vunpack.c.h.b16 %v299
      %v480 = vunpack.c.l.b16 %v300
      %v481 = vunpack.c.h.b16 %v300
      %v482 = vunpack.c.l.b16 %v301
      %v483 = vunpack.c.h.b16 %v301
      %v484 = vunpack.c.l.b16 %v302
      %v485 = vunpack.c.h.b16 %v302
      %v486 = vunpack.c.l.b16 %v303
      %v487 = vunpack.c.h.b16 %v303
      %v488 = vunpack.c.l.b16 %v304
      %v489 = vunpack.c.h.b16 %v304
      %v490 = vunpack.c.l.b16 %v305
      %v491 = vunpack.c.h.b16 %v305
      %v492 = vunpack.c.l.b16 %v306
      %v493 = vunpack.c.h.b16 %v306
      %v494 = vunpack.c.l.b16 %v307
      %v495 = vunpack.c.h.b16 %v307
      %v496 = vunpack.c.l.b16 %v308
      %v497 = vunpack.c.h.b16 %v308
      %v498 = vunpack.c.l.b16 %v309
      %v499 = vunpack.c.h.b16 %v309
      %v500 = vunpack.c.l.b16 %v310
      %v501 = vunpack.c.h.b16 %v310
      %v502 = vunpack.c.l.b16 %v311
      %v503 = vunpack.c.h.b16 %v311
      %v504 = vpack.c.b16 %v380, %v376
      %v505 = vpack.c.b16 %v381, %v377
      %v506 = vpack.c.b16 %v382, %v378
      %v507 = vpack.c.b16 %v383, %v379
      %v508 = vpack.c.b16 %v388, %v384
      %v509 = vpack.c.b16 %v389, %v385
      %v510 = vpack.c.b16 %v390, %v386
      %v511 = vpack.c.b16 %v391, %v387
      %v512 = vpack.c.b16 %v396, %v392
      %v513 = vpack.c.b16 %v397, %v393
      %v514 = vpack.c.b16 %v398, %v394
      %v515 = vpack.c.b16 %v399, %v395
      %v516 = vpack.c.b16 %v404, %v400
      %v517 = vpack.c.b16 %v405, %v401
      %v518 = vpack.c.b16 %v406, %v402
      %v519 = vpack.c.b16 %v407, %v403
      %v520 = vpack.c.b16 %v412, %v408
      %v521 = vpack.c.b16 %v413, %v409
      %v522 = vpack.c.b16 %v414, %v410
      %v523 = vpack.c.b16 %v415, %v411
      %v524 = vpack.c.b16 %v420, %v416
      %v525 = vpack.c.b16 %v421, %v417
      %v526 = vpack.c.b16 %v422, %v418
      %v527 = vpack.c.b16 %v423, %v419
      %v528 = vpack.c.b16 %v428, %v424
      %v529 = vpack.c.b16 %v429, %v425
      %v530 = vpack.c.b16 %v430, %v426
      %v531 = vpack.c.b16 %v431, %v427
      %v532 = vpack.c.b16 %v436, %v432
      %v533 = vpack.c.b16 %v437, %v433
      %v534 = vpack.c.b16 %v438, %v434
      %v535 = vpack.c.b16 %v439, %v435
      %v536 = vpack.c.b16 %v444, %v440
      %v537 = vpack.c.b16 %v445, %v441
      %v538 = vpack.c.b16 %v446, %v442
      %v539 = vpack.c.b16 %v447, %v443
      %v540 = vpack.c.b16 %v452, %v448
      %v541 = vpack.c.b16 %v453, %v449
      %v542 = vpack.c.b16 %v454, %v450
      %v543 = vpack.c.b16 %v455, %v451
      %v544 = vpack.c.b16 %v460, %v456
      %v545 = vpack.c.b16 %v461, %v457
      %v546 = vpack.c.b16 %v462, %v458
      %v547 = vpack.c.b16 %v463, %v459
      %v548 = vpack.c.b16 %v468, %v464
      %v549 = vpack.c.b16 %v469, %v465
      %v550 = vpack.c.b16 %v470, %v466
      %v551 = vpack.c.b16 %v471, %v467
      %v552 = vpack.c.b16 %v476, %v472
      %v553 = vpack.c.b16 %v477, %v473
      %v554 = vpack.c.b16 %v478, %v474
      %v555 = vpack.c.b16 %v479, %v475
      %v556 = vpack.c.b16 %v484, %v480
      %v557 = vpack.c.b16 %v485, %v481
      %v558 = vpack.c.b16 %v486, %v482
      %v559 = vpack.c.b16 %v487, %v483
      %v560 = vpack.c.b16 %v492, %v488
      %v561 = vpack.c.b16 %v493, %v489
      %v562 = vpack.c.b16 %v494, %v490
      %v563 = vpack.c.b16 %v495, %v491
      %v564 = vpack.c.b16 %v500, %v496
      %v565 = vpack.c.b16 %v501, %v497
      %v566 = vpack.c.b16 %v502, %v498
      %v567 = vpack.c.b16 %v503, %v499
      %632 = vmatpush.bf16.msra.mxu0 %v532
      %633 = vmatpush.bf16.msra.mxu0 %v528
      %634 = vmatpush.bf16.msra.mxu0 %v524
      %635 = vmatpush.bf16.msra.mxu0 %v520
      %636 = vmatpush.bf16.msra.mxu0 %v516
      %637 = vmatpush.bf16.msra.mxu0 %v512
      %638 = vmatpush.bf16.msra.mxu0 %v508
      %639 = vmatpush.bf16.msra.mxu0 %v504
      %640 = vmatmul.bf16.gmra.mxu0 %v216
      %v641 = vpop.f32.mrf.mxu0
      %v642 = vadd.f32 0.0, %v641
      %v643 = vpop.f32.mrf.mxu0
      %v644 = vadd.f32 0.0, %v643
      %645 = vmatmul.bf16.gmra.mxu0 %v218
      %v646 = vpop.f32.mrf.mxu0
      %v647 = vadd.f32 0.0, %v646
      %v648 = vpop.f32.mrf.mxu0
      %v649 = vadd.f32 0.0, %v648
      %650 = vmatmul.bf16.gmra.mxu0 %v220
      %v651 = vpop.f32.mrf.mxu0
      %v652 = vadd.f32 0.0, %v651
      %v653 = vpop.f32.mrf.mxu0
      %v654 = vadd.f32 0.0, %v653
      %655 = vmatmul.bf16.gmra.mxu0 %v222
      %v656 = vpop.f32.mrf.mxu0
      %v657 = vadd.f32 0.0, %v656
      %v658 = vpop.f32.mrf.mxu0
      %v659 = vadd.f32 0.0, %v658
      %660 = vmatmul.bf16.gmra.mxu0 %v224
      %v661 = vpop.f32.mrf.mxu0
      %v662 = vadd.f32 0.0, %v661
      %v663 = vpop.f32.mrf.mxu0
      %v664 = vadd.f32 0.0, %v663
      %665 = vmatmul.bf16.gmra.mxu0 %v226
      %v666 = vpop.f32.mrf.mxu0
      %v667 = vadd.f32 0.0, %v666
      %v668 = vpop.f32.mrf.mxu0
      %v669 = vadd.f32 0.0, %v668
      %670 = vmatmul.bf16.gmra.mxu0 %v228
      %v671 = vpop.f32.mrf.mxu0
      %v672 = vadd.f32 0.0, %v671
      %v673 = vpop.f32.mrf.mxu0
      %v674 = vadd.f32 0.0, %v673
      %675 = vmatmul.bf16.gmra.mxu0 %v230
      %v676 = vpop.f32.mrf.mxu0
      %v677 = vadd.f32 0.0, %v676
      %v678 = vpop.f32.mrf.mxu0
      %v679 = vadd.f32 0.0, %v678
      %680 = vmatmul.bf16.gmra.mxu0 %v232
      %v681 = vpop.f32.mrf.mxu0
      %v682 = vadd.f32 0.0, %v681
      %v683 = vpop.f32.mrf.mxu0
      %v684 = vadd.f32 0.0, %v683
      %685 = vmatmul.bf16.gmra.mxu0 %v234
      %v686 = vpop.f32.mrf.mxu0
      %v687 = vadd.f32 0.0, %v686
      %v688 = vpop.f32.mrf.mxu0
      %v689 = vadd.f32 0.0, %v688
      %690 = vmatmul.bf16.gmra.mxu0 %v236
      %v691 = vpop.f32.mrf.mxu0
      %v692 = vadd.f32 0.0, %v691
      %v693 = vpop.f32.mrf.mxu0
      %v694 = vadd.f32 0.0, %v693
      %695 = vmatmul.bf16.gmra.mxu0 %v238
      %v696 = vpop.f32.mrf.mxu0
      %v697 = vadd.f32 0.0, %v696
      %v698 = vpop.f32.mrf.mxu0
      %v699 = vadd.f32 0.0, %v698
      %700 = vmatmul.bf16.gmra.mxu0 %v240
      %v701 = vpop.f32.mrf.mxu0
      %v702 = vadd.f32 0.0, %v701
      %v703 = vpop.f32.mrf.mxu0
      %v704 = vadd.f32 0.0, %v703
      %705 = vmatmul.bf16.gmra.mxu0 %v242
      %v706 = vpop.f32.mrf.mxu0
      %v707 = vadd.f32 0.0, %v706
      %v708 = vpop.f32.mrf.mxu0
      %v709 = vadd.f32 0.0, %v708
      %710 = vmatmul.bf16.gmra.mxu0 %v244
      %v711 = vpop.f32.mrf.mxu0
      %v712 = vadd.f32 0.0, %v711
      %v713 = vpop.f32.mrf.mxu0
      %v714 = vadd.f32 0.0, %v713
      %715 = vmatmul.bf16.gmra.mxu0 %v246
      %v716 = vpop.f32.mrf.mxu0
      %v717 = vadd.f32 0.0, %v716
      %v718 = vpop.f32.mrf.mxu0
      %v719 = vadd.f32 0.0, %v718
      %720 = vdwg.mxu0
      %721 = vmatpush.bf16.msra.mxu0 %v564
      %722 = vmatpush.bf16.msra.mxu0 %v560
      %723 = vmatpush.bf16.msra.mxu0 %v556
      %724 = vmatpush.bf16.msra.mxu0 %v552
      %725 = vmatpush.bf16.msra.mxu0 %v548
      %726 = vmatpush.bf16.msra.mxu0 %v544
      %727 = vmatpush.bf16.msra.mxu0 %v540
      %728 = vmatpush.bf16.msra.mxu0 %v536
      %729 = vmatmul.bf16.gmra.mxu0 %v217
      %v730 = vpop.f32.mrf.mxu0
      %v731 = vadd.f32 %v642, %v730
      %v732 = vpop.f32.mrf.mxu0
      %v733 = vadd.f32 %v644, %v732
      %734 = vmatmul.bf16.gmra.mxu0 %v219
      %v735 = vpop.f32.mrf.mxu0
      %v736 = vadd.f32 %v647, %v735
      %v737 = vpop.f32.mrf.mxu0
      %v738 = vadd.f32 %v649, %v737
      %739 = vmatmul.bf16.gmra.mxu0 %v221
      %v740 = vpop.f32.mrf.mxu0
      %v741 = vadd.f32 %v652, %v740
      %v742 = vpop.f32.mrf.mxu0
      %v743 = vadd.f32 %v654, %v742
      %744 = vmatmul.bf16.gmra.mxu0 %v223
      %v745 = vpop.f32.mrf.mxu0
      %v746 = vadd.f32 %v657, %v745
      %v747 = vpop.f32.mrf.mxu0
      %v748 = vadd.f32 %v659, %v747
      %749 = vmatmul.bf16.gmra.mxu0 %v225
      %v750 = vpop.f32.mrf.mxu0
      %v751 = vadd.f32 %v662, %v750
      %v752 = vpop.f32.mrf.mxu0
      %v753 = vadd.f32 %v664, %v752
      %754 = vmatmul.bf16.gmra.mxu0 %v227
      %v755 = vpop.f32.mrf.mxu0
      %v756 = vadd.f32 %v667, %v755
      %v757 = vpop.f32.mrf.mxu0
      %v758 = vadd.f32 %v669, %v757
      %759 = vmatmul.bf16.gmra.mxu0 %v229
      %v760 = vpop.f32.mrf.mxu0
      %v761 = vadd.f32 %v672, %v760
      %v762 = vpop.f32.mrf.mxu0
      %v763 = vadd.f32 %v674, %v762
      %764 = vmatmul.bf16.gmra.mxu0 %v231
      %v765 = vpop.f32.mrf.mxu0
      %v766 = vadd.f32 %v677, %v765
      %v767 = vpop.f32.mrf.mxu0
      %v768 = vadd.f32 %v679, %v767
      %769 = vmatmul.bf16.gmra.mxu0 %v233
      %v770 = vpop.f32.mrf.mxu0
      %v771 = vadd.f32 %v682, %v770
      %v772 = vpop.f32.mrf.mxu0
      %v773 = vadd.f32 %v684, %v772
      %774 = vmatmul.bf16.gmra.mxu0 %v235
      %v775 = vpop.f32.mrf.mxu0
      %v776 = vadd.f32 %v687, %v775
      %v777 = vpop.f32.mrf.mxu0
      %v778 = vadd.f32 %v689, %v777
      %779 = vmatmul.bf16.gmra.mxu0 %v237
      %v780 = vpop.f32.mrf.mxu0
      %v781 = vadd.f32 %v692, %v780
      %v782 = vpop.f32.mrf.mxu0
      %v783 = vadd.f32 %v694, %v782
      %784 = vmatmul.bf16.gmra.mxu0 %v239
      %v785 = vpop.f32.mrf.mxu0
      %v786 = vadd.f32 %v697, %v785
      %v787 = vpop.f32.mrf.mxu0
      %v788 = vadd.f32 %v699, %v787
      %789 = vmatmul.bf16.gmra.mxu0 %v241
      %v790 = vpop.f32.mrf.mxu0
      %v791 = vadd.f32 %v702, %v790
      %v792 = vpop.f32.mrf.mxu0
      %v793 = vadd.f32 %v704, %v792
      %794 = vmatmul.bf16.gmra.mxu0 %v243
      %v795 = vpop.f32.mrf.mxu0
      %v796 = vadd.f32 %v707, %v795
      %v797 = vpop.f32.mrf.mxu0
      %v798 = vadd.f32 %v709, %v797
      %799 = vmatmul.bf16.gmra.mxu0 %v245
      %v800 = vpop.f32.mrf.mxu0
      %v801 = vadd.f32 %v712, %v800
      %v802 = vpop.f32.mrf.mxu0
      %v803 = vadd.f32 %v714, %v802
      %804 = vmatmul.bf16.gmra.mxu0 %v247
      %v805 = vpop.f32.mrf.mxu0
      %v806 = vadd.f32 %v717, %v805
      %v807 = vpop.f32.mrf.mxu0
      %v808 = vadd.f32 %v719, %v807
      %809 = vdwg.mxu0
      %810 = vmatpush.bf16.msra.mxu0 %v533
      %811 = vmatpush.bf16.msra.mxu0 %v529
      %812 = vmatpush.bf16.msra.mxu0 %v525
      %813 = vmatpush.bf16.msra.mxu0 %v521
      %814 = vmatpush.bf16.msra.mxu0 %v517
      %815 = vmatpush.bf16.msra.mxu0 %v513
      %816 = vmatpush.bf16.msra.mxu0 %v509
      %817 = vmatpush.bf16.msra.mxu0 %v505
      %818 = vmatmul.bf16.gmra.mxu0 %v216
      %v819 = vpop.f32.mrf.mxu0
      %v820 = vadd.f32 0.0, %v819
      %v821 = vpop.f32.mrf.mxu0
      %v822 = vadd.f32 0.0, %v821
      %823 = vmatmul.bf16.gmra.mxu0 %v218
      %v824 = vpop.f32.mrf.mxu0
      %v825 = vadd.f32 0.0, %v824
      %v826 = vpop.f32.mrf.mxu0
      %v827 = vadd.f32 0.0, %v826
      %828 = vmatmul.bf16.gmra.mxu0 %v220
      %v829 = vpop.f32.mrf.mxu0
      %v830 = vadd.f32 0.0, %v829
      %v831 = vpop.f32.mrf.mxu0
      %v832 = vadd.f32 0.0, %v831
      %833 = vmatmul.bf16.gmra.mxu0 %v222
      %v834 = vpop.f32.mrf.mxu0
      %v835 = vadd.f32 0.0, %v834
      %v836 = vpop.f32.mrf.mxu0
      %v837 = vadd.f32 0.0, %v836
      %838 = vmatmul.bf16.gmra.mxu0 %v224
      %v839 = vpop.f32.mrf.mxu0
      %v840 = vadd.f32 0.0, %v839
      %v841 = vpop.f32.mrf.mxu0
      %v842 = vadd.f32 0.0, %v841
      %843 = vmatmul.bf16.gmra.mxu0 %v226
      %v844 = vpop.f32.mrf.mxu0
      %v845 = vadd.f32 0.0, %v844
      %v846 = vpop.f32.mrf.mxu0
      %v847 = vadd.f32 0.0, %v846
      %848 = vmatmul.bf16.gmra.mxu0 %v228
      %v849 = vpop.f32.mrf.mxu0
      %v850 = vadd.f32 0.0, %v849
      %v851 = vpop.f32.mrf.mxu0
      %v852 = vadd.f32 0.0, %v851
      %853 = vmatmul.bf16.gmra.mxu0 %v230
      %v854 = vpop.f32.mrf.mxu0
      %v855 = vadd.f32 0.0, %v854
      %v856 = vpop.f32.mrf.mxu0
      %v857 = vadd.f32 0.0, %v856
      %858 = vmatmul.bf16.gmra.mxu0 %v232
      %v859 = vpop.f32.mrf.mxu0
      %v860 = vadd.f32 0.0, %v859
      %v861 = vpop.f32.mrf.mxu0
      %v862 = vadd.f32 0.0, %v861
      %863 = vmatmul.bf16.gmra.mxu0 %v234
      %v864 = vpop.f32.mrf.mxu0
      %v865 = vadd.f32 0.0, %v864
      %v866 = vpop.f32.mrf.mxu0
      %v867 = vadd.f32 0.0, %v866
      %868 = vmatmul.bf16.gmra.mxu0 %v236
      %v869 = vpop.f32.mrf.mxu0
      %v870 = vadd.f32 0.0, %v869
      %v871 = vpop.f32.mrf.mxu0
      %v872 = vadd.f32 0.0, %v871
      %873 = vmatmul.bf16.gmra.mxu0 %v238
      %v874 = vpop.f32.mrf.mxu0
      %v875 = vadd.f32 0.0, %v874
      %v876 = vpop.f32.mrf.mxu0
      %v877 = vadd.f32 0.0, %v876
      %878 = vmatmul.bf16.gmra.mxu0 %v240
      %v879 = vpop.f32.mrf.mxu0
      %v880 = vadd.f32 0.0, %v879
      %v881 = vpop.f32.mrf.mxu0
      %v882 = vadd.f32 0.0, %v881
      %883 = vmatmul.bf16.gmra.mxu0 %v242
      %v884 = vpop.f32.mrf.mxu0
      %v885 = vadd.f32 0.0, %v884
      %v886 = vpop.f32.mrf.mxu0
      %v887 = vadd.f32 0.0, %v886
      %888 = vmatmul.bf16.gmra.mxu0 %v244
      %v889 = vpop.f32.mrf.mxu0
      %v890 = vadd.f32 0.0, %v889
      %v891 = vpop.f32.mrf.mxu0
      %v892 = vadd.f32 0.0, %v891
      %893 = vmatmul.bf16.gmra.mxu0 %v246
      %v894 = vpop.f32.mrf.mxu0
      %v895 = vadd.f32 0.0, %v894
      %v896 = vpop.f32.mrf.mxu0
      %v897 = vadd.f32 0.0, %v896
      %898 = vdwg.mxu0
      %899 = vmatpush.bf16.msra.mxu0 %v565
      %900 = vmatpush.bf16.msra.mxu0 %v561
      %901 = vmatpush.bf16.msra.mxu0 %v557
      %902 = vmatpush.bf16.msra.mxu0 %v553
      %903 = vmatpush.bf16.msra.mxu0 %v549
      %904 = vmatpush.bf16.msra.mxu0 %v545
      %905 = vmatpush.bf16.msra.mxu0 %v541
      %906 = vmatpush.bf16.msra.mxu0 %v537
      %907 = vmatmul.bf16.gmra.mxu0 %v217
      %v908 = vpop.f32.mrf.mxu0
      %v909 = vadd.f32 %v820, %v908
      %v910 = vpop.f32.mrf.mxu0
      %v911 = vadd.f32 %v822, %v910
      %912 = vmatmul.bf16.gmra.mxu0 %v219
      %v913 = vpop.f32.mrf.mxu0
      %v914 = vadd.f32 %v825, %v913
      %v915 = vpop.f32.mrf.mxu0
      %v916 = vadd.f32 %v827, %v915
      %917 = vmatmul.bf16.gmra.mxu0 %v221
      %v918 = vpop.f32.mrf.mxu0
      %v919 = vadd.f32 %v830, %v918
      %v920 = vpop.f32.mrf.mxu0
      %v921 = vadd.f32 %v832, %v920
      %922 = vmatmul.bf16.gmra.mxu0 %v223
      %v923 = vpop.f32.mrf.mxu0
      %v924 = vadd.f32 %v835, %v923
      %v925 = vpop.f32.mrf.mxu0
      %v926 = vadd.f32 %v837, %v925
      %927 = vmatmul.bf16.gmra.mxu0 %v225
      %v928 = vpop.f32.mrf.mxu0
      %v929 = vadd.f32 %v840, %v928
      %v930 = vpop.f32.mrf.mxu0
      %v931 = vadd.f32 %v842, %v930
      %932 = vmatmul.bf16.gmra.mxu0 %v227
      %v933 = vpop.f32.mrf.mxu0
      %v934 = vadd.f32 %v845, %v933
      %v935 = vpop.f32.mrf.mxu0
      %v936 = vadd.f32 %v847, %v935
      %937 = vmatmul.bf16.gmra.mxu0 %v229
      %v938 = vpop.f32.mrf.mxu0
      %v939 = vadd.f32 %v850, %v938
      %v940 = vpop.f32.mrf.mxu0
      %v941 = vadd.f32 %v852, %v940
      %942 = vmatmul.bf16.gmra.mxu0 %v231
      %v943 = vpop.f32.mrf.mxu0
      %v944 = vadd.f32 %v855, %v943
      %v945 = vpop.f32.mrf.mxu0
      %v946 = vadd.f32 %v857, %v945
      %947 = vmatmul.bf16.gmra.mxu0 %v233
      %v948 = vpop.f32.mrf.mxu0
      %v949 = vadd.f32 %v860, %v948
      %v950 = vpop.f32.mrf.mxu0
      %v951 = vadd.f32 %v862, %v950
      %952 = vmatmul.bf16.gmra.mxu0 %v235
      %v953 = vpop.f32.mrf.mxu0
      %v954 = vadd.f32 %v865, %v953
      %v955 = vpop.f32.mrf.mxu0
      %v956 = vadd.f32 %v867, %v955
      %957 = vmatmul.bf16.gmra.mxu0 %v237
      %v958 = vpop.f32.mrf.mxu0
      %v959 = vadd.f32 %v870, %v958
      %v960 = vpop.f32.mrf.mxu0
      %v961 = vadd.f32 %v872, %v960
      %962 = vmatmul.bf16.gmra.mxu0 %v239
      %v963 = vpop.f32.mrf.mxu0
      %v964 = vadd.f32 %v875, %v963
      %v965 = vpop.f32.mrf.mxu0
      %v966 = vadd.f32 %v877, %v965
      %967 = vmatmul.bf16.gmra.mxu0 %v241
      %v968 = vpop.f32.mrf.mxu0
      %v969 = vadd.f32 %v880, %v968
      %v970 = vpop.f32.mrf.mxu0
      %v971 = vadd.f32 %v882, %v970
      %972 = vmatmul.bf16.gmra.mxu0 %v243
      %v973 = vpop.f32.mrf.mxu0
      %v974 = vadd.f32 %v885, %v973
      %v975 = vpop.f32.mrf.mxu0
      %v976 = vadd.f32 %v887, %v975
      %977 = vmatmul.bf16.gmra.mxu0 %v245
      %v978 = vpop.f32.mrf.mxu0
      %v979 = vadd.f32 %v890, %v978
      %v980 = vpop.f32.mrf.mxu0
      %v981 = vadd.f32 %v892, %v980
      %982 = vmatmul.bf16.gmra.mxu0 %v247
      %v983 = vpop.f32.mrf.mxu0
      %v984 = vadd.f32 %v895, %v983
      %v985 = vpop.f32.mrf.mxu0
      %v986 = vadd.f32 %v897, %v985
      %987 = vdwg.mxu0
      %988 = vmatpush.bf16.msra.mxu0 %v534
      %989 = vmatpush.bf16.msra.mxu0 %v530
      %990 = vmatpush.bf16.msra.mxu0 %v526
      %991 = vmatpush.bf16.msra.mxu0 %v522
      %992 = vmatpush.bf16.msra.mxu0 %v518
      %993 = vmatpush.bf16.msra.mxu0 %v514
      %994 = vmatpush.bf16.msra.mxu0 %v510
      %995 = vmatpush.bf16.msra.mxu0 %v506
      %996 = vmatmul.bf16.gmra.mxu0 %v216
      %v997 = vpop.f32.mrf.mxu0
      %v998 = vadd.f32 0.0, %v997
      %v999 = vpop.f32.mrf.mxu0
      %v1000 = vadd.f32 0.0, %v999
      %1001 = vmatmul.bf16.gmra.mxu0 %v218
      %v1002 = vpop.f32.mrf.mxu0
      %v1003 = vadd.f32 0.0, %v1002
      %v1004 = vpop.f32.mrf.mxu0
      %v1005 = vadd.f32 0.0, %v1004
      %1006 = vmatmul.bf16.gmra.mxu0 %v220
      %v1007 = vpop.f32.mrf.mxu0
      %v1008 = vadd.f32 0.0, %v1007
      %v1009 = vpop.f32.mrf.mxu0
      %v1010 = vadd.f32 0.0, %v1009
      %1011 = vmatmul.bf16.gmra.mxu0 %v222
      %v1012 = vpop.f32.mrf.mxu0
      %v1013 = vadd.f32 0.0, %v1012
      %v1014 = vpop.f32.mrf.mxu0
      %v1015 = vadd.f32 0.0, %v1014
      %1016 = vmatmul.bf16.gmra.mxu0 %v224
      %v1017 = vpop.f32.mrf.mxu0
      %v1018 = vadd.f32 0.0, %v1017
      %v1019 = vpop.f32.mrf.mxu0
      %v1020 = vadd.f32 0.0, %v1019
      %1021 = vmatmul.bf16.gmra.mxu0 %v226
      %v1022 = vpop.f32.mrf.mxu0
      %v1023 = vadd.f32 0.0, %v1022
      %v1024 = vpop.f32.mrf.mxu0
      %v1025 = vadd.f32 0.0, %v1024
      %1026 = vmatmul.bf16.gmra.mxu0 %v228
      %v1027 = vpop.f32.mrf.mxu0
      %v1028 = vadd.f32 0.0, %v1027
      %v1029 = vpop.f32.mrf.mxu0
      %v1030 = vadd.f32 0.0, %v1029
      %1031 = vmatmul.bf16.gmra.mxu0 %v230
      %v1032 = vpop.f32.mrf.mxu0
      %v1033 = vadd.f32 0.0, %v1032
      %v1034 = vpop.f32.mrf.mxu0
      %v1035 = vadd.f32 0.0, %v1034
      %1036 = vmatmul.bf16.gmra.mxu0 %v232
      %v1037 = vpop.f32.mrf.mxu0
      %v1038 = vadd.f32 0.0, %v1037
      %v1039 = vpop.f32.mrf.mxu0
      %v1040 = vadd.f32 0.0, %v1039
      %1041 = vmatmul.bf16.gmra.mxu0 %v234
      %v1042 = vpop.f32.mrf.mxu0
      %v1043 = vadd.f32 0.0, %v1042
      %v1044 = vpop.f32.mrf.mxu0
      %v1045 = vadd.f32 0.0, %v1044
      %1046 = vmatmul.bf16.gmra.mxu0 %v236
      %v1047 = vpop.f32.mrf.mxu0
      %v1048 = vadd.f32 0.0, %v1047
      %v1049 = vpop.f32.mrf.mxu0
      %v1050 = vadd.f32 0.0, %v1049
      %1051 = vmatmul.bf16.gmra.mxu0 %v238
      %v1052 = vpop.f32.mrf.mxu0
      %v1053 = vadd.f32 0.0, %v1052
      %v1054 = vpop.f32.mrf.mxu0
      %v1055 = vadd.f32 0.0, %v1054
      %1056 = vmatmul.bf16.gmra.mxu0 %v240
      %v1057 = vpop.f32.mrf.mxu0
      %v1058 = vadd.f32 0.0, %v1057
      %v1059 = vpop.f32.mrf.mxu0
      %v1060 = vadd.f32 0.0, %v1059
      %1061 = vmatmul.bf16.gmra.mxu0 %v242
      %v1062 = vpop.f32.mrf.mxu0
      %v1063 = vadd.f32 0.0, %v1062
      %v1064 = vpop.f32.mrf.mxu0
      %v1065 = vadd.f32 0.0, %v1064
      %1066 = vmatmul.bf16.gmra.mxu0 %v244
      %v1067 = vpop.f32.mrf.mxu0
      %v1068 = vadd.f32 0.0, %v1067
      %v1069 = vpop.f32.mrf.mxu0
      %v1070 = vadd.f32 0.0, %v1069
      %1071 = vmatmul.bf16.gmra.mxu0 %v246
      %v1072 = vpop.f32.mrf.mxu0
      %v1073 = vadd.f32 0.0, %v1072
      %v1074 = vpop.f32.mrf.mxu0
      %v1075 = vadd.f32 0.0, %v1074
      %1076 = vdwg.mxu0
      %1077 = vmatpush.bf16.msra.mxu0 %v566
      %1078 = vmatpush.bf16.msra.mxu0 %v562
      %1079 = vmatpush.bf16.msra.mxu0 %v558
      %1080 = vmatpush.bf16.msra.mxu0 %v554
      %1081 = vmatpush.bf16.msra.mxu0 %v550
      %1082 = vmatpush.bf16.msra.mxu0 %v546
      %1083 = vmatpush.bf16.msra.mxu0 %v542
      %1084 = vmatpush.bf16.msra.mxu0 %v538
      %1085 = vmatmul.bf16.gmra.mxu0 %v217
      %v1086 = vpop.f32.mrf.mxu0
      %v1087 = vadd.f32 %v998, %v1086
      %v1088 = vpop.f32.mrf.mxu0
      %v1089 = vadd.f32 %v1000, %v1088
      %1090 = vmatmul.bf16.gmra.mxu0 %v219
      %v1091 = vpop.f32.mrf.mxu0
      %v1092 = vadd.f32 %v1003, %v1091
      %v1093 = vpop.f32.mrf.mxu0
      %v1094 = vadd.f32 %v1005, %v1093
      %1095 = vmatmul.bf16.gmra.mxu0 %v221
      %v1096 = vpop.f32.mrf.mxu0
      %v1097 = vadd.f32 %v1008, %v1096
      %v1098 = vpop.f32.mrf.mxu0
      %v1099 = vadd.f32 %v1010, %v1098
      %1100 = vmatmul.bf16.gmra.mxu0 %v223
      %v1101 = vpop.f32.mrf.mxu0
      %v1102 = vadd.f32 %v1013, %v1101
      %v1103 = vpop.f32.mrf.mxu0
      %v1104 = vadd.f32 %v1015, %v1103
      %1105 = vmatmul.bf16.gmra.mxu0 %v225
      %v1106 = vpop.f32.mrf.mxu0
      %v1107 = vadd.f32 %v1018, %v1106
      %v1108 = vpop.f32.mrf.mxu0
      %v1109 = vadd.f32 %v1020, %v1108
      %1110 = vmatmul.bf16.gmra.mxu0 %v227
      %v1111 = vpop.f32.mrf.mxu0
      %v1112 = vadd.f32 %v1023, %v1111
      %v1113 = vpop.f32.mrf.mxu0
      %v1114 = vadd.f32 %v1025, %v1113
      %1115 = vmatmul.bf16.gmra.mxu0 %v229
      %v1116 = vpop.f32.mrf.mxu0
      %v1117 = vadd.f32 %v1028, %v1116
      %v1118 = vpop.f32.mrf.mxu0
      %v1119 = vadd.f32 %v1030, %v1118
      %1120 = vmatmul.bf16.gmra.mxu0 %v231
      %v1121 = vpop.f32.mrf.mxu0
      %v1122 = vadd.f32 %v1033, %v1121
      %v1123 = vpop.f32.mrf.mxu0
      %v1124 = vadd.f32 %v1035, %v1123
      %1125 = vmatmul.bf16.gmra.mxu0 %v233
      %v1126 = vpop.f32.mrf.mxu0
      %v1127 = vadd.f32 %v1038, %v1126
      %v1128 = vpop.f32.mrf.mxu0
      %v1129 = vadd.f32 %v1040, %v1128
      %1130 = vmatmul.bf16.gmra.mxu0 %v235
      %v1131 = vpop.f32.mrf.mxu0
      %v1132 = vadd.f32 %v1043, %v1131
      %v1133 = vpop.f32.mrf.mxu0
      %v1134 = vadd.f32 %v1045, %v1133
      %1135 = vmatmul.bf16.gmra.mxu0 %v237
      %v1136 = vpop.f32.mrf.mxu0
      %v1137 = vadd.f32 %v1048, %v1136
      %v1138 = vpop.f32.mrf.mxu0
      %v1139 = vadd.f32 %v1050, %v1138
      %1140 = vmatmul.bf16.gmra.mxu0 %v239
      %v1141 = vpop.f32.mrf.mxu0
      %v1142 = vadd.f32 %v1053, %v1141
      %v1143 = vpop.f32.mrf.mxu0
      %v1144 = vadd.f32 %v1055, %v1143
      %1145 = vmatmul.bf16.gmra.mxu0 %v241
      %v1146 = vpop.f32.mrf.mxu0
      %v1147 = vadd.f32 %v1058, %v1146
      %v1148 = vpop.f32.mrf.mxu0
      %v1149 = vadd.f32 %v1060, %v1148
      %1150 = vmatmul.bf16.gmra.mxu0 %v243
      %v1151 = vpop.f32.mrf.mxu0
      %v1152 = vadd.f32 %v1063, %v1151
      %v1153 = vpop.f32.mrf.mxu0
      %v1154 = vadd.f32 %v1065, %v1153
      %1155 = vmatmul.bf16.gmra.mxu0 %v245
      %v1156 = vpop.f32.mrf.mxu0
      %v1157 = vadd.f32 %v1068, %v1156
      %v1158 = vpop.f32.mrf.mxu0
      %v1159 = vadd.f32 %v1070, %v1158
      %1160 = vmatmul.bf16.gmra.mxu0 %v247
      %v1161 = vpop.f32.mrf.mxu0
      %v1162 = vadd.f32 %v1073, %v1161
      %v1163 = vpop.f32.mrf.mxu0
      %v1164 = vadd.f32 %v1075, %v1163
      %1165 = vdwg.mxu0
      %1166 = vmatpush.bf16.msra.mxu0 %v535
      %1167 = vmatpush.bf16.msra.mxu0 %v531
      %1168 = vmatpush.bf16.msra.mxu0 %v527
      %1169 = vmatpush.bf16.msra.mxu0 %v523
      %1170 = vmatpush.bf16.msra.mxu0 %v519
      %1171 = vmatpush.bf16.msra.mxu0 %v515
      %1172 = vmatpush.bf16.msra.mxu0 %v511
      %1173 = vmatpush.bf16.msra.mxu0 %v507
      %1174 = vmatmul.bf16.gmra.mxu0 %v216
      %v1175 = vpop.f32.mrf.mxu0
      %v1176 = vadd.f32 0.0, %v1175
      %v1177 = vpop.f32.mrf.mxu0
      %v1178 = vadd.f32 0.0, %v1177
      %1179 = vmatmul.bf16.gmra.mxu0 %v218
      %v1180 = vpop.f32.mrf.mxu0
      %v1181 = vadd.f32 0.0, %v1180
      %v1182 = vpop.f32.mrf.mxu0
      %v1183 = vadd.f32 0.0, %v1182
      %1184 = vmatmul.bf16.gmra.mxu0 %v220
      %v1185 = vpop.f32.mrf.mxu0
      %v1186 = vadd.f32 0.0, %v1185
      %v1187 = vpop.f32.mrf.mxu0
      %v1188 = vadd.f32 0.0, %v1187
      %1189 = vmatmul.bf16.gmra.mxu0 %v222
      %v1190 = vpop.f32.mrf.mxu0
      %v1191 = vadd.f32 0.0, %v1190
      %v1192 = vpop.f32.mrf.mxu0
      %v1193 = vadd.f32 0.0, %v1192
      %1194 = vmatmul.bf16.gmra.mxu0 %v224
      %v1195 = vpop.f32.mrf.mxu0
      %v1196 = vadd.f32 0.0, %v1195
      %v1197 = vpop.f32.mrf.mxu0
      %v1198 = vadd.f32 0.0, %v1197
      %1199 = vmatmul.bf16.gmra.mxu0 %v226
      %v1200 = vpop.f32.mrf.mxu0
      %v1201 = vadd.f32 0.0, %v1200
      %v1202 = vpop.f32.mrf.mxu0
      %v1203 = vadd.f32 0.0, %v1202
      %1204 = vmatmul.bf16.gmra.mxu0 %v228
      %v1205 = vpop.f32.mrf.mxu0
      %v1206 = vadd.f32 0.0, %v1205
      %v1207 = vpop.f32.mrf.mxu0
      %v1208 = vadd.f32 0.0, %v1207
      %1209 = vmatmul.bf16.gmra.mxu0 %v230
      %v1210 = vpop.f32.mrf.mxu0
      %v1211 = vadd.f32 0.0, %v1210
      %v1212 = vpop.f32.mrf.mxu0
      %v1213 = vadd.f32 0.0, %v1212
      %1214 = vmatmul.bf16.gmra.mxu0 %v232
      %v1215 = vpop.f32.mrf.mxu0
      %v1216 = vadd.f32 0.0, %v1215
      %v1217 = vpop.f32.mrf.mxu0
      %v1218 = vadd.f32 0.0, %v1217
      %1219 = vmatmul.bf16.gmra.mxu0 %v234
      %v1220 = vpop.f32.mrf.mxu0
      %v1221 = vadd.f32 0.0, %v1220
      %v1222 = vpop.f32.mrf.mxu0
      %v1223 = vadd.f32 0.0, %v1222
      %1224 = vmatmul.bf16.gmra.mxu0 %v236
      %v1225 = vpop.f32.mrf.mxu0
      %v1226 = vadd.f32 0.0, %v1225
      %v1227 = vpop.f32.mrf.mxu0
      %v1228 = vadd.f32 0.0, %v1227
      %1229 = vmatmul.bf16.gmra.mxu0 %v238
      %v1230 = vpop.f32.mrf.mxu0
      %v1231 = vadd.f32 0.0, %v1230
      %v1232 = vpop.f32.mrf.mxu0
      %v1233 = vadd.f32 0.0, %v1232
      %1234 = vmatmul.bf16.gmra.mxu0 %v240
      %v1235 = vpop.f32.mrf.mxu0
      %v1236 = vadd.f32 0.0, %v1235
      %v1237 = vpop.f32.mrf.mxu0
      %v1238 = vadd.f32 0.0, %v1237
      %1239 = vmatmul.bf16.gmra.mxu0 %v242
      %v1240 = vpop.f32.mrf.mxu0
      %v1241 = vadd.f32 0.0, %v1240
      %v1242 = vpop.f32.mrf.mxu0
      %v1243 = vadd.f32 0.0, %v1242
      %1244 = vmatmul.bf16.gmra.mxu0 %v244
      %v1245 = vpop.f32.mrf.mxu0
      %v1246 = vadd.f32 0.0, %v1245
      %v1247 = vpop.f32.mrf.mxu0
      %v1248 = vadd.f32 0.0, %v1247
      %1249 = vmatmul.bf16.gmra.mxu0 %v246
      %v1250 = vpop.f32.mrf.mxu0
      %v1251 = vadd.f32 0.0, %v1250
      %v1252 = vpop.f32.mrf.mxu0
      %v1253 = vadd.f32 0.0, %v1252
      %1254 = vdwg.mxu0
      %1255 = vmatpush.bf16.msra.mxu0 %v567
      %1256 = vmatpush.bf16.msra.mxu0 %v563
      %1257 = vmatpush.bf16.msra.mxu0 %v559
      %1258 = vmatpush.bf16.msra.mxu0 %v555
      %1259 = vmatpush.bf16.msra.mxu0 %v551
      %1260 = vmatpush.bf16.msra.mxu0 %v547
      %1261 = vmatpush.bf16.msra.mxu0 %v543
      %1262 = vmatpush.bf16.msra.mxu0 %v539
      %1263 = vmatmul.bf16.gmra.mxu0 %v217
      %v1264 = vpop.f32.mrf.mxu0
      %v1265 = vadd.f32 %v1176, %v1264
      %v1266 = vpop.f32.mrf.mxu0
      %v1267 = vadd.f32 %v1178, %v1266
      %1268 = vmatmul.bf16.gmra.mxu0 %v219
      %v1269 = vpop.f32.mrf.mxu0
      %v1270 = vadd.f32 %v1181, %v1269
      %v1271 = vpop.f32.mrf.mxu0
      %v1272 = vadd.f32 %v1183, %v1271
      %1273 = vmatmul.bf16.gmra.mxu0 %v221
      %v1274 = vpop.f32.mrf.mxu0
      %v1275 = vadd.f32 %v1186, %v1274
      %v1276 = vpop.f32.mrf.mxu0
      %v1277 = vadd.f32 %v1188, %v1276
      %1278 = vmatmul.bf16.gmra.mxu0 %v223
      %v1279 = vpop.f32.mrf.mxu0
      %v1280 = vadd.f32 %v1191, %v1279
      %v1281 = vpop.f32.mrf.mxu0
      %v1282 = vadd.f32 %v1193, %v1281
      %1283 = vmatmul.bf16.gmra.mxu0 %v225
      %v1284 = vpop.f32.mrf.mxu0
      %v1285 = vadd.f32 %v1196, %v1284
      %v1286 = vpop.f32.mrf.mxu0
      %v1287 = vadd.f32 %v1198, %v1286
      %1288 = vmatmul.bf16.gmra.mxu0 %v227
      %v1289 = vpop.f32.mrf.mxu0
      %v1290 = vadd.f32 %v1201, %v1289
      %v1291 = vpop.f32.mrf.mxu0
      %v1292 = vadd.f32 %v1203, %v1291
      %1293 = vmatmul.bf16.gmra.mxu0 %v229
      %v1294 = vpop.f32.mrf.mxu0
      %v1295 = vadd.f32 %v1206, %v1294
      %v1296 = vpop.f32.mrf.mxu0
      %v1297 = vadd.f32 %v1208, %v1296
      %1298 = vmatmul.bf16.gmra.mxu0 %v231
      %v1299 = vpop.f32.mrf.mxu0
      %v1300 = vadd.f32 %v1211, %v1299
      %v1301 = vpop.f32.mrf.mxu0
      %v1302 = vadd.f32 %v1213, %v1301
      %1303 = vmatmul.bf16.gmra.mxu0 %v233
      %v1304 = vpop.f32.mrf.mxu0
      %v1305 = vadd.f32 %v1216, %v1304
      %v1306 = vpop.f32.mrf.mxu0
      %v1307 = vadd.f32 %v1218, %v1306
      %1308 = vmatmul.bf16.gmra.mxu0 %v235
      %v1309 = vpop.f32.mrf.mxu0
      %v1310 = vadd.f32 %v1221, %v1309
      %v1311 = vpop.f32.mrf.mxu0
      %v1312 = vadd.f32 %v1223, %v1311
      %1313 = vmatmul.bf16.gmra.mxu0 %v237
      %v1314 = vpop.f32.mrf.mxu0
      %v1315 = vadd.f32 %v1226, %v1314
      %v1316 = vpop.f32.mrf.mxu0
      %v1317 = vadd.f32 %v1228, %v1316
      %1318 = vmatmul.bf16.gmra.mxu0 %v239
      %v1319 = vpop.f32.mrf.mxu0
      %v1320 = vadd.f32 %v1231, %v1319
      %v1321 = vpop.f32.mrf.mxu0
      %v1322 = vadd.f32 %v1233, %v1321
      %1323 = vmatmul.bf16.gmra.mxu0 %v241
      %v1324 = vpop.f32.mrf.mxu0
      %v1325 = vadd.f32 %v1236, %v1324
      %v1326 = vpop.f32.mrf.mxu0
      %v1327 = vadd.f32 %v1238, %v1326
      %1328 = vmatmul.bf16.gmra.mxu0 %v243
      %v1329 = vpop.f32.mrf.mxu0
      %v1330 = vadd.f32 %v1241, %v1329
      %v1331 = vpop.f32.mrf.mxu0
      %v1332 = vadd.f32 %v1243, %v1331
      %1333 = vmatmul.bf16.gmra.mxu0 %v245
      %v1334 = vpop.f32.mrf.mxu0
      %v1335 = vadd.f32 %v1246, %v1334
      %v1336 = vpop.f32.mrf.mxu0
      %v1337 = vadd.f32 %v1248, %v1336
      %1338 = vmatmul.bf16.gmra.mxu0 %v247
      %v1339 = vpop.f32.mrf.mxu0
      %v1340 = vadd.f32 %v1251, %v1339
      %v1341 = vpop.f32.mrf.mxu0
      %v1342 = vadd.f32 %v1253, %v1341
      %1343 = vdwg.mxu0
      %1344 = vst [vmem:[%s150] sm:$0xff] %v731
      %1345 = vst [vmem:[%s150 + $0x8] sm:$0xff] %v909
      %1346 = vst [vmem:[%s150 + $0x10] sm:$0xff] %v1087
      %1347 = vst [vmem:[%s150 + $0x18] sm:$0xff] %v1265
      %1348 = vst [vmem:[%s150 + $0x20] sm:$0xff] %v733
      %1349 = vst [vmem:[%s150 + $0x28] sm:$0xff] %v911
      %1350 = vst [vmem:[%s150 + $0x30] sm:$0xff] %v1089
      %1351 = vst [vmem:[%s150 + $0x38] sm:$0xff] %v1267
      %1352 = vst [vmem:[%s150 + $0x40] sm:$0xff] %v736
      %1353 = vst [vmem:[%s150 + $0x48] sm:$0xff] %v914
      %1354 = vst [vmem:[%s150 + $0x50] sm:$0xff] %v1092
      %1355 = vst [vmem:[%s150 + $0x58] sm:$0xff] %v1270
      %1356 = vst [vmem:[%s150 + $0x60] sm:$0xff] %v738
      %1357 = vst [vmem:[%s150 + $0x68] sm:$0xff] %v916
      %1358 = vst [vmem:[%s150 + $0x70] sm:$0xff] %v1094
      %1359 = vst [vmem:[%s150 + $0x78] sm:$0xff] %v1272
      %1360 = vst [vmem:[%s150 + $0x80] sm:$0xff] %v741
      %1361 = vst [vmem:[%s150 + $0x88] sm:$0xff] %v919
      %1362 = vst [vmem:[%s150 + $0x90] sm:$0xff] %v1097
      %1363 = vst [vmem:[%s150 + $0x98] sm:$0xff] %v1275
      %1364 = vst [vmem:[%s150 + $0xa0] sm:$0xff] %v743
      %1365 = vst [vmem:[%s150 + $0xa8] sm:$0xff] %v921
      %1366 = vst [vmem:[%s150 + $0xb0] sm:$0xff] %v1099
      %1367 = vst [vmem:[%s150 + $0xb8] sm:$0xff] %v1277
      %1368 = vst [vmem:[%s150 + $0xc0] sm:$0xff] %v746
      %1369 = vst [vmem:[%s150 + $0xc8] sm:$0xff] %v924
      %1370 = vst [vmem:[%s150 + $0xd0] sm:$0xff] %v1102
      %1371 = vst [vmem:[%s150 + $0xd8] sm:$0xff] %v1280
      %1372 = vst [vmem:[%s150 + $0xe0] sm:$0xff] %v748
      %1373 = vst [vmem:[%s150 + $0xe8] sm:$0xff] %v926
      %1374 = vst [vmem:[%s150 + $0xf0] sm:$0xff] %v1104
      %1375 = vst [vmem:[%s150 + $0xf8] sm:$0xff] %v1282
      %1376 = vst [vmem:[%s150 + $0x100] sm:$0xff] %v751
      %1377 = vst [vmem:[%s150 + $0x108] sm:$0xff] %v929
      %1378 = vst [vmem:[%s150 + $0x110] sm:$0xff] %v1107
      %1379 = vst [vmem:[%s150 + $0x118] sm:$0xff] %v1285
      %1380 = vst [vmem:[%s150 + $0x120] sm:$0xff] %v753
      %1381 = vst [vmem:[%s150 + $0x128] sm:$0xff] %v931
      %1382 = vst [vmem:[%s150 + $0x130] sm:$0xff] %v1109
      %1383 = vst [vmem:[%s150 + $0x138] sm:$0xff] %v1287
      %1384 = vst [vmem:[%s150 + $0x140] sm:$0xff] %v756
      %1385 = vst [vmem:[%s150 + $0x148] sm:$0xff] %v934
      %1386 = vst [vmem:[%s150 + $0x150] sm:$0xff] %v1112
      %1387 = vst [vmem:[%s150 + $0x158] sm:$0xff] %v1290
      %1388 = vst [vmem:[%s150 + $0x160] sm:$0xff] %v758
      %1389 = vst [vmem:[%s150 + $0x168] sm:$0xff] %v936
      %1390 = vst [vmem:[%s150 + $0x170] sm:$0xff] %v1114
      %1391 = vst [vmem:[%s150 + $0x178] sm:$0xff] %v1292
      %1392 = vst [vmem:[%s150 + $0x180] sm:$0xff] %v761
      %1393 = vst [vmem:[%s150 + $0x188] sm:$0xff] %v939
      %1394 = vst [vmem:[%s150 + $0x190] sm:$0xff] %v1117
      %1395 = vst [vmem:[%s150 + $0x198] sm:$0xff] %v1295
      %1396 = vst [vmem:[%s150 + $0x1a0] sm:$0xff] %v763
      %1397 = vst [vmem:[%s150 + $0x1a8] sm:$0xff] %v941
      %1398 = vst [vmem:[%s150 + $0x1b0] sm:$0xff] %v1119
      %1399 = vst [vmem:[%s150 + $0x1b8] sm:$0xff] %v1297
      %1400 = vst [vmem:[%s150 + $0x1c0] sm:$0xff] %v766
      %1401 = vst [vmem:[%s150 + $0x1c8] sm:$0xff] %v944
      %1402 = vst [vmem:[%s150 + $0x1d0] sm:$0xff] %v1122
      %1403 = vst [vmem:[%s150 + $0x1d8] sm:$0xff] %v1300
      %1404 = vst [vmem:[%s150 + $0x1e0] sm:$0xff] %v768
      %1405 = vst [vmem:[%s150 + $0x1e8] sm:$0xff] %v946
      %1406 = vst [vmem:[%s150 + $0x1f0] sm:$0xff] %v1124
      %1407 = vst [vmem:[%s150 + $0x1f8] sm:$0xff] %v1302
      %1408 = vst [vmem:[%s150 + $0x200] sm:$0xff] %v771
      %1409 = vst [vmem:[%s150 + $0x208] sm:$0xff] %v949
      %1410 = vst [vmem:[%s150 + $0x210] sm:$0xff] %v1127
      %1411 = vst [vmem:[%s150 + $0x218] sm:$0xff] %v1305
      %1412 = vst [vmem:[%s150 + $0x220] sm:$0xff] %v773
      %1413 = vst [vmem:[%s150 + $0x228] sm:$0xff] %v951
      %1414 = vst [vmem:[%s150 + $0x230] sm:$0xff] %v1129
      %1415 = vst [vmem:[%s150 + $0x238] sm:$0xff] %v1307
      %1416 = vst [vmem:[%s150 + $0x240] sm:$0xff] %v776
      %1417 = vst [vmem:[%s150 + $0x248] sm:$0xff] %v954
      %1418 = vst [vmem:[%s150 + $0x250] sm:$0xff] %v1132
      %1419 = vst [vmem:[%s150 + $0x258] sm:$0xff] %v1310
      %1420 = vst [vmem:[%s150 + $0x260] sm:$0xff] %v778
      %1421 = vst [vmem:[%s150 + $0x268] sm:$0xff] %v956
      %1422 = vst [vmem:[%s150 + $0x270] sm:$0xff] %v1134
      %1423 = vst [vmem:[%s150 + $0x278] sm:$0xff] %v1312
      %1424 = vst [vmem:[%s150 + $0x280] sm:$0xff] %v781
      %1425 = vst [vmem:[%s150 + $0x288] sm:$0xff] %v959
      %1426 = vst [vmem:[%s150 + $0x290] sm:$0xff] %v1137
      %1427 = vst [vmem:[%s150 + $0x298] sm:$0xff] %v1315
      %1428 = vst [vmem:[%s150 + $0x2a0] sm:$0xff] %v783
      %1429 = vst [vmem:[%s150 + $0x2a8] sm:$0xff] %v961
      %1430 = vst [vmem:[%s150 + $0x2b0] sm:$0xff] %v1139
      %1431 = vst [vmem:[%s150 + $0x2b8] sm:$0xff] %v1317
      %1432 = vst [vmem:[%s150 + $0x2c0] sm:$0xff] %v786
      %1433 = vst [vmem:[%s150 + $0x2c8] sm:$0xff] %v964
      %1434 = vst [vmem:[%s150 + $0x2d0] sm:$0xff] %v1142
      %1435 = vst [vmem:[%s150 + $0x2d8] sm:$0xff] %v1320
      %1436 = vst [vmem:[%s150 + $0x2e0] sm:$0xff] %v788
      %1437 = vst [vmem:[%s150 + $0x2e8] sm:$0xff] %v966
      %1438 = vst [vmem:[%s150 + $0x2f0] sm:$0xff] %v1144
      %1439 = vst [vmem:[%s150 + $0x2f8] sm:$0xff] %v1322
      %1440 = vst [vmem:[%s150 + $0x300] sm:$0xff] %v791
      %1441 = vst [vmem:[%s150 + $0x308] sm:$0xff] %v969
      %1442 = vst [vmem:[%s150 + $0x310] sm:$0xff] %v1147
      %1443 = vst [vmem:[%s150 + $0x318] sm:$0xff] %v1325
      %1444 = vst [vmem:[%s150 + $0x320] sm:$0xff] %v793
      %1445 = vst [vmem:[%s150 + $0x328] sm:$0xff] %v971
      %1446 = vst [vmem:[%s150 + $0x330] sm:$0xff] %v1149
      %1447 = vst [vmem:[%s150 + $0x338] sm:$0xff] %v1327
      %1448 = vst [vmem:[%s150 + $0x340] sm:$0xff] %v796
      %1449 = vst [vmem:[%s150 + $0x348] sm:$0xff] %v974
      %1450 = vst [vmem:[%s150 + $0x350] sm:$0xff] %v1152
      %1451 = vst [vmem:[%s150 + $0x358] sm:$0xff] %v1330
      %1452 = vst [vmem:[%s150 + $0x360] sm:$0xff] %v798
      %1453 = vst [vmem:[%s150 + $0x368] sm:$0xff] %v976
      %1454 = vst [vmem:[%s150 + $0x370] sm:$0xff] %v1154
      %1455 = vst [vmem:[%s150 + $0x378] sm:$0xff] %v1332
      %1456 = vst [vmem:[%s150 + $0x380] sm:$0xff] %v801
      %1457 = vst [vmem:[%s150 + $0x388] sm:$0xff] %v979
      %1458 = vst [vmem:[%s150 + $0x390] sm:$0xff] %v1157
      %1459 = vst [vmem:[%s150 + $0x398] sm:$0xff] %v1335
      %1460 = vst [vmem:[%s150 + $0x3a0] sm:$0xff] %v803
      %1461 = vst [vmem:[%s150 + $0x3a8] sm:$0xff] %v981
      %1462 = vst [vmem:[%s150 + $0x3b0] sm:$0xff] %v1159
      %1463 = vst [vmem:[%s150 + $0x3b8] sm:$0xff] %v1337
      %1464 = vst [vmem:[%s150 + $0x3c0] sm:$0xff] %v806
      %1465 = vst [vmem:[%s150 + $0x3c8] sm:$0xff] %v984
      %1466 = vst [vmem:[%s150 + $0x3d0] sm:$0xff] %v1162
      %1467 = vst [vmem:[%s150 + $0x3d8] sm:$0xff] %v1340
      %1468 = vst [vmem:[%s150 + $0x3e0] sm:$0xff] %v808
      %1469 = vst [vmem:[%s150 + $0x3e8] sm:$0xff] %v986
      %1470 = vst [vmem:[%s150 + $0x3f0] sm:$0xff] %v1164
      %1471 = vst [vmem:[%s150 + $0x3f8] sm:$0xff] %v1342
      %s1472 = smul.u32 32, %s13
      %p1473 = scmp.lt.s32.totalorder %s1472, 63
      %s1474 = scalar_select %p1473, %s1472, 63
      %s1475 = smul.addr %s1474, 4
      %s1476 = smul.addr %s1475, 8
      %s1477 = scalar_lea.vmem %s2, %s1476
      // Predicated region
      $region29: #{stacked_edvr_forward.16} parent=27 // pred_check
        %p1478 = pneg %p78
      $region30: #{stacked_edvr_forward.16} parent=27 // pred_check_branch
        %1480 = sbr.rel (%p1478) target = $region32
      $region31: #{stacked_edvr_forward.16} parent=27 // pred_region
        %s1481 = smul.u32 32, %s13
      $region32: #{stacked_edvr_forward.16} parent=27 // pred_fallthru
        _
    $region28: #{stacked_edvr_forward.16} parent=5 // pred_fallthru
      _
    %p1482 = scmp.le.s32.totalorder 2, %s8
    // Predicated region
    $region33: #{stacked_edvr_forward.16} parent=5 // pred_check
      %p1483 = pneg %p1482
    $region34: #{stacked_edvr_forward.16} parent=5 // pred_check_branch
      %1485 = sbr.rel (%p1483) target = $region36
    $region35: #{stacked_edvr_forward.16} parent=5 // pred_region
      %s1486 = ssub.s32 %s8, 2
      // Predicated region
      $region37: #{stacked_edvr_forward.16} parent=35 // pred_check
        %p1487 = pneg %p84
      $region38: #{stacked_edvr_forward.16} parent=35 // pred_check_branch
        %1489 = sbr.rel (%p1487) target = $region40
      $region39: #{stacked_edvr_forward.16} parent=35 // pred_region
        %s1490 = smul.u32 32, %s14
        %p1491 = scmp.lt.s32.totalorder %s1490, 63
        %s1492 = scalar_select %p1491, %s1490, 63
        %s1493 = smul.addr %s1492, 4
        %s1494 = smul.addr %s1493, 8
        %s1495 = scalar_lea.vmem %s2, %s1494
      $region40: #{stacked_edvr_forward.16} parent=35 // pred_fallthru
        _
    $region36: #{stacked_edvr_forward.16} parent=5 // pred_fallthru
      _
  $region6: #{stacked_edvr_forward.16} parent=0 // loop_footer
    %s12 = sadd.s32 1, %s8
  $region7: #{stacked_edvr_forward.16} parent=0 // loop_footer_branch
    %7 = sbr.rel target = $region3
  $region8: #{stacked_edvr_forward.16} parent=0 // loop_exit
    _

// kernel: stacked_edvr_forward.14
$region0: #{stacked_edvr_forward.14}
  #allocation0 [shape = 'u32[]', space=smem, size = 0x4, offset = 0x4, fixed_abs, tag = 'smem constant byte address 0x4 - core index']
  #allocation1 [shape = 'u32[72,128]{1,0:T(1,128)}', space=vmem, size = 0x9000, scoped, tag = 'internal scratch']
  %s0 = inlined_call_operand.vmem [shape: f32[2,18,18,32], index: 0, kind: input, shape index: {}]
  %s1 = inlined_call_operand.vmem [shape: bf16[9,32,32], index: 1, kind: input, shape index: {}]
  %s2 = inlined_call_operand.vmem [shape: f32[1,32], index: 2, kind: input, shape index: {}]
  %s3 = inlined_call_operand.vmem [shape: f32[1,32], index: 3, kind: input, shape index: {}]
  %s4 = inlined_call_operand.vmem [shape: f32[2,16,16,32], index: 4, kind: input, shape index: {}]
  %s5 = inlined_call_operand.vmem [shape: f32[2,16,16,32], index: 5, kind: output, shape index: {}]
  %s6 = sld [smem:[#allocation0]]
  $region53: #{stacked_edvr_forward.14} parent=0
    _
  %s8 = ssub.s32 1, %s6
  %s9 = scalar_select 0, %s8, %s6
  loop: start=0, step=1, limit=4
  $region2: #{stacked_edvr_forward.14} parent=0 // loop_pre_header
    _
  $region3: #{stacked_edvr_forward.14} parent=0 // loop_header
    %s11 = sphi 0, %s15
    %p12 = scmp.ge.s32.totalorder %s11, 4
    %s21 = sphi 0, %s23
    %s24 = sphi 0, %s21
    %s25 = sphi 0, %s24
    %s41 = sphi 0, %s25
    %s45 = sphi 0, %s45
    %s47 = sphi 0, %s45
    %s48 = sphi 0, %s47
    %s62 = sphi 0, %s48
    %s66 = sphi 0, %s66
    %s68 = sphi 0, %s66
    %s69 = sphi 0, %s68
    %s83 = sphi 0, %s69
    %s87 = sphi 0, %s87
    %s89 = sphi 0, %s87
    %s90 = sphi 0, %s89
    %s104 = sphi 0, %s90
    %s110 = sphi 0, %s112
    %s113 = sphi 0, %s110
    %s114 = sphi 0, %s113
    %s130 = sphi 0, %s114
    %s136 = sphi 0, %s138
    %s139 = sphi 0, %s136
    %s140 = sphi 0, %s139
    %s156 = sphi 0, %s140
  $region4: #{stacked_edvr_forward.14} parent=0 // loop_header_branch
    %14 = sbr.rel (%p12) target = $region8
  $region5: #{stacked_edvr_forward.14} parent=0 // loop_body
    %s16 = ssub.s32 %s11, 1
    %s17 = ssub.s32 %s11, 2
    %s18 = sadd.s32 %s11, 1
    %s19 = ssub.s32 %s11, %s18
    %p20 = scmp.eq.s32.totalorder %s19, 0
    %s22 = sadd.s32 %s21, 1
    %s23 = scalar_select %p20, %s21, %s22
    %p26 = pneg %p20
    %p27 = scmp.eq.s32.totalorder %s11, 1
    %p28 = por %p26, %p27
    %p29 = scmp.ne.s32.totalorder %s21, %s24
    %p30 = scmp.eq.s32.totalorder %s11, 0
    %p31 = por %p29, %p30
    %p32 = scmp.ne.s32.totalorder %s21, %s24
    %p33 = scmp.eq.s32.totalorder %s16, 1
    %p34 = por %p32, %p33
    %p35 = scmp.ne.s32.totalorder %s24, %s25
    %p36 = scmp.eq.s32.totalorder %s16, 0
    %p37 = por %p35, %p36
    %p38 = scmp.ne.s32.totalorder %s24, %s25
    %p39 = scmp.eq.s32.totalorder %s17, 1
    %p40 = por %p38, %p39
    %p42 = scmp.ne.s32.totalorder %s25, %s41
    %p43 = scmp.eq.s32.totalorder %s17, 0
    %p44 = por %p42, %p43
    %s46 = sadd.s32 %s45, 1
    %p49 = scmp.eq.s32.totalorder %s11, 1
    %p50 = scmp.ne.s32.totalorder %s45, %s47
    %p51 = scmp.eq.s32.totalorder %s11, 0
    %p52 = por %p50, %p51
    %p53 = scmp.ne.s32.totalorder %s45, %s47
    %p54 = scmp.eq.s32.totalorder %s16, 1
    %p55 = por %p53, %p54
    %p56 = scmp.ne.s32.totalorder %s47, %s48
    %p57 = scmp.eq.s32.totalorder %s16, 0
    %p58 = por %p56, %p57
    %p59 = scmp.ne.s32.totalorder %s47, %s48
    %p60 = scmp.eq.s32.totalorder %s17, 1
    %p61 = por %p59, %p60
    %p63 = scmp.ne.s32.totalorder %s48, %s62
    %p64 = scmp.eq.s32.totalorder %s17, 0
    %p65 = por %p63, %p64
    %s67 = sadd.s32 %s66, 1
    %p70 = scmp.eq.s32.totalorder %s11, 1
    %p71 = scmp.ne.s32.totalorder %s66, %s68
    %p72 = scmp.eq.s32.totalorder %s11, 0
    %p73 = por %p71, %p72
    %p74 = scmp.ne.s32.totalorder %s66, %s68
    %p75 = scmp.eq.s32.totalorder %s16, 1
    %p76 = por %p74, %p75
    %p77 = scmp.ne.s32.totalorder %s68, %s69
    %p78 = scmp.eq.s32.totalorder %s16, 0
    %p79 = por %p77, %p78
    %p80 = scmp.ne.s32.totalorder %s68, %s69
    %p81 = scmp.eq.s32.totalorder %s17, 1
    %p82 = por %p80, %p81
    %p84 = scmp.ne.s32.totalorder %s69, %s83
    %p85 = scmp.eq.s32.totalorder %s17, 0
    %p86 = por %p84, %p85
    %s88 = sadd.s32 %s87, 1
    %p91 = scmp.eq.s32.totalorder %s11, 1
    %p92 = scmp.ne.s32.totalorder %s87, %s89
    %p93 = scmp.eq.s32.totalorder %s11, 0
    %p94 = por %p92, %p93
    %p95 = scmp.ne.s32.totalorder %s87, %s89
    %p96 = scmp.eq.s32.totalorder %s16, 1
    %p97 = por %p95, %p96
    %p98 = scmp.ne.s32.totalorder %s89, %s90
    %p99 = scmp.eq.s32.totalorder %s16, 0
    %p100 = por %p98, %p99
    %p101 = scmp.ne.s32.totalorder %s89, %s90
    %p102 = scmp.eq.s32.totalorder %s17, 1
    %p103 = por %p101, %p102
    %p105 = scmp.ne.s32.totalorder %s90, %s104
    %p106 = scmp.eq.s32.totalorder %s17, 0
    %p107 = por %p105, %p106
    %s108 = ssub.s32 %s11, %s18
    %p109 = scmp.eq.s32.totalorder %s108, 0
    %s111 = sadd.s32 %s110, 1
    %s112 = scalar_select %p109, %s110, %s111
    %p115 = pneg %p109
    %p116 = scmp.eq.s32.totalorder %s11, 1
    %p117 = por %p115, %p116
    %p118 = scmp.ne.s32.totalorder %s110, %s113
    %p119 = scmp.eq.s32.totalorder %s11, 0
    %p120 = por %p118, %p119
    %p121 = scmp.ne.s32.totalorder %s110, %s113
    %p122 = scmp.eq.s32.totalorder %s16, 1
    %p123 = por %p121, %p122
    %p124 = scmp.ne.s32.totalorder %s113, %s114
    %p125 = scmp.eq.s32.totalorder %s16, 0
    %p126 = por %p124, %p125
    %p127 = scmp.ne.s32.totalorder %s113, %s114
    %p128 = scmp.eq.s32.totalorder %s17, 1
    %p129 = por %p127, %p128
    %p131 = scmp.ne.s32.totalorder %s114, %s130
    %p132 = scmp.eq.s32.totalorder %s17, 0
    %p133 = por %p131, %p132
    %s134 = ssub.s32 %s11, %s18
    %p135 = scmp.eq.s32.totalorder %s134, 0
    %s137 = sadd.s32 %s136, 1
    %s138 = scalar_select %p135, %s136, %s137
    %p141 = pneg %p135
    %p142 = scmp.eq.s32.totalorder %s11, 1
    %p143 = por %p141, %p142
    %p144 = scmp.ne.s32.totalorder %s136, %s139
    %p145 = scmp.eq.s32.totalorder %s11, 0
    %p146 = por %p144, %p145
    %p147 = scmp.ne.s32.totalorder %s136, %s139
    %p148 = scmp.eq.s32.totalorder %s16, 1
    %p149 = por %p147, %p148
    %p150 = scmp.ne.s32.totalorder %s139, %s140
    %p151 = scmp.eq.s32.totalorder %s16, 0
    %p152 = por %p150, %p151
    %p153 = scmp.ne.s32.totalorder %s139, %s140
    %p154 = scmp.eq.s32.totalorder %s17, 1
    %p155 = por %p153, %p154
    %p157 = scmp.ne.s32.totalorder %s140, %s156
    %p158 = scmp.eq.s32.totalorder %s17, 0
    %p159 = por %p157, %p158
    %p160 = scmp.le.s32.totalorder 1, %s11
    %p161 = scmp.lt.s32.totalorder %s11, 3
    %p162 = pnand %p160, %p161
    %p163 = pneg %p162
    // Predicated region
    $region9: #{stacked_edvr_forward.14} parent=5 // pred_check
      _
    $region10: #{stacked_edvr_forward.14} parent=5 // pred_check_branch
      %165 = sbr.rel (%p162) target = $region12
    $region11: #{stacked_edvr_forward.14} parent=5 // pred_region
      %s166 = ssub.s32 %s11, 1
      // Predicated region
      $region13: #{stacked_edvr_forward.14} parent=11 // pred_check
        %p167 = pneg %p58
      $region14: #{stacked_edvr_forward.14} parent=11 // pred_check_branch
        %169 = sbr.rel (%p167) target = $region16
      $region15: #{stacked_edvr_forward.14} parent=11 // pred_region
        _
      $region16: #{stacked_edvr_forward.14} parent=11 // pred_fallthru
        _
      // Predicated region
      $region17: #{stacked_edvr_forward.14} parent=11 // pred_check
        %p170 = pneg %p79
      $region18: #{stacked_edvr_forward.14} parent=11 // pred_check_branch
        %172 = sbr.rel (%p170) target = $region20
      $region19: #{stacked_edvr_forward.14} parent=11 // pred_region
        _
      $region20: #{stacked_edvr_forward.14} parent=11 // pred_fallthru
        _
      // Predicated region
      $region21: #{stacked_edvr_forward.14} parent=11 // pred_check
        %p173 = pneg %p100
      $region22: #{stacked_edvr_forward.14} parent=11 // pred_check_branch
        %175 = sbr.rel (%p173) target = $region24
      $region23: #{stacked_edvr_forward.14} parent=11 // pred_region
        _
      $region24: #{stacked_edvr_forward.14} parent=11 // pred_fallthru
        _
    $region12: #{stacked_edvr_forward.14} parent=5 // pred_fallthru
      _
    %p176 = scmp.lt.s32.totalorder %s11, 2
    // Predicated region
    $region25: #{stacked_edvr_forward.14} parent=5 // pred_check
      %p177 = pneg %p176
    $region26: #{stacked_edvr_forward.14} parent=5 // pred_check_branch
      %179 = sbr.rel (%p177) target = $region28
    $region27: #{stacked_edvr_forward.14} parent=5 // pred_region
      // Predicated region
      $region29: #{stacked_edvr_forward.14} parent=27 // pred_check
        %p180 = pneg %p31
      $region30: #{stacked_edvr_forward.14} parent=27 // pred_check_branch
        %182 = sbr.rel (%p180) target = $region32
      $region31: #{stacked_edvr_forward.14} parent=27 // pred_region
        %p183 = scmp.lt.s32.totalorder %s11, 1
        %s184 = scalar_select %p183, %s11, 1
        %s185 = smul.addr %s184, 54
        %s186 = smul.addr %s185, 8
        %s187 = scalar_lea.vmem %s0, %s186
      $region32: #{stacked_edvr_forward.14} parent=27 // pred_fallthru
        _
      // Predicated region
      $region33: #{stacked_edvr_forward.14} parent=27 // pred_check
        %p188 = pneg %p120
      $region34: #{stacked_edvr_forward.14} parent=27 // pred_check_branch
        %190 = sbr.rel (%p188) target = $region36
      $region35: #{stacked_edvr_forward.14} parent=27 // pred_region
        %p191 = scmp.lt.s32.totalorder %s11, 1
        %s192 = scalar_select %p191, %s11, 1
        %s193 = smul.addr %s192, 32
        %s194 = smul.addr %s193, 8
        %s195 = scalar_lea.vmem %s4, %s194
      $region36: #{stacked_edvr_forward.14} parent=27 // pred_fallthru
        _
    $region28: #{stacked_edvr_forward.14} parent=5 // pred_fallthru
      _
    %p196 = scmp.le.s32.totalorder 1, %s11
    %p197 = scmp.lt.s32.totalorder %s11, 3
    %p198 = pnand %p196, %p197
    %p199 = pneg %p198
    // Predicated region
    $region37: #{stacked_edvr_forward.14} parent=5 // pred_check
      _
    $region38: #{stacked_edvr_forward.14} parent=5 // pred_check_branch
      %201 = sbr.rel (%p198) target = $region40
    $region39: #{stacked_edvr_forward.14} parent=5 // pred_region
      %s202 = ssub.s32 %s11, 1
      %p203 = scmp.lt.s32.totalorder %s16, 1
      %s204 = scalar_select %p203, %s16, 1
      %s205 = smul.addr %s204, 54
      %s206 = smul.addr %s205, 8
      %s207 = scalar_lea.vmem %s0, %s206
      %p208 = pneg %p37
      %p209 = pneg %p34
      %p210 = pneg %p58
      %p211 = pneg %p55
      %p212 = pneg %p79
      %p213 = pneg %p76
      %p214 = pneg %p100
      %p215 = pneg %p97
      %p216 = scmp.lt.s32.totalorder %s16, 1
      %s217 = scalar_select %p216, %s16, 1
      %s218 = smul.addr %s217, 32
      %s219 = smul.addr %s218, 8
      %s220 = scalar_lea.vmem %s4, %s219
      %p221 = pneg %p126
      %p222 = pneg %p123
      %p223 = pneg %p152
      %p224 = pneg %p149
      %p225 = scmp.lt.s32.totalorder %s16, 1
      %s226 = scalar_select %p225, %s16, 1
      %s227 = smul.addr %s226, 32
      %s228 = smul.addr %s227, 8
      %s229 = scalar_lea.vmem %s5, %s228
      %p230 = scmp.lt.s32.totalorder %s16, 1
      %s231 = scalar_select %p230, %s16, 1
      %s232 = smul.addr %s231, 54
      %s233 = smul.addr %s232, 8
      %s234 = scalar_lea.vmem %s0, %s233
      %p235 = scmp.lt.s32.totalorder %s16, 1
      %s236 = scalar_select %p235, %s16, 1
      %s237 = smul.addr %s236, 32
      %s238 = smul.addr %s237, 8
      %s239 = scalar_lea.vmem %s4, %s238
      %p240 = scmp.lt.s32.totalorder %s16, 1
      %s241 = scalar_select %p240, %s16, 1
      %s242 = smul.addr %s241, 32
      %s243 = smul.addr %s242, 8
      %s244 = scalar_lea.vmem %s5, %s243
      %v246 = vld [vmem:[%s234] sm:$0xff]
      %v247 = vld [vmem:[%s234 + $0x8] sm:$0xff]
      %v248 = vld [vmem:[%s234 + $0x10] sm:$0x3]
      %v249 = vld [vmem:[%s234 + $0x18] sm:$0xff]
      %v250 = vld [vmem:[%s234 + $0x20] sm:$0xff]
      %v251 = vld [vmem:[%s234 + $0x28] sm:$0x3]
      %v252 = vld [vmem:[%s234 + $0x30] sm:$0xff]
      %v253 = vld [vmem:[%s234 + $0x38] sm:$0xff]
      %v254 = vld [vmem:[%s234 + $0x40] sm:$0x3]
      %v255 = vld [vmem:[%s234 + $0x48] sm:$0xff]
      %v256 = vld [vmem:[%s234 + $0x50] sm:$0xff]
      %v257 = vld [vmem:[%s234 + $0x58] sm:$0x3]
      %v258 = vld [vmem:[%s234 + $0x60] sm:$0xff]
      %v259 = vld [vmem:[%s234 + $0x68] sm:$0xff]
      %v260 = vld [vmem:[%s234 + $0x70] sm:$0x3]
      %v261 = vld [vmem:[%s234 + $0x78] sm:$0xff]
      %v262 = vld [vmem:[%s234 + $0x80] sm:$0xff]
      %v263 = vld [vmem:[%s234 + $0x88] sm:$0x3]
      %v264 = vld [vmem:[%s234 + $0x90] sm:$0xff]
      %v265 = vld [vmem:[%s234 + $0x98] sm:$0xff]
      %v266 = vld [vmem:[%s234 + $0xa0] sm:$0x3]
      %v267 = vld [vmem:[%s234 + $0xa8] sm:$0xff]
      %v268 = vld [vmem:[%s234 + $0xb0] sm:$0xff]
      %v269 = vld [vmem:[%s234 + $0xb8] sm:$0x3]
      %v270 = vld [vmem:[%s234 + $0xc0] sm:$0xff]
      %v271 = vld [vmem:[%s234 + $0xc8] sm:$0xff]
      %v272 = vld [vmem:[%s234 + $0xd0] sm:$0x3]
      %v273 = vld [vmem:[%s234 + $0xd8] sm:$0xff]
      %v274 = vld [vmem:[%s234 + $0xe0] sm:$0xff]
      %v275 = vld [vmem:[%s234 + $0xe8] sm:$0x3]
      %v276 = vld [vmem:[%s234 + $0xf0] sm:$0xff]
      %v277 = vld [vmem:[%s234 + $0xf8] sm:$0xff]
      %v278 = vld [vmem:[%s234 + $0x100] sm:$0x3]
      %v279 = vld [vmem:[%s234 + $0x108] sm:$0xff]
      %v280 = vld [vmem:[%s234 + $0x110] sm:$0xff]
      %v281 = vld [vmem:[%s234 + $0x118] sm:$0x3]
      %v282 = vld [vmem:[%s234 + $0x120] sm:$0xff]
      %v283 = vld [vmem:[%s234 + $0x128] sm:$0xff]
      %v284 = vld [vmem:[%s234 + $0x130] sm:$0x3]
      %v285 = vld [vmem:[%s234 + $0x138] sm:$0xff]
      %v286 = vld [vmem:[%s234 + $0x140] sm:$0xff]
      %v287 = vld [vmem:[%s234 + $0x148] sm:$0x3]
      %v288 = vld [vmem:[%s234 + $0x150] sm:$0xff]
      %v289 = vld [vmem:[%s234 + $0x158] sm:$0xff]
      %v290 = vld [vmem:[%s234 + $0x160] sm:$0x3]
      %v291 = vld [vmem:[%s234 + $0x168] sm:$0xff]
      %v292 = vld [vmem:[%s234 + $0x170] sm:$0xff]
      %v293 = vld [vmem:[%s234 + $0x178] sm:$0x3]
      %v294 = vld [vmem:[%s234 + $0x180] sm:$0xff]
      %v295 = vld [vmem:[%s234 + $0x188] sm:$0xff]
      %v296 = vld [vmem:[%s234 + $0x190] sm:$0x3]
      %v297 = vld [vmem:[%s234 + $0x198] sm:$0xff]
      %v298 = vld [vmem:[%s234 + $0x1a0] sm:$0xff]
      %v299 = vld [vmem:[%s234 + $0x1a8] sm:$0x3]
      %v300 = vpack.c.bf16 %v247, %v246
      %v301 = vpack.c.bf16 %v250, %v249
      %v302 = vpack.c.bf16 %v253, %v252
      %v303 = vpack.c.bf16 %v256, %v255
      %v304 = vpack.c.bf16 %v259, %v258
      %v305 = vpack.c.bf16 %v262, %v261
      %v306 = vpack.c.bf16 %v265, %v264
      %v307 = vpack.c.bf16 %v268, %v267
      %v308 = vpack.c.bf16 %v271, %v270
      %v309 = vpack.c.bf16 %v274, %v273
      %v310 = vpack.c.bf16 %v277, %v276
      %v311 = vpack.c.bf16 %v280, %v279
      %v312 = vpack.c.bf16 %v283, %v282
      %v313 = vpack.c.bf16 %v286, %v285
      %v314 = vpack.c.bf16 %v289, %v288
      %v315 = vpack.c.bf16 %v292, %v291
      %v316 = vld [vmem:[%s1] sm:$0xf]
      %v317 = vld [vmem:[%s1 + $0x4] sm:$0xf]
      %v318 = vld [vmem:[%s1 + $0x8] sm:$0xf]
      %v319 = vld [vmem:[%s1 + $0xc] sm:$0xf]
      %vm368 = vcmask 1046528
      %v369 = vrot.slane %v246, 1
      %v370 = vrot.slane %v247, 1
      %v371 = vsel %vm368, %v369, %v370
      %v372 = vrot.slane %v248, 1
      %v373 = vsel %vm368, %v370, %v372
      %v374 = vrot.slane %v249, 1
      %v375 = vrot.slane %v250, 1
      %v376 = vsel %vm368, %v374, %v375
      %v377 = vrot.slane %v251, 1
      %v378 = vsel %vm368, %v375, %v377
      %v379 = vrot.slane %v252, 1
      %v380 = vrot.slane %v253, 1
      %v381 = vsel %vm368, %v379, %v380
      %v382 = vrot.slane %v254, 1
      %v383 = vsel %vm368, %v380, %v382
      %v384 = vrot.slane %v255, 1
      %v385 = vrot.slane %v256, 1
      %v386 = vsel %vm368, %v384, %v385
      %v387 = vrot.slane %v257, 1
      %v388 = vsel %vm368, %v385, %v387
      %v389 = vrot.slane %v258, 1
      %v390 = vrot.slane %v259, 1
      %v391 = vsel %vm368, %v389, %v390
      %v392 = vrot.slane %v260, 1
      %v393 = vsel %vm368, %v390, %v392
      %v394 = vrot.slane %v261, 1
      %v395 = vrot.slane %v262, 1
      %v396 = vsel %vm368, %v394, %v395
      %v397 = vrot.slane %v263, 1
      %v398 = vsel %vm368, %v395, %v397
      %v399 = vrot.slane %v264, 1
      %v400 = vrot.slane %v265, 1
      %v401 = vsel %vm368, %v399, %v400
      %v402 = vrot.slane %v266, 1
      %v403 = vsel %vm368, %v400, %v402
      %v404 = vrot.slane %v267, 1
      %v405 = vrot.slane %v268, 1
      %v406 = vsel %vm368, %v404, %v405
      %v407 = vrot.slane %v269, 1
      %v408 = vsel %vm368, %v405, %v407
      %v409 = vrot.slane %v270, 1
      %v410 = vrot.slane %v271, 1
      %v411 = vsel %vm368, %v409, %v410
      %v412 = vrot.slane %v272, 1
      %v413 = vsel %vm368, %v410, %v412
      %v414 = vrot.slane %v273, 1
      %v415 = vrot.slane %v274, 1
      %v416 = vsel %vm368, %v414, %v415
      %v417 = vrot.slane %v275, 1
      %v418 = vsel %vm368, %v415, %v417
      %v419 = vrot.slane %v276, 1
      %v420 = vrot.slane %v277, 1
      %v421 = vsel %vm368, %v419, %v420
      %v422 = vrot.slane %v278, 1
      %v423 = vsel %vm368, %v420, %v422
      %v424 = vrot.slane %v279, 1
      %v425 = vrot.slane %v280, 1
      %v426 = vsel %vm368, %v424, %v425
      %v427 = vrot.slane %v281, 1
      %v428 = vsel %vm368, %v425, %v427
      %v429 = vrot.slane %v282, 1
      %v430 = vrot.slane %v283, 1
      %v431 = vsel %vm368, %v429, %v430
      %v432 = vrot.slane %v284, 1
      %v433 = vsel %vm368, %v430, %v432
      %v434 = vrot.slane %v285, 1
      %v435 = vrot.slane %v286, 1
      %v436 = vsel %vm368, %v434, %v435
      %v437 = vrot.slane %v287, 1
      %v438 = vsel %vm368, %v435, %v437
      %v439 = vrot.slane %v288, 1
      %v440 = vrot.slane %v289, 1
      %v441 = vsel %vm368, %v439, %v440
      %v442 = vrot.slane %v290, 1
      %v443 = vsel %vm368, %v440, %v442
      %v444 = vrot.slane %v291, 1
      %v445 = vrot.slane %v292, 1
      %v446 = vsel %vm368, %v444, %v445
      %v447 = vrot.slane %v293, 1
      %v448 = vsel %vm368, %v445, %v447
      %v481 = vpack.c.bf16 %v373, %v371
      %v482 = vpack.c.bf16 %v378, %v376
      %v483 = vpack.c.bf16 %v383, %v381
      %v484 = vpack.c.bf16 %v388, %v386
      %v485 = vpack.c.bf16 %v393, %v391
      %v486 = vpack.c.bf16 %v398, %v396
      %v487 = vpack.c.bf16 %v403, %v401
      %v488 = vpack.c.bf16 %v408, %v406
      %v489 = vpack.c.bf16 %v413, %v411
      %v490 = vpack.c.bf16 %v418, %v416
      %v491 = vpack.c.bf16 %v423, %v421
      %v492 = vpack.c.bf16 %v428, %v426
      %v493 = vpack.c.bf16 %v433, %v431
      %v494 = vpack.c.bf16 %v438, %v436
      %v495 = vpack.c.bf16 %v443, %v441
      %v496 = vpack.c.bf16 %v448, %v446
      %s497 = scalar_lea.vmem %s1, 16
      %v498 = vld [vmem:[%s497] sm:$0xf]
      %v499 = vld [vmem:[%s497 + $0x4] sm:$0xf]
      %v500 = vld [vmem:[%s497 + $0x8] sm:$0xf]
      %v501 = vld [vmem:[%s497 + $0xc] sm:$0xf]
      %v506 = vunpack.c.l.b16 %v498
      %v507 = vunpack.c.l.b16 %v499
      %v508 = vunpack.c.l.b16 %v500
      %v509 = vunpack.c.l.b16 %v501
      %v510 = vpack.c.b16 %v507, %v506
      %v511 = vpack.c.b16 %v509, %v508
      %vm514 = vcmask 261120
      %v516 = vsel %vm514, %v481, 0
      %v519 = vsel %vm514, %v482, 0
      %v522 = vsel %vm514, %v483, 0
      %v525 = vsel %vm514, %v484, 0
      %v528 = vsel %vm514, %v485, 0
      %v531 = vsel %vm514, %v486, 0
      %v534 = vsel %vm514, %v487, 0
      %v537 = vsel %vm514, %v488, 0
      %v540 = vsel %vm514, %v489, 0
      %v543 = vsel %vm514, %v490, 0
      %v546 = vsel %vm514, %v491, 0
      %v549 = vsel %vm514, %v492, 0
      %v552 = vsel %vm514, %v493, 0
      %v555 = vsel %vm514, %v494, 0
      %v558 = vsel %vm514, %v495, 0
      %v561 = vsel %vm514, %v496, 0
      %563 = vmatpush.bf16.msra.mxu0 0
      %564 = vmatpush.bf16.msra.mxu0 0
      %565 = vmatpush.bf16.msra.mxu0 0
      %566 = vmatpush.bf16.msra.mxu0 0
      %567 = vmatpush.bf16.msra.mxu0 0
      %568 = vmatpush.bf16.msra.mxu0 0
      %569 = vmatpush.bf16.msra.mxu0 %v511
      %570 = vmatpush.bf16.msra.mxu0 %v510
      %571 = vmatmul.bf16.gmra.mxu0 %v516
      %v572 = vpop.f32.mrf.mxu0
      %v573 = vadd.f32 0.0, %v572
      %v574 = vpop.f32.mrf.mxu0
      %v575 = vadd.f32 0.0, %v574
      %576 = vmatmul.bf16.gmra.mxu0 %v519
      %v577 = vpop.f32.mrf.mxu0
      %v578 = vadd.f32 0.0, %v577
      %v579 = vpop.f32.mrf.mxu0
      %v580 = vadd.f32 0.0, %v579
      %581 = vmatmul.bf16.gmra.mxu0 %v522
      %v582 = vpop.f32.mrf.mxu0
      %v583 = vadd.f32 0.0, %v582
      %v584 = vpop.f32.mrf.mxu0
      %v585 = vadd.f32 0.0, %v584
      %586 = vmatmul.bf16.gmra.mxu0 %v525
      %v587 = vpop.f32.mrf.mxu0
      %v588 = vadd.f32 0.0, %v587
      %v589 = vpop.f32.mrf.mxu0
      %v590 = vadd.f32 0.0, %v589
      %591 = vmatmul.bf16.gmra.mxu0 %v528
      %v592 = vpop.f32.mrf.mxu0
      %v593 = vadd.f32 0.0, %v592
      %v594 = vpop.f32.mrf.mxu0
      %v595 = vadd.f32 0.0, %v594
      %596 = vmatmul.bf16.gmra.mxu0 %v531
      %v597 = vpop.f32.mrf.mxu0
      %v598 = vadd.f32 0.0, %v597
      %v599 = vpop.f32.mrf.mxu0
      %v600 = vadd.f32 0.0, %v599
      %601 = vmatmul.bf16.gmra.mxu0 %v534
      %v602 = vpop.f32.mrf.mxu0
      %v603 = vadd.f32 0.0, %v602
      %v604 = vpop.f32.mrf.mxu0
      %v605 = vadd.f32 0.0, %v604
      %606 = vmatmul.bf16.gmra.mxu0 %v537
      %v607 = vpop.f32.mrf.mxu0
      %v608 = vadd.f32 0.0, %v607
      %v609 = vpop.f32.mrf.mxu0
      %v610 = vadd.f32 0.0, %v609
      %611 = vmatmul.bf16.gmra.mxu0 %v540
      %v612 = vpop.f32.mrf.mxu0
      %v613 = vadd.f32 0.0, %v612
      %v614 = vpop.f32.mrf.mxu0
      %v615 = vadd.f32 0.0, %v614
      %616 = vmatmul.bf16.gmra.mxu0 %v543
      %v617 = vpop.f32.mrf.mxu0
      %v618 = vadd.f32 0.0, %v617
      %v619 = vpop.f32.mrf.mxu0
      %v620 = vadd.f32 0.0, %v619
      %621 = vmatmul.bf16.gmra.mxu0 %v546
      %v622 = vpop.f32.mrf.mxu0
      %v623 = vadd.f32 0.0, %v622
      %v624 = vpop.f32.mrf.mxu0
      %v625 = vadd.f32 0.0, %v624
      %626 = vmatmul.bf16.gmra.mxu0 %v549
      %v627 = vpop.f32.mrf.mxu0
      %v628 = vadd.f32 0.0, %v627
      %v629 = vpop.f32.mrf.mxu0
      %v630 = vadd.f32 0.0, %v629
      %631 = vmatmul.bf16.gmra.mxu0 %v552
      %v632 = vpop.f32.mrf.mxu0
      %v633 = vadd.f32 0.0, %v632
      %v634 = vpop.f32.mrf.mxu0
      %v635 = vadd.f32 0.0, %v634
      %636 = vmatmul.bf16.gmra.mxu0 %v555
      %v637 = vpop.f32.mrf.mxu0
      %v638 = vadd.f32 0.0, %v637
      %v639 = vpop.f32.mrf.mxu0
      %v640 = vadd.f32 0.0, %v639
      %641 = vmatmul.bf16.gmra.mxu0 %v558
      %v642 = vpop.f32.mrf.mxu0
      %v643 = vadd.f32 0.0, %v642
      %v644 = vpop.f32.mrf.mxu0
      %v645 = vadd.f32 0.0, %v644
      %646 = vmatmul.bf16.gmra.mxu0 %v561
      %v647 = vpop.f32.mrf.mxu0
      %v648 = vadd.f32 0.0, %v647
      %v649 = vpop.f32.mrf.mxu0
      %v650 = vadd.f32 0.0, %v649
      %651 = vdwg.mxu0
      %v656 = vunpack.c.l.b16 %v316
      %v657 = vunpack.c.l.b16 %v317
      %v658 = vunpack.c.l.b16 %v318
      %v659 = vunpack.c.l.b16 %v319
      %v660 = vpack.c.b16 %v657, %v656
      %v661 = vpack.c.b16 %v659, %v658
      %v665 = vsel %vm514, %v300, 0
      %v668 = vsel %vm514, %v301, 0
      %v671 = vsel %vm514, %v302, 0
      %v674 = vsel %vm514, %v303, 0
      %v677 = vsel %vm514, %v304, 0
      %v680 = vsel %vm514, %v305, 0
      %v683 = vsel %vm514, %v306, 0
      %v686 = vsel %vm514, %v307, 0
      %v689 = vsel %vm514, %v308, 0
      %v692 = vsel %vm514, %v309, 0
      %v695 = vsel %vm514, %v310, 0
      %v698 = vsel %vm514, %v311, 0
      %v701 = vsel %vm514, %v312, 0
      %v704 = vsel %vm514, %v313, 0
      %v707 = vsel %vm514, %v314, 0
      %v710 = vsel %vm514, %v315, 0
      %712 = vmatpush.bf16.msra.mxu0 0
      %713 = vmatpush.bf16.msra.mxu0 0
      %714 = vmatpush.bf16.msra.mxu0 0
      %715 = vmatpush.bf16.msra.mxu0 0
      %716 = vmatpush.bf16.msra.mxu0 0
      %717 = vmatpush.bf16.msra.mxu0 0
      %718 = vmatpush.bf16.msra.mxu0 %v661
      %719 = vmatpush.bf16.msra.mxu0 %v660
      %720 = vmatmul.bf16.gmra.mxu0 %v665
      %v721 = vpop.f32.mrf.mxu0
      %v722 = vadd.f32 %v573, %v721
      %v723 = vpop.f32.mrf.mxu0
      %v724 = vadd.f32 %v575, %v723
      %725 = vmatmul.bf16.gmra.mxu0 %v668
      %v726 = vpop.f32.mrf.mxu0
      %v727 = vadd.f32 %v578, %v726
      %v728 = vpop.f32.mrf.mxu0
      %v729 = vadd.f32 %v580, %v728
      %730 = vmatmul.bf16.gmra.mxu0 %v671
      %v731 = vpop.f32.mrf.mxu0
      %v732 = vadd.f32 %v583, %v731
      %v733 = vpop.f32.mrf.mxu0
      %v734 = vadd.f32 %v585, %v733
      %735 = vmatmul.bf16.gmra.mxu0 %v674
      %v736 = vpop.f32.mrf.mxu0
      %v737 = vadd.f32 %v588, %v736
      %v738 = vpop.f32.mrf.mxu0
      %v739 = vadd.f32 %v590, %v738
      %740 = vmatmul.bf16.gmra.mxu0 %v677
      %v741 = vpop.f32.mrf.mxu0
      %v742 = vadd.f32 %v593, %v741
      %v743 = vpop.f32.mrf.mxu0
      %v744 = vadd.f32 %v595, %v743
      %745 = vmatmul.bf16.gmra.mxu0 %v680
      %v746 = vpop.f32.mrf.mxu0
      %v747 = vadd.f32 %v598, %v746
      %v748 = vpop.f32.mrf.mxu0
      %v749 = vadd.f32 %v600, %v748
      %750 = vmatmul.bf16.gmra.mxu0 %v683
      %v751 = vpop.f32.mrf.mxu0
      %v752 = vadd.f32 %v603, %v751
      %v753 = vpop.f32.mrf.mxu0
      %v754 = vadd.f32 %v605, %v753
      %755 = vmatmul.bf16.gmra.mxu0 %v686
      %v756 = vpop.f32.mrf.mxu0
      %v757 = vadd.f32 %v608, %v756
      %v758 = vpop.f32.mrf.mxu0
      %v759 = vadd.f32 %v610, %v758
      %760 = vmatmul.bf16.gmra.mxu0 %v689
      %v761 = vpop.f32.mrf.mxu0
      %v762 = vadd.f32 %v613, %v761
      %v763 = vpop.f32.mrf.mxu0
      %v764 = vadd.f32 %v615, %v763
      %765 = vmatmul.bf16.gmra.mxu0 %v692
      %v766 = vpop.f32.mrf.mxu0
      %v767 = vadd.f32 %v618, %v766
      %v768 = vpop.f32.mrf.mxu0
      %v769 = vadd.f32 %v620, %v768
      %770 = vmatmul.bf16.gmra.mxu0 %v695
      %v771 = vpop.f32.mrf.mxu0
      %v772 = vadd.f32 %v623, %v771
      %v773 = vpop.f32.mrf.mxu0
      %v774 = vadd.f32 %v625, %v773
      %775 = vmatmul.bf16.gmra.mxu0 %v698
      %v776 = vpop.f32.mrf.mxu0
      %v777 = vadd.f32 %v628, %v776
      %v778 = vpop.f32.mrf.mxu0
      %v779 = vadd.f32 %v630, %v778
      %780 = vmatmul.bf16.gmra.mxu0 %v701
      %v781 = vpop.f32.mrf.mxu0
      %v782 = vadd.f32 %v633, %v781
      %v783 = vpop.f32.mrf.mxu0
      %v784 = vadd.f32 %v635, %v783
      %785 = vmatmul.bf16.gmra.mxu0 %v704
      %v786 = vpop.f32.mrf.mxu0
      %v787 = vadd.f32 %v638, %v786
      %v788 = vpop.f32.mrf.mxu0
      %v789 = vadd.f32 %v640, %v788
      %790 = vmatmul.bf16.gmra.mxu0 %v707
      %v791 = vpop.f32.mrf.mxu0
      %v792 = vadd.f32 %v643, %v791
      %v793 = vpop.f32.mrf.mxu0
      %v794 = vadd.f32 %v645, %v793
      %795 = vmatmul.bf16.gmra.mxu0 %v710
      %v796 = vpop.f32.mrf.mxu0
      %v797 = vadd.f32 %v648, %v796
      %v798 = vpop.f32.mrf.mxu0
      %v799 = vadd.f32 %v650, %v798
      %800 = vdwg.mxu0
      %vm801 = vcmask 1045504
      %v802 = vrot.slane %v246, 2
      %v803 = vrot.slane %v247, 2
      %v804 = vsel %vm801, %v802, %v803
      %v805 = vrot.slane %v248, 2
      %v806 = vsel %vm801, %v803, %v805
      %v807 = vrot.slane %v249, 2
      %v808 = vrot.slane %v250, 2
      %v809 = vsel %vm801, %v807, %v808
      %v810 = vrot.slane %v251, 2
      %v811 = vsel %vm801, %v808, %v810
      %v812 = vrot.slane %v252, 2
      %v813 = vrot.slane %v253, 2
      %v814 = vsel %vm801, %v812, %v813
      %v815 = vrot.slane %v254, 2
      %v816 = vsel %vm801, %v813, %v815
      %v817 = vrot.slane %v255, 2
      %v818 = vrot.slane %v256, 2
      %v819 = vsel %vm801, %v817, %v818
      %v820 = vrot.slane %v257, 2
      %v821 = vsel %vm801, %v818, %v820
      %v822 = vrot.slane %v258, 2
      %v823 = vrot.slane %v259, 2
      %v824 = vsel %vm801, %v822, %v823
      %v825 = vrot.slane %v260, 2
      %v826 = vsel %vm801, %v823, %v825
      %v827 = vrot.slane %v261, 2
      %v828 = vrot.slane %v262, 2
      %v829 = vsel %vm801, %v827, %v828
      %v830 = vrot.slane %v263, 2
      %v831 = vsel %vm801, %v828, %v830
      %v832 = vrot.slane %v264, 2
      %v833 = vrot.slane %v265, 2
      %v834 = vsel %vm801, %v832, %v833
      %v835 = vrot.slane %v266, 2
      %v836 = vsel %vm801, %v833, %v835
      %v837 = vrot.slane %v267, 2
      %v838 = vrot.slane %v268, 2
      %v839 = vsel %vm801, %v837, %v838
      %v840 = vrot.slane %v269, 2
      %v841 = vsel %vm801, %v838, %v840
      %v842 = vrot.slane %v270, 2
      %v843 = vrot.slane %v271, 2
      %v844 = vsel %vm801, %v842, %v843
      %v845 = vrot.slane %v272, 2
      %v846 = vsel %vm801, %v843, %v845
      %v847 = vrot.slane %v273, 2
      %v848 = vrot.slane %v274, 2
      %v849 = vsel %vm801, %v847, %v848
      %v850 = vrot.slane %v275, 2
      %v851 = vsel %vm801, %v848, %v850
      %v852 = vrot.slane %v276, 2
      %v853 = vrot.slane %v277, 2
      %v854 = vsel %vm801, %v852, %v853
      %v855 = vrot.slane %v278, 2
      %v856 = vsel %vm801, %v853, %v855
      %v857 = vrot.slane %v279, 2
      %v858 = vrot.slane %v280, 2
      %v859 = vsel %vm801, %v857, %v858
      %v860 = vrot.slane %v281, 2
      %v861 = vsel %vm801, %v858, %v860
      %v862 = vrot.slane %v282, 2
      %v863 = vrot.slane %v283, 2
      %v864 = vsel %vm801, %v862, %v863
      %v865 = vrot.slane %v284, 2
      %v866 = vsel %vm801, %v863, %v865
      %v867 = vrot.slane %v285, 2
      %v868 = vrot.slane %v286, 2
      %v869 = vsel %vm801, %v867, %v868
      %v870 = vrot.slane %v287, 2
      %v871 = vsel %vm801, %v868, %v870
      %v872 = vrot.slane %v288, 2
      %v873 = vrot.slane %v289, 2
      %v874 = vsel %vm801, %v872, %v873
      %v875 = vrot.slane %v290, 2
      %v876 = vsel %vm801, %v873, %v875
      %v877 = vrot.slane %v291, 2
      %v878 = vrot.slane %v292, 2
      %v879 = vsel %vm801, %v877, %v878
      %v880 = vrot.slane %v293, 2
      %v881 = vsel %vm801, %v878, %v880
      %v914 = vpack.c.bf16 %v806, %v804
      %v915 = vpack.c.bf16 %v811, %v809
      %v916 = vpack.c.bf16 %v816, %v814
      %v917 = vpack.c.bf16 %v821, %v819
      %v918 = vpack.c.bf16 %v826, %v824
      %v919 = vpack.c.bf16 %v831, %v829
      %v920 = vpack.c.bf16 %v836, %v834
      %v921 = vpack.c.bf16 %v841, %v839
      %v922 = vpack.c.bf16 %v846, %v844
      %v923 = vpack.c.bf16 %v851, %v849
      %v924 = vpack.c.bf16 %v856, %v854
      %v925 = vpack.c.bf16 %v861, %v859
      %v926 = vpack.c.bf16 %v866, %v864
      %v927 = vpack.c.bf16 %v871, %v869
      %v928 = vpack.c.bf16 %v876, %v874
      %v929 = vpack.c.bf16 %v881, %v879
      %s930 = scalar_lea.vmem %s1, 32
      %v931 = vld [vmem:[%s930] sm:$0xf]
      %v932 = vld [vmem:[%s930 + $0x4] sm:$0xf]
      %v933 = vld [vmem:[%s930 + $0x8] sm:$0xf]
      %v934 = vld [vmem:[%s930 + $0xc] sm:$0xf]
      %v939 = vunpack.c.l.b16 %v931
      %v940 = vunpack.c.l.b16 %v932
      %v941 = vunpack.c.l.b16 %v933
      %v942 = vunpack.c.l.b16 %v934
      %v943 = vpack.c.b16 %v940, %v939
      %v944 = vpack.c.b16 %v942, %v941
      %v948 = vsel %vm514, %v914, 0
      %v951 = vsel %vm514, %v915, 0
      %v954 = vsel %vm514, %v916, 0
      %v957 = vsel %vm514, %v917, 0
      %v960 = vsel %vm514, %v918, 0
      %v963 = vsel %vm514, %v919, 0
      %v966 = vsel %vm514, %v920, 0
      %v969 = vsel %vm514, %v921, 0
      %v972 = vsel %vm514, %v922, 0
      %v975 = vsel %vm514, %v923, 0
      %v978 = vsel %vm514, %v924, 0
      %v981 = vsel %vm514, %v925, 0
      %v984 = vsel %vm514, %v926, 0
      %v987 = vsel %vm514, %v927, 0
      %v990 = vsel %vm514, %v928, 0
      %v993 = vsel %vm514, %v929, 0
      %995 = vmatpush.bf16.msra.mxu0 0
      %996 = vmatpush.bf16.msra.mxu0 0
      %997 = vmatpush.bf16.msra.mxu0 0
      %998 = vmatpush.bf16.msra.mxu0 0
      %999 = vmatpush.bf16.msra.mxu0 0
      %1000 = vmatpush.bf16.msra.mxu0 0
      %1001 = vmatpush.bf16.msra.mxu0 %v944
      %1002 = vmatpush.bf16.msra.mxu0 %v943
      %1003 = vmatmul.bf16.gmra.mxu0 %v948
      %v1004 = vpop.f32.mrf.mxu0
      %v1005 = vadd.f32 0.0, %v1004
      %v1006 = vpop.f32.mrf.mxu0
      %v1007 = vadd.f32 0.0, %v1006
      %1008 = vmatmul.bf16.gmra.mxu0 %v951
      %v1009 = vpop.f32.mrf.mxu0
      %v1010 = vadd.f32 0.0, %v1009
      %v1011 = vpop.f32.mrf.mxu0
      %v1012 = vadd.f32 0.0, %v1011
      %1013 = vmatmul.bf16.gmra.mxu0 %v954
      %v1014 = vpop.f32.mrf.mxu0
      %v1015 = vadd.f32 0.0, %v1014
      %v1016 = vpop.f32.mrf.mxu0
      %v1017 = vadd.f32 0.0, %v1016
      %1018 = vmatmul.bf16.gmra.mxu0 %v957
      %v1019 = vpop.f32.mrf.mxu0
      %v1020 = vadd.f32 0.0, %v1019
      %v1021 = vpop.f32.mrf.mxu0
      %v1022 = vadd.f32 0.0, %v1021
      %1023 = vmatmul.bf16.gmra.mxu0 %v960
      %v1024 = vpop.f32.mrf.mxu0
      %v1025 = vadd.f32 0.0, %v1024
      %v1026 = vpop.f32.mrf.mxu0
      %v1027 = vadd.f32 0.0, %v1026
      %1028 = vmatmul.bf16.gmra.mxu0 %v963
      %v1029 = vpop.f32.mrf.mxu0
      %v1030 = vadd.f32 0.0, %v1029
      %v1031 = vpop.f32.mrf.mxu0
      %v1032 = vadd.f32 0.0, %v1031
      %1033 = vmatmul.bf16.gmra.mxu0 %v966
      %v1034 = vpop.f32.mrf.mxu0
      %v1035 = vadd.f32 0.0, %v1034
      %v1036 = vpop.f32.mrf.mxu0
      %v1037 = vadd.f32 0.0, %v1036
      %1038 = vmatmul.bf16.gmra.mxu0 %v969
      %v1039 = vpop.f32.mrf.mxu0
      %v1040 = vadd.f32 0.0, %v1039
      %v1041 = vpop.f32.mrf.mxu0
      %v1042 = vadd.f32 0.0, %v1041
      %1043 = vmatmul.bf16.gmra.mxu0 %v972
      %v1044 = vpop.f32.mrf.mxu0
      %v1045 = vadd.f32 0.0, %v1044
      %v1046 = vpop.f32.mrf.mxu0
      %v1047 = vadd.f32 0.0, %v1046
      %1048 = vmatmul.bf16.gmra.mxu0 %v975
      %v1049 = vpop.f32.mrf.mxu0
      %v1050 = vadd.f32 0.0, %v1049
      %v1051 = vpop.f32.mrf.mxu0
      %v1052 = vadd.f32 0.0, %v1051
      %1053 = vmatmul.bf16.gmra.mxu0 %v978
      %v1054 = vpop.f32.mrf.mxu0
      %v1055 = vadd.f32 0.0, %v1054
      %v1056 = vpop.f32.mrf.mxu0
      %v1057 = vadd.f32 0.0, %v1056
      %1058 = vmatmul.bf16.gmra.mxu0 %v981
      %v1059 = vpop.f32.mrf.mxu0
      %v1060 = vadd.f32 0.0, %v1059
      %v1061 = vpop.f32.mrf.mxu0
      %v1062 = vadd.f32 0.0, %v1061
      %1063 = vmatmul.bf16.gmra.mxu0 %v984
      %v1064 = vpop.f32.mrf.mxu0
      %v1065 = vadd.f32 0.0, %v1064
      %v1066 = vpop.f32.mrf.mxu0
      %v1067 = vadd.f32 0.0, %v1066
      %1068 = vmatmul.bf16.gmra.mxu0 %v987
      %v1069 = vpop.f32.mrf.mxu0
      %v1070 = vadd.f32 0.0, %v1069
      %v1071 = vpop.f32.mrf.mxu0
      %v1072 = vadd.f32 0.0, %v1071
      %1073 = vmatmul.bf16.gmra.mxu0 %v990
      %v1074 = vpop.f32.mrf.mxu0
      %v1075 = vadd.f32 0.0, %v1074
      %v1076 = vpop.f32.mrf.mxu0
      %v1077 = vadd.f32 0.0, %v1076
      %1078 = vmatmul.bf16.gmra.mxu0 %v993
      %v1079 = vpop.f32.mrf.mxu0
      %v1080 = vadd.f32 0.0, %v1079
      %v1081 = vpop.f32.mrf.mxu0
      %v1082 = vadd.f32 0.0, %v1081
      %1083 = vdwg.mxu0
      %v1084 = vadd.f32 %v722, %v1005
      %v1085 = vadd.f32 %v724, %v1007
      %v1086 = vadd.f32 %v727, %v1010
      %v1087 = vadd.f32 %v729, %v1012
      %v1088 = vadd.f32 %v732, %v1015
      %v1089 = vadd.f32 %v734, %v1017
      %v1090 = vadd.f32 %v737, %v1020
      %v1091 = vadd.f32 %v739, %v1022
      %v1092 = vadd.f32 %v742, %v1025
      %v1093 = vadd.f32 %v744, %v1027
      %v1094 = vadd.f32 %v747, %v1030
      %v1095 = vadd.f32 %v749, %v1032
      %v1096 = vadd.f32 %v752, %v1035
      %v1097 = vadd.f32 %v754, %v1037
      %v1098 = vadd.f32 %v757, %v1040
      %v1099 = vadd.f32 %v759, %v1042
      %v1100 = vadd.f32 %v762, %v1045
      %v1101 = vadd.f32 %v764, %v1047
      %v1102 = vadd.f32 %v767, %v1050
      %v1103 = vadd.f32 %v769, %v1052
      %v1104 = vadd.f32 %v772, %v1055
      %v1105 = vadd.f32 %v774, %v1057
      %v1106 = vadd.f32 %v777, %v1060
      %v1107 = vadd.f32 %v779, %v1062
      %v1108 = vadd.f32 %v782, %v1065
      %v1109 = vadd.f32 %v784, %v1067
      %v1110 = vadd.f32 %v787, %v1070
      %v1111 = vadd.f32 %v789, %v1072
      %v1112 = vadd.f32 %v792, %v1075
      %v1113 = vadd.f32 %v794, %v1077
      %v1114 = vadd.f32 %v797, %v1080
      %v1115 = vadd.f32 %v799, %v1082
      %v1116 = vpack.c.bf16 %v295, %v294
      %s1117 = scalar_lea.vmem %s1, 48
      %v1118 = vld [vmem:[%s1117] sm:$0xf]
      %v1119 = vld [vmem:[%s1117 + $0x4] sm:$0xf]
      %v1120 = vld [vmem:[%s1117 + $0x8] sm:$0xf]
      %v1121 = vld [vmem:[%s1117 + $0xc] sm:$0xf]
      %v1126 = vunpack.c.l.b16 %v1118
      %v1127 = vunpack.c.l.b16 %v1119
      %v1128 = vunpack.c.l.b16 %v1120
      %v1129 = vunpack.c.l.b16 %v1121
      %v1130 = vpack.c.b16 %v1127, %v1126
      %v1131 = vpack.c.b16 %v1129, %v1128
      %v1135 = vsel %vm514, %v1116, 0
      %1137 = vmatpush.bf16.msra.mxu0 0
      %1138 = vmatpush.bf16.msra.mxu0 0
      %1139 = vmatpush.bf16.msra.mxu0 0
      %1140 = vmatpush.bf16.msra.mxu0 0
      %1141 = vmatpush.bf16.msra.mxu0 0
      %1142 = vmatpush.bf16.msra.mxu0 0
      %1143 = vmatpush.bf16.msra.mxu0 %v1131
      %1144 = vmatpush.bf16.msra.mxu0 %v1130
      %1145 = vmatmul.bf16.gmra.mxu0 %v668
      %v1146 = vpop.f32.mrf.mxu0
      %v1147 = vadd.f32 0.0, %v1146
      %v1148 = vpop.f32.mrf.mxu0
      %v1149 = vadd.f32 0.0, %v1148
      %1150 = vmatmul.bf16.gmra.mxu0 %v671
      %v1151 = vpop.f32.mrf.mxu0
      %v1152 = vadd.f32 0.0, %v1151
      %v1153 = vpop.f32.mrf.mxu0
      %v1154 = vadd.f32 0.0, %v1153
      %1155 = vmatmul.bf16.gmra.mxu0 %v674
      %v1156 = vpop.f32.mrf.mxu0
      %v1157 = vadd.f32 0.0, %v1156
      %v1158 = vpop.f32.mrf.mxu0
      %v1159 = vadd.f32 0.0, %v1158
      %1160 = vmatmul.bf16.gmra.mxu0 %v677
      %v1161 = vpop.f32.mrf.mxu0
      %v1162 = vadd.f32 0.0, %v1161
      %v1163 = vpop.f32.mrf.mxu0
      %v1164 = vadd.f32 0.0, %v1163
      %1165 = vmatmul.bf16.gmra.mxu0 %v680
      %v1166 = vpop.f32.mrf.mxu0
      %v1167 = vadd.f32 0.0, %v1166
      %v1168 = vpop.f32.mrf.mxu0
      %v1169 = vadd.f32 0.0, %v1168
      %1170 = vmatmul.bf16.gmra.mxu0 %v683
      %v1171 = vpop.f32.mrf.mxu0
      %v1172 = vadd.f32 0.0, %v1171
      %v1173 = vpop.f32.mrf.mxu0
      %v1174 = vadd.f32 0.0, %v1173
      %1175 = vmatmul.bf16.gmra.mxu0 %v686
      %v1176 = vpop.f32.mrf.mxu0
      %v1177 = vadd.f32 0.0, %v1176
      %v1178 = vpop.f32.mrf.mxu0
      %v1179 = vadd.f32 0.0, %v1178
      %1180 = vmatmul.bf16.gmra.mxu0 %v689
      %v1181 = vpop.f32.mrf.mxu0
      %v1182 = vadd.f32 0.0, %v1181
      %v1183 = vpop.f32.mrf.mxu0
      %v1184 = vadd.f32 0.0, %v1183
      %1185 = vmatmul.bf16.gmra.mxu0 %v692
      %v1186 = vpop.f32.mrf.mxu0
      %v1187 = vadd.f32 0.0, %v1186
      %v1188 = vpop.f32.mrf.mxu0
      %v1189 = vadd.f32 0.0, %v1188
      %1190 = vmatmul.bf16.gmra.mxu0 %v695
      %v1191 = vpop.f32.mrf.mxu0
      %v1192 = vadd.f32 0.0, %v1191
      %v1193 = vpop.f32.mrf.mxu0
      %v1194 = vadd.f32 0.0, %v1193
      %1195 = vmatmul.bf16.gmra.mxu0 %v698
      %v1196 = vpop.f32.mrf.mxu0
      %v1197 = vadd.f32 0.0, %v1196
      %v1198 = vpop.f32.mrf.mxu0
      %v1199 = vadd.f32 0.0, %v1198
      %1200 = vmatmul.bf16.gmra.mxu0 %v701
      %v1201 = vpop.f32.mrf.mxu0
      %v1202 = vadd.f32 0.0, %v1201
      %v1203 = vpop.f32.mrf.mxu0
      %v1204 = vadd.f32 0.0, %v1203
      %1205 = vmatmul.bf16.gmra.mxu0 %v704
      %v1206 = vpop.f32.mrf.mxu0
      %v1207 = vadd.f32 0.0, %v1206
      %v1208 = vpop.f32.mrf.mxu0
      %v1209 = vadd.f32 0.0, %v1208
      %1210 = vmatmul.bf16.gmra.mxu0 %v707
      %v1211 = vpop.f32.mrf.mxu0
      %v1212 = vadd.f32 0.0, %v1211
      %v1213 = vpop.f32.mrf.mxu0
      %v1214 = vadd.f32 0.0, %v1213
      %1215 = vmatmul.bf16.gmra.mxu0 %v710
      %v1216 = vpop.f32.mrf.mxu0
      %v1217 = vadd.f32 0.0, %v1216
      %v1218 = vpop.f32.mrf.mxu0
      %v1219 = vadd.f32 0.0, %v1218
      %1220 = vmatmul.bf16.gmra.mxu0 %v1135
      %v1221 = vpop.f32.mrf.mxu0
      %v1222 = vadd.f32 0.0, %v1221
      %v1223 = vpop.f32.mrf.mxu0
      %v1224 = vadd.f32 0.0, %v1223
      %1225 = vdwg.mxu0
      %v1226 = vadd.f32 %v1084, %v1147
      %v1227 = vadd.f32 %v1085, %v1149
      %v1228 = vadd.f32 %v1086, %v1152
      %v1229 = vadd.f32 %v1087, %v1154
      %v1230 = vadd.f32 %v1088, %v1157
      %v1231 = vadd.f32 %v1089, %v1159
      %v1232 = vadd.f32 %v1090, %v1162
      %v1233 = vadd.f32 %v1091, %v1164
      %v1234 = vadd.f32 %v1092, %v1167
      %v1235 = vadd.f32 %v1093, %v1169
      %v1236 = vadd.f32 %v1094, %v1172
      %v1237 = vadd.f32 %v1095, %v1174
      %v1238 = vadd.f32 %v1096, %v1177
      %v1239 = vadd.f32 %v1097, %v1179
      %v1240 = vadd.f32 %v1098, %v1182
      %v1241 = vadd.f32 %v1099, %v1184
      %v1242 = vadd.f32 %v1100, %v1187
      %v1243 = vadd.f32 %v1101, %v1189
      %v1244 = vadd.f32 %v1102, %v1192
      %v1245 = vadd.f32 %v1103, %v1194
      %v1246 = vadd.f32 %v1104, %v1197
      %v1247 = vadd.f32 %v1105, %v1199
      %v1248 = vadd.f32 %v1106, %v1202
      %v1249 = vadd.f32 %v1107, %v1204
      %v1250 = vadd.f32 %v1108, %v1207
      %v1251 = vadd.f32 %v1109, %v1209
      %v1252 = vadd.f32 %v1110, %v1212
      %v1253 = vadd.f32 %v1111, %v1214
      %v1254 = vadd.f32 %v1112, %v1217
      %v1255 = vadd.f32 %v1113, %v1219
      %v1256 = vadd.f32 %v1114, %v1222
      %v1257 = vadd.f32 %v1115, %v1224
      %v1261 = vrot.slane %v294, 1
      %v1262 = vrot.slane %v295, 1
      %v1263 = vsel %vm368, %v1261, %v1262
      %v1264 = vrot.slane %v296, 1
      %v1265 = vsel %vm368, %v1262, %v1264
      %v1268 = vpack.c.bf16 %v1265, %v1263
      %s1269 = scalar_lea.vmem %s1, 64
      %v1270 = vld [vmem:[%s1269] sm:$0xf]
      %v1271 = vld [vmem:[%s1269 + $0x4] sm:$0xf]
      %v1272 = vld [vmem:[%s1269 + $0x8] sm:$0xf]
      %v1273 = vld [vmem:[%s1269 + $0xc] sm:$0xf]
      %v1278 = vunpack.c.l.b16 %v1270
      %v1279 = vunpack.c.l.b16 %v1271
      %v1280 = vunpack.c.l.b16 %v1272
      %v1281 = vunpack.c.l.b16 %v1273
      %v1282 = vpack.c.b16 %v1279, %v1278
      %v1283 = vpack.c.b16 %v1281, %v1280
      %v1287 = vsel %vm514, %v1268, 0
      %1289 = vmatpush.bf16.msra.mxu0 0
      %1290 = vmatpush.bf16.msra.mxu0 0
      %1291 = vmatpush.bf16.msra.mxu0 0
      %1292 = vmatpush.bf16.msra.mxu0 0
      %1293 = vmatpush.bf16.msra.mxu0 0
      %1294 = vmatpush.bf16.msra.mxu0 0
      %1295 = vmatpush.bf16.msra.mxu0 %v1283
      %1296 = vmatpush.bf16.msra.mxu0 %v1282
      %1297 = vmatmul.bf16.gmra.mxu0 %v519
      %v1298 = vpop.f32.mrf.mxu0
      %v1299 = vadd.f32 0.0, %v1298
      %v1300 = vpop.f32.mrf.mxu0
      %v1301 = vadd.f32 0.0, %v1300
      %1302 = vmatmul.bf16.gmra.mxu0 %v522
      %v1303 = vpop.f32.mrf.mxu0
      %v1304 = vadd.f32 0.0, %v1303
      %v1305 = vpop.f32.mrf.mxu0
      %v1306 = vadd.f32 0.0, %v1305
      %1307 = vmatmul.bf16.gmra.mxu0 %v525
      %v1308 = vpop.f32.mrf.mxu0
      %v1309 = vadd.f32 0.0, %v1308
      %v1310 = vpop.f32.mrf.mxu0
      %v1311 = vadd.f32 0.0, %v1310
      %1312 = vmatmul.bf16.gmra.mxu0 %v528
      %v1313 = vpop.f32.mrf.mxu0
      %v1314 = vadd.f32 0.0, %v1313
      %v1315 = vpop.f32.mrf.mxu0
      %v1316 = vadd.f32 0.0, %v1315
      %1317 = vmatmul.bf16.gmra.mxu0 %v531
      %v1318 = vpop.f32.mrf.mxu0
      %v1319 = vadd.f32 0.0, %v1318
      %v1320 = vpop.f32.mrf.mxu0
      %v1321 = vadd.f32 0.0, %v1320
      %1322 = vmatmul.bf16.gmra.mxu0 %v534
      %v1323 = vpop.f32.mrf.mxu0
      %v1324 = vadd.f32 0.0, %v1323
      %v1325 = vpop.f32.mrf.mxu0
      %v1326 = vadd.f32 0.0, %v1325
      %1327 = vmatmul.bf16.gmra.mxu0 %v537
      %v1328 = vpop.f32.mrf.mxu0
      %v1329 = vadd.f32 0.0, %v1328
      %v1330 = vpop.f32.mrf.mxu0
      %v1331 = vadd.f32 0.0, %v1330
      %1332 = vmatmul.bf16.gmra.mxu0 %v540
      %v1333 = vpop.f32.mrf.mxu0
      %v1334 = vadd.f32 0.0, %v1333
      %v1335 = vpop.f32.mrf.mxu0
      %v1336 = vadd.f32 0.0, %v1335
      %1337 = vmatmul.bf16.gmra.mxu0 %v543
      %v1338 = vpop.f32.mrf.mxu0
      %v1339 = vadd.f32 0.0, %v1338
      %v1340 = vpop.f32.mrf.mxu0
      %v1341 = vadd.f32 0.0, %v1340
      %1342 = vmatmul.bf16.gmra.mxu0 %v546
      %v1343 = vpop.f32.mrf.mxu0
      %v1344 = vadd.f32 0.0, %v1343
      %v1345 = vpop.f32.mrf.mxu0
      %v1346 = vadd.f32 0.0, %v1345
      %1347 = vmatmul.bf16.gmra.mxu0 %v549
      %v1348 = vpop.f32.mrf.mxu0
      %v1349 = vadd.f32 0.0, %v1348
      %v1350 = vpop.f32.mrf.mxu0
      %v1351 = vadd.f32 0.0, %v1350
      %1352 = vmatmul.bf16.gmra.mxu0 %v552
      %v1353 = vpop.f32.mrf.mxu0
      %v1354 = vadd.f32 0.0, %v1353
      %v1355 = vpop.f32.mrf.mxu0
      %v1356 = vadd.f32 0.0, %v1355
      %1357 = vmatmul.bf16.gmra.mxu0 %v555
      %v1358 = vpop.f32.mrf.mxu0
      %v1359 = vadd.f32 0.0, %v1358
      %v1360 = vpop.f32.mrf.mxu0
      %v1361 = vadd.f32 0.0, %v1360
      %1362 = vmatmul.bf16.gmra.mxu0 %v558
      %v1363 = vpop.f32.mrf.mxu0
      %v1364 = vadd.f32 0.0, %v1363
      %v1365 = vpop.f32.mrf.mxu0
      %v1366 = vadd.f32 0.0, %v1365
      %1367 = vmatmul.bf16.gmra.mxu0 %v561
      %v1368 = vpop.f32.mrf.mxu0
      %v1369 = vadd.f32 0.0, %v1368
      %v1370 = vpop.f32.mrf.mxu0
      %v1371 = vadd.f32 0.0, %v1370
      %1372 = vmatmul.bf16.gmra.mxu0 %v1287
      %v1373 = vpop.f32.mrf.mxu0
      %v1374 = vadd.f32 0.0, %v1373
      %v1375 = vpop.f32.mrf.mxu0
      %v1376 = vadd.f32 0.0, %v1375
      %1377 = vdwg.mxu0
      %v1378 = vadd.f32 %v1226, %v1299
      %v1379 = vadd.f32 %v1227, %v1301
      %v1380 = vadd.f32 %v1228, %v1304
      %v1381 = vadd.f32 %v1229, %v1306
      %v1382 = vadd.f32 %v1230, %v1309
      %v1383 = vadd.f32 %v1231, %v1311
      %v1384 = vadd.f32 %v1232, %v1314
      %v1385 = vadd.f32 %v1233, %v1316
      %v1386 = vadd.f32 %v1234, %v1319
      %v1387 = vadd.f32 %v1235, %v1321
      %v1388 = vadd.f32 %v1236, %v1324
      %v1389 = vadd.f32 %v1237, %v1326
      %v1390 = vadd.f32 %v1238, %v1329
      %v1391 = vadd.f32 %v1239, %v1331
      %v1392 = vadd.f32 %v1240, %v1334
      %v1393 = vadd.f32 %v1241, %v1336
      %v1394 = vadd.f32 %v1242, %v1339
      %v1395 = vadd.f32 %v1243, %v1341
      %v1396 = vadd.f32 %v1244, %v1344
      %v1397 = vadd.f32 %v1245, %v1346
      %v1398 = vadd.f32 %v1246, %v1349
      %v1399 = vadd.f32 %v1247, %v1351
      %v1400 = vadd.f32 %v1248, %v1354
      %v1401 = vadd.f32 %v1249, %v1356
      %v1402 = vadd.f32 %v1250, %v1359
      %v1403 = vadd.f32 %v1251, %v1361
      %v1404 = vadd.f32 %v1252, %v1364
      %v1405 = vadd.f32 %v1253, %v1366
      %v1406 = vadd.f32 %v1254, %v1369
      %v1407 = vadd.f32 %v1255, %v1371
      %v1408 = vadd.f32 %v1256, %v1374
      %v1409 = vadd.f32 %v1257, %v1376
      %v1410 = vrot.slane %v294, 2
      %v1411 = vrot.slane %v295, 2
      %v1412 = vsel %vm801, %v1410, %v1411
      %v1413 = vrot.slane %v296, 2
      %v1414 = vsel %vm801, %v1411, %v1413
      %v1417 = vpack.c.bf16 %v1414, %v1412
      %s1418 = scalar_lea.vmem %s1, 80
      %v1419 = vld [vmem:[%s1418] sm:$0xf]
      %v1420 = vld [vmem:[%s1418 + $0x4] sm:$0xf]
      %v1421 = vld [vmem:[%s1418 + $0x8] sm:$0xf]
      %v1422 = vld [vmem:[%s1418 + $0xc] sm:$0xf]
      %v1427 = vunpack.c.l.b16 %v1419
      %v1428 = vunpack.c.l.b16 %v1420
      %v1429 = vunpack.c.l.b16 %v1421
      %v1430 = vunpack.c.l.b16 %v1422
      %v1431 = vpack.c.b16 %v1428, %v1427
      %v1432 = vpack.c.b16 %v1430, %v1429
      %v1436 = vsel %vm514, %v1417, 0
      %1438 = vmatpush.bf16.msra.mxu0 0
      %1439 = vmatpush.bf16.msra.mxu0 0
      %1440 = vmatpush.bf16.msra.mxu0 0
      %1441 = vmatpush.bf16.msra.mxu0 0
      %1442 = vmatpush.bf16.msra.mxu0 0
      %1443 = vmatpush.bf16.msra.mxu0 0
      %1444 = vmatpush.bf16.msra.mxu0 %v1432
      %1445 = vmatpush.bf16.msra.mxu0 %v1431
      %1446 = vmatmul.bf16.gmra.mxu0 %v951
      %v1447 = vpop.f32.mrf.mxu0
      %v1448 = vadd.f32 0.0, %v1447
      %v1449 = vpop.f32.mrf.mxu0
      %v1450 = vadd.f32 0.0, %v1449
      %1451 = vmatmul.bf16.gmra.mxu0 %v954
      %v1452 = vpop.f32.mrf.mxu0
      %v1453 = vadd.f32 0.0, %v1452
      %v1454 = vpop.f32.mrf.mxu0
      %v1455 = vadd.f32 0.0, %v1454
      %1456 = vmatmul.bf16.gmra.mxu0 %v957
      %v1457 = vpop.f32.mrf.mxu0
      %v1458 = vadd.f32 0.0, %v1457
      %v1459 = vpop.f32.mrf.mxu0
      %v1460 = vadd.f32 0.0, %v1459
      %1461 = vmatmul.bf16.gmra.mxu0 %v960
      %v1462 = vpop.f32.mrf.mxu0
      %v1463 = vadd.f32 0.0, %v1462
      %v1464 = vpop.f32.mrf.mxu0
      %v1465 = vadd.f32 0.0, %v1464
      %1466 = vmatmul.bf16.gmra.mxu0 %v963
      %v1467 = vpop.f32.mrf.mxu0
      %v1468 = vadd.f32 0.0, %v1467
      %v1469 = vpop.f32.mrf.mxu0
      %v1470 = vadd.f32 0.0, %v1469
      %1471 = vmatmul.bf16.gmra.mxu0 %v966
      %v1472 = vpop.f32.mrf.mxu0
      %v1473 = vadd.f32 0.0, %v1472
      %v1474 = vpop.f32.mrf.mxu0
      %v1475 = vadd.f32 0.0, %v1474
      %1476 = vmatmul.bf16.gmra.mxu0 %v969
      %v1477 = vpop.f32.mrf.mxu0
      %v1478 = vadd.f32 0.0, %v1477
      %v1479 = vpop.f32.mrf.mxu0
      %v1480 = vadd.f32 0.0, %v1479
      %1481 = vmatmul.bf16.gmra.mxu0 %v972
      %v1482 = vpop.f32.mrf.mxu0
      %v1483 = vadd.f32 0.0, %v1482
      %v1484 = vpop.f32.mrf.mxu0
      %v1485 = vadd.f32 0.0, %v1484
      %1486 = vmatmul.bf16.gmra.mxu0 %v975
      %v1487 = vpop.f32.mrf.mxu0
      %v1488 = vadd.f32 0.0, %v1487
      %v1489 = vpop.f32.mrf.mxu0
      %v1490 = vadd.f32 0.0, %v1489
      %1491 = vmatmul.bf16.gmra.mxu0 %v978
      %v1492 = vpop.f32.mrf.mxu0
      %v1493 = vadd.f32 0.0, %v1492
      %v1494 = vpop.f32.mrf.mxu0
      %v1495 = vadd.f32 0.0, %v1494
      %1496 = vmatmul.bf16.gmra.mxu0 %v981
      %v1497 = vpop.f32.mrf.mxu0
      %v1498 = vadd.f32 0.0, %v1497
      %v1499 = vpop.f32.mrf.mxu0
      %v1500 = vadd.f32 0.0, %v1499
      %1501 = vmatmul.bf16.gmra.mxu0 %v984
      %v1502 = vpop.f32.mrf.mxu0
      %v1503 = vadd.f32 0.0, %v1502
      %v1504 = vpop.f32.mrf.mxu0
      %v1505 = vadd.f32 0.0, %v1504
      %1506 = vmatmul.bf16.gmra.mxu0 %v987
      %v1507 = vpop.f32.mrf.mxu0
      %v1508 = vadd.f32 0.0, %v1507
      %v1509 = vpop.f32.mrf.mxu0
      %v1510 = vadd.f32 0.0, %v1509
      %1511 = vmatmul.bf16.gmra.mxu0 %v990
      %v1512 = vpop.f32.mrf.mxu0
      %v1513 = vadd.f32 0.0, %v1512
      %v1514 = vpop.f32.mrf.mxu0
      %v1515 = vadd.f32 0.0, %v1514
      %1516 = vmatmul.bf16.gmra.mxu0 %v993
      %v1517 = vpop.f32.mrf.mxu0
      %v1518 = vadd.f32 0.0, %v1517
      %v1519 = vpop.f32.mrf.mxu0
      %v1520 = vadd.f32 0.0, %v1519
      %1521 = vmatmul.bf16.gmra.mxu0 %v1436
      %v1522 = vpop.f32.mrf.mxu0
      %v1523 = vadd.f32 0.0, %v1522
      %v1524 = vpop.f32.mrf.mxu0
      %v1525 = vadd.f32 0.0, %v1524
      %1526 = vdwg.mxu0
      %v1527 = vadd.f32 %v1378, %v1448
      %v1528 = vadd.f32 %v1379, %v1450
      %v1529 = vadd.f32 %v1380, %v1453
      %v1530 = vadd.f32 %v1381, %v1455
      %v1531 = vadd.f32 %v1382, %v1458
      %v1532 = vadd.f32 %v1383, %v1460
      %v1533 = vadd.f32 %v1384, %v1463
      %v1534 = vadd.f32 %v1385, %v1465
      %v1535 = vadd.f32 %v1386, %v1468
      %v1536 = vadd.f32 %v1387, %v1470
      %v1537 = vadd.f32 %v1388, %v1473
      %v1538 = vadd.f32 %v1389, %v1475
      %v1539 = vadd.f32 %v1390, %v1478
      %v1540 = vadd.f32 %v1391, %v1480
      %v1541 = vadd.f32 %v1392, %v1483
      %v1542 = vadd.f32 %v1393, %v1485
      %v1543 = vadd.f32 %v1394, %v1488
      %v1544 = vadd.f32 %v1395, %v1490
      %v1545 = vadd.f32 %v1396, %v1493
      %v1546 = vadd.f32 %v1397, %v1495
      %v1547 = vadd.f32 %v1398, %v1498
      %v1548 = vadd.f32 %v1399, %v1500
      %v1549 = vadd.f32 %v1400, %v1503
      %v1550 = vadd.f32 %v1401, %v1505
      %v1551 = vadd.f32 %v1402, %v1508
      %v1552 = vadd.f32 %v1403, %v1510
      %v1553 = vadd.f32 %v1404, %v1513
      %v1554 = vadd.f32 %v1405, %v1515
      %v1555 = vadd.f32 %v1406, %v1518
      %v1556 = vadd.f32 %v1407, %v1520
      %v1557 = vadd.f32 %v1408, %v1523
      %v1558 = vadd.f32 %v1409, %v1525
      %v1559 = vpack.c.bf16 %v298, %v297
      %s1560 = scalar_lea.vmem %s1, 96
      %v1561 = vld [vmem:[%s1560] sm:$0xf]
      %v1562 = vld [vmem:[%s1560 + $0x4] sm:$0xf]
      %v1563 = vld [vmem:[%s1560 + $0x8] sm:$0xf]
      %v1564 = vld [vmem:[%s1560 + $0xc] sm:$0xf]
      %v1569 = vunpack.c.l.b16 %v1561
      %v1570 = vunpack.c.l.b16 %v1562
      %v1571 = vunpack.c.l.b16 %v1563
      %v1572 = vunpack.c.l.b16 %v1564
      %v1573 = vpack.c.b16 %v1570, %v1569
      %v1574 = vpack.c.b16 %v1572, %v1571
      %v1578 = vsel %vm514, %v1559, 0
      %1580 = vmatpush.bf16.msra.mxu0 0
      %1581 = vmatpush.bf16.msra.mxu0 0
      %1582 = vmatpush.bf16.msra.mxu0 0
      %1583 = vmatpush.bf16.msra.mxu0 0
      %1584 = vmatpush.bf16.msra.mxu0 0
      %1585 = vmatpush.bf16.msra.mxu0 0
      %1586 = vmatpush.bf16.msra.mxu0 %v1574
      %1587 = vmatpush.bf16.msra.mxu0 %v1573
      %1588 = vmatmul.bf16.gmra.mxu0 %v671
      %v1589 = vpop.f32.mrf.mxu0
      %v1590 = vadd.f32 0.0, %v1589
      %v1591 = vpop.f32.mrf.mxu0
      %v1592 = vadd.f32 0.0, %v1591
      %1593 = vmatmul.bf16.gmra.mxu0 %v674
      %v1594 = vpop.f32.mrf.mxu0
      %v1595 = vadd.f32 0.0, %v1594
      %v1596 = vpop.f32.mrf.mxu0
      %v1597 = vadd.f32 0.0, %v1596
      %1598 = vmatmul.bf16.gmra.mxu0 %v677
      %v1599 = vpop.f32.mrf.mxu0
      %v1600 = vadd.f32 0.0, %v1599
      %v1601 = vpop.f32.mrf.mxu0
      %v1602 = vadd.f32 0.0, %v1601
      %1603 = vmatmul.bf16.gmra.mxu0 %v680
      %v1604 = vpop.f32.mrf.mxu0
      %v1605 = vadd.f32 0.0, %v1604
      %v1606 = vpop.f32.mrf.mxu0
      %v1607 = vadd.f32 0.0, %v1606
      %1608 = vmatmul.bf16.gmra.mxu0 %v683
      %v1609 = vpop.f32.mrf.mxu0
      %v1610 = vadd.f32 0.0, %v1609
      %v1611 = vpop.f32.mrf.mxu0
      %v1612 = vadd.f32 0.0, %v1611
      %1613 = vmatmul.bf16.gmra.mxu0 %v686
      %v1614 = vpop.f32.mrf.mxu0
      %v1615 = vadd.f32 0.0, %v1614
      %v1616 = vpop.f32.mrf.mxu0
      %v1617 = vadd.f32 0.0, %v1616
      %1618 = vmatmul.bf16.gmra.mxu0 %v689
      %v1619 = vpop.f32.mrf.mxu0
      %v1620 = vadd.f32 0.0, %v1619
      %v1621 = vpop.f32.mrf.mxu0
      %v1622 = vadd.f32 0.0, %v1621
      %1623 = vmatmul.bf16.gmra.mxu0 %v692
      %v1624 = vpop.f32.mrf.mxu0
      %v1625 = vadd.f32 0.0, %v1624
      %v1626 = vpop.f32.mrf.mxu0
      %v1627 = vadd.f32 0.0, %v1626
      %1628 = vmatmul.bf16.gmra.mxu0 %v695
      %v1629 = vpop.f32.mrf.mxu0
      %v1630 = vadd.f32 0.0, %v1629
      %v1631 = vpop.f32.mrf.mxu0
      %v1632 = vadd.f32 0.0, %v1631
      %1633 = vmatmul.bf16.gmra.mxu0 %v698
      %v1634 = vpop.f32.mrf.mxu0
      %v1635 = vadd.f32 0.0, %v1634
      %v1636 = vpop.f32.mrf.mxu0
      %v1637 = vadd.f32 0.0, %v1636
      %1638 = vmatmul.bf16.gmra.mxu0 %v701
      %v1639 = vpop.f32.mrf.mxu0
      %v1640 = vadd.f32 0.0, %v1639
      %v1641 = vpop.f32.mrf.mxu0
      %v1642 = vadd.f32 0.0, %v1641
      %1643 = vmatmul.bf16.gmra.mxu0 %v704
      %v1644 = vpop.f32.mrf.mxu0
      %v1645 = vadd.f32 0.0, %v1644
      %v1646 = vpop.f32.mrf.mxu0
      %v1647 = vadd.f32 0.0, %v1646
      %1648 = vmatmul.bf16.gmra.mxu0 %v707
      %v1649 = vpop.f32.mrf.mxu0
      %v1650 = vadd.f32 0.0, %v1649
      %v1651 = vpop.f32.mrf.mxu0
      %v1652 = vadd.f32 0.0, %v1651
      %1653 = vmatmul.bf16.gmra.mxu0 %v710
      %v1654 = vpop.f32.mrf.mxu0
      %v1655 = vadd.f32 0.0, %v1654
      %v1656 = vpop.f32.mrf.mxu0
      %v1657 = vadd.f32 0.0, %v1656
      %1658 = vmatmul.bf16.gmra.mxu0 %v1135
      %v1659 = vpop.f32.mrf.mxu0
      %v1660 = vadd.f32 0.0, %v1659
      %v1661 = vpop.f32.mrf.mxu0
      %v1662 = vadd.f32 0.0, %v1661
      %1663 = vmatmul.bf16.gmra.mxu0 %v1578
      %v1664 = vpop.f32.mrf.mxu0
      %v1665 = vadd.f32 0.0, %v1664
      %v1666 = vpop.f32.mrf.mxu0
      %v1667 = vadd.f32 0.0, %v1666
      %1668 = vdwg.mxu0
      %v1669 = vadd.f32 %v1527, %v1590
      %v1670 = vadd.f32 %v1528, %v1592
      %v1671 = vadd.f32 %v1529, %v1595
      %v1672 = vadd.f32 %v1530, %v1597
      %v1673 = vadd.f32 %v1531, %v1600
      %v1674 = vadd.f32 %v1532, %v1602
      %v1675 = vadd.f32 %v1533, %v1605
      %v1676 = vadd.f32 %v1534, %v1607
      %v1677 = vadd.f32 %v1535, %v1610
      %v1678 = vadd.f32 %v1536, %v1612
      %v1679 = vadd.f32 %v1537, %v1615
      %v1680 = vadd.f32 %v1538, %v1617
      %v1681 = vadd.f32 %v1539, %v1620
      %v1682 = vadd.f32 %v1540, %v1622
      %v1683 = vadd.f32 %v1541, %v1625
      %v1684 = vadd.f32 %v1542, %v1627
      %v1685 = vadd.f32 %v1543, %v1630
      %v1686 = vadd.f32 %v1544, %v1632
      %v1687 = vadd.f32 %v1545, %v1635
      %v1688 = vadd.f32 %v1546, %v1637
      %v1689 = vadd.f32 %v1547, %v1640
      %v1690 = vadd.f32 %v1548, %v1642
      %v1691 = vadd.f32 %v1549, %v1645
      %v1692 = vadd.f32 %v1550, %v1647
      %v1693 = vadd.f32 %v1551, %v1650
      %v1694 = vadd.f32 %v1552, %v1652
      %v1695 = vadd.f32 %v1553, %v1655
      %v1696 = vadd.f32 %v1554, %v1657
      %v1697 = vadd.f32 %v1555, %v1660
      %v1698 = vadd.f32 %v1556, %v1662
      %v1699 = vadd.f32 %v1557, %v1665
      %v1700 = vadd.f32 %v1558, %v1667
      %v1704 = vrot.slane %v297, 1
      %v1705 = vrot.slane %v298, 1
      %v1706 = vsel %vm368, %v1704, %v1705
      %v1707 = vrot.slane %v299, 1
      %v1708 = vsel %vm368, %v1705, %v1707
      %v1711 = vpack.c.bf16 %v1708, %v1706
      %s1712 = scalar_lea.vmem %s1, 112
      %v1713 = vld [vmem:[%s1712] sm:$0xf]
      %v1714 = vld [vmem:[%s1712 + $0x4] sm:$0xf]
      %v1715 = vld [vmem:[%s1712 + $0x8] sm:$0xf]
      %v1716 = vld [vmem:[%s1712 + $0xc] sm:$0xf]
      %v1721 = vunpack.c.l.b16 %v1713
      %v1722 = vunpack.c.l.b16 %v1714
      %v1723 = vunpack.c.l.b16 %v1715
      %v1724 = vunpack.c.l.b16 %v1716
      %v1725 = vpack.c.b16 %v1722, %v1721
      %v1726 = vpack.c.b16 %v1724, %v1723
      %v1730 = vsel %vm514, %v1711, 0
      %1732 = vmatpush.bf16.msra.mxu0 0
      %1733 = vmatpush.bf16.msra.mxu0 0
      %1734 = vmatpush.bf16.msra.mxu0 0
      %1735 = vmatpush.bf16.msra.mxu0 0
      %1736 = vmatpush.bf16.msra.mxu0 0
      %1737 = vmatpush.bf16.msra.mxu0 0
      %1738 = vmatpush.bf16.msra.mxu0 %v1726
      %1739 = vmatpush.bf16.msra.mxu0 %v1725
      %1740 = vmatmul.bf16.gmra.mxu0 %v522
      %v1741 = vpop.f32.mrf.mxu0
      %v1742 = vadd.f32 0.0, %v1741
      %v1743 = vpop.f32.mrf.mxu0
      %v1744 = vadd.f32 0.0, %v1743
      %1745 = vmatmul.bf16.gmra.mxu0 %v525
      %v1746 = vpop.f32.mrf.mxu0
      %v1747 = vadd.f32 0.0, %v1746
      %v1748 = vpop.f32.mrf.mxu0
      %v1749 = vadd.f32 0.0, %v1748
      %1750 = vmatmul.bf16.gmra.mxu0 %v528
      %v1751 = vpop.f32.mrf.mxu0
      %v1752 = vadd.f32 0.0, %v1751
      %v1753 = vpop.f32.mrf.mxu0
      %v1754 = vadd.f32 0.0, %v1753
      %1755 = vmatmul.bf16.gmra.mxu0 %v531
      %v1756 = vpop.f32.mrf.mxu0
      %v1757 = vadd.f32 0.0, %v1756
      %v1758 = vpop.f32.mrf.mxu0
      %v1759 = vadd.f32 0.0, %v1758
      %1760 = vmatmul.bf16.gmra.mxu0 %v534
      %v1761 = vpop.f32.mrf.mxu0
      %v1762 = vadd.f32 0.0, %v1761
      %v1763 = vpop.f32.mrf.mxu0
      %v1764 = vadd.f32 0.0, %v1763
      %1765 = vmatmul.bf16.gmra.mxu0 %v537
      %v1766 = vpop.f32.mrf.mxu0
      %v1767 = vadd.f32 0.0, %v1766
      %v1768 = vpop.f32.mrf.mxu0
      %v1769 = vadd.f32 0.0, %v1768
      %1770 = vmatmul.bf16.gmra.mxu0 %v540
      %v1771 = vpop.f32.mrf.mxu0
      %v1772 = vadd.f32 0.0, %v1771
      %v1773 = vpop.f32.mrf.mxu0
      %v1774 = vadd.f32 0.0, %v1773
      %1775 = vmatmul.bf16.gmra.mxu0 %v543
      %v1776 = vpop.f32.mrf.mxu0
      %v1777 = vadd.f32 0.0, %v1776
      %v1778 = vpop.f32.mrf.mxu0
      %v1779 = vadd.f32 0.0, %v1778
      %1780 = vmatmul.bf16.gmra.mxu0 %v546
      %v1781 = vpop.f32.mrf.mxu0
      %v1782 = vadd.f32 0.0, %v1781
      %v1783 = vpop.f32.mrf.mxu0
      %v1784 = vadd.f32 0.0, %v1783
      %1785 = vmatmul.bf16.gmra.mxu0 %v549
      %v1786 = vpop.f32.mrf.mxu0
      %v1787 = vadd.f32 0.0, %v1786
      %v1788 = vpop.f32.mrf.mxu0
      %v1789 = vadd.f32 0.0, %v1788
      %1790 = vmatmul.bf16.gmra.mxu0 %v552
      %v1791 = vpop.f32.mrf.mxu0
      %v1792 = vadd.f32 0.0, %v1791
      %v1793 = vpop.f32.mrf.mxu0
      %v1794 = vadd.f32 0.0, %v1793
      %1795 = vmatmul.bf16.gmra.mxu0 %v555
      %v1796 = vpop.f32.mrf.mxu0
      %v1797 = vadd.f32 0.0, %v1796
      %v1798 = vpop.f32.mrf.mxu0
      %v1799 = vadd.f32 0.0, %v1798
      %1800 = vmatmul.bf16.gmra.mxu0 %v558
      %v1801 = vpop.f32.mrf.mxu0
      %v1802 = vadd.f32 0.0, %v1801
      %v1803 = vpop.f32.mrf.mxu0
      %v1804 = vadd.f32 0.0, %v1803
      %1805 = vmatmul.bf16.gmra.mxu0 %v561
      %v1806 = vpop.f32.mrf.mxu0
      %v1807 = vadd.f32 0.0, %v1806
      %v1808 = vpop.f32.mrf.mxu0
      %v1809 = vadd.f32 0.0, %v1808
      %1810 = vmatmul.bf16.gmra.mxu0 %v1287
      %v1811 = vpop.f32.mrf.mxu0
      %v1812 = vadd.f32 0.0, %v1811
      %v1813 = vpop.f32.mrf.mxu0
      %v1814 = vadd.f32 0.0, %v1813
      %1815 = vmatmul.bf16.gmra.mxu0 %v1730
      %v1816 = vpop.f32.mrf.mxu0
      %v1817 = vadd.f32 0.0, %v1816
      %v1818 = vpop.f32.mrf.mxu0
      %v1819 = vadd.f32 0.0, %v1818
      %1820 = vdwg.mxu0
      %v1821 = vadd.f32 %v1669, %v1742
      %v1822 = vadd.f32 %v1670, %v1744
      %v1823 = vadd.f32 %v1671, %v1747
      %v1824 = vadd.f32 %v1672, %v1749
      %v1825 = vadd.f32 %v1673, %v1752
      %v1826 = vadd.f32 %v1674, %v1754
      %v1827 = vadd.f32 %v1675, %v1757
      %v1828 = vadd.f32 %v1676, %v1759
      %v1829 = vadd.f32 %v1677, %v1762
      %v1830 = vadd.f32 %v1678, %v1764
      %v1831 = vadd.f32 %v1679, %v1767
      %v1832 = vadd.f32 %v1680, %v1769
      %v1833 = vadd.f32 %v1681, %v1772
      %v1834 = vadd.f32 %v1682, %v1774
      %v1835 = vadd.f32 %v1683, %v1777
      %v1836 = vadd.f32 %v1684, %v1779
      %v1837 = vadd.f32 %v1685, %v1782
      %v1838 = vadd.f32 %v1686, %v1784
      %v1839 = vadd.f32 %v1687, %v1787
      %v1840 = vadd.f32 %v1688, %v1789
      %v1841 = vadd.f32 %v1689, %v1792
      %v1842 = vadd.f32 %v1690, %v1794
      %v1843 = vadd.f32 %v1691, %v1797
      %v1844 = vadd.f32 %v1692, %v1799
      %v1845 = vadd.f32 %v1693, %v1802
      %v1846 = vadd.f32 %v1694, %v1804
      %v1847 = vadd.f32 %v1695, %v1807
      %v1848 = vadd.f32 %v1696, %v1809
      %v1849 = vadd.f32 %v1697, %v1812
      %v1850 = vadd.f32 %v1698, %v1814
      %v1851 = vadd.f32 %v1699, %v1817
      %v1852 = vadd.f32 %v1700, %v1819
      %v1853 = vrot.slane %v297, 2
      %v1854 = vrot.slane %v298, 2
      %v1855 = vsel %vm801, %v1853, %v1854
      %v1856 = vrot.slane %v299, 2
      %v1857 = vsel %vm801, %v1854, %v1856
      %v1860 = vpack.c.bf16 %v1857, %v1855
      %s1861 = scalar_lea.vmem %s1, 128
      %v1862 = vld [vmem:[%s1861] sm:$0xf]
      %v1863 = vld [vmem:[%s1861 + $0x4] sm:$0xf]
      %v1864 = vld [vmem:[%s1861 + $0x8] sm:$0xf]
      %v1865 = vld [vmem:[%s1861 + $0xc] sm:$0xf]
      %v1870 = vunpack.c.l.b16 %v1862
      %v1871 = vunpack.c.l.b16 %v1863
      %v1872 = vunpack.c.l.b16 %v1864
      %v1873 = vunpack.c.l.b16 %v1865
      %v1874 = vpack.c.b16 %v1871, %v1870
      %v1875 = vpack.c.b16 %v1873, %v1872
      %v1879 = vsel %vm514, %v1860, 0
      %1881 = vmatpush.bf16.msra.mxu0 0
      %1882 = vmatpush.bf16.msra.mxu0 0
      %1883 = vmatpush.bf16.msra.mxu0 0
      %1884 = vmatpush.bf16.msra.mxu0 0
      %1885 = vmatpush.bf16.msra.mxu0 0
      %1886 = vmatpush.bf16.msra.mxu0 0
      %1887 = vmatpush.bf16.msra.mxu0 %v1875
      %1888 = vmatpush.bf16.msra.mxu0 %v1874
      %1889 = vmatmul.bf16.gmra.mxu0 %v954
      %v1890 = vpop.f32.mrf.mxu0
      %v1891 = vadd.f32 0.0, %v1890
      %v1892 = vpop.f32.mrf.mxu0
      %v1893 = vadd.f32 0.0, %v1892
      %1894 = vmatmul.bf16.gmra.mxu0 %v957
      %v1895 = vpop.f32.mrf.mxu0
      %v1896 = vadd.f32 0.0, %v1895
      %v1897 = vpop.f32.mrf.mxu0
      %v1898 = vadd.f32 0.0, %v1897
      %1899 = vmatmul.bf16.gmra.mxu0 %v960
      %v1900 = vpop.f32.mrf.mxu0
      %v1901 = vadd.f32 0.0, %v1900
      %v1902 = vpop.f32.mrf.mxu0
      %v1903 = vadd.f32 0.0, %v1902
      %1904 = vmatmul.bf16.gmra.mxu0 %v963
      %v1905 = vpop.f32.mrf.mxu0
      %v1906 = vadd.f32 0.0, %v1905
      %v1907 = vpop.f32.mrf.mxu0
      %v1908 = vadd.f32 0.0, %v1907
      %1909 = vmatmul.bf16.gmra.mxu0 %v966
      %v1910 = vpop.f32.mrf.mxu0
      %v1911 = vadd.f32 0.0, %v1910
      %v1912 = vpop.f32.mrf.mxu0
      %v1913 = vadd.f32 0.0, %v1912
      %1914 = vmatmul.bf16.gmra.mxu0 %v969
      %v1915 = vpop.f32.mrf.mxu0
      %v1916 = vadd.f32 0.0, %v1915
      %v1917 = vpop.f32.mrf.mxu0
      %v1918 = vadd.f32 0.0, %v1917
      %1919 = vmatmul.bf16.gmra.mxu0 %v972
      %v1920 = vpop.f32.mrf.mxu0
      %v1921 = vadd.f32 0.0, %v1920
      %v1922 = vpop.f32.mrf.mxu0
      %v1923 = vadd.f32 0.0, %v1922
      %1924 = vmatmul.bf16.gmra.mxu0 %v975
      %v1925 = vpop.f32.mrf.mxu0
      %v1926 = vadd.f32 0.0, %v1925
      %v1927 = vpop.f32.mrf.mxu0
      %v1928 = vadd.f32 0.0, %v1927
      %1929 = vmatmul.bf16.gmra.mxu0 %v978
      %v1930 = vpop.f32.mrf.mxu0
      %v1931 = vadd.f32 0.0, %v1930
      %v1932 = vpop.f32.mrf.mxu0
      %v1933 = vadd.f32 0.0, %v1932
      %1934 = vmatmul.bf16.gmra.mxu0 %v981
      %v1935 = vpop.f32.mrf.mxu0
      %v1936 = vadd.f32 0.0, %v1935
      %v1937 = vpop.f32.mrf.mxu0
      %v1938 = vadd.f32 0.0, %v1937
      %1939 = vmatmul.bf16.gmra.mxu0 %v984
      %v1940 = vpop.f32.mrf.mxu0
      %v1941 = vadd.f32 0.0, %v1940
      %v1942 = vpop.f32.mrf.mxu0
      %v1943 = vadd.f32 0.0, %v1942
      %1944 = vmatmul.bf16.gmra.mxu0 %v987
      %v1945 = vpop.f32.mrf.mxu0
      %v1946 = vadd.f32 0.0, %v1945
      %v1947 = vpop.f32.mrf.mxu0
      %v1948 = vadd.f32 0.0, %v1947
      %1949 = vmatmul.bf16.gmra.mxu0 %v990
      %v1950 = vpop.f32.mrf.mxu0
      %v1951 = vadd.f32 0.0, %v1950
      %v1952 = vpop.f32.mrf.mxu0
      %v1953 = vadd.f32 0.0, %v1952
      %1954 = vmatmul.bf16.gmra.mxu0 %v993
      %v1955 = vpop.f32.mrf.mxu0
      %v1956 = vadd.f32 0.0, %v1955
      %v1957 = vpop.f32.mrf.mxu0
      %v1958 = vadd.f32 0.0, %v1957
      %1959 = vmatmul.bf16.gmra.mxu0 %v1436
      %v1960 = vpop.f32.mrf.mxu0
      %v1961 = vadd.f32 0.0, %v1960
      %v1962 = vpop.f32.mrf.mxu0
      %v1963 = vadd.f32 0.0, %v1962
      %1964 = vmatmul.bf16.gmra.mxu0 %v1879
      %v1965 = vpop.f32.mrf.mxu0
      %v1966 = vadd.f32 0.0, %v1965
      %v1967 = vpop.f32.mrf.mxu0
      %v1968 = vadd.f32 0.0, %v1967
      %1969 = vdwg.mxu0
      %v1970 = vadd.f32 %v1821, %v1891
      %v1971 = vadd.f32 %v1822, %v1893
      %v1972 = vadd.f32 %v1823, %v1896
      %v1973 = vadd.f32 %v1824, %v1898
      %v1974 = vadd.f32 %v1825, %v1901
      %v1975 = vadd.f32 %v1826, %v1903
      %v1976 = vadd.f32 %v1827, %v1906
      %v1977 = vadd.f32 %v1828, %v1908
      %v1978 = vadd.f32 %v1829, %v1911
      %v1979 = vadd.f32 %v1830, %v1913
      %v1980 = vadd.f32 %v1831, %v1916
      %v1981 = vadd.f32 %v1832, %v1918
      %v1982 = vadd.f32 %v1833, %v1921
      %v1983 = vadd.f32 %v1834, %v1923
      %v1984 = vadd.f32 %v1835, %v1926
      %v1985 = vadd.f32 %v1836, %v1928
      %v1986 = vadd.f32 %v1837, %v1931
      %v1987 = vadd.f32 %v1838, %v1933
      %v1988 = vadd.f32 %v1839, %v1936
      %v1989 = vadd.f32 %v1840, %v1938
      %v1990 = vadd.f32 %v1841, %v1941
      %v1991 = vadd.f32 %v1842, %v1943
      %v1992 = vadd.f32 %v1843, %v1946
      %v1993 = vadd.f32 %v1844, %v1948
      %v1994 = vadd.f32 %v1845, %v1951
      %v1995 = vadd.f32 %v1846, %v1953
      %v1996 = vadd.f32 %v1847, %v1956
      %v1997 = vadd.f32 %v1848, %v1958
      %v1998 = vadd.f32 %v1849, %v1961
      %v1999 = vadd.f32 %v1850, %v1963
      %v2000 = vadd.f32 %v1851, %v1966
      %v2001 = vadd.f32 %v1852, %v1968
      %v2002 = vld [vmem:[%s2] sm:$0x1]
      %v2004 = vperm.slane %v2002, 0
      %v2006 = vadd.f32 %v1970, %v2004
      %v2007 = vadd.f32 %v1971, %v2004
      %v2008 = vadd.f32 %v1972, %v2004
      %v2009 = vadd.f32 %v1973, %v2004
      %v2010 = vadd.f32 %v1974, %v2004
      %v2011 = vadd.f32 %v1975, %v2004
      %v2012 = vadd.f32 %v1976, %v2004
      %v2013 = vadd.f32 %v1977, %v2004
      %v2014 = vadd.f32 %v1978, %v2004
      %v2015 = vadd.f32 %v1979, %v2004
      %v2016 = vadd.f32 %v1980, %v2004
      %v2017 = vadd.f32 %v1981, %v2004
      %v2018 = vadd.f32 %v1982, %v2004
      %v2019 = vadd.f32 %v1983, %v2004
      %v2020 = vadd.f32 %v1984, %v2004
      %v2021 = vadd.f32 %v1985, %v2004
      %v2022 = vadd.f32 %v1986, %v2004
      %v2023 = vadd.f32 %v1987, %v2004
      %v2024 = vadd.f32 %v1988, %v2004
      %v2025 = vadd.f32 %v1989, %v2004
      %v2026 = vadd.f32 %v1990, %v2004
      %v2027 = vadd.f32 %v1991, %v2004
      %v2028 = vadd.f32 %v1992, %v2004
      %v2029 = vadd.f32 %v1993, %v2004
      %v2030 = vadd.f32 %v1994, %v2004
      %v2031 = vadd.f32 %v1995, %v2004
      %v2032 = vadd.f32 %v1996, %v2004
      %v2033 = vadd.f32 %v1997, %v2004
      %v2034 = vadd.f32 %v1998, %v2004
      %v2035 = vadd.f32 %v1999, %v2004
      %v2036 = vadd.f32 %v2000, %v2004
      %v2037 = vadd.f32 %v2001, %v2004
      %vm2038 = vcmp.ge.f32.partialorder %v2006, 0.0
      %vm2039 = vcmp.ge.f32.partialorder %v2007, 0.0
      %vm2040 = vcmp.ge.f32.partialorder %v2008, 0.0
      %vm2041 = vcmp.ge.f32.partialorder %v2009, 0.0
      %vm2042 = vcmp.ge.f32.partialorder %v2010, 0.0
      %vm2043 = vcmp.ge.f32.partialorder %v2011, 0.0
      %vm2044 = vcmp.ge.f32.partialorder %v2012, 0.0
      %vm2045 = vcmp.ge.f32.partialorder %v2013, 0.0
      %vm2046 = vcmp.ge.f32.partialorder %v2014, 0.0
      %vm2047 = vcmp.ge.f32.partialorder %v2015, 0.0
      %vm2048 = vcmp.ge.f32.partialorder %v2016, 0.0
      %vm2049 = vcmp.ge.f32.partialorder %v2017, 0.0
      %vm2050 = vcmp.ge.f32.partialorder %v2018, 0.0
      %vm2051 = vcmp.ge.f32.partialorder %v2019, 0.0
      %vm2052 = vcmp.ge.f32.partialorder %v2020, 0.0
      %vm2053 = vcmp.ge.f32.partialorder %v2021, 0.0
      %vm2054 = vcmp.ge.f32.partialorder %v2022, 0.0
      %vm2055 = vcmp.ge.f32.partialorder %v2023, 0.0
      %vm2056 = vcmp.ge.f32.partialorder %v2024, 0.0
      %vm2057 = vcmp.ge.f32.partialorder %v2025, 0.0
      %vm2058 = vcmp.ge.f32.partialorder %v2026, 0.0
      %vm2059 = vcmp.ge.f32.partialorder %v2027, 0.0
      %vm2060 = vcmp.ge.f32.partialorder %v2028, 0.0
      %vm2061 = vcmp.ge.f32.partialorder %v2029, 0.0
      %vm2062 = vcmp.ge.f32.partialorder %v2030, 0.0
      %vm2063 = vcmp.ge.f32.partialorder %v2031, 0.0
      %vm2064 = vcmp.ge.f32.partialorder %v2032, 0.0
      %vm2065 = vcmp.ge.f32.partialorder %v2033, 0.0
      %vm2066 = vcmp.ge.f32.partialorder %v2034, 0.0
      %vm2067 = vcmp.ge.f32.partialorder %v2035, 0.0
      %vm2068 = vcmp.ge.f32.partialorder %v2036, 0.0
      %vm2069 = vcmp.ge.f32.partialorder %v2037, 0.0
      %v2070 = vld [vmem:[%s3] sm:$0x1]
      %v2072 = vperm.slane %v2070, 0
      %v2074 = vmul.f32 %v2072, %v2006
      %v2075 = vmul.f32 %v2072, %v2007
      %v2076 = vmul.f32 %v2072, %v2008
      %v2077 = vmul.f32 %v2072, %v2009
      %v2078 = vmul.f32 %v2072, %v2010
      %v2079 = vmul.f32 %v2072, %v2011
      %v2080 = vmul.f32 %v2072, %v2012
      %v2081 = vmul.f32 %v2072, %v2013
      %v2082 = vmul.f32 %v2072, %v2014
      %v2083 = vmul.f32 %v2072, %v2015
      %v2084 = vmul.f32 %v2072, %v2016
      %v2085 = vmul.f32 %v2072, %v2017
      %v2086 = vmul.f32 %v2072, %v2018
      %v2087 = vmul.f32 %v2072, %v2019
      %v2088 = vmul.f32 %v2072, %v2020
      %v2089 = vmul.f32 %v2072, %v2021
      %v2090 = vmul.f32 %v2072, %v2022
      %v2091 = vmul.f32 %v2072, %v2023
      %v2092 = vmul.f32 %v2072, %v2024
      %v2093 = vmul.f32 %v2072, %v2025
      %v2094 = vmul.f32 %v2072, %v2026
      %v2095 = vmul.f32 %v2072, %v2027
      %v2096 = vmul.f32 %v2072, %v2028
      %v2097 = vmul.f32 %v2072, %v2029
      %v2098 = vmul.f32 %v2072, %v2030
      %v2099 = vmul.f32 %v2072, %v2031
      %v2100 = vmul.f32 %v2072, %v2032
      %v2101 = vmul.f32 %v2072, %v2033
      %v2102 = vmul.f32 %v2072, %v2034
      %v2103 = vmul.f32 %v2072, %v2035
      %v2104 = vmul.f32 %v2072, %v2036
      %v2105 = vmul.f32 %v2072, %v2037
      %v2106 = vsel %vm2038, %v2006, %v2074
      %v2107 = vsel %vm2039, %v2007, %v2075
      %v2108 = vsel %vm2040, %v2008, %v2076
      %v2109 = vsel %vm2041, %v2009, %v2077
      %v2110 = vsel %vm2042, %v2010, %v2078
      %v2111 = vsel %vm2043, %v2011, %v2079
      %v2112 = vsel %vm2044, %v2012, %v2080
      %v2113 = vsel %vm2045, %v2013, %v2081
      %v2114 = vsel %vm2046, %v2014, %v2082
      %v2115 = vsel %vm2047, %v2015, %v2083
      %v2116 = vsel %vm2048, %v2016, %v2084
      %v2117 = vsel %vm2049, %v2017, %v2085
      %v2118 = vsel %vm2050, %v2018, %v2086
      %v2119 = vsel %vm2051, %v2019, %v2087
      %v2120 = vsel %vm2052, %v2020, %v2088
      %v2121 = vsel %vm2053, %v2021, %v2089
      %v2122 = vsel %vm2054, %v2022, %v2090
      %v2123 = vsel %vm2055, %v2023, %v2091
      %v2124 = vsel %vm2056, %v2024, %v2092
      %v2125 = vsel %vm2057, %v2025, %v2093
      %v2126 = vsel %vm2058, %v2026, %v2094
      %v2127 = vsel %vm2059, %v2027, %v2095
      %v2128 = vsel %vm2060, %v2028, %v2096
      %v2129 = vsel %vm2061, %v2029, %v2097
      %v2130 = vsel %vm2062, %v2030, %v2098
      %v2131 = vsel %vm2063, %v2031, %v2099
      %v2132 = vsel %vm2064, %v2032, %v2100
      %v2133 = vsel %vm2065, %v2033, %v2101
      %v2134 = vsel %vm2066, %v2034, %v2102
      %v2135 = vsel %vm2067, %v2035, %v2103
      %v2136 = vsel %vm2068, %v2036, %v2104
      %v2137 = vsel %vm2069, %v2037, %v2105
      %v2138 = vld [vmem:[%s239] sm:$0xff]
      %v2139 = vld [vmem:[%s239 + $0x8] sm:$0xff]
      %v2140 = vld [vmem:[%s239 + $0x10] sm:$0xff]
      %v2141 = vld [vmem:[%s239 + $0x18] sm:$0xff]
      %v2142 = vld [vmem:[%s239 + $0x20] sm:$0xff]
      %v2143 = vld [vmem:[%s239 + $0x28] sm:$0xff]
      %v2144 = vld [vmem:[%s239 + $0x30] sm:$0xff]
      %v2145 = vld [vmem:[%s239 + $0x38] sm:$0xff]
      %v2146 = vld [vmem:[%s239 + $0x40] sm:$0xff]
      %v2147 = vld [vmem:[%s239 + $0x48] sm:$0xff]
      %v2148 = vld [vmem:[%s239 + $0x50] sm:$0xff]
      %v2149 = vld [vmem:[%s239 + $0x58] sm:$0xff]
      %v2150 = vld [vmem:[%s239 + $0x60] sm:$0xff]
      %v2151 = vld [vmem:[%s239 + $0x68] sm:$0xff]
      %v2152 = vld [vmem:[%s239 + $0x70] sm:$0xff]
      %v2153 = vld [vmem:[%s239 + $0x78] sm:$0xff]
      %v2154 = vld [vmem:[%s239 + $0x80] sm:$0xff]
      %v2155 = vld [vmem:[%s239 + $0x88] sm:$0xff]
      %v2156 = vld [vmem:[%s239 + $0x90] sm:$0xff]
      %v2157 = vld [vmem:[%s239 + $0x98] sm:$0xff]
      %v2158 = vld [vmem:[%s239 + $0xa0] sm:$0xff]
      %v2159 = vld [vmem:[%s239 + $0xa8] sm:$0xff]
      %v2160 = vld [vmem:[%s239 + $0xb0] sm:$0xff]
      %v2161 = vld [vmem:[%s239 + $0xb8] sm:$0xff]
      %v2162 = vld [vmem:[%s239 + $0xc0] sm:$0xff]
      %v2163 = vld [vmem:[%s239 + $0xc8] sm:$0xff]
      %v2164 = vld [vmem:[%s239 + $0xd0] sm:$0xff]
      %v2165 = vld [vmem:[%s239 + $0xd8] sm:$0xff]
      %v2166 = vld [vmem:[%s239 + $0xe0] sm:$0xff]
      %v2167 = vld [vmem:[%s239 + $0xe8] sm:$0xff]
      %v2168 = vld [vmem:[%s239 + $0xf0] sm:$0xff]
      %v2169 = vld [vmem:[%s239 + $0xf8] sm:$0xff]
      %v2170 = vadd.f32 %v2106, %v2138
      %v2171 = vadd.f32 %v2107, %v2139
      %v2172 = vadd.f32 %v2108, %v2140
      %v2173 = vadd.f32 %v2109, %v2141
      %v2174 = vadd.f32 %v2110, %v2142
      %v2175 = vadd.f32 %v2111, %v2143
      %v2176 = vadd.f32 %v2112, %v2144
      %v2177 = vadd.f32 %v2113, %v2145
      %v2178 = vadd.f32 %v2114, %v2146
      %v2179 = vadd.f32 %v2115, %v2147
      %v2180 = vadd.f32 %v2116, %v2148
      %v2181 = vadd.f32 %v2117, %v2149
      %v2182 = vadd.f32 %v2118, %v2150
      %v2183 = vadd.f32 %v2119, %v2151
      %v2184 = vadd.f32 %v2120, %v2152
      %v2185 = vadd.f32 %v2121, %v2153
      %v2186 = vadd.f32 %v2122, %v2154
      %v2187 = vadd.f32 %v2123, %v2155
      %v2188 = vadd.f32 %v2124, %v2156
      %v2189 = vadd.f32 %v2125, %v2157
      %v2190 = vadd.f32 %v2126, %v2158
      %v2191 = vadd.f32 %v2127, %v2159
      %v2192 = vadd.f32 %v2128, %v2160
      %v2193 = vadd.f32 %v2129, %v2161
      %v2194 = vadd.f32 %v2130, %v2162
      %v2195 = vadd.f32 %v2131, %v2163
      %v2196 = vadd.f32 %v2132, %v2164
      %v2197 = vadd.f32 %v2133, %v2165
      %v2198 = vadd.f32 %v2134, %v2166
      %v2199 = vadd.f32 %v2135, %v2167
      %v2200 = vadd.f32 %v2136, %v2168
      %v2201 = vadd.f32 %v2137, %v2169
      %2202 = vst.msk [vmem:[%s244] sm:$0xff] %vm514, %v2170
      %2203 = vst.msk [vmem:[%s244 + $0x8] sm:$0xff] %vm514, %v2171
      %2204 = vst.msk [vmem:[%s244 + $0x10] sm:$0xff] %vm514, %v2172
      %2205 = vst.msk [vmem:[%s244 + $0x18] sm:$0xff] %vm514, %v2173
      %2206 = vst.msk [vmem:[%s244 + $0x20] sm:$0xff] %vm514, %v2174
      %2207 = vst.msk [vmem:[%s244 + $0x28] sm:$0xff] %vm514, %v2175
      %2208 = vst.msk [vmem:[%s244 + $0x30] sm:$0xff] %vm514, %v2176
      %2209 = vst.msk [vmem:[%s244 + $0x38] sm:$0xff] %vm514, %v2177
      %2210 = vst.msk [vmem:[%s244 + $0x40] sm:$0xff] %vm514, %v2178
      %2211 = vst.msk [vmem:[%s244 + $0x48] sm:$0xff] %vm514, %v2179
      %2212 = vst.msk [vmem:[%s244 + $0x50] sm:$0xff] %vm514, %v2180
      %2213 = vst.msk [vmem:[%s244 + $0x58] sm:$0xff] %vm514, %v2181
      %2214 = vst.msk [vmem:[%s244 + $0x60] sm:$0xff] %vm514, %v2182
      %2215 = vst.msk [vmem:[%s244 + $0x68] sm:$0xff] %vm514, %v2183
      %2216 = vst.msk [vmem:[%s244 + $0x70] sm:$0xff] %vm514, %v2184
      %2217 = vst.msk [vmem:[%s244 + $0x78] sm:$0xff] %vm514, %v2185
      %2218 = vst.msk [vmem:[%s244 + $0x80] sm:$0xff] %vm514, %v2186
      %2219 = vst.msk [vmem:[%s244 + $0x88] sm:$0xff] %vm514, %v2187
      %2220 = vst.msk [vmem:[%s244 + $0x90] sm:$0xff] %vm514, %v2188
      %2221 = vst.msk [vmem:[%s244 + $0x98] sm:$0xff] %vm514, %v2189
      %2222 = vst.msk [vmem:[%s244 + $0xa0] sm:$0xff] %vm514, %v2190
      %2223 = vst.msk [vmem:[%s244 + $0xa8] sm:$0xff] %vm514, %v2191
      %2224 = vst.msk [vmem:[%s244 + $0xb0] sm:$0xff] %vm514, %v2192
      %2225 = vst.msk [vmem:[%s244 + $0xb8] sm:$0xff] %vm514, %v2193
      %2226 = vst.msk [vmem:[%s244 + $0xc0] sm:$0xff] %vm514, %v2194
      %2227 = vst.msk [vmem:[%s244 + $0xc8] sm:$0xff] %vm514, %v2195
      %2228 = vst.msk [vmem:[%s244 + $0xd0] sm:$0xff] %vm514, %v2196
      %2229 = vst.msk [vmem:[%s244 + $0xd8] sm:$0xff] %vm514, %v2197
      %2230 = vst.msk [vmem:[%s244 + $0xe0] sm:$0xff] %vm514, %v2198
      %2231 = vst.msk [vmem:[%s244 + $0xe8] sm:$0xff] %vm514, %v2199
      %2232 = vst.msk [vmem:[%s244 + $0xf0] sm:$0xff] %vm514, %v2200
      %2233 = vst.msk [vmem:[%s244 + $0xf8] sm:$0xff] %vm514, %v2201
      %p2234 = scmp.lt.s32.totalorder %s16, 1
      %s2235 = scalar_select %p2234, %s16, 1
      %s2236 = smul.addr %s2235, 32
      %s2237 = smul.addr %s2236, 8
      %s2238 = scalar_lea.vmem %s5, %s2237
      // Predicated region
      $region41: #{stacked_edvr_forward.14} parent=39 // pred_check
        %p2239 = pneg %p149
      $region42: #{stacked_edvr_forward.14} parent=39 // pred_check_branch
        %2241 = sbr.rel (%p2239) target = $region44
      $region43: #{stacked_edvr_forward.14} parent=39 // pred_region
        _
      $region44: #{stacked_edvr_forward.14} parent=39 // pred_fallthru
        _
    $region40: #{stacked_edvr_forward.14} parent=5 // pred_fallthru
      _
    %p2242 = scmp.le.s32.totalorder 2, %s11
    // Predicated region
    $region45: #{stacked_edvr_forward.14} parent=5 // pred_check
      %p2243 = pneg %p2242
    $region46: #{stacked_edvr_forward.14} parent=5 // pred_check_branch
      %2245 = sbr.rel (%p2243) target = $region48
    $region47: #{stacked_edvr_forward.14} parent=5 // pred_region
      %s2246 = ssub.s32 %s11, 2
      // Predicated region
      $region49: #{stacked_edvr_forward.14} parent=47 // pred_check
        %p2247 = pneg %p155
      $region50: #{stacked_edvr_forward.14} parent=47 // pred_check_branch
        %2249 = sbr.rel (%p2247) target = $region52
      $region51: #{stacked_edvr_forward.14} parent=47 // pred_region
        %p2250 = scmp.lt.s32.totalorder %s17, 1
        %s2251 = scalar_select %p2250, %s17, 1
        %s2252 = smul.addr %s2251, 32
        %s2253 = smul.addr %s2252, 8
        %s2254 = scalar_lea.vmem %s5, %s2253
      $region52: #{stacked_edvr_forward.14} parent=47 // pred_fallthru
        _
    $region48: #{stacked_edvr_forward.14} parent=5 // pred_fallthru
      _
  $region6: #{stacked_edvr_forward.14} parent=0 // loop_footer
    %s15 = sadd.s32 1, %s11
  $region7: #{stacked_edvr_forward.14} parent=0 // loop_footer_branch
    %10 = sbr.rel target = $region3
  $region8: #{stacked_edvr_forward.14} parent=0 // loop_exit
    _

// kernel: stacked_edvr_forward.17
$region0: #{stacked_edvr_forward.17}
  #allocation0 [shape = 'u32[]', space=smem, size = 0x4, offset = 0x4, fixed_abs, tag = 'smem constant byte address 0x4 - core index']
  #allocation1 [shape = 'u32[72,128]{1,0:T(1,128)}', space=vmem, size = 0x9000, scoped, tag = 'internal scratch']
  %s0 = inlined_call_operand.vmem [shape: f32[8192,3], index: 0, kind: input, shape index: {}]
  %s1 = inlined_call_operand.vmem [shape: f32[8192,3], index: 1, kind: input, shape index: {}]
  %s2 = inlined_call_operand.vmem [shape: f32[8192,1], index: 2, kind: input, shape index: {}]
  %s3 = inlined_call_operand.vmem [shape: f32[1,3], index: 3, kind: input, shape index: {}]
  %s4 = inlined_call_operand.vmem [shape: f32[8192,3], index: 4, kind: output, shape index: {}]
  %s5 = sld [smem:[#allocation0]]
  $region49: #{stacked_edvr_forward.17} parent=0
    _
  %s7 = ssub.s32 1, %s5
  %s8 = scalar_select 0, %s7, %s5
  loop: start=0, step=1, limit=10
  $region2: #{stacked_edvr_forward.17} parent=0 // loop_pre_header
    _
  $region3: #{stacked_edvr_forward.17} parent=0 // loop_header
    %s10 = sphi 0, %s14
    %p11 = scmp.ge.s32.totalorder %s10, 10
    %s20 = sphi 0, %s22
    %s23 = sphi 0, %s20
    %s24 = sphi 0, %s23
    %s40 = sphi 0, %s24
    %s46 = sphi 0, %s48
    %s49 = sphi 0, %s46
    %s50 = sphi 0, %s49
    %s66 = sphi 0, %s50
    %s72 = sphi 0, %s74
    %s75 = sphi 0, %s72
    %s76 = sphi 0, %s75
    %s92 = sphi 0, %s76
    %s96 = sphi 0, %s96
    %s98 = sphi 0, %s96
    %s99 = sphi 0, %s98
    %s113 = sphi 0, %s99
    %s119 = sphi 0, %s121
    %s122 = sphi 0, %s119
    %s123 = sphi 0, %s122
    %s139 = sphi 0, %s123
  $region4: #{stacked_edvr_forward.17} parent=0 // loop_header_branch
    %13 = sbr.rel (%p11) target = $region8
  $region5: #{stacked_edvr_forward.17} parent=0 // loop_body
    %s15 = ssub.s32 %s10, 1
    %s16 = ssub.s32 %s10, 2
    %s17 = sadd.s32 %s10, 1
    %s18 = ssub.s32 %s10, %s17
    %p19 = scmp.eq.s32.totalorder %s18, 0
    %s21 = sadd.s32 %s20, 1
    %s22 = scalar_select %p19, %s20, %s21
    %p25 = pneg %p19
    %p26 = scmp.eq.s32.totalorder %s10, 7
    %p27 = por %p25, %p26
    %p28 = scmp.ne.s32.totalorder %s20, %s23
    %p29 = scmp.eq.s32.totalorder %s10, 0
    %p30 = por %p28, %p29
    %p31 = scmp.ne.s32.totalorder %s20, %s23
    %p32 = scmp.eq.s32.totalorder %s15, 7
    %p33 = por %p31, %p32
    %p34 = scmp.ne.s32.totalorder %s23, %s24
    %p35 = scmp.eq.s32.totalorder %s15, 0
    %p36 = por %p34, %p35
    %p37 = scmp.ne.s32.totalorder %s23, %s24
    %p38 = scmp.eq.s32.totalorder %s16, 7
    %p39 = por %p37, %p38
    %p41 = scmp.ne.s32.totalorder %s24, %s40
    %p42 = scmp.eq.s32.totalorder %s16, 0
    %p43 = por %p41, %p42
    %s44 = ssub.s32 %s10, %s17
    %p45 = scmp.eq.s32.totalorder %s44, 0
    %s47 = sadd.s32 %s46, 1
    %s48 = scalar_select %p45, %s46, %s47
    %p51 = pneg %p45
    %p52 = scmp.eq.s32.totalorder %s10, 7
    %p53 = por %p51, %p52
    %p54 = scmp.ne.s32.totalorder %s46, %s49
    %p55 = scmp.eq.s32.totalorder %s10, 0
    %p56 = por %p54, %p55
    %p57 = scmp.ne.s32.totalorder %s46, %s49
    %p58 = scmp.eq.s32.totalorder %s15, 7
    %p59 = por %p57, %p58
    %p60 = scmp.ne.s32.totalorder %s49, %s50
    %p61 = scmp.eq.s32.totalorder %s15, 0
    %p62 = por %p60, %p61
    %p63 = scmp.ne.s32.totalorder %s49, %s50
    %p64 = scmp.eq.s32.totalorder %s16, 7
    %p65 = por %p63, %p64
    %p67 = scmp.ne.s32.totalorder %s50, %s66
    %p68 = scmp.eq.s32.totalorder %s16, 0
    %p69 = por %p67, %p68
    %s70 = ssub.s32 %s10, %s17
    %p71 = scmp.eq.s32.totalorder %s70, 0
    %s73 = sadd.s32 %s72, 1
    %s74 = scalar_select %p71, %s72, %s73
    %p77 = pneg %p71
    %p78 = scmp.eq.s32.totalorder %s10, 7
    %p79 = por %p77, %p78
    %p80 = scmp.ne.s32.totalorder %s72, %s75
    %p81 = scmp.eq.s32.totalorder %s10, 0
    %p82 = por %p80, %p81
    %p83 = scmp.ne.s32.totalorder %s72, %s75
    %p84 = scmp.eq.s32.totalorder %s15, 7
    %p85 = por %p83, %p84
    %p86 = scmp.ne.s32.totalorder %s75, %s76
    %p87 = scmp.eq.s32.totalorder %s15, 0
    %p88 = por %p86, %p87
    %p89 = scmp.ne.s32.totalorder %s75, %s76
    %p90 = scmp.eq.s32.totalorder %s16, 7
    %p91 = por %p89, %p90
    %p93 = scmp.ne.s32.totalorder %s76, %s92
    %p94 = scmp.eq.s32.totalorder %s16, 0
    %p95 = por %p93, %p94
    %s97 = sadd.s32 %s96, 1
    %p100 = scmp.eq.s32.totalorder %s10, 7
    %p101 = scmp.ne.s32.totalorder %s96, %s98
    %p102 = scmp.eq.s32.totalorder %s10, 0
    %p103 = por %p101, %p102
    %p104 = scmp.ne.s32.totalorder %s96, %s98
    %p105 = scmp.eq.s32.totalorder %s15, 7
    %p106 = por %p104, %p105
    %p107 = scmp.ne.s32.totalorder %s98, %s99
    %p108 = scmp.eq.s32.totalorder %s15, 0
    %p109 = por %p107, %p108
    %p110 = scmp.ne.s32.totalorder %s98, %s99
    %p111 = scmp.eq.s32.totalorder %s16, 7
    %p112 = por %p110, %p111
    %p114 = scmp.ne.s32.totalorder %s99, %s113
    %p115 = scmp.eq.s32.totalorder %s16, 0
    %p116 = por %p114, %p115
    %s117 = ssub.s32 %s10, %s17
    %p118 = scmp.eq.s32.totalorder %s117, 0
    %s120 = sadd.s32 %s119, 1
    %s121 = scalar_select %p118, %s119, %s120
    %p124 = pneg %p118
    %p125 = scmp.eq.s32.totalorder %s10, 7
    %p126 = por %p124, %p125
    %p127 = scmp.ne.s32.totalorder %s119, %s122
    %p128 = scmp.eq.s32.totalorder %s10, 0
    %p129 = por %p127, %p128
    %p130 = scmp.ne.s32.totalorder %s119, %s122
    %p131 = scmp.eq.s32.totalorder %s15, 7
    %p132 = por %p130, %p131
    %p133 = scmp.ne.s32.totalorder %s122, %s123
    %p134 = scmp.eq.s32.totalorder %s15, 0
    %p135 = por %p133, %p134
    %p136 = scmp.ne.s32.totalorder %s122, %s123
    %p137 = scmp.eq.s32.totalorder %s16, 7
    %p138 = por %p136, %p137
    %p140 = scmp.ne.s32.totalorder %s123, %s139
    %p141 = scmp.eq.s32.totalorder %s16, 0
    %p142 = por %p140, %p141
    %p143 = scmp.le.s32.totalorder 1, %s10
    %p144 = scmp.lt.s32.totalorder %s10, 9
    %p145 = pnand %p143, %p144
    %p146 = pneg %p145
    // Predicated region
    $region9: #{stacked_edvr_forward.17} parent=5 // pred_check
      _
    $region10: #{stacked_edvr_forward.17} parent=5 // pred_check_branch
      %148 = sbr.rel (%p145) target = $region12
    $region11: #{stacked_edvr_forward.17} parent=5 // pred_region
      %s149 = ssub.s32 %s10, 1
      // Predicated region
      $region13: #{stacked_edvr_forward.17} parent=11 // pred_check
        %p150 = pneg %p109
      $region14: #{stacked_edvr_forward.17} parent=11 // pred_check_branch
        %152 = sbr.rel (%p150) target = $region16
      $region15: #{stacked_edvr_forward.17} parent=11 // pred_region
        _
      $region16: #{stacked_edvr_forward.17} parent=11 // pred_fallthru
        _
    $region12: #{stacked_edvr_forward.17} parent=5 // pred_fallthru
      _
    %p153 = scmp.lt.s32.totalorder %s10, 8
    // Predicated region
    $region17: #{stacked_edvr_forward.17} parent=5 // pred_check
      %p154 = pneg %p153
    $region18: #{stacked_edvr_forward.17} parent=5 // pred_check_branch
      %156 = sbr.rel (%p154) target = $region20
    $region19: #{stacked_edvr_forward.17} parent=5 // pred_region
      // Predicated region
      $region21: #{stacked_edvr_forward.17} parent=19 // pred_check
        %p157 = pneg %p30
      $region22: #{stacked_edvr_forward.17} parent=19 // pred_check_branch
        %159 = sbr.rel (%p157) target = $region24
      $region23: #{stacked_edvr_forward.17} parent=19 // pred_region
        %s160 = smul.u32 128, %s10
        %p161 = scmp.lt.s32.totalorder %s160, 1023
        %s162 = scalar_select %p161, %s160, 1023
        %s163 = smul.addr %s162, 8
        %s164 = scalar_lea.vmem %s0, %s163
        %s165 = smul.u32 128, %s10
      $region24: #{stacked_edvr_forward.17} parent=19 // pred_fallthru
        _
      // Predicated region
      $region25: #{stacked_edvr_forward.17} parent=19 // pred_check
        %p166 = pneg %p56
      $region26: #{stacked_edvr_forward.17} parent=19 // pred_check_branch
        %168 = sbr.rel (%p166) target = $region28
      $region27: #{stacked_edvr_forward.17} parent=19 // pred_region
        %s169 = smul.u32 128, %s10
        %p170 = scmp.lt.s32.totalorder %s169, 1023
        %s171 = scalar_select %p170, %s169, 1023
        %s172 = smul.addr %s171, 8
        %s173 = scalar_lea.vmem %s1, %s172
        %s174 = smul.u32 128, %s10
      $region28: #{stacked_edvr_forward.17} parent=19 // pred_fallthru
        _
      // Predicated region
      $region29: #{stacked_edvr_forward.17} parent=19 // pred_check
        %p175 = pneg %p82
      $region30: #{stacked_edvr_forward.17} parent=19 // pred_check_branch
        %177 = sbr.rel (%p175) target = $region32
      $region31: #{stacked_edvr_forward.17} parent=19 // pred_region
        %s178 = smul.u32 128, %s10
        %p179 = scmp.lt.s32.totalorder %s178, 1023
        %s180 = scalar_select %p179, %s178, 1023
        %s181 = smul.addr %s180, 8
        %s182 = scalar_lea.vmem %s2, %s181
        %s183 = smul.u32 128, %s10
      $region32: #{stacked_edvr_forward.17} parent=19 // pred_fallthru
        _
    $region20: #{stacked_edvr_forward.17} parent=5 // pred_fallthru
      _
    %p184 = scmp.le.s32.totalorder 1, %s10
    %p185 = scmp.lt.s32.totalorder %s10, 9
    %p186 = pnand %p184, %p185
    %p187 = pneg %p186
    // Predicated region
    $region33: #{stacked_edvr_forward.17} parent=5 // pred_check
      _
    $region34: #{stacked_edvr_forward.17} parent=5 // pred_check_branch
      %189 = sbr.rel (%p186) target = $region36
    $region35: #{stacked_edvr_forward.17} parent=5 // pred_region
      %s190 = ssub.s32 %s10, 1
      %s191 = smul.u32 128, %s15
      %p192 = scmp.lt.s32.totalorder %s191, 1023
      %s193 = scalar_select %p192, %s191, 1023
      %s194 = smul.addr %s193, 8
      %s195 = scalar_lea.vmem %s0, %s194
      %p196 = pneg %p36
      %p197 = pneg %p33
      %s198 = smul.u32 128, %s15
      %p199 = scmp.lt.s32.totalorder %s198, 1023
      %s200 = scalar_select %p199, %s198, 1023
      %s201 = smul.addr %s200, 8
      %s202 = scalar_lea.vmem %s1, %s201
      %p203 = pneg %p62
      %p204 = pneg %p59
      %s205 = smul.u32 128, %s15
      %p206 = scmp.lt.s32.totalorder %s205, 1023
      %s207 = scalar_select %p206, %s205, 1023
      %s208 = smul.addr %s207, 8
      %s209 = scalar_lea.vmem %s2, %s208
      %p210 = pneg %p88
      %p211 = pneg %p85
      %p212 = pneg %p109
      %p213 = pneg %p106
      %p214 = pneg %p135
      %p215 = pneg %p132
      %s216 = smul.u32 128, %s15
      %p217 = scmp.lt.s32.totalorder %s216, 1023
      %s218 = scalar_select %p217, %s216, 1023
      %s219 = smul.addr %s218, 8
      %s220 = scalar_lea.vmem %s4, %s219
      %s221 = smul.u32 128, %s15
      %p222 = scmp.lt.s32.totalorder %s221, 1023
      %s223 = scalar_select %p222, %s221, 1023
      %s224 = smul.addr %s223, 8
      %s225 = scalar_lea.vmem %s0, %s224
      %s226 = smul.u32 128, %s15
      %s227 = smul.u32 128, %s15
      %p228 = scmp.lt.s32.totalorder %s227, 1023
      %s229 = scalar_select %p228, %s227, 1023
      %s230 = smul.addr %s229, 8
      %s231 = scalar_lea.vmem %s1, %s230
      %s232 = smul.u32 128, %s15
      %s233 = smul.u32 128, %s15
      %p234 = scmp.lt.s32.totalorder %s233, 1023
      %s235 = scalar_select %p234, %s233, 1023
      %s236 = smul.addr %s235, 8
      %s237 = scalar_lea.vmem %s2, %s236
      %s238 = smul.u32 128, %s15
      %s239 = smul.u32 128, %s15
      %p240 = scmp.lt.s32.totalorder %s239, 1023
      %s241 = scalar_select %p240, %s239, 1023
      %s242 = smul.addr %s241, 8
      %s243 = scalar_lea.vmem %s4, %s242
      %s244 = smul.u32 128, %s15
      %v245 = vld [vmem:[%s225] sm:$0xff]
      %v246 = vld [vmem:[%s225 + $0x8] sm:$0xff]
      %v247 = vld [vmem:[%s225 + $0x10] sm:$0xff]
      %v248 = vld [vmem:[%s225 + $0x18] sm:$0xff]
      %v249 = vld [vmem:[%s225 + $0x20] sm:$0xff]
      %v250 = vld [vmem:[%s225 + $0x28] sm:$0xff]
      %v251 = vld [vmem:[%s225 + $0x30] sm:$0xff]
      %v252 = vld [vmem:[%s225 + $0x38] sm:$0xff]
      %v253 = vld [vmem:[%s225 + $0x40] sm:$0xff]
      %v254 = vld [vmem:[%s225 + $0x48] sm:$0xff]
      %v255 = vld [vmem:[%s225 + $0x50] sm:$0xff]
      %v256 = vld [vmem:[%s225 + $0x58] sm:$0xff]
      %v257 = vld [vmem:[%s225 + $0x60] sm:$0xff]
      %v258 = vld [vmem:[%s225 + $0x68] sm:$0xff]
      %v259 = vld [vmem:[%s225 + $0x70] sm:$0xff]
      %v260 = vld [vmem:[%s225 + $0x78] sm:$0xff]
      %v261 = vld [vmem:[%s225 + $0x80] sm:$0xff]
      %v262 = vld [vmem:[%s225 + $0x88] sm:$0xff]
      %v263 = vld [vmem:[%s225 + $0x90] sm:$0xff]
      %v264 = vld [vmem:[%s225 + $0x98] sm:$0xff]
      %v265 = vld [vmem:[%s225 + $0xa0] sm:$0xff]
      %v266 = vld [vmem:[%s225 + $0xa8] sm:$0xff]
      %v267 = vld [vmem:[%s225 + $0xb0] sm:$0xff]
      %v268 = vld [vmem:[%s225 + $0xb8] sm:$0xff]
      %v269 = vld [vmem:[%s225 + $0xc0] sm:$0xff]
      %v270 = vld [vmem:[%s225 + $0xc8] sm:$0xff]
      %v271 = vld [vmem:[%s225 + $0xd0] sm:$0xff]
      %v272 = vld [vmem:[%s225 + $0xd8] sm:$0xff]
      %v273 = vld [vmem:[%s225 + $0xe0] sm:$0xff]
      %v274 = vld [vmem:[%s225 + $0xe8] sm:$0xff]
      %v275 = vld [vmem:[%s225 + $0xf0] sm:$0xff]
      %v276 = vld [vmem:[%s225 + $0xf8] sm:$0xff]
      %v277 = vld [vmem:[%s225 + $0x100] sm:$0xff]
      %v278 = vld [vmem:[%s225 + $0x108] sm:$0xff]
      %v279 = vld [vmem:[%s225 + $0x110] sm:$0xff]
      %v280 = vld [vmem:[%s225 + $0x118] sm:$0xff]
      %v281 = vld [vmem:[%s225 + $0x120] sm:$0xff]
      %v282 = vld [vmem:[%s225 + $0x128] sm:$0xff]
      %v283 = vld [vmem:[%s225 + $0x130] sm:$0xff]
      %v284 = vld [vmem:[%s225 + $0x138] sm:$0xff]
      %v285 = vld [vmem:[%s225 + $0x140] sm:$0xff]
      %v286 = vld [vmem:[%s225 + $0x148] sm:$0xff]
      %v287 = vld [vmem:[%s225 + $0x150] sm:$0xff]
      %v288 = vld [vmem:[%s225 + $0x158] sm:$0xff]
      %v289 = vld [vmem:[%s225 + $0x160] sm:$0xff]
      %v290 = vld [vmem:[%s225 + $0x168] sm:$0xff]
      %v291 = vld [vmem:[%s225 + $0x170] sm:$0xff]
      %v292 = vld [vmem:[%s225 + $0x178] sm:$0xff]
      %v293 = vld [vmem:[%s225 + $0x180] sm:$0xff]
      %v294 = vld [vmem:[%s225 + $0x188] sm:$0xff]
      %v295 = vld [vmem:[%s225 + $0x190] sm:$0xff]
      %v296 = vld [vmem:[%s225 + $0x198] sm:$0xff]
      %v297 = vld [vmem:[%s225 + $0x1a0] sm:$0xff]
      %v298 = vld [vmem:[%s225 + $0x1a8] sm:$0xff]
      %v299 = vld [vmem:[%s225 + $0x1b0] sm:$0xff]
      %v300 = vld [vmem:[%s225 + $0x1b8] sm:$0xff]
      %v301 = vld [vmem:[%s225 + $0x1c0] sm:$0xff]
      %v302 = vld [vmem:[%s225 + $0x1c8] sm:$0xff]
      %v303 = vld [vmem:[%s225 + $0x1d0] sm:$0xff]
      %v304 = vld [vmem:[%s225 + $0x1d8] sm:$0xff]
      %v305 = vld [vmem:[%s225 + $0x1e0] sm:$0xff]
      %v306 = vld [vmem:[%s225 + $0x1e8] sm:$0xff]
      %v307 = vld [vmem:[%s225 + $0x1f0] sm:$0xff]
      %v308 = vld [vmem:[%s225 + $0x1f8] sm:$0xff]
      %v309 = vld [vmem:[%s225 + $0x200] sm:$0xff]
      %v310 = vld [vmem:[%s225 + $0x208] sm:$0xff]
      %v311 = vld [vmem:[%s225 + $0x210] sm:$0xff]
      %v312 = vld [vmem:[%s225 + $0x218] sm:$0xff]
      %v313 = vld [vmem:[%s225 + $0x220] sm:$0xff]
      %v314 = vld [vmem:[%s225 + $0x228] sm:$0xff]
      %v315 = vld [vmem:[%s225 + $0x230] sm:$0xff]
      %v316 = vld [vmem:[%s225 + $0x238] sm:$0xff]
      %v317 = vld [vmem:[%s225 + $0x240] sm:$0xff]
      %v318 = vld [vmem:[%s225 + $0x248] sm:$0xff]
      %v319 = vld [vmem:[%s225 + $0x250] sm:$0xff]
      %v320 = vld [vmem:[%s225 + $0x258] sm:$0xff]
      %v321 = vld [vmem:[%s225 + $0x260] sm:$0xff]
      %v322 = vld [vmem:[%s225 + $0x268] sm:$0xff]
      %v323 = vld [vmem:[%s225 + $0x270] sm:$0xff]
      %v324 = vld [vmem:[%s225 + $0x278] sm:$0xff]
      %v325 = vld [vmem:[%s225 + $0x280] sm:$0xff]
      %v326 = vld [vmem:[%s225 + $0x288] sm:$0xff]
      %v327 = vld [vmem:[%s225 + $0x290] sm:$0xff]
      %v328 = vld [vmem:[%s225 + $0x298] sm:$0xff]
      %v329 = vld [vmem:[%s225 + $0x2a0] sm:$0xff]
      %v330 = vld [vmem:[%s225 + $0x2a8] sm:$0xff]
      %v331 = vld [vmem:[%s225 + $0x2b0] sm:$0xff]
      %v332 = vld [vmem:[%s225 + $0x2b8] sm:$0xff]
      %v333 = vld [vmem:[%s225 + $0x2c0] sm:$0xff]
      %v334 = vld [vmem:[%s225 + $0x2c8] sm:$0xff]
      %v335 = vld [vmem:[%s225 + $0x2d0] sm:$0xff]
      %v336 = vld [vmem:[%s225 + $0x2d8] sm:$0xff]
      %v337 = vld [vmem:[%s225 + $0x2e0] sm:$0xff]
      %v338 = vld [vmem:[%s225 + $0x2e8] sm:$0xff]
      %v339 = vld [vmem:[%s225 + $0x2f0] sm:$0xff]
      %v340 = vld [vmem:[%s225 + $0x2f8] sm:$0xff]
      %v341 = vld [vmem:[%s225 + $0x300] sm:$0xff]
      %v342 = vld [vmem:[%s225 + $0x308] sm:$0xff]
      %v343 = vld [vmem:[%s225 + $0x310] sm:$0xff]
      %v344 = vld [vmem:[%s225 + $0x318] sm:$0xff]
      %v345 = vld [vmem:[%s225 + $0x320] sm:$0xff]
      %v346 = vld [vmem:[%s225 + $0x328] sm:$0xff]
      %v347 = vld [vmem:[%s225 + $0x330] sm:$0xff]
      %v348 = vld [vmem:[%s225 + $0x338] sm:$0xff]
      %v349 = vld [vmem:[%s225 + $0x340] sm:$0xff]
      %v350 = vld [vmem:[%s225 + $0x348] sm:$0xff]
      %v351 = vld [vmem:[%s225 + $0x350] sm:$0xff]
      %v352 = vld [vmem:[%s225 + $0x358] sm:$0xff]
      %v353 = vld [vmem:[%s225 + $0x360] sm:$0xff]
      %v354 = vld [vmem:[%s225 + $0x368] sm:$0xff]
      %v355 = vld [vmem:[%s225 + $0x370] sm:$0xff]
      %v356 = vld [vmem:[%s225 + $0x378] sm:$0xff]
      %v357 = vld [vmem:[%s225 + $0x380] sm:$0xff]
      %v358 = vld [vmem:[%s225 + $0x388] sm:$0xff]
      %v359 = vld [vmem:[%s225 + $0x390] sm:$0xff]
      %v360 = vld [vmem:[%s225 + $0x398] sm:$0xff]
      %v361 = vld [vmem:[%s225 + $0x3a0] sm:$0xff]
      %v362 = vld [vmem:[%s225 + $0x3a8] sm:$0xff]
      %v363 = vld [vmem:[%s225 + $0x3b0] sm:$0xff]
      %v364 = vld [vmem:[%s225 + $0x3b8] sm:$0xff]
      %v365 = vld [vmem:[%s225 + $0x3c0] sm:$0xff]
      %v366 = vld [vmem:[%s225 + $0x3c8] sm:$0xff]
      %v367 = vld [vmem:[%s225 + $0x3d0] sm:$0xff]
      %v368 = vld [vmem:[%s225 + $0x3d8] sm:$0xff]
      %v369 = vld [vmem:[%s225 + $0x3e0] sm:$0xff]
      %v370 = vld [vmem:[%s225 + $0x3e8] sm:$0xff]
      %v371 = vld [vmem:[%s225 + $0x3f0] sm:$0xff]
      %v372 = vld [vmem:[%s225 + $0x3f8] sm:$0xff]
      %v373 = vld [vmem:[%s231] sm:$0xff]
      %v374 = vld [vmem:[%s231 + $0x8] sm:$0xff]
      %v375 = vld [vmem:[%s231 + $0x10] sm:$0xff]
      %v376 = vld [vmem:[%s231 + $0x18] sm:$0xff]
      %v377 = vld [vmem:[%s231 + $0x20] sm:$0xff]
      %v378 = vld [vmem:[%s231 + $0x28] sm:$0xff]
      %v379 = vld [vmem:[%s231 + $0x30] sm:$0xff]
      %v380 = vld [vmem:[%s231 + $0x38] sm:$0xff]
      %v381 = vld [vmem:[%s231 + $0x40] sm:$0xff]
      %v382 = vld [vmem:[%s231 + $0x48] sm:$0xff]
      %v383 = vld [vmem:[%s231 + $0x50] sm:$0xff]
      %v384 = vld [vmem:[%s231 + $0x58] sm:$0xff]
      %v385 = vld [vmem:[%s231 + $0x60] sm:$0xff]
      %v386 = vld [vmem:[%s231 + $0x68] sm:$0xff]
      %v387 = vld [vmem:[%s231 + $0x70] sm:$0xff]
      %v388 = vld [vmem:[%s231 + $0x78] sm:$0xff]
      %v389 = vld [vmem:[%s231 + $0x80] sm:$0xff]
      %v390 = vld [vmem:[%s231 + $0x88] sm:$0xff]
      %v391 = vld [vmem:[%s231 + $0x90] sm:$0xff]
      %v392 = vld [vmem:[%s231 + $0x98] sm:$0xff]
      %v393 = vld [vmem:[%s231 + $0xa0] sm:$0xff]
      %v394 = vld [vmem:[%s231 + $0xa8] sm:$0xff]
      %v395 = vld [vmem:[%s231 + $0xb0] sm:$0xff]
      %v396 = vld [vmem:[%s231 + $0xb8] sm:$0xff]
      %v397 = vld [vmem:[%s231 + $0xc0] sm:$0xff]
      %v398 = vld [vmem:[%s231 + $0xc8] sm:$0xff]
      %v399 = vld [vmem:[%s231 + $0xd0] sm:$0xff]
      %v400 = vld [vmem:[%s231 + $0xd8] sm:$0xff]
      %v401 = vld [vmem:[%s231 + $0xe0] sm:$0xff]
      %v402 = vld [vmem:[%s231 + $0xe8] sm:$0xff]
      %v403 = vld [vmem:[%s231 + $0xf0] sm:$0xff]
      %v404 = vld [vmem:[%s231 + $0xf8] sm:$0xff]
      %v405 = vld [vmem:[%s231 + $0x100] sm:$0xff]
      %v406 = vld [vmem:[%s231 + $0x108] sm:$0xff]
      %v407 = vld [vmem:[%s231 + $0x110] sm:$0xff]
      %v408 = vld [vmem:[%s231 + $0x118] sm:$0xff]
      %v409 = vld [vmem:[%s231 + $0x120] sm:$0xff]
      %v410 = vld [vmem:[%s231 + $0x128] sm:$0xff]
      %v411 = vld [vmem:[%s231 + $0x130] sm:$0xff]
      %v412 = vld [vmem:[%s231 + $0x138] sm:$0xff]
      %v413 = vld [vmem:[%s231 + $0x140] sm:$0xff]
      %v414 = vld [vmem:[%s231 + $0x148] sm:$0xff]
      %v415 = vld [vmem:[%s231 + $0x150] sm:$0xff]
      %v416 = vld [vmem:[%s231 + $0x158] sm:$0xff]
      %v417 = vld [vmem:[%s231 + $0x160] sm:$0xff]
      %v418 = vld [vmem:[%s231 + $0x168] sm:$0xff]
      %v419 = vld [vmem:[%s231 + $0x170] sm:$0xff]
      %v420 = vld [vmem:[%s231 + $0x178] sm:$0xff]
      %v421 = vld [vmem:[%s231 + $0x180] sm:$0xff]
      %v422 = vld [vmem:[%s231 + $0x188] sm:$0xff]
      %v423 = vld [vmem:[%s231 + $0x190] sm:$0xff]
      %v424 = vld [vmem:[%s231 + $0x198] sm:$0xff]
      %v425 = vld [vmem:[%s231 + $0x1a0] sm:$0xff]
      %v426 = vld [vmem:[%s231 + $0x1a8] sm:$0xff]
      %v427 = vld [vmem:[%s231 + $0x1b0] sm:$0xff]
      %v428 = vld [vmem:[%s231 + $0x1b8] sm:$0xff]
      %v429 = vld [vmem:[%s231 + $0x1c0] sm:$0xff]
      %v430 = vld [vmem:[%s231 + $0x1c8] sm:$0xff]
      %v431 = vld [vmem:[%s231 + $0x1d0] sm:$0xff]
      %v432 = vld [vmem:[%s231 + $0x1d8] sm:$0xff]
      %v433 = vld [vmem:[%s231 + $0x1e0] sm:$0xff]
      %v434 = vld [vmem:[%s231 + $0x1e8] sm:$0xff]
      %v435 = vld [vmem:[%s231 + $0x1f0] sm:$0xff]
      %v436 = vld [vmem:[%s231 + $0x1f8] sm:$0xff]
      %v437 = vld [vmem:[%s231 + $0x200] sm:$0xff]
      %v438 = vld [vmem:[%s231 + $0x208] sm:$0xff]
      %v439 = vld [vmem:[%s231 + $0x210] sm:$0xff]
      %v440 = vld [vmem:[%s231 + $0x218] sm:$0xff]
      %v441 = vld [vmem:[%s231 + $0x220] sm:$0xff]
      %v442 = vld [vmem:[%s231 + $0x228] sm:$0xff]
      %v443 = vld [vmem:[%s231 + $0x230] sm:$0xff]
      %v444 = vld [vmem:[%s231 + $0x238] sm:$0xff]
      %v445 = vld [vmem:[%s231 + $0x240] sm:$0xff]
      %v446 = vld [vmem:[%s231 + $0x248] sm:$0xff]
      %v447 = vld [vmem:[%s231 + $0x250] sm:$0xff]
      %v448 = vld [vmem:[%s231 + $0x258] sm:$0xff]
      %v449 = vld [vmem:[%s231 + $0x260] sm:$0xff]
      %v450 = vld [vmem:[%s231 + $0x268] sm:$0xff]
      %v451 = vld [vmem:[%s231 + $0x270] sm:$0xff]
      %v452 = vld [vmem:[%s231 + $0x278] sm:$0xff]
      %v453 = vld [vmem:[%s231 + $0x280] sm:$0xff]
      %v454 = vld [vmem:[%s231 + $0x288] sm:$0xff]
      %v455 = vld [vmem:[%s231 + $0x290] sm:$0xff]
      %v456 = vld [vmem:[%s231 + $0x298] sm:$0xff]
      %v457 = vld [vmem:[%s231 + $0x2a0] sm:$0xff]
      %v458 = vld [vmem:[%s231 + $0x2a8] sm:$0xff]
      %v459 = vld [vmem:[%s231 + $0x2b0] sm:$0xff]
      %v460 = vld [vmem:[%s231 + $0x2b8] sm:$0xff]
      %v461 = vld [vmem:[%s231 + $0x2c0] sm:$0xff]
      %v462 = vld [vmem:[%s231 + $0x2c8] sm:$0xff]
      %v463 = vld [vmem:[%s231 + $0x2d0] sm:$0xff]
      %v464 = vld [vmem:[%s231 + $0x2d8] sm:$0xff]
      %v465 = vld [vmem:[%s231 + $0x2e0] sm:$0xff]
      %v466 = vld [vmem:[%s231 + $0x2e8] sm:$0xff]
      %v467 = vld [vmem:[%s231 + $0x2f0] sm:$0xff]
      %v468 = vld [vmem:[%s231 + $0x2f8] sm:$0xff]
      %v469 = vld [vmem:[%s231 + $0x300] sm:$0xff]
      %v470 = vld [vmem:[%s231 + $0x308] sm:$0xff]
      %v471 = vld [vmem:[%s231 + $0x310] sm:$0xff]
      %v472 = vld [vmem:[%s231 + $0x318] sm:$0xff]
      %v473 = vld [vmem:[%s231 + $0x320] sm:$0xff]
      %v474 = vld [vmem:[%s231 + $0x328] sm:$0xff]
      %v475 = vld [vmem:[%s231 + $0x330] sm:$0xff]
      %v476 = vld [vmem:[%s231 + $0x338] sm:$0xff]
      %v477 = vld [vmem:[%s231 + $0x340] sm:$0xff]
      %v478 = vld [vmem:[%s231 + $0x348] sm:$0xff]
      %v479 = vld [vmem:[%s231 + $0x350] sm:$0xff]
      %v480 = vld [vmem:[%s231 + $0x358] sm:$0xff]
      %v481 = vld [vmem:[%s231 + $0x360] sm:$0xff]
      %v482 = vld [vmem:[%s231 + $0x368] sm:$0xff]
      %v483 = vld [vmem:[%s231 + $0x370] sm:$0xff]
      %v484 = vld [vmem:[%s231 + $0x378] sm:$0xff]
      %v485 = vld [vmem:[%s231 + $0x380] sm:$0xff]
      %v486 = vld [vmem:[%s231 + $0x388] sm:$0xff]
      %v487 = vld [vmem:[%s231 + $0x390] sm:$0xff]
      %v488 = vld [vmem:[%s231 + $0x398] sm:$0xff]
      %v489 = vld [vmem:[%s231 + $0x3a0] sm:$0xff]
      %v490 = vld [vmem:[%s231 + $0x3a8] sm:$0xff]
      %v491 = vld [vmem:[%s231 + $0x3b0] sm:$0xff]
      %v492 = vld [vmem:[%s231 + $0x3b8] sm:$0xff]
      %v493 = vld [vmem:[%s231 + $0x3c0] sm:$0xff]
      %v494 = vld [vmem:[%s231 + $0x3c8] sm:$0xff]
      %v495 = vld [vmem:[%s231 + $0x3d0] sm:$0xff]
      %v496 = vld [vmem:[%s231 + $0x3d8] sm:$0xff]
      %v497 = vld [vmem:[%s231 + $0x3e0] sm:$0xff]
      %v498 = vld [vmem:[%s231 + $0x3e8] sm:$0xff]
      %v499 = vld [vmem:[%s231 + $0x3f0] sm:$0xff]
      %v500 = vld [vmem:[%s231 + $0x3f8] sm:$0xff]
      %v501 = vadd.f32 %v245, %v373
      %v502 = vadd.f32 %v246, %v374
      %v503 = vadd.f32 %v247, %v375
      %v504 = vadd.f32 %v248, %v376
      %v505 = vadd.f32 %v249, %v377
      %v506 = vadd.f32 %v250, %v378
      %v507 = vadd.f32 %v251, %v379
      %v508 = vadd.f32 %v252, %v380
      %v509 = vadd.f32 %v253, %v381
      %v510 = vadd.f32 %v254, %v382
      %v511 = vadd.f32 %v255, %v383
      %v512 = vadd.f32 %v256, %v384
      %v513 = vadd.f32 %v257, %v385
      %v514 = vadd.f32 %v258, %v386
      %v515 = vadd.f32 %v259, %v387
      %v516 = vadd.f32 %v260, %v388
      %v517 = vadd.f32 %v261, %v389
      %v518 = vadd.f32 %v262, %v390
      %v519 = vadd.f32 %v263, %v391
      %v520 = vadd.f32 %v264, %v392
      %v521 = vadd.f32 %v265, %v393
      %v522 = vadd.f32 %v266, %v394
      %v523 = vadd.f32 %v267, %v395
      %v524 = vadd.f32 %v268, %v396
      %v525 = vadd.f32 %v269, %v397
      %v526 = vadd.f32 %v270, %v398
      %v527 = vadd.f32 %v271, %v399
      %v528 = vadd.f32 %v272, %v400
      %v529 = vadd.f32 %v273, %v401
      %v530 = vadd.f32 %v274, %v402
      %v531 = vadd.f32 %v275, %v403
      %v532 = vadd.f32 %v276, %v404
      %v533 = vadd.f32 %v277, %v405
      %v534 = vadd.f32 %v278, %v406
      %v535 = vadd.f32 %v279, %v407
      %v536 = vadd.f32 %v280, %v408
      %v537 = vadd.f32 %v281, %v409
      %v538 = vadd.f32 %v282, %v410
      %v539 = vadd.f32 %v283, %v411
      %v540 = vadd.f32 %v284, %v412
      %v541 = vadd.f32 %v285, %v413
      %v542 = vadd.f32 %v286, %v414
      %v543 = vadd.f32 %v287, %v415
      %v544 = vadd.f32 %v288, %v416
      %v545 = vadd.f32 %v289, %v417
      %v546 = vadd.f32 %v290, %v418
      %v547 = vadd.f32 %v291, %v419
      %v548 = vadd.f32 %v292, %v420
      %v549 = vadd.f32 %v293, %v421
      %v550 = vadd.f32 %v294, %v422
      %v551 = vadd.f32 %v295, %v423
      %v552 = vadd.f32 %v296, %v424
      %v553 = vadd.f32 %v297, %v425
      %v554 = vadd.f32 %v298, %v426
      %v555 = vadd.f32 %v299, %v427
      %v556 = vadd.f32 %v300, %v428
      %v557 = vadd.f32 %v301, %v429
      %v558 = vadd.f32 %v302, %v430
      %v559 = vadd.f32 %v303, %v431
      %v560 = vadd.f32 %v304, %v432
      %v561 = vadd.f32 %v305, %v433
      %v562 = vadd.f32 %v306, %v434
      %v563 = vadd.f32 %v307, %v435
      %v564 = vadd.f32 %v308, %v436
      %v565 = vadd.f32 %v309, %v437
      %v566 = vadd.f32 %v310, %v438
      %v567 = vadd.f32 %v311, %v439
      %v568 = vadd.f32 %v312, %v440
      %v569 = vadd.f32 %v313, %v441
      %v570 = vadd.f32 %v314, %v442
      %v571 = vadd.f32 %v315, %v443
      %v572 = vadd.f32 %v316, %v444
      %v573 = vadd.f32 %v317, %v445
      %v574 = vadd.f32 %v318, %v446
      %v575 = vadd.f32 %v319, %v447
      %v576 = vadd.f32 %v320, %v448
      %v577 = vadd.f32 %v321, %v449
      %v578 = vadd.f32 %v322, %v450
      %v579 = vadd.f32 %v323, %v451
      %v580 = vadd.f32 %v324, %v452
      %v581 = vadd.f32 %v325, %v453
      %v582 = vadd.f32 %v326, %v454
      %v583 = vadd.f32 %v327, %v455
      %v584 = vadd.f32 %v328, %v456
      %v585 = vadd.f32 %v329, %v457
      %v586 = vadd.f32 %v330, %v458
      %v587 = vadd.f32 %v331, %v459
      %v588 = vadd.f32 %v332, %v460
      %v589 = vadd.f32 %v333, %v461
      %v590 = vadd.f32 %v334, %v462
      %v591 = vadd.f32 %v335, %v463
      %v592 = vadd.f32 %v336, %v464
      %v593 = vadd.f32 %v337, %v465
      %v594 = vadd.f32 %v338, %v466
      %v595 = vadd.f32 %v339, %v467
      %v596 = vadd.f32 %v340, %v468
      %v597 = vadd.f32 %v341, %v469
      %v598 = vadd.f32 %v342, %v470
      %v599 = vadd.f32 %v343, %v471
      %v600 = vadd.f32 %v344, %v472
      %v601 = vadd.f32 %v345, %v473
      %v602 = vadd.f32 %v346, %v474
      %v603 = vadd.f32 %v347, %v475
      %v604 = vadd.f32 %v348, %v476
      %v605 = vadd.f32 %v349, %v477
      %v606 = vadd.f32 %v350, %v478
      %v607 = vadd.f32 %v351, %v479
      %v608 = vadd.f32 %v352, %v480
      %v609 = vadd.f32 %v353, %v481
      %v610 = vadd.f32 %v354, %v482
      %v611 = vadd.f32 %v355, %v483
      %v612 = vadd.f32 %v356, %v484
      %v613 = vadd.f32 %v357, %v485
      %v614 = vadd.f32 %v358, %v486
      %v615 = vadd.f32 %v359, %v487
      %v616 = vadd.f32 %v360, %v488
      %v617 = vadd.f32 %v361, %v489
      %v618 = vadd.f32 %v362, %v490
      %v619 = vadd.f32 %v363, %v491
      %v620 = vadd.f32 %v364, %v492
      %v621 = vadd.f32 %v365, %v493
      %v622 = vadd.f32 %v366, %v494
      %v623 = vadd.f32 %v367, %v495
      %v624 = vadd.f32 %v368, %v496
      %v625 = vadd.f32 %v369, %v497
      %v626 = vadd.f32 %v370, %v498
      %v627 = vadd.f32 %v371, %v499
      %v628 = vadd.f32 %v372, %v500
      %v629 = vld [vmem:[%s237] sm:$0xff]
      %v630 = vld [vmem:[%s237 + $0x8] sm:$0xff]
      %v631 = vld [vmem:[%s237 + $0x10] sm:$0xff]
      %v632 = vld [vmem:[%s237 + $0x18] sm:$0xff]
      %v633 = vld [vmem:[%s237 + $0x20] sm:$0xff]
      %v634 = vld [vmem:[%s237 + $0x28] sm:$0xff]
      %v635 = vld [vmem:[%s237 + $0x30] sm:$0xff]
      %v636 = vld [vmem:[%s237 + $0x38] sm:$0xff]
      %v637 = vld [vmem:[%s237 + $0x40] sm:$0xff]
      %v638 = vld [vmem:[%s237 + $0x48] sm:$0xff]
      %v639 = vld [vmem:[%s237 + $0x50] sm:$0xff]
      %v640 = vld [vmem:[%s237 + $0x58] sm:$0xff]
      %v641 = vld [vmem:[%s237 + $0x60] sm:$0xff]
      %v642 = vld [vmem:[%s237 + $0x68] sm:$0xff]
      %v643 = vld [vmem:[%s237 + $0x70] sm:$0xff]
      %v644 = vld [vmem:[%s237 + $0x78] sm:$0xff]
      %v645 = vld [vmem:[%s237 + $0x80] sm:$0xff]
      %v646 = vld [vmem:[%s237 + $0x88] sm:$0xff]
      %v647 = vld [vmem:[%s237 + $0x90] sm:$0xff]
      %v648 = vld [vmem:[%s237 + $0x98] sm:$0xff]
      %v649 = vld [vmem:[%s237 + $0xa0] sm:$0xff]
      %v650 = vld [vmem:[%s237 + $0xa8] sm:$0xff]
      %v651 = vld [vmem:[%s237 + $0xb0] sm:$0xff]
      %v652 = vld [vmem:[%s237 + $0xb8] sm:$0xff]
      %v653 = vld [vmem:[%s237 + $0xc0] sm:$0xff]
      %v654 = vld [vmem:[%s237 + $0xc8] sm:$0xff]
      %v655 = vld [vmem:[%s237 + $0xd0] sm:$0xff]
      %v656 = vld [vmem:[%s237 + $0xd8] sm:$0xff]
      %v657 = vld [vmem:[%s237 + $0xe0] sm:$0xff]
      %v658 = vld [vmem:[%s237 + $0xe8] sm:$0xff]
      %v659 = vld [vmem:[%s237 + $0xf0] sm:$0xff]
      %v660 = vld [vmem:[%s237 + $0xf8] sm:$0xff]
      %v661 = vld [vmem:[%s237 + $0x100] sm:$0xff]
      %v662 = vld [vmem:[%s237 + $0x108] sm:$0xff]
      %v663 = vld [vmem:[%s237 + $0x110] sm:$0xff]
      %v664 = vld [vmem:[%s237 + $0x118] sm:$0xff]
      %v665 = vld [vmem:[%s237 + $0x120] sm:$0xff]
      %v666 = vld [vmem:[%s237 + $0x128] sm:$0xff]
      %v667 = vld [vmem:[%s237 + $0x130] sm:$0xff]
      %v668 = vld [vmem:[%s237 + $0x138] sm:$0xff]
      %v669 = vld [vmem:[%s237 + $0x140] sm:$0xff]
      %v670 = vld [vmem:[%s237 + $0x148] sm:$0xff]
      %v671 = vld [vmem:[%s237 + $0x150] sm:$0xff]
      %v672 = vld [vmem:[%s237 + $0x158] sm:$0xff]
      %v673 = vld [vmem:[%s237 + $0x160] sm:$0xff]
      %v674 = vld [vmem:[%s237 + $0x168] sm:$0xff]
      %v675 = vld [vmem:[%s237 + $0x170] sm:$0xff]
      %v676 = vld [vmem:[%s237 + $0x178] sm:$0xff]
      %v677 = vld [vmem:[%s237 + $0x180] sm:$0xff]
      %v678 = vld [vmem:[%s237 + $0x188] sm:$0xff]
      %v679 = vld [vmem:[%s237 + $0x190] sm:$0xff]
      %v680 = vld [vmem:[%s237 + $0x198] sm:$0xff]
      %v681 = vld [vmem:[%s237 + $0x1a0] sm:$0xff]
      %v682 = vld [vmem:[%s237 + $0x1a8] sm:$0xff]
      %v683 = vld [vmem:[%s237 + $0x1b0] sm:$0xff]
      %v684 = vld [vmem:[%s237 + $0x1b8] sm:$0xff]
      %v685 = vld [vmem:[%s237 + $0x1c0] sm:$0xff]
      %v686 = vld [vmem:[%s237 + $0x1c8] sm:$0xff]
      %v687 = vld [vmem:[%s237 + $0x1d0] sm:$0xff]
      %v688 = vld [vmem:[%s237 + $0x1d8] sm:$0xff]
      %v689 = vld [vmem:[%s237 + $0x1e0] sm:$0xff]
      %v690 = vld [vmem:[%s237 + $0x1e8] sm:$0xff]
      %v691 = vld [vmem:[%s237 + $0x1f0] sm:$0xff]
      %v692 = vld [vmem:[%s237 + $0x1f8] sm:$0xff]
      %v693 = vld [vmem:[%s237 + $0x200] sm:$0xff]
      %v694 = vld [vmem:[%s237 + $0x208] sm:$0xff]
      %v695 = vld [vmem:[%s237 + $0x210] sm:$0xff]
      %v696 = vld [vmem:[%s237 + $0x218] sm:$0xff]
      %v697 = vld [vmem:[%s237 + $0x220] sm:$0xff]
      %v698 = vld [vmem:[%s237 + $0x228] sm:$0xff]
      %v699 = vld [vmem:[%s237 + $0x230] sm:$0xff]
      %v700 = vld [vmem:[%s237 + $0x238] sm:$0xff]
      %v701 = vld [vmem:[%s237 + $0x240] sm:$0xff]
      %v702 = vld [vmem:[%s237 + $0x248] sm:$0xff]
      %v703 = vld [vmem:[%s237 + $0x250] sm:$0xff]
      %v704 = vld [vmem:[%s237 + $0x258] sm:$0xff]
      %v705 = vld [vmem:[%s237 + $0x260] sm:$0xff]
      %v706 = vld [vmem:[%s237 + $0x268] sm:$0xff]
      %v707 = vld [vmem:[%s237 + $0x270] sm:$0xff]
      %v708 = vld [vmem:[%s237 + $0x278] sm:$0xff]
      %v709 = vld [vmem:[%s237 + $0x280] sm:$0xff]
      %v710 = vld [vmem:[%s237 + $0x288] sm:$0xff]
      %v711 = vld [vmem:[%s237 + $0x290] sm:$0xff]
      %v712 = vld [vmem:[%s237 + $0x298] sm:$0xff]
      %v713 = vld [vmem:[%s237 + $0x2a0] sm:$0xff]
      %v714 = vld [vmem:[%s237 + $0x2a8] sm:$0xff]
      %v715 = vld [vmem:[%s237 + $0x2b0] sm:$0xff]
      %v716 = vld [vmem:[%s237 + $0x2b8] sm:$0xff]
      %v717 = vld [vmem:[%s237 + $0x2c0] sm:$0xff]
      %v718 = vld [vmem:[%s237 + $0x2c8] sm:$0xff]
      %v719 = vld [vmem:[%s237 + $0x2d0] sm:$0xff]
      %v720 = vld [vmem:[%s237 + $0x2d8] sm:$0xff]
      %v721 = vld [vmem:[%s237 + $0x2e0] sm:$0xff]
      %v722 = vld [vmem:[%s237 + $0x2e8] sm:$0xff]
      %v723 = vld [vmem:[%s237 + $0x2f0] sm:$0xff]
      %v724 = vld [vmem:[%s237 + $0x2f8] sm:$0xff]
      %v725 = vld [vmem:[%s237 + $0x300] sm:$0xff]
      %v726 = vld [vmem:[%s237 + $0x308] sm:$0xff]
      %v727 = vld [vmem:[%s237 + $0x310] sm:$0xff]
      %v728 = vld [vmem:[%s237 + $0x318] sm:$0xff]
      %v729 = vld [vmem:[%s237 + $0x320] sm:$0xff]
      %v730 = vld [vmem:[%s237 + $0x328] sm:$0xff]
      %v731 = vld [vmem:[%s237 + $0x330] sm:$0xff]
      %v732 = vld [vmem:[%s237 + $0x338] sm:$0xff]
      %v733 = vld [vmem:[%s237 + $0x340] sm:$0xff]
      %v734 = vld [vmem:[%s237 + $0x348] sm:$0xff]
      %v735 = vld [vmem:[%s237 + $0x350] sm:$0xff]
      %v736 = vld [vmem:[%s237 + $0x358] sm:$0xff]
      %v737 = vld [vmem:[%s237 + $0x360] sm:$0xff]
      %v738 = vld [vmem:[%s237 + $0x368] sm:$0xff]
      %v739 = vld [vmem:[%s237 + $0x370] sm:$0xff]
      %v740 = vld [vmem:[%s237 + $0x378] sm:$0xff]
      %v741 = vld [vmem:[%s237 + $0x380] sm:$0xff]
      %v742 = vld [vmem:[%s237 + $0x388] sm:$0xff]
      %v743 = vld [vmem:[%s237 + $0x390] sm:$0xff]
      %v744 = vld [vmem:[%s237 + $0x398] sm:$0xff]
      %v745 = vld [vmem:[%s237 + $0x3a0] sm:$0xff]
      %v746 = vld [vmem:[%s237 + $0x3a8] sm:$0xff]
      %v747 = vld [vmem:[%s237 + $0x3b0] sm:$0xff]
      %v748 = vld [vmem:[%s237 + $0x3b8] sm:$0xff]
      %v749 = vld [vmem:[%s237 + $0x3c0] sm:$0xff]
      %v750 = vld [vmem:[%s237 + $0x3c8] sm:$0xff]
      %v751 = vld [vmem:[%s237 + $0x3d0] sm:$0xff]
      %v752 = vld [vmem:[%s237 + $0x3d8] sm:$0xff]
      %v753 = vld [vmem:[%s237 + $0x3e0] sm:$0xff]
      %v754 = vld [vmem:[%s237 + $0x3e8] sm:$0xff]
      %v755 = vld [vmem:[%s237 + $0x3f0] sm:$0xff]
      %v756 = vld [vmem:[%s237 + $0x3f8] sm:$0xff]
      %758 = vset.pattern.permute.xlu0 0
      %759 = vperm.xlu0 %758, %v629
      %v760 = vpop.permute.xlu0 %759
      %763 = vset.pattern.permute.xlu0 0
      %764 = vperm.xlu0 %763, %v630
      %v765 = vpop.permute.xlu0 %764
      %768 = vset.pattern.permute.xlu0 0
      %769 = vperm.xlu0 %768, %v631
      %v770 = vpop.permute.xlu0 %769
      %773 = vset.pattern.permute.xlu0 0
      %774 = vperm.xlu0 %773, %v632
      %v775 = vpop.permute.xlu0 %774
      %778 = vset.pattern.permute.xlu0 0
      %779 = vperm.xlu0 %778, %v633
      %v780 = vpop.permute.xlu0 %779
      %783 = vset.pattern.permute.xlu0 0
      %784 = vperm.xlu0 %783, %v634
      %v785 = vpop.permute.xlu0 %784
      %788 = vset.pattern.permute.xlu0 0
      %789 = vperm.xlu0 %788, %v635
      %v790 = vpop.permute.xlu0 %789
      %793 = vset.pattern.permute.xlu0 0
      %794 = vperm.xlu0 %793, %v636
      %v795 = vpop.permute.xlu0 %794
      %798 = vset.pattern.permute.xlu0 0
      %799 = vperm.xlu0 %798, %v637
      %v800 = vpop.permute.xlu0 %799
      %803 = vset.pattern.permute.xlu0 0
      %804 = vperm.xlu0 %803, %v638
      %v805 = vpop.permute.xlu0 %804
      %808 = vset.pattern.permute.xlu0 0
      %809 = vperm.xlu0 %808, %v639
      %v810 = vpop.permute.xlu0 %809
      %813 = vset.pattern.permute.xlu0 0
      %814 = vperm.xlu0 %813, %v640
      %v815 = vpop.permute.xlu0 %814
      %818 = vset.pattern.permute.xlu0 0
      %819 = vperm.xlu0 %818, %v641
      %v820 = vpop.permute.xlu0 %819
      %823 = vset.pattern.permute.xlu0 0
      %824 = vperm.xlu0 %823, %v642
      %v825 = vpop.permute.xlu0 %824
      %828 = vset.pattern.permute.xlu0 0
      %829 = vperm.xlu0 %828, %v643
      %v830 = vpop.permute.xlu0 %829
      %833 = vset.pattern.permute.xlu0 0
      %834 = vperm.xlu0 %833, %v644
      %v835 = vpop.permute.xlu0 %834
      %838 = vset.pattern.permute.xlu0 0
      %839 = vperm.xlu0 %838, %v645
      %v840 = vpop.permute.xlu0 %839
      %843 = vset.pattern.permute.xlu0 0
      %844 = vperm.xlu0 %843, %v646
      %v845 = vpop.permute.xlu0 %844
      %848 = vset.pattern.permute.xlu0 0
      %849 = vperm.xlu0 %848, %v647
      %v850 = vpop.permute.xlu0 %849
      %853 = vset.pattern.permute.xlu0 0
      %854 = vperm.xlu0 %853, %v648
      %v855 = vpop.permute.xlu0 %854
      %858 = vset.pattern.permute.xlu0 0
      %859 = vperm.xlu0 %858, %v649
      %v860 = vpop.permute.xlu0 %859
      %863 = vset.pattern.permute.xlu0 0
      %864 = vperm.xlu0 %863, %v650
      %v865 = vpop.permute.xlu0 %864
      %868 = vset.pattern.permute.xlu0 0
      %869 = vperm.xlu0 %868, %v651
      %v870 = vpop.permute.xlu0 %869
      %873 = vset.pattern.permute.xlu0 0
      %874 = vperm.xlu0 %873, %v652
      %v875 = vpop.permute.xlu0 %874
      %878 = vset.pattern.permute.xlu0 0
      %879 = vperm.xlu0 %878, %v653
      %v880 = vpop.permute.xlu0 %879
      %883 = vset.pattern.permute.xlu0 0
      %884 = vperm.xlu0 %883, %v654
      %v885 = vpop.permute.xlu0 %884
      %888 = vset.pattern.permute.xlu0 0
      %889 = vperm.xlu0 %888, %v655
      %v890 = vpop.permute.xlu0 %889
      %893 = vset.pattern.permute.xlu0 0
      %894 = vperm.xlu0 %893, %v656
      %v895 = vpop.permute.xlu0 %894
      %898 = vset.pattern.permute.xlu0 0
      %899 = vperm.xlu0 %898, %v657
      %v900 = vpop.permute.xlu0 %899
      %903 = vset.pattern.permute.xlu0 0
      %904 = vperm.xlu0 %903, %v658
      %v905 = vpop.permute.xlu0 %904
      %908 = vset.pattern.permute.xlu0 0
      %909 = vperm.xlu0 %908, %v659
      %v910 = vpop.permute.xlu0 %909
      %913 = vset.pattern.permute.xlu0 0
      %914 = vperm.xlu0 %913, %v660
      %v915 = vpop.permute.xlu0 %914
      %918 = vset.pattern.permute.xlu0 0
      %919 = vperm.xlu0 %918, %v661
      %v920 = vpop.permute.xlu0 %919
      %923 = vset.pattern.permute.xlu0 0
      %924 = vperm.xlu0 %923, %v662
      %v925 = vpop.permute.xlu0 %924
      %928 = vset.pattern.permute.xlu0 0
      %929 = vperm.xlu0 %928, %v663
      %v930 = vpop.permute.xlu0 %929
      %933 = vset.pattern.permute.xlu0 0
      %934 = vperm.xlu0 %933, %v664
      %v935 = vpop.permute.xlu0 %934
      %938 = vset.pattern.permute.xlu0 0
      %939 = vperm.xlu0 %938, %v665
      %v940 = vpop.permute.xlu0 %939
      %943 = vset.pattern.permute.xlu0 0
      %944 = vperm.xlu0 %943, %v666
      %v945 = vpop.permute.xlu0 %944
      %948 = vset.pattern.permute.xlu0 0
      %949 = vperm.xlu0 %948, %v667
      %v950 = vpop.permute.xlu0 %949
      %953 = vset.pattern.permute.xlu0 0
      %954 = vperm.xlu0 %953, %v668
      %v955 = vpop.permute.xlu0 %954
      %958 = vset.pattern.permute.xlu0 0
      %959 = vperm.xlu0 %958, %v669
      %v960 = vpop.permute.xlu0 %959
      %963 = vset.pattern.permute.xlu0 0
      %964 = vperm.xlu0 %963, %v670
      %v965 = vpop.permute.xlu0 %964
      %968 = vset.pattern.permute.xlu0 0
      %969 = vperm.xlu0 %968, %v671
      %v970 = vpop.permute.xlu0 %969
      %973 = vset.pattern.permute.xlu0 0
      %974 = vperm.xlu0 %973, %v672
      %v975 = vpop.permute.xlu0 %974
      %978 = vset.pattern.permute.xlu0 0
      %979 = vperm.xlu0 %978, %v673
      %v980 = vpop.permute.xlu0 %979
      %983 = vset.pattern.permute.xlu0 0
      %984 = vperm.xlu0 %983, %v674
      %v985 = vpop.permute.xlu0 %984
      %988 = vset.pattern.permute.xlu0 0
      %989 = vperm.xlu0 %988, %v675
      %v990 = vpop.permute.xlu0 %989
      %993 = vset.pattern.permute.xlu0 0
      %994 = vperm.xlu0 %993, %v676
      %v995 = vpop.permute.xlu0 %994
      %998 = vset.pattern.permute.xlu0 0
      %999 = vperm.xlu0 %998, %v677
      %v1000 = vpop.permute.xlu0 %999
      %1003 = vset.pattern.permute.xlu0 0
      %1004 = vperm.xlu0 %1003, %v678
      %v1005 = vpop.permute.xlu0 %1004
      %1008 = vset.pattern.permute.xlu0 0
      %1009 = vperm.xlu0 %1008, %v679
      %v1010 = vpop.permute.xlu0 %1009
      %1013 = vset.pattern.permute.xlu0 0
      %1014 = vperm.xlu0 %1013, %v680
      %v1015 = vpop.permute.xlu0 %1014
      %1018 = vset.pattern.permute.xlu0 0
      %1019 = vperm.xlu0 %1018, %v681
      %v1020 = vpop.permute.xlu0 %1019
      %1023 = vset.pattern.permute.xlu0 0
      %1024 = vperm.xlu0 %1023, %v682
      %v1025 = vpop.permute.xlu0 %1024
      %1028 = vset.pattern.permute.xlu0 0
      %1029 = vperm.xlu0 %1028, %v683
      %v1030 = vpop.permute.xlu0 %1029
      %1033 = vset.pattern.permute.xlu0 0
      %1034 = vperm.xlu0 %1033, %v684
      %v1035 = vpop.permute.xlu0 %1034
      %1038 = vset.pattern.permute.xlu0 0
      %1039 = vperm.xlu0 %1038, %v685
      %v1040 = vpop.permute.xlu0 %1039
      %1043 = vset.pattern.permute.xlu0 0
      %1044 = vperm.xlu0 %1043, %v686
      %v1045 = vpop.permute.xlu0 %1044
      %1048 = vset.pattern.permute.xlu0 0
      %1049 = vperm.xlu0 %1048, %v687
      %v1050 = vpop.permute.xlu0 %1049
      %1053 = vset.pattern.permute.xlu0 0
      %1054 = vperm.xlu0 %1053, %v688
      %v1055 = vpop.permute.xlu0 %1054
      %1058 = vset.pattern.permute.xlu0 0
      %1059 = vperm.xlu0 %1058, %v689
      %v1060 = vpop.permute.xlu0 %1059
      %1063 = vset.pattern.permute.xlu0 0
      %1064 = vperm.xlu0 %1063, %v690
      %v1065 = vpop.permute.xlu0 %1064
      %1068 = vset.pattern.permute.xlu0 0
      %1069 = vperm.xlu0 %1068, %v691
      %v1070 = vpop.permute.xlu0 %1069
      %1073 = vset.pattern.permute.xlu0 0
      %1074 = vperm.xlu0 %1073, %v692
      %v1075 = vpop.permute.xlu0 %1074
      %1078 = vset.pattern.permute.xlu0 0
      %1079 = vperm.xlu0 %1078, %v693
      %v1080 = vpop.permute.xlu0 %1079
      %1083 = vset.pattern.permute.xlu0 0
      %1084 = vperm.xlu0 %1083, %v694
      %v1085 = vpop.permute.xlu0 %1084
      %1088 = vset.pattern.permute.xlu0 0
      %1089 = vperm.xlu0 %1088, %v695
      %v1090 = vpop.permute.xlu0 %1089
      %1093 = vset.pattern.permute.xlu0 0
      %1094 = vperm.xlu0 %1093, %v696
      %v1095 = vpop.permute.xlu0 %1094
      %1098 = vset.pattern.permute.xlu0 0
      %1099 = vperm.xlu0 %1098, %v697
      %v1100 = vpop.permute.xlu0 %1099
      %1103 = vset.pattern.permute.xlu0 0
      %1104 = vperm.xlu0 %1103, %v698
      %v1105 = vpop.permute.xlu0 %1104
      %1108 = vset.pattern.permute.xlu0 0
      %1109 = vperm.xlu0 %1108, %v699
      %v1110 = vpop.permute.xlu0 %1109
      %1113 = vset.pattern.permute.xlu0 0
      %1114 = vperm.xlu0 %1113, %v700
      %v1115 = vpop.permute.xlu0 %1114
      %1118 = vset.pattern.permute.xlu0 0
      %1119 = vperm.xlu0 %1118, %v701
      %v1120 = vpop.permute.xlu0 %1119
      %1123 = vset.pattern.permute.xlu0 0
      %1124 = vperm.xlu0 %1123, %v702
      %v1125 = vpop.permute.xlu0 %1124
      %1128 = vset.pattern.permute.xlu0 0
      %1129 = vperm.xlu0 %1128, %v703
      %v1130 = vpop.permute.xlu0 %1129
      %1133 = vset.pattern.permute.xlu0 0
      %1134 = vperm.xlu0 %1133, %v704
      %v1135 = vpop.permute.xlu0 %1134
      %1138 = vset.pattern.permute.xlu0 0
      %1139 = vperm.xlu0 %1138, %v705
      %v1140 = vpop.permute.xlu0 %1139
      %1143 = vset.pattern.permute.xlu0 0
      %1144 = vperm.xlu0 %1143, %v706
      %v1145 = vpop.permute.xlu0 %1144
      %1148 = vset.pattern.permute.xlu0 0
      %1149 = vperm.xlu0 %1148, %v707
      %v1150 = vpop.permute.xlu0 %1149
      %1153 = vset.pattern.permute.xlu0 0
      %1154 = vperm.xlu0 %1153, %v708
      %v1155 = vpop.permute.xlu0 %1154
      %1158 = vset.pattern.permute.xlu0 0
      %1159 = vperm.xlu0 %1158, %v709
      %v1160 = vpop.permute.xlu0 %1159
      %1163 = vset.pattern.permute.xlu0 0
      %1164 = vperm.xlu0 %1163, %v710
      %v1165 = vpop.permute.xlu0 %1164
      %1168 = vset.pattern.permute.xlu0 0
      %1169 = vperm.xlu0 %1168, %v711
      %v1170 = vpop.permute.xlu0 %1169
      %1173 = vset.pattern.permute.xlu0 0
      %1174 = vperm.xlu0 %1173, %v712
      %v1175 = vpop.permute.xlu0 %1174
      %1178 = vset.pattern.permute.xlu0 0
      %1179 = vperm.xlu0 %1178, %v713
      %v1180 = vpop.permute.xlu0 %1179
      %1183 = vset.pattern.permute.xlu0 0
      %1184 = vperm.xlu0 %1183, %v714
      %v1185 = vpop.permute.xlu0 %1184
      %1188 = vset.pattern.permute.xlu0 0
      %1189 = vperm.xlu0 %1188, %v715
      %v1190 = vpop.permute.xlu0 %1189
      %1193 = vset.pattern.permute.xlu0 0
      %1194 = vperm.xlu0 %1193, %v716
      %v1195 = vpop.permute.xlu0 %1194
      %1198 = vset.pattern.permute.xlu0 0
      %1199 = vperm.xlu0 %1198, %v717
      %v1200 = vpop.permute.xlu0 %1199
      %1203 = vset.pattern.permute.xlu0 0
      %1204 = vperm.xlu0 %1203, %v718
      %v1205 = vpop.permute.xlu0 %1204
      %1208 = vset.pattern.permute.xlu0 0
      %1209 = vperm.xlu0 %1208, %v719
      %v1210 = vpop.permute.xlu0 %1209
      %1213 = vset.pattern.permute.xlu0 0
      %1214 = vperm.xlu0 %1213, %v720
      %v1215 = vpop.permute.xlu0 %1214
      %1218 = vset.pattern.permute.xlu0 0
      %1219 = vperm.xlu0 %1218, %v721
      %v1220 = vpop.permute.xlu0 %1219
      %1223 = vset.pattern.permute.xlu0 0
      %1224 = vperm.xlu0 %1223, %v722
      %v1225 = vpop.permute.xlu0 %1224
      %1228 = vset.pattern.permute.xlu0 0
      %1229 = vperm.xlu0 %1228, %v723
      %v1230 = vpop.permute.xlu0 %1229
      %1233 = vset.pattern.permute.xlu0 0
      %1234 = vperm.xlu0 %1233, %v724
      %v1235 = vpop.permute.xlu0 %1234
      %1238 = vset.pattern.permute.xlu0 0
      %1239 = vperm.xlu0 %1238, %v725
      %v1240 = vpop.permute.xlu0 %1239
      %1243 = vset.pattern.permute.xlu0 0
      %1244 = vperm.xlu0 %1243, %v726
      %v1245 = vpop.permute.xlu0 %1244
      %1248 = vset.pattern.permute.xlu0 0
      %1249 = vperm.xlu0 %1248, %v727
      %v1250 = vpop.permute.xlu0 %1249
      %1253 = vset.pattern.permute.xlu0 0
      %1254 = vperm.xlu0 %1253, %v728
      %v1255 = vpop.permute.xlu0 %1254
      %1258 = vset.pattern.permute.xlu0 0
      %1259 = vperm.xlu0 %1258, %v729
      %v1260 = vpop.permute.xlu0 %1259
      %1263 = vset.pattern.permute.xlu0 0
      %1264 = vperm.xlu0 %1263, %v730
      %v1265 = vpop.permute.xlu0 %1264
      %1268 = vset.pattern.permute.xlu0 0
      %1269 = vperm.xlu0 %1268, %v731
      %v1270 = vpop.permute.xlu0 %1269
      %1273 = vset.pattern.permute.xlu0 0
      %1274 = vperm.xlu0 %1273, %v732
      %v1275 = vpop.permute.xlu0 %1274
      %1278 = vset.pattern.permute.xlu0 0
      %1279 = vperm.xlu0 %1278, %v733
      %v1280 = vpop.permute.xlu0 %1279
      %1283 = vset.pattern.permute.xlu0 0
      %1284 = vperm.xlu0 %1283, %v734
      %v1285 = vpop.permute.xlu0 %1284
      %1288 = vset.pattern.permute.xlu0 0
      %1289 = vperm.xlu0 %1288, %v735
      %v1290 = vpop.permute.xlu0 %1289
      %1293 = vset.pattern.permute.xlu0 0
      %1294 = vperm.xlu0 %1293, %v736
      %v1295 = vpop.permute.xlu0 %1294
      %1298 = vset.pattern.permute.xlu0 0
      %1299 = vperm.xlu0 %1298, %v737
      %v1300 = vpop.permute.xlu0 %1299
      %1303 = vset.pattern.permute.xlu0 0
      %1304 = vperm.xlu0 %1303, %v738
      %v1305 = vpop.permute.xlu0 %1304
      %1308 = vset.pattern.permute.xlu0 0
      %1309 = vperm.xlu0 %1308, %v739
      %v1310 = vpop.permute.xlu0 %1309
      %1313 = vset.pattern.permute.xlu0 0
      %1314 = vperm.xlu0 %1313, %v740
      %v1315 = vpop.permute.xlu0 %1314
      %1318 = vset.pattern.permute.xlu0 0
      %1319 = vperm.xlu0 %1318, %v741
      %v1320 = vpop.permute.xlu0 %1319
      %1323 = vset.pattern.permute.xlu0 0
      %1324 = vperm.xlu0 %1323, %v742
      %v1325 = vpop.permute.xlu0 %1324
      %1328 = vset.pattern.permute.xlu0 0
      %1329 = vperm.xlu0 %1328, %v743
      %v1330 = vpop.permute.xlu0 %1329
      %1333 = vset.pattern.permute.xlu0 0
      %1334 = vperm.xlu0 %1333, %v744
      %v1335 = vpop.permute.xlu0 %1334
      %1338 = vset.pattern.permute.xlu0 0
      %1339 = vperm.xlu0 %1338, %v745
      %v1340 = vpop.permute.xlu0 %1339
      %1343 = vset.pattern.permute.xlu0 0
      %1344 = vperm.xlu0 %1343, %v746
      %v1345 = vpop.permute.xlu0 %1344
      %1348 = vset.pattern.permute.xlu0 0
      %1349 = vperm.xlu0 %1348, %v747
      %v1350 = vpop.permute.xlu0 %1349
      %1353 = vset.pattern.permute.xlu0 0
      %1354 = vperm.xlu0 %1353, %v748
      %v1355 = vpop.permute.xlu0 %1354
      %1358 = vset.pattern.permute.xlu0 0
      %1359 = vperm.xlu0 %1358, %v749
      %v1360 = vpop.permute.xlu0 %1359
      %1363 = vset.pattern.permute.xlu0 0
      %1364 = vperm.xlu0 %1363, %v750
      %v1365 = vpop.permute.xlu0 %1364
      %1368 = vset.pattern.permute.xlu0 0
      %1369 = vperm.xlu0 %1368, %v751
      %v1370 = vpop.permute.xlu0 %1369
      %1373 = vset.pattern.permute.xlu0 0
      %1374 = vperm.xlu0 %1373, %v752
      %v1375 = vpop.permute.xlu0 %1374
      %1378 = vset.pattern.permute.xlu0 0
      %1379 = vperm.xlu0 %1378, %v753
      %v1380 = vpop.permute.xlu0 %1379
      %1383 = vset.pattern.permute.xlu0 0
      %1384 = vperm.xlu0 %1383, %v754
      %v1385 = vpop.permute.xlu0 %1384
      %1388 = vset.pattern.permute.xlu0 0
      %1389 = vperm.xlu0 %1388, %v755
      %v1390 = vpop.permute.xlu0 %1389
      %1393 = vset.pattern.permute.xlu0 0
      %1394 = vperm.xlu0 %1393, %v756
      %v1395 = vpop.permute.xlu0 %1394
      %v1397 = vadd.f32 %v501, %v760
      %v1398 = vadd.f32 %v502, %v765
      %v1399 = vadd.f32 %v503, %v770
      %v1400 = vadd.f32 %v504, %v775
      %v1401 = vadd.f32 %v505, %v780
      %v1402 = vadd.f32 %v506, %v785
      %v1403 = vadd.f32 %v507, %v790
      %v1404 = vadd.f32 %v508, %v795
      %v1405 = vadd.f32 %v509, %v800
      %v1406 = vadd.f32 %v510, %v805
      %v1407 = vadd.f32 %v511, %v810
      %v1408 = vadd.f32 %v512, %v815
      %v1409 = vadd.f32 %v513, %v820
      %v1410 = vadd.f32 %v514, %v825
      %v1411 = vadd.f32 %v515, %v830
      %v1412 = vadd.f32 %v516, %v835
      %v1413 = vadd.f32 %v517, %v840
      %v1414 = vadd.f32 %v518, %v845
      %v1415 = vadd.f32 %v519, %v850
      %v1416 = vadd.f32 %v520, %v855
      %v1417 = vadd.f32 %v521, %v860
      %v1418 = vadd.f32 %v522, %v865
      %v1419 = vadd.f32 %v523, %v870
      %v1420 = vadd.f32 %v524, %v875
      %v1421 = vadd.f32 %v525, %v880
      %v1422 = vadd.f32 %v526, %v885
      %v1423 = vadd.f32 %v527, %v890
      %v1424 = vadd.f32 %v528, %v895
      %v1425 = vadd.f32 %v529, %v900
      %v1426 = vadd.f32 %v530, %v905
      %v1427 = vadd.f32 %v531, %v910
      %v1428 = vadd.f32 %v532, %v915
      %v1429 = vadd.f32 %v533, %v920
      %v1430 = vadd.f32 %v534, %v925
      %v1431 = vadd.f32 %v535, %v930
      %v1432 = vadd.f32 %v536, %v935
      %v1433 = vadd.f32 %v537, %v940
      %v1434 = vadd.f32 %v538, %v945
      %v1435 = vadd.f32 %v539, %v950
      %v1436 = vadd.f32 %v540, %v955
      %v1437 = vadd.f32 %v541, %v960
      %v1438 = vadd.f32 %v542, %v965
      %v1439 = vadd.f32 %v543, %v970
      %v1440 = vadd.f32 %v544, %v975
      %v1441 = vadd.f32 %v545, %v980
      %v1442 = vadd.f32 %v546, %v985
      %v1443 = vadd.f32 %v547, %v990
      %v1444 = vadd.f32 %v548, %v995
      %v1445 = vadd.f32 %v549, %v1000
      %v1446 = vadd.f32 %v550, %v1005
      %v1447 = vadd.f32 %v551, %v1010
      %v1448 = vadd.f32 %v552, %v1015
      %v1449 = vadd.f32 %v553, %v1020
      %v1450 = vadd.f32 %v554, %v1025
      %v1451 = vadd.f32 %v555, %v1030
      %v1452 = vadd.f32 %v556, %v1035
      %v1453 = vadd.f32 %v557, %v1040
      %v1454 = vadd.f32 %v558, %v1045
      %v1455 = vadd.f32 %v559, %v1050
      %v1456 = vadd.f32 %v560, %v1055
      %v1457 = vadd.f32 %v561, %v1060
      %v1458 = vadd.f32 %v562, %v1065
      %v1459 = vadd.f32 %v563, %v1070
      %v1460 = vadd.f32 %v564, %v1075
      %v1461 = vadd.f32 %v565, %v1080
      %v1462 = vadd.f32 %v566, %v1085
      %v1463 = vadd.f32 %v567, %v1090
      %v1464 = vadd.f32 %v568, %v1095
      %v1465 = vadd.f32 %v569, %v1100
      %v1466 = vadd.f32 %v570, %v1105
      %v1467 = vadd.f32 %v571, %v1110
      %v1468 = vadd.f32 %v572, %v1115
      %v1469 = vadd.f32 %v573, %v1120
      %v1470 = vadd.f32 %v574, %v1125
      %v1471 = vadd.f32 %v575, %v1130
      %v1472 = vadd.f32 %v576, %v1135
      %v1473 = vadd.f32 %v577, %v1140
      %v1474 = vadd.f32 %v578, %v1145
      %v1475 = vadd.f32 %v579, %v1150
      %v1476 = vadd.f32 %v580, %v1155
      %v1477 = vadd.f32 %v581, %v1160
      %v1478 = vadd.f32 %v582, %v1165
      %v1479 = vadd.f32 %v583, %v1170
      %v1480 = vadd.f32 %v584, %v1175
      %v1481 = vadd.f32 %v585, %v1180
      %v1482 = vadd.f32 %v586, %v1185
      %v1483 = vadd.f32 %v587, %v1190
      %v1484 = vadd.f32 %v588, %v1195
      %v1485 = vadd.f32 %v589, %v1200
      %v1486 = vadd.f32 %v590, %v1205
      %v1487 = vadd.f32 %v591, %v1210
      %v1488 = vadd.f32 %v592, %v1215
      %v1489 = vadd.f32 %v593, %v1220
      %v1490 = vadd.f32 %v594, %v1225
      %v1491 = vadd.f32 %v595, %v1230
      %v1492 = vadd.f32 %v596, %v1235
      %v1493 = vadd.f32 %v597, %v1240
      %v1494 = vadd.f32 %v598, %v1245
      %v1495 = vadd.f32 %v599, %v1250
      %v1496 = vadd.f32 %v600, %v1255
      %v1497 = vadd.f32 %v601, %v1260
      %v1498 = vadd.f32 %v602, %v1265
      %v1499 = vadd.f32 %v603, %v1270
      %v1500 = vadd.f32 %v604, %v1275
      %v1501 = vadd.f32 %v605, %v1280
      %v1502 = vadd.f32 %v606, %v1285
      %v1503 = vadd.f32 %v607, %v1290
      %v1504 = vadd.f32 %v608, %v1295
      %v1505 = vadd.f32 %v609, %v1300
      %v1506 = vadd.f32 %v610, %v1305
      %v1507 = vadd.f32 %v611, %v1310
      %v1508 = vadd.f32 %v612, %v1315
      %v1509 = vadd.f32 %v613, %v1320
      %v1510 = vadd.f32 %v614, %v1325
      %v1511 = vadd.f32 %v615, %v1330
      %v1512 = vadd.f32 %v616, %v1335
      %v1513 = vadd.f32 %v617, %v1340
      %v1514 = vadd.f32 %v618, %v1345
      %v1515 = vadd.f32 %v619, %v1350
      %v1516 = vadd.f32 %v620, %v1355
      %v1517 = vadd.f32 %v621, %v1360
      %v1518 = vadd.f32 %v622, %v1365
      %v1519 = vadd.f32 %v623, %v1370
      %v1520 = vadd.f32 %v624, %v1375
      %v1521 = vadd.f32 %v625, %v1380
      %v1522 = vadd.f32 %v626, %v1385
      %v1523 = vadd.f32 %v627, %v1390
      %v1524 = vadd.f32 %v628, %v1395
      %v1525 = vld [vmem:[%s3] sm:$0x1]
      %v1527 = vperm.slane %v1525, 0
      %v1529 = vadd.f32 %v1397, %v1527
      %v1530 = vadd.f32 %v1398, %v1527
      %v1531 = vadd.f32 %v1399, %v1527
      %v1532 = vadd.f32 %v1400, %v1527
      %v1533 = vadd.f32 %v1401, %v1527
      %v1534 = vadd.f32 %v1402, %v1527
      %v1535 = vadd.f32 %v1403, %v1527
      %v1536 = vadd.f32 %v1404, %v1527
      %v1537 = vadd.f32 %v1405, %v1527
      %v1538 = vadd.f32 %v1406, %v1527
      %v1539 = vadd.f32 %v1407, %v1527
      %v1540 = vadd.f32 %v1408, %v1527
      %v1541 = vadd.f32 %v1409, %v1527
      %v1542 = vadd.f32 %v1410, %v1527
      %v1543 = vadd.f32 %v1411, %v1527
      %v1544 = vadd.f32 %v1412, %v1527
      %v1545 = vadd.f32 %v1413, %v1527
      %v1546 = vadd.f32 %v1414, %v1527
      %v1547 = vadd.f32 %v1415, %v1527
      %v1548 = vadd.f32 %v1416, %v1527
      %v1549 = vadd.f32 %v1417, %v1527
      %v1550 = vadd.f32 %v1418, %v1527
      %v1551 = vadd.f32 %v1419, %v1527
      %v1552 = vadd.f32 %v1420, %v1527
      %v1553 = vadd.f32 %v1421, %v1527
      %v1554 = vadd.f32 %v1422, %v1527
      %v1555 = vadd.f32 %v1423, %v1527
      %v1556 = vadd.f32 %v1424, %v1527
      %v1557 = vadd.f32 %v1425, %v1527
      %v1558 = vadd.f32 %v1426, %v1527
      %v1559 = vadd.f32 %v1427, %v1527
      %v1560 = vadd.f32 %v1428, %v1527
      %v1561 = vadd.f32 %v1429, %v1527
      %v1562 = vadd.f32 %v1430, %v1527
      %v1563 = vadd.f32 %v1431, %v1527
      %v1564 = vadd.f32 %v1432, %v1527
      %v1565 = vadd.f32 %v1433, %v1527
      %v1566 = vadd.f32 %v1434, %v1527
      %v1567 = vadd.f32 %v1435, %v1527
      %v1568 = vadd.f32 %v1436, %v1527
      %v1569 = vadd.f32 %v1437, %v1527
      %v1570 = vadd.f32 %v1438, %v1527
      %v1571 = vadd.f32 %v1439, %v1527
      %v1572 = vadd.f32 %v1440, %v1527
      %v1573 = vadd.f32 %v1441, %v1527
      %v1574 = vadd.f32 %v1442, %v1527
      %v1575 = vadd.f32 %v1443, %v1527
      %v1576 = vadd.f32 %v1444, %v1527
      %v1577 = vadd.f32 %v1445, %v1527
      %v1578 = vadd.f32 %v1446, %v1527
      %v1579 = vadd.f32 %v1447, %v1527
      %v1580 = vadd.f32 %v1448, %v1527
      %v1581 = vadd.f32 %v1449, %v1527
      %v1582 = vadd.f32 %v1450, %v1527
      %v1583 = vadd.f32 %v1451, %v1527
      %v1584 = vadd.f32 %v1452, %v1527
      %v1585 = vadd.f32 %v1453, %v1527
      %v1586 = vadd.f32 %v1454, %v1527
      %v1587 = vadd.f32 %v1455, %v1527
      %v1588 = vadd.f32 %v1456, %v1527
      %v1589 = vadd.f32 %v1457, %v1527
      %v1590 = vadd.f32 %v1458, %v1527
      %v1591 = vadd.f32 %v1459, %v1527
      %v1592 = vadd.f32 %v1460, %v1527
      %v1593 = vadd.f32 %v1461, %v1527
      %v1594 = vadd.f32 %v1462, %v1527
      %v1595 = vadd.f32 %v1463, %v1527
      %v1596 = vadd.f32 %v1464, %v1527
      %v1597 = vadd.f32 %v1465, %v1527
      %v1598 = vadd.f32 %v1466, %v1527
      %v1599 = vadd.f32 %v1467, %v1527
      %v1600 = vadd.f32 %v1468, %v1527
      %v1601 = vadd.f32 %v1469, %v1527
      %v1602 = vadd.f32 %v1470, %v1527
      %v1603 = vadd.f32 %v1471, %v1527
      %v1604 = vadd.f32 %v1472, %v1527
      %v1605 = vadd.f32 %v1473, %v1527
      %v1606 = vadd.f32 %v1474, %v1527
      %v1607 = vadd.f32 %v1475, %v1527
      %v1608 = vadd.f32 %v1476, %v1527
      %v1609 = vadd.f32 %v1477, %v1527
      %v1610 = vadd.f32 %v1478, %v1527
      %v1611 = vadd.f32 %v1479, %v1527
      %v1612 = vadd.f32 %v1480, %v1527
      %v1613 = vadd.f32 %v1481, %v1527
      %v1614 = vadd.f32 %v1482, %v1527
      %v1615 = vadd.f32 %v1483, %v1527
      %v1616 = vadd.f32 %v1484, %v1527
      %v1617 = vadd.f32 %v1485, %v1527
      %v1618 = vadd.f32 %v1486, %v1527
      %v1619 = vadd.f32 %v1487, %v1527
      %v1620 = vadd.f32 %v1488, %v1527
      %v1621 = vadd.f32 %v1489, %v1527
      %v1622 = vadd.f32 %v1490, %v1527
      %v1623 = vadd.f32 %v1491, %v1527
      %v1624 = vadd.f32 %v1492, %v1527
      %v1625 = vadd.f32 %v1493, %v1527
      %v1626 = vadd.f32 %v1494, %v1527
      %v1627 = vadd.f32 %v1495, %v1527
      %v1628 = vadd.f32 %v1496, %v1527
      %v1629 = vadd.f32 %v1497, %v1527
      %v1630 = vadd.f32 %v1498, %v1527
      %v1631 = vadd.f32 %v1499, %v1527
      %v1632 = vadd.f32 %v1500, %v1527
      %v1633 = vadd.f32 %v1501, %v1527
      %v1634 = vadd.f32 %v1502, %v1527
      %v1635 = vadd.f32 %v1503, %v1527
      %v1636 = vadd.f32 %v1504, %v1527
      %v1637 = vadd.f32 %v1505, %v1527
      %v1638 = vadd.f32 %v1506, %v1527
      %v1639 = vadd.f32 %v1507, %v1527
      %v1640 = vadd.f32 %v1508, %v1527
      %v1641 = vadd.f32 %v1509, %v1527
      %v1642 = vadd.f32 %v1510, %v1527
      %v1643 = vadd.f32 %v1511, %v1527
      %v1644 = vadd.f32 %v1512, %v1527
      %v1645 = vadd.f32 %v1513, %v1527
      %v1646 = vadd.f32 %v1514, %v1527
      %v1647 = vadd.f32 %v1515, %v1527
      %v1648 = vadd.f32 %v1516, %v1527
      %v1649 = vadd.f32 %v1517, %v1527
      %v1650 = vadd.f32 %v1518, %v1527
      %v1651 = vadd.f32 %v1519, %v1527
      %v1652 = vadd.f32 %v1520, %v1527
      %v1653 = vadd.f32 %v1521, %v1527
      %v1654 = vadd.f32 %v1522, %v1527
      %v1655 = vadd.f32 %v1523, %v1527
      %v1656 = vadd.f32 %v1524, %v1527
      %vm1657 = vcmask 23552
      %1658 = vst.msk [vmem:[%s243] sm:$0xff] %vm1657, %v1529
      %1659 = vst.msk [vmem:[%s243 + $0x8] sm:$0xff] %vm1657, %v1530
      %1660 = vst.msk [vmem:[%s243 + $0x10] sm:$0xff] %vm1657, %v1531
      %1661 = vst.msk [vmem:[%s243 + $0x18] sm:$0xff] %vm1657, %v1532
      %1662 = vst.msk [vmem:[%s243 + $0x20] sm:$0xff] %vm1657, %v1533
      %1663 = vst.msk [vmem:[%s243 + $0x28] sm:$0xff] %vm1657, %v1534
      %1664 = vst.msk [vmem:[%s243 + $0x30] sm:$0xff] %vm1657, %v1535
      %1665 = vst.msk [vmem:[%s243 + $0x38] sm:$0xff] %vm1657, %v1536
      %1666 = vst.msk [vmem:[%s243 + $0x40] sm:$0xff] %vm1657, %v1537
      %1667 = vst.msk [vmem:[%s243 + $0x48] sm:$0xff] %vm1657, %v1538
      %1668 = vst.msk [vmem:[%s243 + $0x50] sm:$0xff] %vm1657, %v1539
      %1669 = vst.msk [vmem:[%s243 + $0x58] sm:$0xff] %vm1657, %v1540
      %1670 = vst.msk [vmem:[%s243 + $0x60] sm:$0xff] %vm1657, %v1541
      %1671 = vst.msk [vmem:[%s243 + $0x68] sm:$0xff] %vm1657, %v1542
      %1672 = vst.msk [vmem:[%s243 + $0x70] sm:$0xff] %vm1657, %v1543
      %1673 = vst.msk [vmem:[%s243 + $0x78] sm:$0xff] %vm1657, %v1544
      %1674 = vst.msk [vmem:[%s243 + $0x80] sm:$0xff] %vm1657, %v1545
      %1675 = vst.msk [vmem:[%s243 + $0x88] sm:$0xff] %vm1657, %v1546
      %1676 = vst.msk [vmem:[%s243 + $0x90] sm:$0xff] %vm1657, %v1547
      %1677 = vst.msk [vmem:[%s243 + $0x98] sm:$0xff] %vm1657, %v1548
      %1678 = vst.msk [vmem:[%s243 + $0xa0] sm:$0xff] %vm1657, %v1549
      %1679 = vst.msk [vmem:[%s243 + $0xa8] sm:$0xff] %vm1657, %v1550
      %1680 = vst.msk [vmem:[%s243 + $0xb0] sm:$0xff] %vm1657, %v1551
      %1681 = vst.msk [vmem:[%s243 + $0xb8] sm:$0xff] %vm1657, %v1552
      %1682 = vst.msk [vmem:[%s243 + $0xc0] sm:$0xff] %vm1657, %v1553
      %1683 = vst.msk [vmem:[%s243 + $0xc8] sm:$0xff] %vm1657, %v1554
      %1684 = vst.msk [vmem:[%s243 + $0xd0] sm:$0xff] %vm1657, %v1555
      %1685 = vst.msk [vmem:[%s243 + $0xd8] sm:$0xff] %vm1657, %v1556
      %1686 = vst.msk [vmem:[%s243 + $0xe0] sm:$0xff] %vm1657, %v1557
      %1687 = vst.msk [vmem:[%s243 + $0xe8] sm:$0xff] %vm1657, %v1558
      %1688 = vst.msk [vmem:[%s243 + $0xf0] sm:$0xff] %vm1657, %v1559
      %1689 = vst.msk [vmem:[%s243 + $0xf8] sm:$0xff] %vm1657, %v1560
      %1690 = vst.msk [vmem:[%s243 + $0x100] sm:$0xff] %vm1657, %v1561
      %1691 = vst.msk [vmem:[%s243 + $0x108] sm:$0xff] %vm1657, %v1562
      %1692 = vst.msk [vmem:[%s243 + $0x110] sm:$0xff] %vm1657, %v1563
      %1693 = vst.msk [vmem:[%s243 + $0x118] sm:$0xff] %vm1657, %v1564
      %1694 = vst.msk [vmem:[%s243 + $0x120] sm:$0xff] %vm1657, %v1565
      %1695 = vst.msk [vmem:[%s243 + $0x128] sm:$0xff] %vm1657, %v1566
      %1696 = vst.msk [vmem:[%s243 + $0x130] sm:$0xff] %vm1657, %v1567
      %1697 = vst.msk [vmem:[%s243 + $0x138] sm:$0xff] %vm1657, %v1568
      %1698 = vst.msk [vmem:[%s243 + $0x140] sm:$0xff] %vm1657, %v1569
      %1699 = vst.msk [vmem:[%s243 + $0x148] sm:$0xff] %vm1657, %v1570
      %1700 = vst.msk [vmem:[%s243 + $0x150] sm:$0xff] %vm1657, %v1571
      %1701 = vst.msk [vmem:[%s243 + $0x158] sm:$0xff] %vm1657, %v1572
      %1702 = vst.msk [vmem:[%s243 + $0x160] sm:$0xff] %vm1657, %v1573
      %1703 = vst.msk [vmem:[%s243 + $0x168] sm:$0xff] %vm1657, %v1574
      %1704 = vst.msk [vmem:[%s243 + $0x170] sm:$0xff] %vm1657, %v1575
      %1705 = vst.msk [vmem:[%s243 + $0x178] sm:$0xff] %vm1657, %v1576
      %1706 = vst.msk [vmem:[%s243 + $0x180] sm:$0xff] %vm1657, %v1577
      %1707 = vst.msk [vmem:[%s243 + $0x188] sm:$0xff] %vm1657, %v1578
      %1708 = vst.msk [vmem:[%s243 + $0x190] sm:$0xff] %vm1657, %v1579
      %1709 = vst.msk [vmem:[%s243 + $0x198] sm:$0xff] %vm1657, %v1580
      %1710 = vst.msk [vmem:[%s243 + $0x1a0] sm:$0xff] %vm1657, %v1581
      %1711 = vst.msk [vmem:[%s243 + $0x1a8] sm:$0xff] %vm1657, %v1582
      %1712 = vst.msk [vmem:[%s243 + $0x1b0] sm:$0xff] %vm1657, %v1583
      %1713 = vst.msk [vmem:[%s243 + $0x1b8] sm:$0xff] %vm1657, %v1584
      %1714 = vst.msk [vmem:[%s243 + $0x1c0] sm:$0xff] %vm1657, %v1585
      %1715 = vst.msk [vmem:[%s243 + $0x1c8] sm:$0xff] %vm1657, %v1586
      %1716 = vst.msk [vmem:[%s243 + $0x1d0] sm:$0xff] %vm1657, %v1587
      %1717 = vst.msk [vmem:[%s243 + $0x1d8] sm:$0xff] %vm1657, %v1588
      %1718 = vst.msk [vmem:[%s243 + $0x1e0] sm:$0xff] %vm1657, %v1589
      %1719 = vst.msk [vmem:[%s243 + $0x1e8] sm:$0xff] %vm1657, %v1590
      %1720 = vst.msk [vmem:[%s243 + $0x1f0] sm:$0xff] %vm1657, %v1591
      %1721 = vst.msk [vmem:[%s243 + $0x1f8] sm:$0xff] %vm1657, %v1592
      %1722 = vst.msk [vmem:[%s243 + $0x200] sm:$0xff] %vm1657, %v1593
      %1723 = vst.msk [vmem:[%s243 + $0x208] sm:$0xff] %vm1657, %v1594
      %1724 = vst.msk [vmem:[%s243 + $0x210] sm:$0xff] %vm1657, %v1595
      %1725 = vst.msk [vmem:[%s243 + $0x218] sm:$0xff] %vm1657, %v1596
      %1726 = vst.msk [vmem:[%s243 + $0x220] sm:$0xff] %vm1657, %v1597
      %1727 = vst.msk [vmem:[%s243 + $0x228] sm:$0xff] %vm1657, %v1598
      %1728 = vst.msk [vmem:[%s243 + $0x230] sm:$0xff] %vm1657, %v1599
      %1729 = vst.msk [vmem:[%s243 + $0x238] sm:$0xff] %vm1657, %v1600
      %1730 = vst.msk [vmem:[%s243 + $0x240] sm:$0xff] %vm1657, %v1601
      %1731 = vst.msk [vmem:[%s243 + $0x248] sm:$0xff] %vm1657, %v1602
      %1732 = vst.msk [vmem:[%s243 + $0x250] sm:$0xff] %vm1657, %v1603
      %1733 = vst.msk [vmem:[%s243 + $0x258] sm:$0xff] %vm1657, %v1604
      %1734 = vst.msk [vmem:[%s243 + $0x260] sm:$0xff] %vm1657, %v1605
      %1735 = vst.msk [vmem:[%s243 + $0x268] sm:$0xff] %vm1657, %v1606
      %1736 = vst.msk [vmem:[%s243 + $0x270] sm:$0xff] %vm1657, %v1607
      %1737 = vst.msk [vmem:[%s243 + $0x278] sm:$0xff] %vm1657, %v1608
      %1738 = vst.msk [vmem:[%s243 + $0x280] sm:$0xff] %vm1657, %v1609
      %1739 = vst.msk [vmem:[%s243 + $0x288] sm:$0xff] %vm1657, %v1610
      %1740 = vst.msk [vmem:[%s243 + $0x290] sm:$0xff] %vm1657, %v1611
      %1741 = vst.msk [vmem:[%s243 + $0x298] sm:$0xff] %vm1657, %v1612
      %1742 = vst.msk [vmem:[%s243 + $0x2a0] sm:$0xff] %vm1657, %v1613
      %1743 = vst.msk [vmem:[%s243 + $0x2a8] sm:$0xff] %vm1657, %v1614
      %1744 = vst.msk [vmem:[%s243 + $0x2b0] sm:$0xff] %vm1657, %v1615
      %1745 = vst.msk [vmem:[%s243 + $0x2b8] sm:$0xff] %vm1657, %v1616
      %1746 = vst.msk [vmem:[%s243 + $0x2c0] sm:$0xff] %vm1657, %v1617
      %1747 = vst.msk [vmem:[%s243 + $0x2c8] sm:$0xff] %vm1657, %v1618
      %1748 = vst.msk [vmem:[%s243 + $0x2d0] sm:$0xff] %vm1657, %v1619
      %1749 = vst.msk [vmem:[%s243 + $0x2d8] sm:$0xff] %vm1657, %v1620
      %1750 = vst.msk [vmem:[%s243 + $0x2e0] sm:$0xff] %vm1657, %v1621
      %1751 = vst.msk [vmem:[%s243 + $0x2e8] sm:$0xff] %vm1657, %v1622
      %1752 = vst.msk [vmem:[%s243 + $0x2f0] sm:$0xff] %vm1657, %v1623
      %1753 = vst.msk [vmem:[%s243 + $0x2f8] sm:$0xff] %vm1657, %v1624
      %1754 = vst.msk [vmem:[%s243 + $0x300] sm:$0xff] %vm1657, %v1625
      %1755 = vst.msk [vmem:[%s243 + $0x308] sm:$0xff] %vm1657, %v1626
      %1756 = vst.msk [vmem:[%s243 + $0x310] sm:$0xff] %vm1657, %v1627
      %1757 = vst.msk [vmem:[%s243 + $0x318] sm:$0xff] %vm1657, %v1628
      %1758 = vst.msk [vmem:[%s243 + $0x320] sm:$0xff] %vm1657, %v1629
      %1759 = vst.msk [vmem:[%s243 + $0x328] sm:$0xff] %vm1657, %v1630
      %1760 = vst.msk [vmem:[%s243 + $0x330] sm:$0xff] %vm1657, %v1631
      %1761 = vst.msk [vmem:[%s243 + $0x338] sm:$0xff] %vm1657, %v1632
      %1762 = vst.msk [vmem:[%s243 + $0x340] sm:$0xff] %vm1657, %v1633
      %1763 = vst.msk [vmem:[%s243 + $0x348] sm:$0xff] %vm1657, %v1634
      %1764 = vst.msk [vmem:[%s243 + $0x350] sm:$0xff] %vm1657, %v1635
      %1765 = vst.msk [vmem:[%s243 + $0x358] sm:$0xff] %vm1657, %v1636
      %1766 = vst.msk [vmem:[%s243 + $0x360] sm:$0xff] %vm1657, %v1637
      %1767 = vst.msk [vmem:[%s243 + $0x368] sm:$0xff] %vm1657, %v1638
      %1768 = vst.msk [vmem:[%s243 + $0x370] sm:$0xff] %vm1657, %v1639
      %1769 = vst.msk [vmem:[%s243 + $0x378] sm:$0xff] %vm1657, %v1640
      %1770 = vst.msk [vmem:[%s243 + $0x380] sm:$0xff] %vm1657, %v1641
      %1771 = vst.msk [vmem:[%s243 + $0x388] sm:$0xff] %vm1657, %v1642
      %1772 = vst.msk [vmem:[%s243 + $0x390] sm:$0xff] %vm1657, %v1643
      %1773 = vst.msk [vmem:[%s243 + $0x398] sm:$0xff] %vm1657, %v1644
      %1774 = vst.msk [vmem:[%s243 + $0x3a0] sm:$0xff] %vm1657, %v1645
      %1775 = vst.msk [vmem:[%s243 + $0x3a8] sm:$0xff] %vm1657, %v1646
      %1776 = vst.msk [vmem:[%s243 + $0x3b0] sm:$0xff] %vm1657, %v1647
      %1777 = vst.msk [vmem:[%s243 + $0x3b8] sm:$0xff] %vm1657, %v1648
      %1778 = vst.msk [vmem:[%s243 + $0x3c0] sm:$0xff] %vm1657, %v1649
      %1779 = vst.msk [vmem:[%s243 + $0x3c8] sm:$0xff] %vm1657, %v1650
      %1780 = vst.msk [vmem:[%s243 + $0x3d0] sm:$0xff] %vm1657, %v1651
      %1781 = vst.msk [vmem:[%s243 + $0x3d8] sm:$0xff] %vm1657, %v1652
      %1782 = vst.msk [vmem:[%s243 + $0x3e0] sm:$0xff] %vm1657, %v1653
      %1783 = vst.msk [vmem:[%s243 + $0x3e8] sm:$0xff] %vm1657, %v1654
      %1784 = vst.msk [vmem:[%s243 + $0x3f0] sm:$0xff] %vm1657, %v1655
      %1785 = vst.msk [vmem:[%s243 + $0x3f8] sm:$0xff] %vm1657, %v1656
      %s1786 = smul.u32 128, %s15
      %p1787 = scmp.lt.s32.totalorder %s1786, 1023
      %s1788 = scalar_select %p1787, %s1786, 1023
      %s1789 = smul.addr %s1788, 8
      %s1790 = scalar_lea.vmem %s4, %s1789
      // Predicated region
      $region37: #{stacked_edvr_forward.17} parent=35 // pred_check
        %p1791 = pneg %p132
      $region38: #{stacked_edvr_forward.17} parent=35 // pred_check_branch
        %1793 = sbr.rel (%p1791) target = $region40
      $region39: #{stacked_edvr_forward.17} parent=35 // pred_region
        %s1794 = smul.u32 128, %s15
      $region40: #{stacked_edvr_forward.17} parent=35 // pred_fallthru
        _
    $region36: #{stacked_edvr_forward.17} parent=5 // pred_fallthru
      _
    %p1795 = scmp.le.s32.totalorder 2, %s10
    // Predicated region
    $region41: #{stacked_edvr_forward.17} parent=5 // pred_check
      %p1796 = pneg %p1795
    $region42: #{stacked_edvr_forward.17} parent=5 // pred_check_branch
      %1798 = sbr.rel (%p1796) target = $region44
    $region43: #{stacked_edvr_forward.17} parent=5 // pred_region
      %s1799 = ssub.s32 %s10, 2
      // Predicated region
      $region45: #{stacked_edvr_forward.17} parent=43 // pred_check
        %p1800 = pneg %p138
      $region46: #{stacked_edvr_forward.17} parent=43 // pred_check_branch
        %1802 = sbr.rel (%p1800) target = $region48
      $region47: #{stacked_edvr_forward.17} parent=43 // pred_region
        %s1803 = smul.u32 128, %s16
        %p1804 = scmp.lt.s32.totalorder %s1803, 1023
        %s1805 = scalar_select %p1804, %s1803, 1023
        %s1806 = smul.addr %s1805, 8
        %s1807 = scalar_lea.vmem %s4, %s1806
      $region48: #{stacked_edvr_forward.17} parent=43 // pred_fallthru
        _
    $region44: #{stacked_edvr_forward.17} parent=5 // pred_fallthru
      _
  $region6: #{stacked_edvr_forward.17} parent=0 // loop_footer
    %s14 = sadd.s32 1, %s10
  $region7: #{stacked_edvr_forward.17} parent=0 // loop_footer_branch
    %9 = sbr.rel target = $region3
  $region8: #{stacked_edvr_forward.17} parent=0 // loop_exit
    _

</llo_original>
